<compile_context>
chip_gen: v7x
topology: tpu7x:2x2x1
jax: 0.10.0
libtpu: 0.0.40
codegen_flags: <defaults>
</compile_context>

<pallas_src>
import math

import jax
import jax.numpy as jnp
from jax.experimental import pallas as pl
from jax.experimental.pallas import tpu as pltpu


# ---------------------------------------------------------------------------
# In-kernel helpers.  Data tensors are (BN, K, Hf, Wf) float32 values; weights
# are compact: dw taps (9, K, 1, 1), pointwise (Cin, Cout, 1, 1), bias (K, 1, 1).
# ---------------------------------------------------------------------------
def _relu(v):
    return jnp.maximum(v, 0.0)


def _sigmoid(v):
    # 0.5*(tanh(v/2)+1) == sigmoid(v): single EUP op, no VALU divide, no inf
    # intermediates for large negative v.
    return 0.5 * (jnp.tanh(0.5 * v) + 1.0)


def _pad1(x):
    """Zero-pad a (BN, K, H, W) map by 1 on each side of the last two dims."""
    bn, k, h, w = x.shape
    zr = jnp.zeros((bn, k, 1, w), x.dtype)
    x = jnp.concatenate([zr, x, zr], axis=2)          # (BN, K, H+2, W)
    zc = jnp.zeros((bn, k, h + 2, 1), x.dtype)
    x = jnp.concatenate([zc, x, zc], axis=3)          # (BN, K, H+2, W+2)
    return x


def _dwconv3x3(x, w_ref, b_ref):
    """Depthwise 3x3, stride 1, 'same' zero padding.

    x: (BN, K, H, W); w_ref: (9, K, 1, 1) compact taps; b_ref: (K, 1, 1) bias.
    """
    bn, k, h, w = x.shape
    xp = _pad1(x)
    taps = w_ref[...]                                     # hoisted: (9, K, 1, 1)
    acc = jnp.broadcast_to(b_ref[...], (bn, k, h, w))     # hoisted bias splat
    tap = 0
    for ki in range(3):
        for kj in range(3):
            acc = acc + taps[tap] * xp[:, :, ki:ki + h, kj:kj + w]
            tap += 1
    return acc


def _pwconv1x1(x, w_ref, b_ref):
    """1x1 conv Cin->Cout.  x: (BN,Cin,H,W); w_ref: (Cin,Cout,1,1); b_ref: (Cout,1,1).

    TODO(synk): route through the MXU (jnp.dot) when Cin/Cout are non-trivial.
    """
    bn, cin, h, w = x.shape
    cout = b_ref.shape[0]
    wt = w_ref[...]                                       # hoisted: (Cin, Cout, 1, 1)
    acc = jnp.broadcast_to(b_ref[...], (bn, cout, h, w))
    for ci in range(cin):
        acc = acc + wt[ci] * x[:, ci:ci + 1]
    return acc


def _df_attention(x, dw_w_ref, dw_b_ref, pw_w_ref, pw_b_ref):
    """channel mean/max -> concat(2ch) -> dw3x3 -> ReLU -> 1x1(2->1) -> sigmoid."""
    avg = jnp.mean(x, axis=1, keepdims=True)
    mx = jnp.max(x, axis=1, keepdims=True)
    agg = jnp.concatenate([avg, mx], axis=1)              # (BN, 2, H, W)
    a = _relu(_dwconv3x3(agg, dw_w_ref, dw_b_ref))
    a = _pwconv1x1(a, pw_w_ref, pw_b_ref)                 # (BN, 1, H, W)
    return _sigmoid(a)


# ---------------------------------------------------------------------------
# Fused frequency-domain kernel (everything between rfft2 and irfft2, plus the
# cos/sin + real/imag epilogue)
# ---------------------------------------------------------------------------
def _freq_core_kernel(
    amp_ref, pha_ref,
    a_dw_w, a_dw_b, a_pw_w, a_pw_b,
    d1_dw_w, d1_dw_b, d1_pw_w, d1_pw_b,
    p_dw_w, p_dw_b, p_pw_w, p_pw_b,
    d2_dw_w, d2_dw_b, d2_pw_w, d2_pw_b,
    real_ref, imag_ref,
):
    amp = amp_ref[...]                                    # (BN, C, Hf, Wf)
    pha = pha_ref[...]

    # dw_amp_conv: depthwise 3x3 -> ReLU -> 1x1 -> ReLU
    t = _relu(_dwconv3x3(amp, a_dw_w, a_dw_b))
    amp_fuse = _relu(_pwconv1x1(t, a_pw_w, a_pw_b))

    # df1 spatial attention over amplitude
    amp_fuse = amp_fuse * _df_attention(amp_fuse, d1_dw_w, d1_dw_b, d1_pw_w, d1_pw_b)

    # phase branch: guide = [phase, amplitude residual]
    amp_res = amp_fuse - amp
    pha_guide = jnp.concatenate([pha, amp_res], axis=1)   # (BN, 2C, Hf, Wf)
    t = _relu(_dwconv3x3(pha_guide, p_dw_w, p_dw_b))
    pha_fuse = _sigmoid(_pwconv1x1(t, p_pw_w, p_pw_b))    # (BN, C, Hf, Wf)

    # df2 attention over phase, rescale to [-pi, pi]
    pha_fuse = pha_fuse * _df_attention(pha_fuse, d2_dw_w, d2_dw_b, d2_pw_w, d2_pw_b)
    pha_fuse = pha_fuse * (2.0 * math.pi) - math.pi

    # fold the complex-reconstruction elementwise math in (cos/sin -> EUP slot)
    real_ref[...] = (amp_fuse * jnp.cos(pha_fuse)).astype(real_ref.dtype)
    imag_ref[...] = (amp_fuse * jnp.sin(pha_fuse)).astype(imag_ref.dtype)


def _pick_batch_block(n, c, hf, wf):
    """Images per grid step: amortize per-step overhead, stay within a few MiB,
    and keep >=2 grid steps when possible so v7x's two TCs both get work."""
    work_bytes = c * hf * wf * 4 * 8          # ~inputs + outputs + intermediates
    target = max(1, (4 << 20) // max(1, work_bytes))
    if n >= 2:
        target = min(target, n // 2)
    target = max(1, target)
    bn = 1
    for d in range(1, n + 1):
        if n % d == 0 and d <= target:
            bn = d
    return bn


def _freq_core_pallas(amp, pha, params):
    n, c, hf, wf = amp.shape

    # Compact f32 weights (no spatial broadcast): a few KB total, DMA'd once and
    # resident in VMEM across the whole batch grid (constant index maps).
    def dw_w(w):      # (K,1,3,3) -> (9, K, 1, 1)
        k = w.shape[0]
        return jnp.transpose(w.reshape(k, 9), (1, 0)).reshape(9, k, 1, 1).astype(jnp.float32)

    def pw_w(w):      # (Cout,Cin,1,1) -> (Cin, Cout, 1, 1)
        cout, cin = w.shape[0], w.shape[1]
        return jnp.transpose(w.reshape(cout, cin), (1, 0)).reshape(cin, cout, 1, 1).astype(jnp.float32)

    def bias(b):      # (K,) -> (K, 1, 1)
        return b.astype(jnp.float32).reshape(-1, 1, 1)

    weights = [
        dw_w(params["amp_dw_w"]), bias(params["amp_dw_b"]),
        pw_w(params["amp_pw_w"]), bias(params["amp_pw_b"]),
        dw_w(params["df1_dw_w"]), bias(params["df1_dw_b"]),
        pw_w(params["df1_pw_w"]), bias(params["df1_pw_b"]),
        dw_w(params["pha_dw_w"]), bias(params["pha_dw_b"]),
        pw_w(params["pha_pw_w"]), bias(params["pha_pw_b"]),
        dw_w(params["df2_dw_w"]), bias(params["df2_dw_b"]),
        pw_w(params["df2_pw_w"]), bias(params["df2_pw_b"]),
    ]

    bn = _pick_batch_block(n, c, hf, wf)
    grid = (n // bn,)

    data_spec = pl.BlockSpec((bn, c, hf, wf), lambda i: (i, 0, 0, 0))

    def const_spec(arr):
        nd = arr.ndim
        return pl.BlockSpec(arr.shape, lambda i, _nd=nd: (0,) * _nd)

    w_specs = [const_spec(w) for w in weights]

    out_shape = (
        jax.ShapeDtypeStruct((n, c, hf, wf), jnp.float32),
        jax.ShapeDtypeStruct((n, c, hf, wf), jnp.float32),
    )

    real, imag = pl.pallas_call(
        _freq_core_kernel,
        out_shape=out_shape,
        grid_spec=pltpu.PrefetchScalarGridSpec(
            num_scalar_prefetch=0,
            grid=grid,
            in_specs=[data_spec, data_spec] + w_specs,
            out_specs=[data_spec, data_spec],
        ),
        compiler_params=pltpu.CompilerParams(
            dimension_semantics=("parallel",),
        ),
    )(amp.astype(jnp.float32), pha.astype(jnp.float32), *weights)
    return real, imag


# ---------------------------------------------------------------------------
# Post-iFFT residual kernel: relu(|y| + x), lane-dense, row-blocked grid
# ---------------------------------------------------------------------------
def _residual_relu_kernel(y_ref, x_ref, o_ref):
    o_ref[...] = jnp.maximum(jnp.abs(y_ref[...]) + x_ref[...], 0.0).astype(o_ref.dtype)


def _residual_relu_pallas(y, x):
    n, c, h, w = x.shape
    rows, cols = n * c, h * w
    y2 = y.reshape(rows, cols).astype(jnp.float32)
    x2 = x.reshape(rows, cols).astype(jnp.float32)
    # Lane-dense layout: pad minor dim to a multiple of 128 (unmasked vld/vst).
    cols_p = ((cols + 127) // 128) * 128
    if cols_p != cols:
        y2 = jnp.pad(y2, ((0, 0), (0, cols_p - cols)))
        x2 = jnp.pad(x2, ((0, 0), (0, cols_p - cols)))
    # Row block: keep the double-buffered working set to a few MiB; must divide
    # `rows` and be a multiple of 8 (else use the full row extent).
    budget_rows = max(8, (2 << 20) // (cols_p * 4))
    br = rows
    if rows % 8 == 0:
        cands = [d for d in range(8, rows + 1, 8) if rows % d == 0 and d <= budget_rows]
        if cands:
            br = max(cands)
    out = pl.pallas_call(
        _residual_relu_kernel,
        out_shape=jax.ShapeDtypeStruct((rows, cols_p), jnp.float32),
        grid=(rows // br,),
        in_specs=[pl.BlockSpec((br, cols_p), lambda i: (i, 0)),
                  pl.BlockSpec((br, cols_p), lambda i: (i, 0))],
        out_specs=pl.BlockSpec((br, cols_p), lambda i: (i, 0)),
        compiler_params=pltpu.CompilerParams(dimension_semantics=("parallel",)),
    )(y2, x2)
    if cols_p != cols:
        out = out[:, :cols]
    return out.reshape(n, c, h, w).astype(x.dtype)


# ---------------------------------------------------------------------------
# Full forward (FFT plumbing shared between the Pallas and reference paths)
# ---------------------------------------------------------------------------
def _freq_block_forward(x, params, core_fn, residual_fn):
    n, c, h, w = x.shape
    msf = jnp.fft.rfft2(x + 1e-8, axes=(-2, -1))                    # (N, C, H, W//2+1)
    s = msf.shape[2]
    msf = jnp.concatenate([msf[:, :, s // 2 + 1:, :], msf[:, :, :s // 2 + 1, :]], axis=2)
    amp = jnp.abs(msf)
    pha = jnp.angle(msf)

    real, imag = core_fn(amp, pha, params)

    out = jax.lax.complex(real, imag)
    s2 = out.shape[2]
    out = jnp.concatenate([out[:, :, s2 // 2 - 1:, :], out[:, :, :s2 // 2 - 1, :]], axis=2)
    y = jnp.fft.irfft2(out + 1e-8, s=(h, w), axes=(-2, -1))
    return residual_fn(y, x)


def freq_block_pallas(x, params):
    return _freq_block_forward(x, params, _freq_core_pallas, _residual_relu_pallas)


# ---------------------------------------------------------------------------
# Pure-JAX reference (lax convs) for validation
# ---------------------------------------------------------------------------
def _conv2d_ref(x, w, b, groups=1, padding=1):
    out = jax.lax.conv_general_dilated(
        x, w,
        window_strides=(1, 1),
        padding=[(padding, padding), (padding, padding)],
        dimension_numbers=("NCHW", "OIHW", "NCHW"),
        feature_group_count=groups,
        precision=jax.lax.Precision.HIGHEST,
    )
    return out + b.reshape(1, -1, 1, 1)


def _freq_core_reference(amp, pha, p):
    c = amp.shape[1]
    t = jax.nn.relu(_conv2d_ref(amp, p["amp_dw_w"], p["amp_dw_b"], groups=c, padding=1))
    amp_fuse = jax.nn.relu(_conv2d_ref(t, p["amp_pw_w"], p["amp_pw_b"], groups=1, padding=0))
    agg = jnp.concatenate([jnp.mean(amp_fuse, axis=1, keepdims=True),
                           jnp.max(amp_fuse, axis=1, keepdims=True)], axis=1)
    a = jax.nn.relu(_conv2d_ref(agg, p["df1_dw_w"], p["df1_dw_b"], groups=2, padding=1))
    a = jax.nn.sigmoid(_conv2d_ref(a, p["df1_pw_w"], p["df1_pw_b"], groups=1, padding=0))
    amp_fuse = amp_fuse * a
    amp_res = amp_fuse - amp
    pha_guide = jnp.concatenate([pha, amp_res], axis=1)
    t = jax.nn.relu(_conv2d_ref(pha_guide, p["pha_dw_w"], p["pha_dw_b"], groups=2 * c, padding=1))
    pha_fuse = jax.nn.sigmoid(_conv2d_ref(t, p["pha_pw_w"], p["pha_pw_b"], groups=1, padding=0))
    agg = jnp.concatenate([jnp.mean(pha_fuse, axis=1, keepdims=True),
                           jnp.max(pha_fuse, axis=1, keepdims=True)], axis=1)
    a = jax.nn.relu(_conv2d_ref(agg, p["df2_dw_w"], p["df2_dw_b"], groups=2, padding=1))
    a = jax.nn.sigmoid(_conv2d_ref(a, p["df2_pw_w"], p["df2_pw_b"], groups=1, padding=0))
    pha_fuse = pha_fuse * a
    pha_fuse = pha_fuse * (2.0 * math.pi) - math.pi
    return amp_fuse * jnp.cos(pha_fuse), amp_fuse * jnp.sin(pha_fuse)


def freq_block_reference(x, params):
    return _freq_block_forward(
        x, params, _freq_core_reference,
        lambda y, xx: jax.nn.relu(jnp.abs(y) + xx),
    )


# ---------------------------------------------------------------------------
if __name__ == "__main__":
    key = jax.random.PRNGKey(0)
    dim, n, h, w = 4, 2, 16, 16
    keys = jax.random.split(key, 17)

    def init(k, shape, scale=0.1):
        return scale * jax.random.normal(k, shape, dtype=jnp.float32)

    params = {
        "amp_dw_w": init(keys[1], (dim, 1, 3, 3)),
        "amp_dw_b": init(keys[2], (dim,)),
        "amp_pw_w": init(keys[3], (dim, dim, 1, 1)),
        "amp_pw_b": init(keys[4], (dim,)),
        "df1_dw_w": init(keys[5], (2, 1, 3, 3)),
        "df1_dw_b": init(keys[6], (2,)),
        "df1_pw_w": init(keys[7], (1, 2, 1, 1)),
        "df1_pw_b": init(keys[8], (1,)),
        "pha_dw_w": init(keys[9], (2 * dim, 1, 3, 3)),
        "pha_dw_b": init(keys[10], (2 * dim,)),
        "pha_pw_w": init(keys[11], (dim, 2 * dim, 1, 1)),
        "pha_pw_b": init(keys[12], (dim,)),
        "df2_dw_w": init(keys[13], (2, 1, 3, 3)),
        "df2_dw_b": init(keys[14], (2,)),
        "df2_pw_w": init(keys[15], (1, 2, 1, 1)),
        "df2_pw_b": init(keys[16], (1,)),
    }
    x = jax.random.normal(keys[0], (n, dim, h, w), dtype=jnp.float32)

    out = jax.jit(freq_block_pallas)(x, params)
    out = jax.block_until_ready(out)

    ref = freq_block_reference(x, params)
    assert out.shape == (n, dim, h, w)
    assert bool(jnp.all(jnp.isfinite(out)))
    assert jnp.allclose(out, ref, atol=1e-3, rtol=1e-3), float(jnp.max(jnp.abs(out - ref)))

    print("KERNEL_OK")
</pallas_src>

<mosaic_0001>
module attributes {stable_mosaic.version = 11 : i64} {
  func.func @_freq_core_kernel(%arg0: i32, %arg1: memref<1x4x16x9xf32, #tpu.memory_space<vmem>>, %arg2: memref<1x4x16x9xf32, #tpu.memory_space<vmem>>, %arg3: memref<9x4x1x1xf32, #tpu.memory_space<vmem>>, %arg4: memref<4x1x1xf32, #tpu.memory_space<vmem>>, %arg5: memref<4x4x1x1xf32, #tpu.memory_space<vmem>>, %arg6: memref<4x1x1xf32, #tpu.memory_space<vmem>>, %arg7: memref<9x2x1x1xf32, #tpu.memory_space<vmem>>, %arg8: memref<2x1x1xf32, #tpu.memory_space<vmem>>, %arg9: memref<2x1x1x1xf32, #tpu.memory_space<vmem>>, %arg10: memref<1x1x1xf32, #tpu.memory_space<vmem>>, %arg11: memref<9x8x1x1xf32, #tpu.memory_space<vmem>>, %arg12: memref<8x1x1xf32, #tpu.memory_space<vmem>>, %arg13: memref<8x4x1x1xf32, #tpu.memory_space<vmem>>, %arg14: memref<4x1x1xf32, #tpu.memory_space<vmem>>, %arg15: memref<9x2x1x1xf32, #tpu.memory_space<vmem>>, %arg16: memref<2x1x1xf32, #tpu.memory_space<vmem>>, %arg17: memref<2x1x1x1xf32, #tpu.memory_space<vmem>>, %arg18: memref<1x1x1xf32, #tpu.memory_space<vmem>>, %arg19: memref<1x4x16x9xf32, #tpu.memory_space<vmem>>, %arg20: memref<1x4x16x9xf32, #tpu.memory_space<vmem>>) attributes {dimension_semantics = [#tpu.dimension_semantics<parallel>], iteration_bounds = array<i64: 2>, scalar_prefetch = 0 : i64, scratch_operands = 0 : i64, tpu.core_type = #tpu.core_type<tc>, window_params = [{transform_indices = @transform_0, window_bounds = array<i64: 1, 4, 16, 9>}, {transform_indices = @transform_1, window_bounds = array<i64: 1, 4, 16, 9>}, {pipeline_mode = #tpu.pipeline_mode<synchronous>, transform_indices = @transform_2, window_bounds = array<i64: 9, 4, 1, 1>}, {pipeline_mode = #tpu.pipeline_mode<synchronous>, transform_indices = @transform_3, window_bounds = array<i64: 4, 1, 1>}, {pipeline_mode = #tpu.pipeline_mode<synchronous>, transform_indices = @transform_4, window_bounds = array<i64: 4, 4, 1, 1>}, {pipeline_mode = #tpu.pipeline_mode<synchronous>, transform_indices = @transform_5, window_bounds = array<i64: 4, 1, 1>}, {pipeline_mode = #tpu.pipeline_mode<synchronous>, transform_indices = @transform_6, window_bounds = array<i64: 9, 2, 1, 1>}, {pipeline_mode = #tpu.pipeline_mode<synchronous>, transform_indices = @transform_7, window_bounds = array<i64: 2, 1, 1>}, {pipeline_mode = #tpu.pipeline_mode<synchronous>, transform_indices = @transform_8, window_bounds = array<i64: 2, 1, 1, 1>}, {pipeline_mode = #tpu.pipeline_mode<synchronous>, transform_indices = @transform_9, window_bounds = array<i64: 1, 1, 1>}, {pipeline_mode = #tpu.pipeline_mode<synchronous>, transform_indices = @transform_10, window_bounds = array<i64: 9, 8, 1, 1>}, {pipeline_mode = #tpu.pipeline_mode<synchronous>, transform_indices = @transform_11, window_bounds = array<i64: 8, 1, 1>}, {pipeline_mode = #tpu.pipeline_mode<synchronous>, transform_indices = @transform_12, window_bounds = array<i64: 8, 4, 1, 1>}, {pipeline_mode = #tpu.pipeline_mode<synchronous>, transform_indices = @transform_13, window_bounds = array<i64: 4, 1, 1>}, {pipeline_mode = #tpu.pipeline_mode<synchronous>, transform_indices = @transform_14, window_bounds = array<i64: 9, 2, 1, 1>}, {pipeline_mode = #tpu.pipeline_mode<synchronous>, transform_indices = @transform_15, window_bounds = array<i64: 2, 1, 1>}, {pipeline_mode = #tpu.pipeline_mode<synchronous>, transform_indices = @transform_16, window_bounds = array<i64: 2, 1, 1, 1>}, {pipeline_mode = #tpu.pipeline_mode<synchronous>, transform_indices = @transform_17, window_bounds = array<i64: 1, 1, 1>}, {transform_indices = @transform_18, window_bounds = array<i64: 1, 4, 16, 9>}, {transform_indices = @transform_19, window_bounds = array<i64: 1, 4, 16, 9>}]} {
    %c0 = arith.constant 0 : index
    %c0_0 = arith.constant 0 : index
    %c0_1 = arith.constant 0 : index
    %c0_2 = arith.constant 0 : index
    %0 = vector.load %arg1[%c0, %c0_0, %c0_1, %c0_2] : memref<1x4x16x9xf32, #tpu.memory_space<vmem>>, vector<1x4x16x9xf32>
    %c0_3 = arith.constant 0 : index
    %c0_4 = arith.constant 0 : index
    %c0_5 = arith.constant 0 : index
    %c0_6 = arith.constant 0 : index
    %1 = vector.load %arg2[%c0_3, %c0_4, %c0_5, %c0_6] : memref<1x4x16x9xf32, #tpu.memory_space<vmem>>, vector<1x4x16x9xf32>
    %cst = arith.constant 0.000000e+00 : f32
    %2 = vector.broadcast %cst : f32 to vector<1x4x1x9xf32>
    %3 = tpu.concatenate %2, %0, %2 in 2 : vector<1x4x1x9xf32>, vector<1x4x16x9xf32>, vector<1x4x1x9xf32> -> vector<1x4x18x9xf32>
    %cst_7 = arith.constant 0.000000e+00 : f32
    %4 = vector.broadcast %cst_7 : f32 to vector<1x4x18x1xf32>
    %5 = tpu.concatenate %4, %3, %4 in 3 : vector<1x4x18x1xf32>, vector<1x4x18x9xf32>, vector<1x4x18x1xf32> -> vector<1x4x18x11xf32>
    %c0_8 = arith.constant 0 : index
    %c0_9 = arith.constant 0 : index
    %c0_10 = arith.constant 0 : index
    %c0_11 = arith.constant 0 : index
    %6 = vector.load %arg3[%c0_8, %c0_9, %c0_10, %c0_11] : memref<9x4x1x1xf32, #tpu.memory_space<vmem>>, vector<9x4x1x1xf32>
    %c0_12 = arith.constant 0 : index
    %c0_13 = arith.constant 0 : index
    %c0_14 = arith.constant 0 : index
    %7 = vector.load %arg4[%c0_12, %c0_13, %c0_14] : memref<4x1x1xf32, #tpu.memory_space<vmem>>, vector<4x1x1xf32>
    %8 = vector.shape_cast %7 : vector<4x1x1xf32> to vector<1x4x1x1xf32>
    %9 = vector.broadcast %8 : vector<1x4x1x1xf32> to vector<1x4x16x9xf32>
    %10 = vector.extract_strided_slice %6 {offsets = [0, 0, 0, 0], sizes = [1, 4, 1, 1], strides = [1, 1, 1, 1]} : vector<9x4x1x1xf32> to vector<1x4x1x1xf32>
    %11 = vector.shape_cast %10 : vector<1x4x1x1xf32> to vector<4x1x1xf32>
    %12 = vector.extract_strided_slice %5 {offsets = [0, 0, 0, 0], sizes = [1, 4, 16, 9], strides = [1, 1, 1, 1]} : vector<1x4x18x11xf32> to vector<1x4x16x9xf32>
    %13 = vector.shape_cast %11 : vector<4x1x1xf32> to vector<1x4x1x1xf32>
    %14 = vector.broadcast %13 : vector<1x4x1x1xf32> to vector<1x4x16x9xf32>
    %15 = arith.mulf %14, %12 : vector<1x4x16x9xf32>
    %16 = arith.addf %9, %15 : vector<1x4x16x9xf32>
    %17 = vector.extract_strided_slice %6 {offsets = [1, 0, 0, 0], sizes = [1, 4, 1, 1], strides = [1, 1, 1, 1]} : vector<9x4x1x1xf32> to vector<1x4x1x1xf32>
    %18 = vector.shape_cast %17 : vector<1x4x1x1xf32> to vector<4x1x1xf32>
    %19 = vector.extract_strided_slice %5 {offsets = [0, 0, 0, 1], sizes = [1, 4, 16, 9], strides = [1, 1, 1, 1]} : vector<1x4x18x11xf32> to vector<1x4x16x9xf32>
    %20 = vector.shape_cast %18 : vector<4x1x1xf32> to vector<1x4x1x1xf32>
    %21 = vector.broadcast %20 : vector<1x4x1x1xf32> to vector<1x4x16x9xf32>
    %22 = arith.mulf %21, %19 : vector<1x4x16x9xf32>
    %23 = arith.addf %16, %22 : vector<1x4x16x9xf32>
    %24 = vector.extract_strided_slice %6 {offsets = [2, 0, 0, 0], sizes = [1, 4, 1, 1], strides = [1, 1, 1, 1]} : vector<9x4x1x1xf32> to vector<1x4x1x1xf32>
    %25 = vector.shape_cast %24 : vector<1x4x1x1xf32> to vector<4x1x1xf32>
    %26 = vector.extract_strided_slice %5 {offsets = [0, 0, 0, 2], sizes = [1, 4, 16, 9], strides = [1, 1, 1, 1]} : vector<1x4x18x11xf32> to vector<1x4x16x9xf32>
    %27 = vector.shape_cast %25 : vector<4x1x1xf32> to vector<1x4x1x1xf32>
    %28 = vector.broadcast %27 : vector<1x4x1x1xf32> to vector<1x4x16x9xf32>
    %29 = arith.mulf %28, %26 : vector<1x4x16x9xf32>
    %30 = arith.addf %23, %29 : vector<1x4x16x9xf32>
    %31 = vector.extract_strided_slice %6 {offsets = [3, 0, 0, 0], sizes = [1, 4, 1, 1], strides = [1, 1, 1, 1]} : vector<9x4x1x1xf32> to vector<1x4x1x1xf32>
    %32 = vector.shape_cast %31 : vector<1x4x1x1xf32> to vector<4x1x1xf32>
    %33 = vector.extract_strided_slice %5 {offsets = [0, 0, 1, 0], sizes = [1, 4, 16, 9], strides = [1, 1, 1, 1]} : vector<1x4x18x11xf32> to vector<1x4x16x9xf32>
    %34 = vector.shape_cast %32 : vector<4x1x1xf32> to vector<1x4x1x1xf32>
    %35 = vector.broadcast %34 : vector<1x4x1x1xf32> to vector<1x4x16x9xf32>
    %36 = arith.mulf %35, %33 : vector<1x4x16x9xf32>
    %37 = arith.addf %30, %36 : vector<1x4x16x9xf32>
    %38 = vector.extract_strided_slice %6 {offsets = [4, 0, 0, 0], sizes = [1, 4, 1, 1], strides = [1, 1, 1, 1]} : vector<9x4x1x1xf32> to vector<1x4x1x1xf32>
    %39 = vector.shape_cast %38 : vector<1x4x1x1xf32> to vector<4x1x1xf32>
    %40 = vector.extract_strided_slice %5 {offsets = [0, 0, 1, 1], sizes = [1, 4, 16, 9], strides = [1, 1, 1, 1]} : vector<1x4x18x11xf32> to vector<1x4x16x9xf32>
    %41 = vector.shape_cast %39 : vector<4x1x1xf32> to vector<1x4x1x1xf32>
    %42 = vector.broadcast %41 : vector<1x4x1x1xf32> to vector<1x4x16x9xf32>
    %43 = arith.mulf %42, %40 : vector<1x4x16x9xf32>
    %44 = arith.addf %37, %43 : vector<1x4x16x9xf32>
    %45 = vector.extract_strided_slice %6 {offsets = [5, 0, 0, 0], sizes = [1, 4, 1, 1], strides = [1, 1, 1, 1]} : vector<9x4x1x1xf32> to vector<1x4x1x1xf32>
    %46 = vector.shape_cast %45 : vector<1x4x1x1xf32> to vector<4x1x1xf32>
    %47 = vector.extract_strided_slice %5 {offsets = [0, 0, 1, 2], sizes = [1, 4, 16, 9], strides = [1, 1, 1, 1]} : vector<1x4x18x11xf32> to vector<1x4x16x9xf32>
    %48 = vector.shape_cast %46 : vector<4x1x1xf32> to vector<1x4x1x1xf32>
    %49 = vector.broadcast %48 : vector<1x4x1x1xf32> to vector<1x4x16x9xf32>
    %50 = arith.mulf %49, %47 : vector<1x4x16x9xf32>
    %51 = arith.addf %44, %50 : vector<1x4x16x9xf32>
    %52 = vector.extract_strided_slice %6 {offsets = [6, 0, 0, 0], sizes = [1, 4, 1, 1], strides = [1, 1, 1, 1]} : vector<9x4x1x1xf32> to vector<1x4x1x1xf32>
    %53 = vector.shape_cast %52 : vector<1x4x1x1xf32> to vector<4x1x1xf32>
    %54 = vector.extract_strided_slice %5 {offsets = [0, 0, 2, 0], sizes = [1, 4, 16, 9], strides = [1, 1, 1, 1]} : vector<1x4x18x11xf32> to vector<1x4x16x9xf32>
    %55 = vector.shape_cast %53 : vector<4x1x1xf32> to vector<1x4x1x1xf32>
    %56 = vector.broadcast %55 : vector<1x4x1x1xf32> to vector<1x4x16x9xf32>
    %57 = arith.mulf %56, %54 : vector<1x4x16x9xf32>
    %58 = arith.addf %51, %57 : vector<1x4x16x9xf32>
    %59 = vector.extract_strided_slice %6 {offsets = [7, 0, 0, 0], sizes = [1, 4, 1, 1], strides = [1, 1, 1, 1]} : vector<9x4x1x1xf32> to vector<1x4x1x1xf32>
    %60 = vector.shape_cast %59 : vector<1x4x1x1xf32> to vector<4x1x1xf32>
    %61 = vector.extract_strided_slice %5 {offsets = [0, 0, 2, 1], sizes = [1, 4, 16, 9], strides = [1, 1, 1, 1]} : vector<1x4x18x11xf32> to vector<1x4x16x9xf32>
    %62 = vector.shape_cast %60 : vector<4x1x1xf32> to vector<1x4x1x1xf32>
    %63 = vector.broadcast %62 : vector<1x4x1x1xf32> to vector<1x4x16x9xf32>
    %64 = arith.mulf %63, %61 : vector<1x4x16x9xf32>
    %65 = arith.addf %58, %64 : vector<1x4x16x9xf32>
    %66 = vector.extract_strided_slice %6 {offsets = [8, 0, 0, 0], sizes = [1, 4, 1, 1], strides = [1, 1, 1, 1]} : vector<9x4x1x1xf32> to vector<1x4x1x1xf32>
    %67 = vector.shape_cast %66 : vector<1x4x1x1xf32> to vector<4x1x1xf32>
    %68 = vector.extract_strided_slice %5 {offsets = [0, 0, 2, 2], sizes = [1, 4, 16, 9], strides = [1, 1, 1, 1]} : vector<1x4x18x11xf32> to vector<1x4x16x9xf32>
    %69 = vector.shape_cast %67 : vector<4x1x1xf32> to vector<1x4x1x1xf32>
    %70 = vector.broadcast %69 : vector<1x4x1x1xf32> to vector<1x4x16x9xf32>
    %71 = arith.mulf %70, %68 : vector<1x4x16x9xf32>
    %72 = arith.addf %65, %71 : vector<1x4x16x9xf32>
    %cst_15 = arith.constant 0.000000e+00 : f32
    %73 = vector.broadcast %cst_15 : f32 to vector<1x4x16x9xf32>
    %74 = arith.maximumf %72, %73 : vector<1x4x16x9xf32>
    %c0_16 = arith.constant 0 : index
    %c0_17 = arith.constant 0 : index
    %c0_18 = arith.constant 0 : index
    %c0_19 = arith.constant 0 : index
    %75 = vector.load %arg5[%c0_16, %c0_17, %c0_18, %c0_19] : memref<4x4x1x1xf32, #tpu.memory_space<vmem>>, vector<4x4x1x1xf32>
    %c0_20 = arith.constant 0 : index
    %c0_21 = arith.constant 0 : index
    %c0_22 = arith.constant 0 : index
    %76 = vector.load %arg6[%c0_20, %c0_21, %c0_22] : memref<4x1x1xf32, #tpu.memory_space<vmem>>, vector<4x1x1xf32>
    %77 = vector.shape_cast %76 : vector<4x1x1xf32> to vector<1x4x1x1xf32>
    %78 = vector.broadcast %77 : vector<1x4x1x1xf32> to vector<1x4x16x9xf32>
    %79 = vector.extract_strided_slice %75 {offsets = [0, 0, 0, 0], sizes = [1, 4, 1, 1], strides = [1, 1, 1, 1]} : vector<4x4x1x1xf32> to vector<1x4x1x1xf32>
    %80 = vector.shape_cast %79 : vector<1x4x1x1xf32> to vector<4x1x1xf32>
    %81 = vector.extract_strided_slice %74 {offsets = [0, 0, 0, 0], sizes = [1, 1, 16, 9], strides = [1, 1, 1, 1]} : vector<1x4x16x9xf32> to vector<1x1x16x9xf32>
    %82 = vector.shape_cast %80 : vector<4x1x1xf32> to vector<1x4x1x1xf32>
    %83 = vector.broadcast %82 : vector<1x4x1x1xf32> to vector<1x4x16x9xf32>
    %84 = vector.broadcast %81 : vector<1x1x16x9xf32> to vector<1x4x16x9xf32>
    %85 = arith.mulf %83, %84 : vector<1x4x16x9xf32>
    %86 = arith.addf %78, %85 : vector<1x4x16x9xf32>
    %87 = vector.extract_strided_slice %75 {offsets = [1, 0, 0, 0], sizes = [1, 4, 1, 1], strides = [1, 1, 1, 1]} : vector<4x4x1x1xf32> to vector<1x4x1x1xf32>
    %88 = vector.shape_cast %87 : vector<1x4x1x1xf32> to vector<4x1x1xf32>
    %89 = vector.extract_strided_slice %74 {offsets = [0, 1, 0, 0], sizes = [1, 1, 16, 9], strides = [1, 1, 1, 1]} : vector<1x4x16x9xf32> to vector<1x1x16x9xf32>
    %90 = vector.shape_cast %88 : vector<4x1x1xf32> to vector<1x4x1x1xf32>
    %91 = vector.broadcast %90 : vector<1x4x1x1xf32> to vector<1x4x16x9xf32>
    %92 = vector.broadcast %89 : vector<1x1x16x9xf32> to vector<1x4x16x9xf32>
    %93 = arith.mulf %91, %92 : vector<1x4x16x9xf32>
    %94 = arith.addf %86, %93 : vector<1x4x16x9xf32>
    %95 = vector.extract_strided_slice %75 {offsets = [2, 0, 0, 0], sizes = [1, 4, 1, 1], strides = [1, 1, 1, 1]} : vector<4x4x1x1xf32> to vector<1x4x1x1xf32>
    %96 = vector.shape_cast %95 : vector<1x4x1x1xf32> to vector<4x1x1xf32>
    %97 = vector.extract_strided_slice %74 {offsets = [0, 2, 0, 0], sizes = [1, 1, 16, 9], strides = [1, 1, 1, 1]} : vector<1x4x16x9xf32> to vector<1x1x16x9xf32>
    %98 = vector.shape_cast %96 : vector<4x1x1xf32> to vector<1x4x1x1xf32>
    %99 = vector.broadcast %98 : vector<1x4x1x1xf32> to vector<1x4x16x9xf32>
    %100 = vector.broadcast %97 : vector<1x1x16x9xf32> to vector<1x4x16x9xf32>
    %101 = arith.mulf %99, %100 : vector<1x4x16x9xf32>
    %102 = arith.addf %94, %101 : vector<1x4x16x9xf32>
    %103 = vector.extract_strided_slice %75 {offsets = [3, 0, 0, 0], sizes = [1, 4, 1, 1], strides = [1, 1, 1, 1]} : vector<4x4x1x1xf32> to vector<1x4x1x1xf32>
    %104 = vector.shape_cast %103 : vector<1x4x1x1xf32> to vector<4x1x1xf32>
    %105 = vector.extract_strided_slice %74 {offsets = [0, 3, 0, 0], sizes = [1, 1, 16, 9], strides = [1, 1, 1, 1]} : vector<1x4x16x9xf32> to vector<1x1x16x9xf32>
    %106 = vector.shape_cast %104 : vector<4x1x1xf32> to vector<1x4x1x1xf32>
    %107 = vector.broadcast %106 : vector<1x4x1x1xf32> to vector<1x4x16x9xf32>
    %108 = vector.broadcast %105 : vector<1x1x16x9xf32> to vector<1x4x16x9xf32>
    %109 = arith.mulf %107, %108 : vector<1x4x16x9xf32>
    %110 = arith.addf %102, %109 : vector<1x4x16x9xf32>
    %cst_23 = arith.constant 0.000000e+00 : f32
    %111 = vector.broadcast %cst_23 : f32 to vector<1x4x16x9xf32>
    %112 = arith.maximumf %110, %111 : vector<1x4x16x9xf32>
    %cst_24 = arith.constant dense<0.000000e+00> : vector<1x16x9xf32>
    %113 = vector.multi_reduction <add>, %112, %cst_24 [1] : vector<1x4x16x9xf32> to vector<1x16x9xf32>
    %114 = vector.shape_cast %113 : vector<1x16x9xf32> to vector<1x1x16x9xf32>
    %cst_25 = arith.constant 4.000000e+00 : f32
    %115 = vector.broadcast %cst_25 : f32 to vector<1x1x16x9xf32>
    %116 = arith.divf %114, %115 : vector<1x1x16x9xf32>
    %cst_26 = arith.constant dense<0xFF800000> : vector<1x16x9xf32>
    %117 = vector.multi_reduction <maximumf>, %112, %cst_26 [1] : vector<1x4x16x9xf32> to vector<1x16x9xf32>
    %118 = vector.shape_cast %117 : vector<1x16x9xf32> to vector<1x1x16x9xf32>
    %119 = tpu.concatenate %116, %118 in 1 : vector<1x1x16x9xf32>, vector<1x1x16x9xf32> -> vector<1x2x16x9xf32>
    %cst_27 = arith.constant 0.000000e+00 : f32
    %120 = vector.broadcast %cst_27 : f32 to vector<1x2x1x9xf32>
    %121 = tpu.concatenate %120, %119, %120 in 2 : vector<1x2x1x9xf32>, vector<1x2x16x9xf32>, vector<1x2x1x9xf32> -> vector<1x2x18x9xf32>
    %cst_28 = arith.constant 0.000000e+00 : f32
    %122 = vector.broadcast %cst_28 : f32 to vector<1x2x18x1xf32>
    %123 = tpu.concatenate %122, %121, %122 in 3 : vector<1x2x18x1xf32>, vector<1x2x18x9xf32>, vector<1x2x18x1xf32> -> vector<1x2x18x11xf32>
    %c0_29 = arith.constant 0 : index
    %c0_30 = arith.constant 0 : index
    %c0_31 = arith.constant 0 : index
    %c0_32 = arith.constant 0 : index
    %124 = vector.load %arg7[%c0_29, %c0_30, %c0_31, %c0_32] : memref<9x2x1x1xf32, #tpu.memory_space<vmem>>, vector<9x2x1x1xf32>
    %c0_33 = arith.constant 0 : index
    %c0_34 = arith.constant 0 : index
    %c0_35 = arith.constant 0 : index
    %125 = vector.load %arg8[%c0_33, %c0_34, %c0_35] : memref<2x1x1xf32, #tpu.memory_space<vmem>>, vector<2x1x1xf32>
    %126 = vector.shape_cast %125 : vector<2x1x1xf32> to vector<1x2x1x1xf32>
    %127 = vector.broadcast %126 : vector<1x2x1x1xf32> to vector<1x2x16x9xf32>
    %128 = vector.extract_strided_slice %124 {offsets = [0, 0, 0, 0], sizes = [1, 2, 1, 1], strides = [1, 1, 1, 1]} : vector<9x2x1x1xf32> to vector<1x2x1x1xf32>
    %129 = vector.shape_cast %128 : vector<1x2x1x1xf32> to vector<2x1x1xf32>
    %130 = vector.extract_strided_slice %123 {offsets = [0, 0, 0, 0], sizes = [1, 2, 16, 9], strides = [1, 1, 1, 1]} : vector<1x2x18x11xf32> to vector<1x2x16x9xf32>
    %131 = vector.shape_cast %129 : vector<2x1x1xf32> to vector<1x2x1x1xf32>
    %132 = vector.broadcast %131 : vector<1x2x1x1xf32> to vector<1x2x16x9xf32>
    %133 = arith.mulf %132, %130 : vector<1x2x16x9xf32>
    %134 = arith.addf %127, %133 : vector<1x2x16x9xf32>
    %135 = vector.extract_strided_slice %124 {offsets = [1, 0, 0, 0], sizes = [1, 2, 1, 1], strides = [1, 1, 1, 1]} : vector<9x2x1x1xf32> to vector<1x2x1x1xf32>
    %136 = vector.shape_cast %135 : vector<1x2x1x1xf32> to vector<2x1x1xf32>
    %137 = vector.extract_strided_slice %123 {offsets = [0, 0, 0, 1], sizes = [1, 2, 16, 9], strides = [1, 1, 1, 1]} : vector<1x2x18x11xf32> to vector<1x2x16x9xf32>
    %138 = vector.shape_cast %136 : vector<2x1x1xf32> to vector<1x2x1x1xf32>
    %139 = vector.broadcast %138 : vector<1x2x1x1xf32> to vector<1x2x16x9xf32>
    %140 = arith.mulf %139, %137 : vector<1x2x16x9xf32>
    %141 = arith.addf %134, %140 : vector<1x2x16x9xf32>
    %142 = vector.extract_strided_slice %124 {offsets = [2, 0, 0, 0], sizes = [1, 2, 1, 1], strides = [1, 1, 1, 1]} : vector<9x2x1x1xf32> to vector<1x2x1x1xf32>
    %143 = vector.shape_cast %142 : vector<1x2x1x1xf32> to vector<2x1x1xf32>
    %144 = vector.extract_strided_slice %123 {offsets = [0, 0, 0, 2], sizes = [1, 2, 16, 9], strides = [1, 1, 1, 1]} : vector<1x2x18x11xf32> to vector<1x2x16x9xf32>
    %145 = vector.shape_cast %143 : vector<2x1x1xf32> to vector<1x2x1x1xf32>
    %146 = vector.broadcast %145 : vector<1x2x1x1xf32> to vector<1x2x16x9xf32>
    %147 = arith.mulf %146, %144 : vector<1x2x16x9xf32>
    %148 = arith.addf %141, %147 : vector<1x2x16x9xf32>
    %149 = vector.extract_strided_slice %124 {offsets = [3, 0, 0, 0], sizes = [1, 2, 1, 1], strides = [1, 1, 1, 1]} : vector<9x2x1x1xf32> to vector<1x2x1x1xf32>
    %150 = vector.shape_cast %149 : vector<1x2x1x1xf32> to vector<2x1x1xf32>
    %151 = vector.extract_strided_slice %123 {offsets = [0, 0, 1, 0], sizes = [1, 2, 16, 9], strides = [1, 1, 1, 1]} : vector<1x2x18x11xf32> to vector<1x2x16x9xf32>
    %152 = vector.shape_cast %150 : vector<2x1x1xf32> to vector<1x2x1x1xf32>
    %153 = vector.broadcast %152 : vector<1x2x1x1xf32> to vector<1x2x16x9xf32>
    %154 = arith.mulf %153, %151 : vector<1x2x16x9xf32>
    %155 = arith.addf %148, %154 : vector<1x2x16x9xf32>
    %156 = vector.extract_strided_slice %124 {offsets = [4, 0, 0, 0], sizes = [1, 2, 1, 1], strides = [1, 1, 1, 1]} : vector<9x2x1x1xf32> to vector<1x2x1x1xf32>
    %157 = vector.shape_cast %156 : vector<1x2x1x1xf32> to vector<2x1x1xf32>
    %158 = vector.extract_strided_slice %123 {offsets = [0, 0, 1, 1], sizes = [1, 2, 16, 9], strides = [1, 1, 1, 1]} : vector<1x2x18x11xf32> to vector<1x2x16x9xf32>
    %159 = vector.shape_cast %157 : vector<2x1x1xf32> to vector<1x2x1x1xf32>
    %160 = vector.broadcast %159 : vector<1x2x1x1xf32> to vector<1x2x16x9xf32>
    %161 = arith.mulf %160, %158 : vector<1x2x16x9xf32>
    %162 = arith.addf %155, %161 : vector<1x2x16x9xf32>
    %163 = vector.extract_strided_slice %124 {offsets = [5, 0, 0, 0], sizes = [1, 2, 1, 1], strides = [1, 1, 1, 1]} : vector<9x2x1x1xf32> to vector<1x2x1x1xf32>
    %164 = vector.shape_cast %163 : vector<1x2x1x1xf32> to vector<2x1x1xf32>
    %165 = vector.extract_strided_slice %123 {offsets = [0, 0, 1, 2], sizes = [1, 2, 16, 9], strides = [1, 1, 1, 1]} : vector<1x2x18x11xf32> to vector<1x2x16x9xf32>
    %166 = vector.shape_cast %164 : vector<2x1x1xf32> to vector<1x2x1x1xf32>
    %167 = vector.broadcast %166 : vector<1x2x1x1xf32> to vector<1x2x16x9xf32>
    %168 = arith.mulf %167, %165 : vector<1x2x16x9xf32>
    %169 = arith.addf %162, %168 : vector<1x2x16x9xf32>
    %170 = vector.extract_strided_slice %124 {offsets = [6, 0, 0, 0], sizes = [1, 2, 1, 1], strides = [1, 1, 1, 1]} : vector<9x2x1x1xf32> to vector<1x2x1x1xf32>
    %171 = vector.shape_cast %170 : vector<1x2x1x1xf32> to vector<2x1x1xf32>
    %172 = vector.extract_strided_slice %123 {offsets = [0, 0, 2, 0], sizes = [1, 2, 16, 9], strides = [1, 1, 1, 1]} : vector<1x2x18x11xf32> to vector<1x2x16x9xf32>
    %173 = vector.shape_cast %171 : vector<2x1x1xf32> to vector<1x2x1x1xf32>
    %174 = vector.broadcast %173 : vector<1x2x1x1xf32> to vector<1x2x16x9xf32>
    %175 = arith.mulf %174, %172 : vector<1x2x16x9xf32>
    %176 = arith.addf %169, %175 : vector<1x2x16x9xf32>
    %177 = vector.extract_strided_slice %124 {offsets = [7, 0, 0, 0], sizes = [1, 2, 1, 1], strides = [1, 1, 1, 1]} : vector<9x2x1x1xf32> to vector<1x2x1x1xf32>
    %178 = vector.shape_cast %177 : vector<1x2x1x1xf32> to vector<2x1x1xf32>
    %179 = vector.extract_strided_slice %123 {offsets = [0, 0, 2, 1], sizes = [1, 2, 16, 9], strides = [1, 1, 1, 1]} : vector<1x2x18x11xf32> to vector<1x2x16x9xf32>
    %180 = vector.shape_cast %178 : vector<2x1x1xf32> to vector<1x2x1x1xf32>
    %181 = vector.broadcast %180 : vector<1x2x1x1xf32> to vector<1x2x16x9xf32>
    %182 = arith.mulf %181, %179 : vector<1x2x16x9xf32>
    %183 = arith.addf %176, %182 : vector<1x2x16x9xf32>
    %184 = vector.extract_strided_slice %124 {offsets = [8, 0, 0, 0], sizes = [1, 2, 1, 1], strides = [1, 1, 1, 1]} : vector<9x2x1x1xf32> to vector<1x2x1x1xf32>
    %185 = vector.shape_cast %184 : vector<1x2x1x1xf32> to vector<2x1x1xf32>
    %186 = vector.extract_strided_slice %123 {offsets = [0, 0, 2, 2], sizes = [1, 2, 16, 9], strides = [1, 1, 1, 1]} : vector<1x2x18x11xf32> to vector<1x2x16x9xf32>
    %187 = vector.shape_cast %185 : vector<2x1x1xf32> to vector<1x2x1x1xf32>
    %188 = vector.broadcast %187 : vector<1x2x1x1xf32> to vector<1x2x16x9xf32>
    %189 = arith.mulf %188, %186 : vector<1x2x16x9xf32>
    %190 = arith.addf %183, %189 : vector<1x2x16x9xf32>
    %cst_36 = arith.constant 0.000000e+00 : f32
    %191 = vector.broadcast %cst_36 : f32 to vector<1x2x16x9xf32>
    %192 = arith.maximumf %190, %191 : vector<1x2x16x9xf32>
    %c0_37 = arith.constant 0 : index
    %c0_38 = arith.constant 0 : index
    %c0_39 = arith.constant 0 : index
    %c0_40 = arith.constant 0 : index
    %193 = vector.load %arg9[%c0_37, %c0_38, %c0_39, %c0_40] : memref<2x1x1x1xf32, #tpu.memory_space<vmem>>, vector<2x1x1x1xf32>
    %c0_41 = arith.constant 0 : index
    %c0_42 = arith.constant 0 : index
    %c0_43 = arith.constant 0 : index
    %194 = vector.load %arg10[%c0_41, %c0_42, %c0_43] : memref<1x1x1xf32, #tpu.memory_space<vmem>>, vector<1x1x1xf32>
    %195 = vector.shape_cast %194 : vector<1x1x1xf32> to vector<1x1x1x1xf32>
    %196 = vector.broadcast %195 : vector<1x1x1x1xf32> to vector<1x1x16x9xf32>
    %197 = vector.extract_strided_slice %193 {offsets = [0, 0, 0, 0], sizes = [1, 1, 1, 1], strides = [1, 1, 1, 1]} : vector<2x1x1x1xf32> to vector<1x1x1x1xf32>
    %198 = vector.shape_cast %197 : vector<1x1x1x1xf32> to vector<1x1x1xf32>
    %199 = vector.extract_strided_slice %192 {offsets = [0, 0, 0, 0], sizes = [1, 1, 16, 9], strides = [1, 1, 1, 1]} : vector<1x2x16x9xf32> to vector<1x1x16x9xf32>
    %200 = vector.shape_cast %198 : vector<1x1x1xf32> to vector<1x1x1x1xf32>
    %201 = vector.broadcast %200 : vector<1x1x1x1xf32> to vector<1x1x16x9xf32>
    %202 = arith.mulf %201, %199 : vector<1x1x16x9xf32>
    %203 = arith.addf %196, %202 : vector<1x1x16x9xf32>
    %204 = vector.extract_strided_slice %193 {offsets = [1, 0, 0, 0], sizes = [1, 1, 1, 1], strides = [1, 1, 1, 1]} : vector<2x1x1x1xf32> to vector<1x1x1x1xf32>
    %205 = vector.shape_cast %204 : vector<1x1x1x1xf32> to vector<1x1x1xf32>
    %206 = vector.extract_strided_slice %192 {offsets = [0, 1, 0, 0], sizes = [1, 1, 16, 9], strides = [1, 1, 1, 1]} : vector<1x2x16x9xf32> to vector<1x1x16x9xf32>
    %207 = vector.shape_cast %205 : vector<1x1x1xf32> to vector<1x1x1x1xf32>
    %208 = vector.broadcast %207 : vector<1x1x1x1xf32> to vector<1x1x16x9xf32>
    %209 = arith.mulf %208, %206 : vector<1x1x16x9xf32>
    %210 = arith.addf %203, %209 : vector<1x1x16x9xf32>
    %cst_44 = arith.constant 5.000000e-01 : f32
    %211 = vector.broadcast %cst_44 : f32 to vector<1x1x16x9xf32>
    %212 = arith.mulf %211, %210 : vector<1x1x16x9xf32>
    %213 = math.tanh %212 : vector<1x1x16x9xf32>
    %cst_45 = arith.constant 1.000000e+00 : f32
    %214 = vector.broadcast %cst_45 : f32 to vector<1x1x16x9xf32>
    %215 = arith.addf %213, %214 : vector<1x1x16x9xf32>
    %cst_46 = arith.constant 5.000000e-01 : f32
    %216 = vector.broadcast %cst_46 : f32 to vector<1x1x16x9xf32>
    %217 = arith.mulf %216, %215 : vector<1x1x16x9xf32>
    %218 = vector.broadcast %217 : vector<1x1x16x9xf32> to vector<1x4x16x9xf32>
    %219 = arith.mulf %112, %218 : vector<1x4x16x9xf32>
    %220 = arith.subf %219, %0 : vector<1x4x16x9xf32>
    %221 = tpu.concatenate %1, %220 in 1 : vector<1x4x16x9xf32>, vector<1x4x16x9xf32> -> vector<1x8x16x9xf32>
    %cst_47 = arith.constant 0.000000e+00 : f32
    %222 = vector.broadcast %cst_47 : f32 to vector<1x8x1x9xf32>
    %223 = tpu.concatenate %222, %221, %222 in 2 : vector<1x8x1x9xf32>, vector<1x8x16x9xf32>, vector<1x8x1x9xf32> -> vector<1x8x18x9xf32>
    %cst_48 = arith.constant 0.000000e+00 : f32
    %224 = vector.broadcast %cst_48 : f32 to vector<1x8x18x1xf32>
    %225 = tpu.concatenate %224, %223, %224 in 3 : vector<1x8x18x1xf32>, vector<1x8x18x9xf32>, vector<1x8x18x1xf32> -> vector<1x8x18x11xf32>
    %c0_49 = arith.constant 0 : index
    %c0_50 = arith.constant 0 : index
    %c0_51 = arith.constant 0 : index
    %c0_52 = arith.constant 0 : index
    %226 = vector.load %arg11[%c0_49, %c0_50, %c0_51, %c0_52] : memref<9x8x1x1xf32, #tpu.memory_space<vmem>>, vector<9x8x1x1xf32>
    %c0_53 = arith.constant 0 : index
    %c0_54 = arith.constant 0 : index
    %c0_55 = arith.constant 0 : index
    %227 = vector.load %arg12[%c0_53, %c0_54, %c0_55] : memref<8x1x1xf32, #tpu.memory_space<vmem>>, vector<8x1x1xf32>
    %228 = vector.shape_cast %227 : vector<8x1x1xf32> to vector<1x8x1x1xf32>
    %229 = vector.broadcast %228 : vector<1x8x1x1xf32> to vector<1x8x16x9xf32>
    %230 = vector.extract_strided_slice %226 {offsets = [0, 0, 0, 0], sizes = [1, 8, 1, 1], strides = [1, 1, 1, 1]} : vector<9x8x1x1xf32> to vector<1x8x1x1xf32>
    %231 = vector.shape_cast %230 : vector<1x8x1x1xf32> to vector<8x1x1xf32>
    %232 = vector.extract_strided_slice %225 {offsets = [0, 0, 0, 0], sizes = [1, 8, 16, 9], strides = [1, 1, 1, 1]} : vector<1x8x18x11xf32> to vector<1x8x16x9xf32>
    %233 = vector.shape_cast %231 : vector<8x1x1xf32> to vector<1x8x1x1xf32>
    %234 = vector.broadcast %233 : vector<1x8x1x1xf32> to vector<1x8x16x9xf32>
    %235 = arith.mulf %234, %232 : vector<1x8x16x9xf32>
    %236 = arith.addf %229, %235 : vector<1x8x16x9xf32>
    %237 = vector.extract_strided_slice %226 {offsets = [1, 0, 0, 0], sizes = [1, 8, 1, 1], strides = [1, 1, 1, 1]} : vector<9x8x1x1xf32> to vector<1x8x1x1xf32>
    %238 = vector.shape_cast %237 : vector<1x8x1x1xf32> to vector<8x1x1xf32>
    %239 = vector.extract_strided_slice %225 {offsets = [0, 0, 0, 1], sizes = [1, 8, 16, 9], strides = [1, 1, 1, 1]} : vector<1x8x18x11xf32> to vector<1x8x16x9xf32>
    %240 = vector.shape_cast %238 : vector<8x1x1xf32> to vector<1x8x1x1xf32>
    %241 = vector.broadcast %240 : vector<1x8x1x1xf32> to vector<1x8x16x9xf32>
    %242 = arith.mulf %241, %239 : vector<1x8x16x9xf32>
    %243 = arith.addf %236, %242 : vector<1x8x16x9xf32>
    %244 = vector.extract_strided_slice %226 {offsets = [2, 0, 0, 0], sizes = [1, 8, 1, 1], strides = [1, 1, 1, 1]} : vector<9x8x1x1xf32> to vector<1x8x1x1xf32>
    %245 = vector.shape_cast %244 : vector<1x8x1x1xf32> to vector<8x1x1xf32>
    %246 = vector.extract_strided_slice %225 {offsets = [0, 0, 0, 2], sizes = [1, 8, 16, 9], strides = [1, 1, 1, 1]} : vector<1x8x18x11xf32> to vector<1x8x16x9xf32>
    %247 = vector.shape_cast %245 : vector<8x1x1xf32> to vector<1x8x1x1xf32>
    %248 = vector.broadcast %247 : vector<1x8x1x1xf32> to vector<1x8x16x9xf32>
    %249 = arith.mulf %248, %246 : vector<1x8x16x9xf32>
    %250 = arith.addf %243, %249 : vector<1x8x16x9xf32>
    %251 = vector.extract_strided_slice %226 {offsets = [3, 0, 0, 0], sizes = [1, 8, 1, 1], strides = [1, 1, 1, 1]} : vector<9x8x1x1xf32> to vector<1x8x1x1xf32>
    %252 = vector.shape_cast %251 : vector<1x8x1x1xf32> to vector<8x1x1xf32>
    %253 = vector.extract_strided_slice %225 {offsets = [0, 0, 1, 0], sizes = [1, 8, 16, 9], strides = [1, 1, 1, 1]} : vector<1x8x18x11xf32> to vector<1x8x16x9xf32>
    %254 = vector.shape_cast %252 : vector<8x1x1xf32> to vector<1x8x1x1xf32>
    %255 = vector.broadcast %254 : vector<1x8x1x1xf32> to vector<1x8x16x9xf32>
    %256 = arith.mulf %255, %253 : vector<1x8x16x9xf32>
    %257 = arith.addf %250, %256 : vector<1x8x16x9xf32>
    %258 = vector.extract_strided_slice %226 {offsets = [4, 0, 0, 0], sizes = [1, 8, 1, 1], strides = [1, 1, 1, 1]} : vector<9x8x1x1xf32> to vector<1x8x1x1xf32>
    %259 = vector.shape_cast %258 : vector<1x8x1x1xf32> to vector<8x1x1xf32>
    %260 = vector.extract_strided_slice %225 {offsets = [0, 0, 1, 1], sizes = [1, 8, 16, 9], strides = [1, 1, 1, 1]} : vector<1x8x18x11xf32> to vector<1x8x16x9xf32>
    %261 = vector.shape_cast %259 : vector<8x1x1xf32> to vector<1x8x1x1xf32>
    %262 = vector.broadcast %261 : vector<1x8x1x1xf32> to vector<1x8x16x9xf32>
    %263 = arith.mulf %262, %260 : vector<1x8x16x9xf32>
    %264 = arith.addf %257, %263 : vector<1x8x16x9xf32>
    %265 = vector.extract_strided_slice %226 {offsets = [5, 0, 0, 0], sizes = [1, 8, 1, 1], strides = [1, 1, 1, 1]} : vector<9x8x1x1xf32> to vector<1x8x1x1xf32>
    %266 = vector.shape_cast %265 : vector<1x8x1x1xf32> to vector<8x1x1xf32>
    %267 = vector.extract_strided_slice %225 {offsets = [0, 0, 1, 2], sizes = [1, 8, 16, 9], strides = [1, 1, 1, 1]} : vector<1x8x18x11xf32> to vector<1x8x16x9xf32>
    %268 = vector.shape_cast %266 : vector<8x1x1xf32> to vector<1x8x1x1xf32>
    %269 = vector.broadcast %268 : vector<1x8x1x1xf32> to vector<1x8x16x9xf32>
    %270 = arith.mulf %269, %267 : vector<1x8x16x9xf32>
    %271 = arith.addf %264, %270 : vector<1x8x16x9xf32>
    %272 = vector.extract_strided_slice %226 {offsets = [6, 0, 0, 0], sizes = [1, 8, 1, 1], strides = [1, 1, 1, 1]} : vector<9x8x1x1xf32> to vector<1x8x1x1xf32>
    %273 = vector.shape_cast %272 : vector<1x8x1x1xf32> to vector<8x1x1xf32>
    %274 = vector.extract_strided_slice %225 {offsets = [0, 0, 2, 0], sizes = [1, 8, 16, 9], strides = [1, 1, 1, 1]} : vector<1x8x18x11xf32> to vector<1x8x16x9xf32>
    %275 = vector.shape_cast %273 : vector<8x1x1xf32> to vector<1x8x1x1xf32>
    %276 = vector.broadcast %275 : vector<1x8x1x1xf32> to vector<1x8x16x9xf32>
    %277 = arith.mulf %276, %274 : vector<1x8x16x9xf32>
    %278 = arith.addf %271, %277 : vector<1x8x16x9xf32>
    %279 = vector.extract_strided_slice %226 {offsets = [7, 0, 0, 0], sizes = [1, 8, 1, 1], strides = [1, 1, 1, 1]} : vector<9x8x1x1xf32> to vector<1x8x1x1xf32>
    %280 = vector.shape_cast %279 : vector<1x8x1x1xf32> to vector<8x1x1xf32>
    %281 = vector.extract_strided_slice %225 {offsets = [0, 0, 2, 1], sizes = [1, 8, 16, 9], strides = [1, 1, 1, 1]} : vector<1x8x18x11xf32> to vector<1x8x16x9xf32>
    %282 = vector.shape_cast %280 : vector<8x1x1xf32> to vector<1x8x1x1xf32>
    %283 = vector.broadcast %282 : vector<1x8x1x1xf32> to vector<1x8x16x9xf32>
    %284 = arith.mulf %283, %281 : vector<1x8x16x9xf32>
    %285 = arith.addf %278, %284 : vector<1x8x16x9xf32>
    %286 = vector.extract_strided_slice %226 {offsets = [8, 0, 0, 0], sizes = [1, 8, 1, 1], strides = [1, 1, 1, 1]} : vector<9x8x1x1xf32> to vector<1x8x1x1xf32>
    %287 = vector.shape_cast %286 : vector<1x8x1x1xf32> to vector<8x1x1xf32>
    %288 = vector.extract_strided_slice %225 {offsets = [0, 0, 2, 2], sizes = [1, 8, 16, 9], strides = [1, 1, 1, 1]} : vector<1x8x18x11xf32> to vector<1x8x16x9xf32>
    %289 = vector.shape_cast %287 : vector<8x1x1xf32> to vector<1x8x1x1xf32>
    %290 = vector.broadcast %289 : vector<1x8x1x1xf32> to vector<1x8x16x9xf32>
    %291 = arith.mulf %290, %288 : vector<1x8x16x9xf32>
    %292 = arith.addf %285, %291 : vector<1x8x16x9xf32>
    %cst_56 = arith.constant 0.000000e+00 : f32
    %293 = vector.broadcast %cst_56 : f32 to vector<1x8x16x9xf32>
    %294 = arith.maximumf %292, %293 : vector<1x8x16x9xf32>
    %c0_57 = arith.constant 0 : index
    %c0_58 = arith.constant 0 : index
    %c0_59 = arith.constant 0 : index
    %c0_60 = arith.constant 0 : index
    %295 = vector.load %arg13[%c0_57, %c0_58, %c0_59, %c0_60] : memref<8x4x1x1xf32, #tpu.memory_space<vmem>>, vector<8x4x1x1xf32>
    %c0_61 = arith.constant 0 : index
    %c0_62 = arith.constant 0 : index
    %c0_63 = arith.constant 0 : index
    %296 = vector.load %arg14[%c0_61, %c0_62, %c0_63] : memref<4x1x1xf32, #tpu.memory_space<vmem>>, vector<4x1x1xf32>
    %297 = vector.shape_cast %296 : vector<4x1x1xf32> to vector<1x4x1x1xf32>
    %298 = vector.broadcast %297 : vector<1x4x1x1xf32> to vector<1x4x16x9xf32>
    %299 = vector.extract_strided_slice %295 {offsets = [0, 0, 0, 0], sizes = [1, 4, 1, 1], strides = [1, 1, 1, 1]} : vector<8x4x1x1xf32> to vector<1x4x1x1xf32>
    %300 = vector.shape_cast %299 : vector<1x4x1x1xf32> to vector<4x1x1xf32>
    %301 = vector.extract_strided_slice %294 {offsets = [0, 0, 0, 0], sizes = [1, 1, 16, 9], strides = [1, 1, 1, 1]} : vector<1x8x16x9xf32> to vector<1x1x16x9xf32>
    %302 = vector.shape_cast %300 : vector<4x1x1xf32> to vector<1x4x1x1xf32>
    %303 = vector.broadcast %302 : vector<1x4x1x1xf32> to vector<1x4x16x9xf32>
    %304 = vector.broadcast %301 : vector<1x1x16x9xf32> to vector<1x4x16x9xf32>
    %305 = arith.mulf %303, %304 : vector<1x4x16x9xf32>
    %306 = arith.addf %298, %305 : vector<1x4x16x9xf32>
    %307 = vector.extract_strided_slice %295 {offsets = [1, 0, 0, 0], sizes = [1, 4, 1, 1], strides = [1, 1, 1, 1]} : vector<8x4x1x1xf32> to vector<1x4x1x1xf32>
    %308 = vector.shape_cast %307 : vector<1x4x1x1xf32> to vector<4x1x1xf32>
    %309 = vector.extract_strided_slice %294 {offsets = [0, 1, 0, 0], sizes = [1, 1, 16, 9], strides = [1, 1, 1, 1]} : vector<1x8x16x9xf32> to vector<1x1x16x9xf32>
    %310 = vector.shape_cast %308 : vector<4x1x1xf32> to vector<1x4x1x1xf32>
    %311 = vector.broadcast %310 : vector<1x4x1x1xf32> to vector<1x4x16x9xf32>
    %312 = vector.broadcast %309 : vector<1x1x16x9xf32> to vector<1x4x16x9xf32>
    %313 = arith.mulf %311, %312 : vector<1x4x16x9xf32>
    %314 = arith.addf %306, %313 : vector<1x4x16x9xf32>
    %315 = vector.extract_strided_slice %295 {offsets = [2, 0, 0, 0], sizes = [1, 4, 1, 1], strides = [1, 1, 1, 1]} : vector<8x4x1x1xf32> to vector<1x4x1x1xf32>
    %316 = vector.shape_cast %315 : vector<1x4x1x1xf32> to vector<4x1x1xf32>
    %317 = vector.extract_strided_slice %294 {offsets = [0, 2, 0, 0], sizes = [1, 1, 16, 9], strides = [1, 1, 1, 1]} : vector<1x8x16x9xf32> to vector<1x1x16x9xf32>
    %318 = vector.shape_cast %316 : vector<4x1x1xf32> to vector<1x4x1x1xf32>
    %319 = vector.broadcast %318 : vector<1x4x1x1xf32> to vector<1x4x16x9xf32>
    %320 = vector.broadcast %317 : vector<1x1x16x9xf32> to vector<1x4x16x9xf32>
    %321 = arith.mulf %319, %320 : vector<1x4x16x9xf32>
    %322 = arith.addf %314, %321 : vector<1x4x16x9xf32>
    %323 = vector.extract_strided_slice %295 {offsets = [3, 0, 0, 0], sizes = [1, 4, 1, 1], strides = [1, 1, 1, 1]} : vector<8x4x1x1xf32> to vector<1x4x1x1xf32>
    %324 = vector.shape_cast %323 : vector<1x4x1x1xf32> to vector<4x1x1xf32>
    %325 = vector.extract_strided_slice %294 {offsets = [0, 3, 0, 0], sizes = [1, 1, 16, 9], strides = [1, 1, 1, 1]} : vector<1x8x16x9xf32> to vector<1x1x16x9xf32>
    %326 = vector.shape_cast %324 : vector<4x1x1xf32> to vector<1x4x1x1xf32>
    %327 = vector.broadcast %326 : vector<1x4x1x1xf32> to vector<1x4x16x9xf32>
    %328 = vector.broadcast %325 : vector<1x1x16x9xf32> to vector<1x4x16x9xf32>
    %329 = arith.mulf %327, %328 : vector<1x4x16x9xf32>
    %330 = arith.addf %322, %329 : vector<1x4x16x9xf32>
    %331 = vector.extract_strided_slice %295 {offsets = [4, 0, 0, 0], sizes = [1, 4, 1, 1], strides = [1, 1, 1, 1]} : vector<8x4x1x1xf32> to vector<1x4x1x1xf32>
    %332 = vector.shape_cast %331 : vector<1x4x1x1xf32> to vector<4x1x1xf32>
    %333 = vector.extract_strided_slice %294 {offsets = [0, 4, 0, 0], sizes = [1, 1, 16, 9], strides = [1, 1, 1, 1]} : vector<1x8x16x9xf32> to vector<1x1x16x9xf32>
    %334 = vector.shape_cast %332 : vector<4x1x1xf32> to vector<1x4x1x1xf32>
    %335 = vector.broadcast %334 : vector<1x4x1x1xf32> to vector<1x4x16x9xf32>
    %336 = vector.broadcast %333 : vector<1x1x16x9xf32> to vector<1x4x16x9xf32>
    %337 = arith.mulf %335, %336 : vector<1x4x16x9xf32>
    %338 = arith.addf %330, %337 : vector<1x4x16x9xf32>
    %339 = vector.extract_strided_slice %295 {offsets = [5, 0, 0, 0], sizes = [1, 4, 1, 1], strides = [1, 1, 1, 1]} : vector<8x4x1x1xf32> to vector<1x4x1x1xf32>
    %340 = vector.shape_cast %339 : vector<1x4x1x1xf32> to vector<4x1x1xf32>
    %341 = vector.extract_strided_slice %294 {offsets = [0, 5, 0, 0], sizes = [1, 1, 16, 9], strides = [1, 1, 1, 1]} : vector<1x8x16x9xf32> to vector<1x1x16x9xf32>
    %342 = vector.shape_cast %340 : vector<4x1x1xf32> to vector<1x4x1x1xf32>
    %343 = vector.broadcast %342 : vector<1x4x1x1xf32> to vector<1x4x16x9xf32>
    %344 = vector.broadcast %341 : vector<1x1x16x9xf32> to vector<1x4x16x9xf32>
    %345 = arith.mulf %343, %344 : vector<1x4x16x9xf32>
    %346 = arith.addf %338, %345 : vector<1x4x16x9xf32>
    %347 = vector.extract_strided_slice %295 {offsets = [6, 0, 0, 0], sizes = [1, 4, 1, 1], strides = [1, 1, 1, 1]} : vector<8x4x1x1xf32> to vector<1x4x1x1xf32>
    %348 = vector.shape_cast %347 : vector<1x4x1x1xf32> to vector<4x1x1xf32>
    %349 = vector.extract_strided_slice %294 {offsets = [0, 6, 0, 0], sizes = [1, 1, 16, 9], strides = [1, 1, 1, 1]} : vector<1x8x16x9xf32> to vector<1x1x16x9xf32>
    %350 = vector.shape_cast %348 : vector<4x1x1xf32> to vector<1x4x1x1xf32>
    %351 = vector.broadcast %350 : vector<1x4x1x1xf32> to vector<1x4x16x9xf32>
    %352 = vector.broadcast %349 : vector<1x1x16x9xf32> to vector<1x4x16x9xf32>
    %353 = arith.mulf %351, %352 : vector<1x4x16x9xf32>
    %354 = arith.addf %346, %353 : vector<1x4x16x9xf32>
    %355 = vector.extract_strided_slice %295 {offsets = [7, 0, 0, 0], sizes = [1, 4, 1, 1], strides = [1, 1, 1, 1]} : vector<8x4x1x1xf32> to vector<1x4x1x1xf32>
    %356 = vector.shape_cast %355 : vector<1x4x1x1xf32> to vector<4x1x1xf32>
    %357 = vector.extract_strided_slice %294 {offsets = [0, 7, 0, 0], sizes = [1, 1, 16, 9], strides = [1, 1, 1, 1]} : vector<1x8x16x9xf32> to vector<1x1x16x9xf32>
    %358 = vector.shape_cast %356 : vector<4x1x1xf32> to vector<1x4x1x1xf32>
    %359 = vector.broadcast %358 : vector<1x4x1x1xf32> to vector<1x4x16x9xf32>
    %360 = vector.broadcast %357 : vector<1x1x16x9xf32> to vector<1x4x16x9xf32>
    %361 = arith.mulf %359, %360 : vector<1x4x16x9xf32>
    %362 = arith.addf %354, %361 : vector<1x4x16x9xf32>
    %cst_64 = arith.constant 5.000000e-01 : f32
    %363 = vector.broadcast %cst_64 : f32 to vector<1x4x16x9xf32>
    %364 = arith.mulf %363, %362 : vector<1x4x16x9xf32>
    %365 = math.tanh %364 : vector<1x4x16x9xf32>
    %cst_65 = arith.constant 1.000000e+00 : f32
    %366 = vector.broadcast %cst_65 : f32 to vector<1x4x16x9xf32>
    %367 = arith.addf %365, %366 : vector<1x4x16x9xf32>
    %cst_66 = arith.constant 5.000000e-01 : f32
    %368 = vector.broadcast %cst_66 : f32 to vector<1x4x16x9xf32>
    %369 = arith.mulf %368, %367 : vector<1x4x16x9xf32>
    %cst_67 = arith.constant dense<0.000000e+00> : vector<1x16x9xf32>
    %370 = vector.multi_reduction <add>, %369, %cst_67 [1] : vector<1x4x16x9xf32> to vector<1x16x9xf32>
    %371 = vector.shape_cast %370 : vector<1x16x9xf32> to vector<1x1x16x9xf32>
    %cst_68 = arith.constant 4.000000e+00 : f32
    %372 = vector.broadcast %cst_68 : f32 to vector<1x1x16x9xf32>
    %373 = arith.divf %371, %372 : vector<1x1x16x9xf32>
    %cst_69 = arith.constant dense<0xFF800000> : vector<1x16x9xf32>
    %374 = vector.multi_reduction <maximumf>, %369, %cst_69 [1] : vector<1x4x16x9xf32> to vector<1x16x9xf32>
    %375 = vector.shape_cast %374 : vector<1x16x9xf32> to vector<1x1x16x9xf32>
    %376 = tpu.concatenate %373, %375 in 1 : vector<1x1x16x9xf32>, vector<1x1x16x9xf32> -> vector<1x2x16x9xf32>
    %cst_70 = arith.constant 0.000000e+00 : f32
    %377 = vector.broadcast %cst_70 : f32 to vector<1x2x1x9xf32>
    %378 = tpu.concatenate %377, %376, %377 in 2 : vector<1x2x1x9xf32>, vector<1x2x16x9xf32>, vector<1x2x1x9xf32> -> vector<1x2x18x9xf32>
    %cst_71 = arith.constant 0.000000e+00 : f32
    %379 = vector.broadcast %cst_71 : f32 to vector<1x2x18x1xf32>
    %380 = tpu.concatenate %379, %378, %379 in 3 : vector<1x2x18x1xf32>, vector<1x2x18x9xf32>, vector<1x2x18x1xf32> -> vector<1x2x18x11xf32>
    %c0_72 = arith.constant 0 : index
    %c0_73 = arith.constant 0 : index
    %c0_74 = arith.constant 0 : index
    %c0_75 = arith.constant 0 : index
    %381 = vector.load %arg15[%c0_72, %c0_73, %c0_74, %c0_75] : memref<9x2x1x1xf32, #tpu.memory_space<vmem>>, vector<9x2x1x1xf32>
    %c0_76 = arith.constant 0 : index
    %c0_77 = arith.constant 0 : index
    %c0_78 = arith.constant 0 : index
    %382 = vector.load %arg16[%c0_76, %c0_77, %c0_78] : memref<2x1x1xf32, #tpu.memory_space<vmem>>, vector<2x1x1xf32>
    %383 = vector.shape_cast %382 : vector<2x1x1xf32> to vector<1x2x1x1xf32>
    %384 = vector.broadcast %383 : vector<1x2x1x1xf32> to vector<1x2x16x9xf32>
    %385 = vector.extract_strided_slice %381 {offsets = [0, 0, 0, 0], sizes = [1, 2, 1, 1], strides = [1, 1, 1, 1]} : vector<9x2x1x1xf32> to vector<1x2x1x1xf32>
    %386 = vector.shape_cast %385 : vector<1x2x1x1xf32> to vector<2x1x1xf32>
    %387 = vector.extract_strided_slice %380 {offsets = [0, 0, 0, 0], sizes = [1, 2, 16, 9], strides = [1, 1, 1, 1]} : vector<1x2x18x11xf32> to vector<1x2x16x9xf32>
    %388 = vector.shape_cast %386 : vector<2x1x1xf32> to vector<1x2x1x1xf32>
    %389 = vector.broadcast %388 : vector<1x2x1x1xf32> to vector<1x2x16x9xf32>
    %390 = arith.mulf %389, %387 : vector<1x2x16x9xf32>
    %391 = arith.addf %384, %390 : vector<1x2x16x9xf32>
    %392 = vector.extract_strided_slice %381 {offsets = [1, 0, 0, 0], sizes = [1, 2, 1, 1], strides = [1, 1, 1, 1]} : vector<9x2x1x1xf32> to vector<1x2x1x1xf32>
    %393 = vector.shape_cast %392 : vector<1x2x1x1xf32> to vector<2x1x1xf32>
    %394 = vector.extract_strided_slice %380 {offsets = [0, 0, 0, 1], sizes = [1, 2, 16, 9], strides = [1, 1, 1, 1]} : vector<1x2x18x11xf32> to vector<1x2x16x9xf32>
    %395 = vector.shape_cast %393 : vector<2x1x1xf32> to vector<1x2x1x1xf32>
    %396 = vector.broadcast %395 : vector<1x2x1x1xf32> to vector<1x2x16x9xf32>
    %397 = arith.mulf %396, %394 : vector<1x2x16x9xf32>
    %398 = arith.addf %391, %397 : vector<1x2x16x9xf32>
    %399 = vector.extract_strided_slice %381 {offsets = [2, 0, 0, 0], sizes = [1, 2, 1, 1], strides = [1, 1, 1, 1]} : vector<9x2x1x1xf32> to vector<1x2x1x1xf32>
    %400 = vector.shape_cast %399 : vector<1x2x1x1xf32> to vector<2x1x1xf32>
    %401 = vector.extract_strided_slice %380 {offsets = [0, 0, 0, 2], sizes = [1, 2, 16, 9], strides = [1, 1, 1, 1]} : vector<1x2x18x11xf32> to vector<1x2x16x9xf32>
    %402 = vector.shape_cast %400 : vector<2x1x1xf32> to vector<1x2x1x1xf32>
    %403 = vector.broadcast %402 : vector<1x2x1x1xf32> to vector<1x2x16x9xf32>
    %404 = arith.mulf %403, %401 : vector<1x2x16x9xf32>
    %405 = arith.addf %398, %404 : vector<1x2x16x9xf32>
    %406 = vector.extract_strided_slice %381 {offsets = [3, 0, 0, 0], sizes = [1, 2, 1, 1], strides = [1, 1, 1, 1]} : vector<9x2x1x1xf32> to vector<1x2x1x1xf32>
    %407 = vector.shape_cast %406 : vector<1x2x1x1xf32> to vector<2x1x1xf32>
    %408 = vector.extract_strided_slice %380 {offsets = [0, 0, 1, 0], sizes = [1, 2, 16, 9], strides = [1, 1, 1, 1]} : vector<1x2x18x11xf32> to vector<1x2x16x9xf32>
    %409 = vector.shape_cast %407 : vector<2x1x1xf32> to vector<1x2x1x1xf32>
    %410 = vector.broadcast %409 : vector<1x2x1x1xf32> to vector<1x2x16x9xf32>
    %411 = arith.mulf %410, %408 : vector<1x2x16x9xf32>
    %412 = arith.addf %405, %411 : vector<1x2x16x9xf32>
    %413 = vector.extract_strided_slice %381 {offsets = [4, 0, 0, 0], sizes = [1, 2, 1, 1], strides = [1, 1, 1, 1]} : vector<9x2x1x1xf32> to vector<1x2x1x1xf32>
    %414 = vector.shape_cast %413 : vector<1x2x1x1xf32> to vector<2x1x1xf32>
    %415 = vector.extract_strided_slice %380 {offsets = [0, 0, 1, 1], sizes = [1, 2, 16, 9], strides = [1, 1, 1, 1]} : vector<1x2x18x11xf32> to vector<1x2x16x9xf32>
    %416 = vector.shape_cast %414 : vector<2x1x1xf32> to vector<1x2x1x1xf32>
    %417 = vector.broadcast %416 : vector<1x2x1x1xf32> to vector<1x2x16x9xf32>
    %418 = arith.mulf %417, %415 : vector<1x2x16x9xf32>
    %419 = arith.addf %412, %418 : vector<1x2x16x9xf32>
    %420 = vector.extract_strided_slice %381 {offsets = [5, 0, 0, 0], sizes = [1, 2, 1, 1], strides = [1, 1, 1, 1]} : vector<9x2x1x1xf32> to vector<1x2x1x1xf32>
    %421 = vector.shape_cast %420 : vector<1x2x1x1xf32> to vector<2x1x1xf32>
    %422 = vector.extract_strided_slice %380 {offsets = [0, 0, 1, 2], sizes = [1, 2, 16, 9], strides = [1, 1, 1, 1]} : vector<1x2x18x11xf32> to vector<1x2x16x9xf32>
    %423 = vector.shape_cast %421 : vector<2x1x1xf32> to vector<1x2x1x1xf32>
    %424 = vector.broadcast %423 : vector<1x2x1x1xf32> to vector<1x2x16x9xf32>
    %425 = arith.mulf %424, %422 : vector<1x2x16x9xf32>
    %426 = arith.addf %419, %425 : vector<1x2x16x9xf32>
    %427 = vector.extract_strided_slice %381 {offsets = [6, 0, 0, 0], sizes = [1, 2, 1, 1], strides = [1, 1, 1, 1]} : vector<9x2x1x1xf32> to vector<1x2x1x1xf32>
    %428 = vector.shape_cast %427 : vector<1x2x1x1xf32> to vector<2x1x1xf32>
    %429 = vector.extract_strided_slice %380 {offsets = [0, 0, 2, 0], sizes = [1, 2, 16, 9], strides = [1, 1, 1, 1]} : vector<1x2x18x11xf32> to vector<1x2x16x9xf32>
    %430 = vector.shape_cast %428 : vector<2x1x1xf32> to vector<1x2x1x1xf32>
    %431 = vector.broadcast %430 : vector<1x2x1x1xf32> to vector<1x2x16x9xf32>
    %432 = arith.mulf %431, %429 : vector<1x2x16x9xf32>
    %433 = arith.addf %426, %432 : vector<1x2x16x9xf32>
    %434 = vector.extract_strided_slice %381 {offsets = [7, 0, 0, 0], sizes = [1, 2, 1, 1], strides = [1, 1, 1, 1]} : vector<9x2x1x1xf32> to vector<1x2x1x1xf32>
    %435 = vector.shape_cast %434 : vector<1x2x1x1xf32> to vector<2x1x1xf32>
    %436 = vector.extract_strided_slice %380 {offsets = [0, 0, 2, 1], sizes = [1, 2, 16, 9], strides = [1, 1, 1, 1]} : vector<1x2x18x11xf32> to vector<1x2x16x9xf32>
    %437 = vector.shape_cast %435 : vector<2x1x1xf32> to vector<1x2x1x1xf32>
    %438 = vector.broadcast %437 : vector<1x2x1x1xf32> to vector<1x2x16x9xf32>
    %439 = arith.mulf %438, %436 : vector<1x2x16x9xf32>
    %440 = arith.addf %433, %439 : vector<1x2x16x9xf32>
    %441 = vector.extract_strided_slice %381 {offsets = [8, 0, 0, 0], sizes = [1, 2, 1, 1], strides = [1, 1, 1, 1]} : vector<9x2x1x1xf32> to vector<1x2x1x1xf32>
    %442 = vector.shape_cast %441 : vector<1x2x1x1xf32> to vector<2x1x1xf32>
    %443 = vector.extract_strided_slice %380 {offsets = [0, 0, 2, 2], sizes = [1, 2, 16, 9], strides = [1, 1, 1, 1]} : vector<1x2x18x11xf32> to vector<1x2x16x9xf32>
    %444 = vector.shape_cast %442 : vector<2x1x1xf32> to vector<1x2x1x1xf32>
    %445 = vector.broadcast %444 : vector<1x2x1x1xf32> to vector<1x2x16x9xf32>
    %446 = arith.mulf %445, %443 : vector<1x2x16x9xf32>
    %447 = arith.addf %440, %446 : vector<1x2x16x9xf32>
    %cst_79 = arith.constant 0.000000e+00 : f32
    %448 = vector.broadcast %cst_79 : f32 to vector<1x2x16x9xf32>
    %449 = arith.maximumf %447, %448 : vector<1x2x16x9xf32>
    %c0_80 = arith.constant 0 : index
    %c0_81 = arith.constant 0 : index
    %c0_82 = arith.constant 0 : index
    %c0_83 = arith.constant 0 : index
    %450 = vector.load %arg17[%c0_80, %c0_81, %c0_82, %c0_83] : memref<2x1x1x1xf32, #tpu.memory_space<vmem>>, vector<2x1x1x1xf32>
    %c0_84 = arith.constant 0 : index
    %c0_85 = arith.constant 0 : index
    %c0_86 = arith.constant 0 : index
    %451 = vector.load %arg18[%c0_84, %c0_85, %c0_86] : memref<1x1x1xf32, #tpu.memory_space<vmem>>, vector<1x1x1xf32>
    %452 = vector.shape_cast %451 : vector<1x1x1xf32> to vector<1x1x1x1xf32>
    %453 = vector.broadcast %452 : vector<1x1x1x1xf32> to vector<1x1x16x9xf32>
    %454 = vector.extract_strided_slice %450 {offsets = [0, 0, 0, 0], sizes = [1, 1, 1, 1], strides = [1, 1, 1, 1]} : vector<2x1x1x1xf32> to vector<1x1x1x1xf32>
    %455 = vector.shape_cast %454 : vector<1x1x1x1xf32> to vector<1x1x1xf32>
    %456 = vector.extract_strided_slice %449 {offsets = [0, 0, 0, 0], sizes = [1, 1, 16, 9], strides = [1, 1, 1, 1]} : vector<1x2x16x9xf32> to vector<1x1x16x9xf32>
    %457 = vector.shape_cast %455 : vector<1x1x1xf32> to vector<1x1x1x1xf32>
    %458 = vector.broadcast %457 : vector<1x1x1x1xf32> to vector<1x1x16x9xf32>
    %459 = arith.mulf %458, %456 : vector<1x1x16x9xf32>
    %460 = arith.addf %453, %459 : vector<1x1x16x9xf32>
    %461 = vector.extract_strided_slice %450 {offsets = [1, 0, 0, 0], sizes = [1, 1, 1, 1], strides = [1, 1, 1, 1]} : vector<2x1x1x1xf32> to vector<1x1x1x1xf32>
    %462 = vector.shape_cast %461 : vector<1x1x1x1xf32> to vector<1x1x1xf32>
    %463 = vector.extract_strided_slice %449 {offsets = [0, 1, 0, 0], sizes = [1, 1, 16, 9], strides = [1, 1, 1, 1]} : vector<1x2x16x9xf32> to vector<1x1x16x9xf32>
    %464 = vector.shape_cast %462 : vector<1x1x1xf32> to vector<1x1x1x1xf32>
    %465 = vector.broadcast %464 : vector<1x1x1x1xf32> to vector<1x1x16x9xf32>
    %466 = arith.mulf %465, %463 : vector<1x1x16x9xf32>
    %467 = arith.addf %460, %466 : vector<1x1x16x9xf32>
    %cst_87 = arith.constant 5.000000e-01 : f32
    %468 = vector.broadcast %cst_87 : f32 to vector<1x1x16x9xf32>
    %469 = arith.mulf %468, %467 : vector<1x1x16x9xf32>
    %470 = math.tanh %469 : vector<1x1x16x9xf32>
    %cst_88 = arith.constant 1.000000e+00 : f32
    %471 = vector.broadcast %cst_88 : f32 to vector<1x1x16x9xf32>
    %472 = arith.addf %470, %471 : vector<1x1x16x9xf32>
    %cst_89 = arith.constant 5.000000e-01 : f32
    %473 = vector.broadcast %cst_89 : f32 to vector<1x1x16x9xf32>
    %474 = arith.mulf %473, %472 : vector<1x1x16x9xf32>
    %475 = vector.broadcast %474 : vector<1x1x16x9xf32> to vector<1x4x16x9xf32>
    %476 = arith.mulf %369, %475 : vector<1x4x16x9xf32>
    %cst_90 = arith.constant 6.28318548 : f32
    %477 = vector.broadcast %cst_90 : f32 to vector<1x4x16x9xf32>
    %478 = arith.mulf %476, %477 : vector<1x4x16x9xf32>
    %cst_91 = arith.constant 3.14159274 : f32
    %479 = vector.broadcast %cst_91 : f32 to vector<1x4x16x9xf32>
    %480 = arith.subf %478, %479 : vector<1x4x16x9xf32>
    %481 = math.cos %480 : vector<1x4x16x9xf32>
    %482 = arith.mulf %219, %481 : vector<1x4x16x9xf32>
    %c0_92 = arith.constant 0 : index
    %c0_93 = arith.constant 0 : index
    %c0_94 = arith.constant 0 : index
    %c0_95 = arith.constant 0 : index
    %483 = vector.load %arg19[%c0_92, %c0_93, %c0_94, %c0_95] : memref<1x4x16x9xf32, #tpu.memory_space<vmem>>, vector<1x4x16x9xf32>
    tpu.vector_store %arg19[%c0_92, %c0_93, %c0_94, %c0_95], %482 {strides = array<i32>} : memref<1x4x16x9xf32, #tpu.memory_space<vmem>>, vector<1x4x16x9xf32>,
    %484 = math.sin %480 : vector<1x4x16x9xf32>
    %485 = arith.mulf %219, %484 : vector<1x4x16x9xf32>
    %c0_96 = arith.constant 0 : index
    %c0_97 = arith.constant 0 : index
    %c0_98 = arith.constant 0 : index
    %c0_99 = arith.constant 0 : index
    %486 = vector.load %arg20[%c0_96, %c0_97, %c0_98, %c0_99] : memref<1x4x16x9xf32, #tpu.memory_space<vmem>>, vector<1x4x16x9xf32>
    tpu.vector_store %arg20[%c0_96, %c0_97, %c0_98, %c0_99], %485 {strides = array<i32>} : memref<1x4x16x9xf32, #tpu.memory_space<vmem>>, vector<1x4x16x9xf32>,
    return
  }
  func.func @transform_0(%arg0: i32) -> (i32, i32, i32, i32) {
    %c0_i32 = arith.constant 0 : i32
    %c0_i32_0 = arith.constant 0 : i32
    %c0_i32_1 = arith.constant 0 : i32
    %c0_i32_2 = arith.constant 0 : i32
    return %arg0, %c0_i32, %c0_i32_0, %c0_i32_1 : i32, i32, i32, i32
  }
  func.func @transform_1(%arg0: i32) -> (i32, i32, i32, i32) {
    %c0_i32 = arith.constant 0 : i32
    %c0_i32_0 = arith.constant 0 : i32
    %c0_i32_1 = arith.constant 0 : i32
    %c0_i32_2 = arith.constant 0 : i32
    return %arg0, %c0_i32, %c0_i32_0, %c0_i32_1 : i32, i32, i32, i32
  }
  func.func @transform_2(%arg0: i32) -> (i32, i32, i32, i32) {
    %c0_i32 = arith.constant 0 : i32
    %c0_i32_0 = arith.constant 0 : i32
    %c0_i32_1 = arith.constant 0 : i32
    %c0_i32_2 = arith.constant 0 : i32
    %c0_i32_3 = arith.constant 0 : i32
    return %c0_i32, %c0_i32_0, %c0_i32_1, %c0_i32_2 : i32, i32, i32, i32
  }
  func.func @transform_3(%arg0: i32) -> (i32, i32, i32) {
    %c0_i32 = arith.constant 0 : i32
    %c0_i32_0 = arith.constant 0 : i32
    %c0_i32_1 = arith.constant 0 : i32
    %c0_i32_2 = arith.constant 0 : i32
    return %c0_i32, %c0_i32_0, %c0_i32_1 : i32, i32, i32
  }
  func.func @transform_4(%arg0: i32) -> (i32, i32, i32, i32) {
    %c0_i32 = arith.constant 0 : i32
    %c0_i32_0 = arith.constant 0 : i32
    %c0_i32_1 = arith.constant 0 : i32
    %c0_i32_2 = arith.constant 0 : i32
    %c0_i32_3 = arith.constant 0 : i32
    return %c0_i32, %c0_i32_0, %c0_i32_1, %c0_i32_2 : i32, i32, i32, i32
  }
  func.func @transform_5(%arg0: i32) -> (i32, i32, i32) {
    %c0_i32 = arith.constant 0 : i32
    %c0_i32_0 = arith.constant 0 : i32
    %c0_i32_1 = arith.constant 0 : i32
    %c0_i32_2 = arith.constant 0 : i32
    return %c0_i32, %c0_i32_0, %c0_i32_1 : i32, i32, i32
  }
  func.func @transform_6(%arg0: i32) -> (i32, i32, i32, i32) {
    %c0_i32 = arith.constant 0 : i32
    %c0_i32_0 = arith.constant 0 : i32
    %c0_i32_1 = arith.constant 0 : i32
    %c0_i32_2 = arith.constant 0 : i32
    %c0_i32_3 = arith.constant 0 : i32
    return %c0_i32, %c0_i32_0, %c0_i32_1, %c0_i32_2 : i32, i32, i32, i32
  }
  func.func @transform_7(%arg0: i32) -> (i32, i32, i32) {
    %c0_i32 = arith.constant 0 : i32
    %c0_i32_0 = arith.constant 0 : i32
    %c0_i32_1 = arith.constant 0 : i32
    %c0_i32_2 = arith.constant 0 : i32
    return %c0_i32, %c0_i32_0, %c0_i32_1 : i32, i32, i32
  }
  func.func @transform_8(%arg0: i32) -> (i32, i32, i32, i32) {
    %c0_i32 = arith.constant 0 : i32
    %c0_i32_0 = arith.constant 0 : i32
    %c0_i32_1 = arith.constant 0 : i32
    %c0_i32_2 = arith.constant 0 : i32
    %c0_i32_3 = arith.constant 0 : i32
    return %c0_i32, %c0_i32_0, %c0_i32_1, %c0_i32_2 : i32, i32, i32, i32
  }
  func.func @transform_9(%arg0: i32) -> (i32, i32, i32) {
    %c0_i32 = arith.constant 0 : i32
    %c0_i32_0 = arith.constant 0 : i32
    %c0_i32_1 = arith.constant 0 : i32
    %c0_i32_2 = arith.constant 0 : i32
    return %c0_i32, %c0_i32_0, %c0_i32_1 : i32, i32, i32
  }
  func.func @transform_10(%arg0: i32) -> (i32, i32, i32, i32) {
    %c0_i32 = arith.constant 0 : i32
    %c0_i32_0 = arith.constant 0 : i32
    %c0_i32_1 = arith.constant 0 : i32
    %c0_i32_2 = arith.constant 0 : i32
    %c0_i32_3 = arith.constant 0 : i32
    return %c0_i32, %c0_i32_0, %c0_i32_1, %c0_i32_2 : i32, i32, i32, i32
  }
  func.func @transform_11(%arg0: i32) -> (i32, i32, i32) {
    %c0_i32 = arith.constant 0 : i32
    %c0_i32_0 = arith.constant 0 : i32
    %c0_i32_1 = arith.constant 0 : i32
    %c0_i32_2 = arith.constant 0 : i32
    return %c0_i32, %c0_i32_0, %c0_i32_1 : i32, i32, i32
  }
  func.func @transform_12(%arg0: i32) -> (i32, i32, i32, i32) {
    %c0_i32 = arith.constant 0 : i32
    %c0_i32_0 = arith.constant 0 : i32
    %c0_i32_1 = arith.constant 0 : i32
    %c0_i32_2 = arith.constant 0 : i32
    %c0_i32_3 = arith.constant 0 : i32
    return %c0_i32, %c0_i32_0, %c0_i32_1, %c0_i32_2 : i32, i32, i32, i32
  }
  func.func @transform_13(%arg0: i32) -> (i32, i32, i32) {
    %c0_i32 = arith.constant 0 : i32
    %c0_i32_0 = arith.constant 0 : i32
    %c0_i32_1 = arith.constant 0 : i32
    %c0_i32_2 = arith.constant 0 : i32
    return %c0_i32, %c0_i32_0, %c0_i32_1 : i32, i32, i32
  }
  func.func @transform_14(%arg0: i32) -> (i32, i32, i32, i32) {
    %c0_i32 = arith.constant 0 : i32
    %c0_i32_0 = arith.constant 0 : i32
    %c0_i32_1 = arith.constant 0 : i32
    %c0_i32_2 = arith.constant 0 : i32
    %c0_i32_3 = arith.constant 0 : i32
    return %c0_i32, %c0_i32_0, %c0_i32_1, %c0_i32_2 : i32, i32, i32, i32
  }
  func.func @transform_15(%arg0: i32) -> (i32, i32, i32) {
    %c0_i32 = arith.constant 0 : i32
    %c0_i32_0 = arith.constant 0 : i32
    %c0_i32_1 = arith.constant 0 : i32
    %c0_i32_2 = arith.constant 0 : i32
    return %c0_i32, %c0_i32_0, %c0_i32_1 : i32, i32, i32
  }
  func.func @transform_16(%arg0: i32) -> (i32, i32, i32, i32) {
    %c0_i32 = arith.constant 0 : i32
    %c0_i32_0 = arith.constant 0 : i32
    %c0_i32_1 = arith.constant 0 : i32
    %c0_i32_2 = arith.constant 0 : i32
    %c0_i32_3 = arith.constant 0 : i32
    return %c0_i32, %c0_i32_0, %c0_i32_1, %c0_i32_2 : i32, i32, i32, i32
  }
  func.func @transform_17(%arg0: i32) -> (i32, i32, i32) {
    %c0_i32 = arith.constant 0 : i32
    %c0_i32_0 = arith.constant 0 : i32
    %c0_i32_1 = arith.constant 0 : i32
    %c0_i32_2 = arith.constant 0 : i32
    return %c0_i32, %c0_i32_0, %c0_i32_1 : i32, i32, i32
  }
  func.func @transform_18(%arg0: i32) -> (i32, i32, i32, i32) {
    %c0_i32 = arith.constant 0 : i32
    %c0_i32_0 = arith.constant 0 : i32
    %c0_i32_1 = arith.constant 0 : i32
    %c0_i32_2 = arith.constant 0 : i32
    return %arg0, %c0_i32, %c0_i32_0, %c0_i32_1 : i32, i32, i32, i32
  }
  func.func @transform_19(%arg0: i32) -> (i32, i32, i32, i32) {
    %c0_i32 = arith.constant 0 : i32
    %c0_i32_0 = arith.constant 0 : i32
    %c0_i32_1 = arith.constant 0 : i32
    %c0_i32_2 = arith.constant 0 : i32
    return %arg0, %c0_i32, %c0_i32_0, %c0_i32_1 : i32, i32, i32, i32
  }
}

module attributes {stable_mosaic.version = 11 : i64} {
  func.func @_residual_relu_kernel(%arg0: i32, %arg1: memref<8x256xf32, #tpu.memory_space<vmem>>, %arg2: memref<8x256xf32, #tpu.memory_space<vmem>>, %arg3: memref<8x256xf32, #tpu.memory_space<vmem>>) attributes {dimension_semantics = [#tpu.dimension_semantics<parallel>], iteration_bounds = array<i64: 1>, scalar_prefetch = 0 : i64, scratch_operands = 0 : i64, tpu.core_type = #tpu.core_type<tc>, window_params = [{transform_indices = @transform_0, window_bounds = array<i64: 8, 256>}, {transform_indices = @transform_1, window_bounds = array<i64: 8, 256>}, {transform_indices = @transform_2, window_bounds = array<i64: 8, 256>}]} {
    %c0 = arith.constant 0 : index
    %c0_0 = arith.constant 0 : index
    %0 = vector.load %arg1[%c0, %c0_0] : memref<8x256xf32, #tpu.memory_space<vmem>>, vector<8x256xf32>
    %1 = math.absf %0 : vector<8x256xf32>
    %c0_1 = arith.constant 0 : index
    %c0_2 = arith.constant 0 : index
    %2 = vector.load %arg2[%c0_1, %c0_2] : memref<8x256xf32, #tpu.memory_space<vmem>>, vector<8x256xf32>
    %3 = arith.addf %1, %2 : vector<8x256xf32>
    %cst = arith.constant 0.000000e+00 : f32
    %4 = vector.broadcast %cst : f32 to vector<8x256xf32>
    %5 = arith.maximumf %3, %4 : vector<8x256xf32>
    %c0_3 = arith.constant 0 : index
    %c0_4 = arith.constant 0 : index
    %6 = vector.load %arg3[%c0_3, %c0_4] : memref<8x256xf32, #tpu.memory_space<vmem>>, vector<8x256xf32>
    tpu.vector_store %arg3[%c0_3, %c0_4], %5 {strides = array<i32>} : memref<8x256xf32, #tpu.memory_space<vmem>>, vector<8x256xf32>,
    return
  }
  func.func @transform_0(%arg0: i32) -> (i32, i32) {
    %c0_i32 = arith.constant 0 : i32
    %c0_i32_0 = arith.constant 0 : i32
    return %arg0, %c0_i32 : i32, i32
  }
  func.func @transform_1(%arg0: i32) -> (i32, i32) {
    %c0_i32 = arith.constant 0 : i32
    %c0_i32_0 = arith.constant 0 : i32
    return %arg0, %c0_i32 : i32, i32
  }
  func.func @transform_2(%arg0: i32) -> (i32, i32) {
    %c0_i32 = arith.constant 0 : i32
    %c0_i32_0 = arith.constant 0 : i32
    return %arg0, %c0_i32 : i32, i32
  }
}

</mosaic_0001>

<llo_original>
// kernel: reverse.0
$region0: #{reverse.0}
  %s0 = inlined_call_operand.vmem [shape: f32[2,4,16,7], index: 0, kind: input, shape index: {}]
  %s1 = inlined_call_operand.vmem [shape: f32[2,4,16,7], index: 1, kind: output, shape index: {}]
  $region1: #{reverse.0} parent=0
    #allocation0 [shape = 'u8[65536]{0}', space=vmem, size = 0x10000, scoped, tag = 'operand span for operand 0']
    #allocation1 [shape = 'u8[32768]{0}', space=vmem, size = 0x8000, scoped, tag = 'operand span for operand 1']
    %s2 = scalar_lea.vmem [#allocation0], 8
    // Predicated region
    $region2: #{reverse.0} parent=1 // pred_check
      _
    $region3: #{reverse.0} parent=1 // pred_check_branch
      %4 = sbr.rel (0) target = $region5
    $region4: #{reverse.0} parent=1 // pred_region
      // Predicated region
      $region6: #{reverse.0} parent=4 // pred_check
        _
      $region7: #{reverse.0} parent=4 // pred_check_branch
        %6 = sbr.rel (0) target = $region9
      $region8: #{reverse.0} parent=4 // pred_region
        // Predicated region
        $region21: #{reverse.0} parent=8 // pred_check
          _
        $region22: #{reverse.0} parent=8 // pred_check_branch
          %35 = sbr.rel (0) target = $region24
        $region23: #{reverse.0} parent=8 // pred_region
          loop: start=0, step=1, limit=1
          $region25: #{reverse.0} parent=23 // loop_pre_header
            _
          $region26: #{reverse.0} parent=23 // loop_header
            %s37 = sphi 0, %s41
            %p38 = scmp.ge.s32.totalorder %s37, 1
            %s42 = sphi %s0, %s0
            %s43 = sphi %s2, %s2
          $region27: #{reverse.0} parent=23 // loop_header_branch
            %40 = sbr.rel (%p38) target = $region31
          $region28: #{reverse.0} parent=23 // loop_body
            %v44 = vld [vmem:[%s42] sm:$0xff]
            %45 = vst [vmem:[%s43] sm:$0xff] %v44
            %v46 = vld [vmem:[%s42 + $0x8] sm:$0xff]
            %47 = vst [vmem:[%s43 + $0x10] sm:$0xff] %v46
            %v48 = vld [vmem:[%s42 + $0x10] sm:$0xff]
            %49 = vst [vmem:[%s43 + $0x20] sm:$0xff] %v48
            %v50 = vld [vmem:[%s42 + $0x18] sm:$0xff]
            %51 = vst [vmem:[%s43 + $0x30] sm:$0xff] %v50
            %v52 = vld [vmem:[%s42 + $0x20] sm:$0xff]
            %53 = vst [vmem:[%s43 + $0x40] sm:$0xff] %v52
            %v54 = vld [vmem:[%s42 + $0x28] sm:$0xff]
            %55 = vst [vmem:[%s43 + $0x50] sm:$0xff] %v54
            %v56 = vld [vmem:[%s42 + $0x30] sm:$0xff]
            %57 = vst [vmem:[%s43 + $0x60] sm:$0xff] %v56
            %v58 = vld [vmem:[%s42 + $0x38] sm:$0xff]
            %59 = vst [vmem:[%s43 + $0x70] sm:$0xff] %v58
          $region29: #{reverse.0} parent=23 // loop_footer
            %s41 = sadd.s32 1, %s37
          $region30: #{reverse.0} parent=23 // loop_footer_branch
            %36 = sbr.rel target = $region26
          $region31: #{reverse.0} parent=23 // loop_exit
            _
        $region24: #{reverse.0} parent=8 // pred_fallthru
          _
        // Predicated region
        $region32: #{reverse.0} parent=8 // pred_check
          _
        $region33: #{reverse.0} parent=8 // pred_check_branch
          %61 = sbr.rel target = $region35
        $region34: #{reverse.0} parent=8 // pred_region
          _
        $region35: #{reverse.0} parent=8 // pred_fallthru
          _
      $region9: #{reverse.0} parent=4 // pred_fallthru
        _
      // Predicated region
      $region10: #{reverse.0} parent=4 // pred_check
        _
      $region11: #{reverse.0} parent=4 // pred_check_branch
        %8 = sbr.rel target = $region13
      $region12: #{reverse.0} parent=4 // pred_region
        loop: start=0, step=1, limit=1
        $region14: #{reverse.0} parent=12 // loop_pre_header
          _
        $region15: #{reverse.0} parent=12 // loop_header
          %s11 = sphi 0, %s15
          %p12 = scmp.ge.s32.totalorder %s11, 1
          %s16 = sphi %s0, %s0
          %s17 = sphi %s2, %s2
        $region16: #{reverse.0} parent=12 // loop_header_branch
          %14 = sbr.rel (%p12) target = $region20
        $region17: #{reverse.0} parent=12 // loop_body
          %v18 = vld [vmem:[%s16] sm:$0xff]
          %19 = vst [vmem:[%s17] sm:$0xff] %v18
          %v20 = vld [vmem:[%s16 + $0x8] sm:$0xff]
          %21 = vst [vmem:[%s17 + $0x10] sm:$0xff] %v20
          %v22 = vld [vmem:[%s16 + $0x10] sm:$0xff]
          %23 = vst [vmem:[%s17 + $0x20] sm:$0xff] %v22
          %v24 = vld [vmem:[%s16 + $0x18] sm:$0xff]
          %25 = vst [vmem:[%s17 + $0x30] sm:$0xff] %v24
          %v26 = vld [vmem:[%s16 + $0x20] sm:$0xff]
          %27 = vst [vmem:[%s17 + $0x40] sm:$0xff] %v26
          %v28 = vld [vmem:[%s16 + $0x28] sm:$0xff]
          %29 = vst [vmem:[%s17 + $0x50] sm:$0xff] %v28
          %v30 = vld [vmem:[%s16 + $0x30] sm:$0xff]
          %31 = vst [vmem:[%s17 + $0x60] sm:$0xff] %v30
          %v32 = vld [vmem:[%s16 + $0x38] sm:$0xff]
          %33 = vst [vmem:[%s17 + $0x70] sm:$0xff] %v32
        $region18: #{reverse.0} parent=12 // loop_footer
          %s15 = sadd.s32 1, %s11
        $region19: #{reverse.0} parent=12 // loop_footer_branch
          %10 = sbr.rel target = $region15
        $region20: #{reverse.0} parent=12 // loop_exit
          _
      $region13: #{reverse.0} parent=4 // pred_fallthru
        _
    $region5: #{reverse.0} parent=1 // pred_fallthru
      _
    %62 = vnop
    %s63 = scalar_lea.vmem [#allocation0], 7
    %v64 = vld [vmem:[%s63] ss:$-1 sm:$0xff]
    %v65 = vrot.slane %v64, 1
    %66 = vst [vmem:[#allocation1] sm:$0xff] %v65
    %s67 = scalar_lea.vmem [#allocation0], 8
    %s68 = scalar_lea.vmem %s67, 7 [#allocation0]
    %v69 = vld [vmem:[%s68] ss:$-1 sm:$0xff]
    %v70 = vrot.slane %v69, 1
    %v71 = vlaneseq
    %v72 = vshrl.u32 %v71, 7
    %vm73 = vcmp.lt.s32.totalorder %v72, 7
    %74 = vst.msk [vmem:[#allocation1] sm:$0xff] %vm73, %v70
    %s75 = scalar_lea.vmem [#allocation1], 8
    %s76 = scalar_lea.vmem [#allocation0], 16
    %s77 = scalar_lea.vmem %s76, 7 [#allocation0]
    %v78 = vld [vmem:[%s77] ss:$-1 sm:$0xff]
    %v79 = vrot.slane %v78, 1
    %80 = vst [vmem:[%s75] sm:$0xff] %v79
    %s81 = scalar_lea.vmem %s76, 8 [#allocation0]
    %s82 = scalar_lea.vmem %s81, 7 [#allocation0]
    %v83 = vld [vmem:[%s82] ss:$-1 sm:$0xff]
    %v84 = vrot.slane %v83, 1
    %v85 = vlaneseq
    %v86 = vshrl.u32 %v85, 7
    %vm87 = vcmp.lt.s32.totalorder %v86, 7
    %88 = vst.msk [vmem:[%s75] sm:$0xff] %vm87, %v84
    %s89 = scalar_lea.vmem [#allocation1], 16
    %s90 = scalar_lea.vmem [#allocation0], 32
    %s91 = scalar_lea.vmem %s90, 7 [#allocation0]
    %v92 = vld [vmem:[%s91] ss:$-1 sm:$0xff]
    %v93 = vrot.slane %v92, 1
    %94 = vst [vmem:[%s89] sm:$0xff] %v93
    %s95 = scalar_lea.vmem %s90, 8 [#allocation0]
    %s96 = scalar_lea.vmem %s95, 7 [#allocation0]
    %v97 = vld [vmem:[%s96] ss:$-1 sm:$0xff]
    %v98 = vrot.slane %v97, 1
    %v99 = vlaneseq
    %v100 = vshrl.u32 %v99, 7
    %vm101 = vcmp.lt.s32.totalorder %v100, 7
    %102 = vst.msk [vmem:[%s89] sm:$0xff] %vm101, %v98
    %s103 = scalar_lea.vmem [#allocation1], 24
    %s104 = scalar_lea.vmem [#allocation0], 48
    %s105 = scalar_lea.vmem %s104, 7 [#allocation0]
    %v106 = vld [vmem:[%s105] ss:$-1 sm:$0xff]
    %v107 = vrot.slane %v106, 1
    %108 = vst [vmem:[%s103] sm:$0xff] %v107
    %s109 = scalar_lea.vmem %s104, 8 [#allocation0]
    %s110 = scalar_lea.vmem %s109, 7 [#allocation0]
    %v111 = vld [vmem:[%s110] ss:$-1 sm:$0xff]
    %v112 = vrot.slane %v111, 1
    %v113 = vlaneseq
    %v114 = vshrl.u32 %v113, 7
    %vm115 = vcmp.lt.s32.totalorder %v114, 7
    %116 = vst.msk [vmem:[%s103] sm:$0xff] %vm115, %v112
    %s117 = scalar_lea.vmem [#allocation1], 32
    %s118 = scalar_lea.vmem [#allocation0], 64
    %s119 = scalar_lea.vmem %s118, 7 [#allocation0]
    %v120 = vld [vmem:[%s119] ss:$-1 sm:$0xff]
    %v121 = vrot.slane %v120, 1
    %122 = vst [vmem:[%s117] sm:$0xff] %v121
    %s123 = scalar_lea.vmem %s118, 8 [#allocation0]
    %s124 = scalar_lea.vmem %s123, 7 [#allocation0]
    %v125 = vld [vmem:[%s124] ss:$-1 sm:$0xff]
    %v126 = vrot.slane %v125, 1
    %v127 = vlaneseq
    %v128 = vshrl.u32 %v127, 7
    %vm129 = vcmp.lt.s32.totalorder %v128, 7
    %130 = vst.msk [vmem:[%s117] sm:$0xff] %vm129, %v126
    %s131 = scalar_lea.vmem [#allocation1], 40
    %s132 = scalar_lea.vmem [#allocation0], 80
    %s133 = scalar_lea.vmem %s132, 7 [#allocation0]
    %v134 = vld [vmem:[%s133] ss:$-1 sm:$0xff]
    %v135 = vrot.slane %v134, 1
    %136 = vst [vmem:[%s131] sm:$0xff] %v135
    %s137 = scalar_lea.vmem %s132, 8 [#allocation0]
    %s138 = scalar_lea.vmem %s137, 7 [#allocation0]
    %v139 = vld [vmem:[%s138] ss:$-1 sm:$0xff]
    %v140 = vrot.slane %v139, 1
    %v141 = vlaneseq
    %v142 = vshrl.u32 %v141, 7
    %vm143 = vcmp.lt.s32.totalorder %v142, 7
    %144 = vst.msk [vmem:[%s131] sm:$0xff] %vm143, %v140
    %s145 = scalar_lea.vmem [#allocation1], 48
    %s146 = scalar_lea.vmem [#allocation0], 96
    %s147 = scalar_lea.vmem %s146, 7 [#allocation0]
    %v148 = vld [vmem:[%s147] ss:$-1 sm:$0xff]
    %v149 = vrot.slane %v148, 1
    %150 = vst [vmem:[%s145] sm:$0xff] %v149
    %s151 = scalar_lea.vmem %s146, 8 [#allocation0]
    %s152 = scalar_lea.vmem %s151, 7 [#allocation0]
    %v153 = vld [vmem:[%s152] ss:$-1 sm:$0xff]
    %v154 = vrot.slane %v153, 1
    %v155 = vlaneseq
    %v156 = vshrl.u32 %v155, 7
    %vm157 = vcmp.lt.s32.totalorder %v156, 7
    %158 = vst.msk [vmem:[%s145] sm:$0xff] %vm157, %v154
    %s159 = scalar_lea.vmem [#allocation1], 56
    %s160 = scalar_lea.vmem [#allocation0], 112
    %s161 = scalar_lea.vmem %s160, 7 [#allocation0]
    %v162 = vld [vmem:[%s161] ss:$-1 sm:$0xff]
    %v163 = vrot.slane %v162, 1
    %164 = vst [vmem:[%s159] sm:$0xff] %v163
    %s165 = scalar_lea.vmem %s160, 8 [#allocation0]
    %s166 = scalar_lea.vmem %s165, 7 [#allocation0]
    %v167 = vld [vmem:[%s166] ss:$-1 sm:$0xff]
    %v168 = vrot.slane %v167, 1
    %v169 = vlaneseq
    %v170 = vshrl.u32 %v169, 7
    %vm171 = vcmp.lt.s32.totalorder %v170, 7
    %172 = vst.msk [vmem:[%s159] sm:$0xff] %vm171, %v168
    // Predicated region
    $region36: #{reverse.0} parent=1 // pred_check
      _
    $region37: #{reverse.0} parent=1 // pred_check_branch
      %174 = sbr.rel (0) target = $region39
    $region38: #{reverse.0} parent=1 // pred_region
      // Predicated region
      $region40: #{reverse.0} parent=38 // pred_check
        _
      $region41: #{reverse.0} parent=38 // pred_check_branch
        %176 = sbr.rel (0) target = $region43
      $region42: #{reverse.0} parent=38 // pred_region
        // Predicated region
        $region55: #{reverse.0} parent=42 // pred_check
          _
        $region56: #{reverse.0} parent=42 // pred_check_branch
          %205 = sbr.rel (0) target = $region58
        $region57: #{reverse.0} parent=42 // pred_region
          loop: start=0, step=1, limit=1
          $region59: #{reverse.0} parent=57 // loop_pre_header
            _
          $region60: #{reverse.0} parent=57 // loop_header
            %s207 = sphi 0, %s211
            %p208 = scmp.ge.s32.totalorder %s207, 1
            %s212 = sphi [#allocation1], [#allocation1]
            %s213 = sphi %s1, %s1
          $region61: #{reverse.0} parent=57 // loop_header_branch
            %210 = sbr.rel (%p208) target = $region65
          $region62: #{reverse.0} parent=57 // loop_body
            %v214 = vld [vmem:[%s212] sm:$0xff]
            %215 = vst [vmem:[%s213] sm:$0xff] %v214
            %v216 = vld [vmem:[%s212 + $0x8] sm:$0xff]
            %217 = vst [vmem:[%s213 + $0x8] sm:$0xff] %v216
            %v218 = vld [vmem:[%s212 + $0x10] sm:$0xff]
            %219 = vst [vmem:[%s213 + $0x10] sm:$0xff] %v218
            %v220 = vld [vmem:[%s212 + $0x18] sm:$0xff]
            %221 = vst [vmem:[%s213 + $0x18] sm:$0xff] %v220
            %v222 = vld [vmem:[%s212 + $0x20] sm:$0xff]
            %223 = vst [vmem:[%s213 + $0x20] sm:$0xff] %v222
            %v224 = vld [vmem:[%s212 + $0x28] sm:$0xff]
            %225 = vst [vmem:[%s213 + $0x28] sm:$0xff] %v224
            %v226 = vld [vmem:[%s212 + $0x30] sm:$0xff]
            %227 = vst [vmem:[%s213 + $0x30] sm:$0xff] %v226
            %v228 = vld [vmem:[%s212 + $0x38] sm:$0xff]
            %229 = vst [vmem:[%s213 + $0x38] sm:$0xff] %v228
          $region63: #{reverse.0} parent=57 // loop_footer
            %s211 = sadd.s32 1, %s207
          $region64: #{reverse.0} parent=57 // loop_footer_branch
            %206 = sbr.rel target = $region60
          $region65: #{reverse.0} parent=57 // loop_exit
            _
        $region58: #{reverse.0} parent=42 // pred_fallthru
          _
        // Predicated region
        $region66: #{reverse.0} parent=42 // pred_check
          _
        $region67: #{reverse.0} parent=42 // pred_check_branch
          %231 = sbr.rel target = $region69
        $region68: #{reverse.0} parent=42 // pred_region
          _
        $region69: #{reverse.0} parent=42 // pred_fallthru
          _
      $region43: #{reverse.0} parent=38 // pred_fallthru
        _
      // Predicated region
      $region44: #{reverse.0} parent=38 // pred_check
        _
      $region45: #{reverse.0} parent=38 // pred_check_branch
        %178 = sbr.rel target = $region47
      $region46: #{reverse.0} parent=38 // pred_region
        loop: start=0, step=1, limit=1
        $region48: #{reverse.0} parent=46 // loop_pre_header
          _
        $region49: #{reverse.0} parent=46 // loop_header
          %s181 = sphi 0, %s185
          %p182 = scmp.ge.s32.totalorder %s181, 1
          %s186 = sphi [#allocation1], [#allocation1]
          %s187 = sphi %s1, %s1
        $region50: #{reverse.0} parent=46 // loop_header_branch
          %184 = sbr.rel (%p182) target = $region54
        $region51: #{reverse.0} parent=46 // loop_body
          %v188 = vld [vmem:[%s186] sm:$0xff]
          %189 = vst [vmem:[%s187] sm:$0xff] %v188
          %v190 = vld [vmem:[%s186 + $0x8] sm:$0xff]
          %191 = vst [vmem:[%s187 + $0x8] sm:$0xff] %v190
          %v192 = vld [vmem:[%s186 + $0x10] sm:$0xff]
          %193 = vst [vmem:[%s187 + $0x10] sm:$0xff] %v192
          %v194 = vld [vmem:[%s186 + $0x18] sm:$0xff]
          %195 = vst [vmem:[%s187 + $0x18] sm:$0xff] %v194
          %v196 = vld [vmem:[%s186 + $0x20] sm:$0xff]
          %197 = vst [vmem:[%s187 + $0x20] sm:$0xff] %v196
          %v198 = vld [vmem:[%s186 + $0x28] sm:$0xff]
          %199 = vst [vmem:[%s187 + $0x28] sm:$0xff] %v198
          %v200 = vld [vmem:[%s186 + $0x30] sm:$0xff]
          %201 = vst [vmem:[%s187 + $0x30] sm:$0xff] %v200
          %v202 = vld [vmem:[%s186 + $0x38] sm:$0xff]
          %203 = vst [vmem:[%s187 + $0x38] sm:$0xff] %v202
        $region52: #{reverse.0} parent=46 // loop_footer
          %s185 = sadd.s32 1, %s181
        $region53: #{reverse.0} parent=46 // loop_footer_branch
          %180 = sbr.rel target = $region49
        $region54: #{reverse.0} parent=46 // loop_exit
          _
      $region47: #{reverse.0} parent=38 // pred_fallthru
        _
    $region39: #{reverse.0} parent=1 // pred_fallthru
      _
    %232 = vnop

// kernel: freq_block_pallas.3
$region0: #{freq_block_pallas.3}
  #allocation0 [shape = 'u32[]', space=smem, size = 0x4, offset = 0x4, fixed_abs, tag = 'smem constant byte address 0x4 - core index']
  #allocation1 [shape = 'u32[144,128]{1,0:T(1,128)}', space=vmem, size = 0x12000, scoped, tag = 'internal scratch']
  %s0 = inlined_call_operand.vmem [shape: f32[8,256], index: 0, kind: input, shape index: {}]
  %s1 = inlined_call_operand.vmem [shape: f32[8,256], index: 1, kind: input, shape index: {}]
  %s2 = inlined_call_operand.vmem [shape: f32[8,256], index: 2, kind: output, shape index: {}]
  %s3 = sld [smem:[#allocation0]]
  $region18: #{freq_block_pallas.3} parent=0
    _
  %s5 = ssub.s32 1, %s3
  %s6 = scalar_select 0, %s5, %s3
  // Predicated region
  $region2: #{freq_block_pallas.3} parent=0 // pred_check
    _
  $region3: #{freq_block_pallas.3} parent=0 // pred_check_branch
    %8 = sbr.rel (0) target = $region5
  $region4: #{freq_block_pallas.3} parent=0 // pred_region
    _
  $region5: #{freq_block_pallas.3} parent=0 // pred_fallthru
    _
  // Predicated region
  $region6: #{freq_block_pallas.3} parent=0 // pred_check
    _
  $region7: #{freq_block_pallas.3} parent=0 // pred_check_branch
    %10 = sbr.rel (0) target = $region9
  $region8: #{freq_block_pallas.3} parent=0 // pred_region
    _
  $region9: #{freq_block_pallas.3} parent=0 // pred_fallthru
    _
  %v11 = vld [vmem:[%s0] sm:$0xff]
  %v12 = vld [vmem:[%s0 + $0x8] sm:$0xff]
  %v13 = vand.u32 2147483647, %v11
  %v14 = vand.u32 2147483647, %v12
  %v15 = vld [vmem:[%s1] sm:$0xff]
  %v16 = vld [vmem:[%s1 + $0x8] sm:$0xff]
  %v17 = vadd.f32 %v13, %v15
  %v18 = vadd.f32 %v14, %v16
  %v19 = vmax.f32 %v17, 0.0
  %v20 = vmax.f32 %v18, 0.0
  %21 = vst [vmem:[%s2] sm:$0xff] %v19
  %22 = vst [vmem:[%s2 + $0x8] sm:$0xff] %v20
  // Predicated region
  $region10: #{freq_block_pallas.3} parent=0 // pred_check
    _
  $region11: #{freq_block_pallas.3} parent=0 // pred_check_branch
    %24 = sbr.rel (0) target = $region13
  $region12: #{freq_block_pallas.3} parent=0 // pred_region
    _
  $region13: #{freq_block_pallas.3} parent=0 // pred_fallthru
    _
  // Predicated region
  $region14: #{freq_block_pallas.3} parent=0 // pred_check
    _
  $region15: #{freq_block_pallas.3} parent=0 // pred_check_branch
    %26 = sbr.rel (0) target = $region17
  $region16: #{freq_block_pallas.3} parent=0 // pred_region
    _
  $region17: #{freq_block_pallas.3} parent=0 // pred_fallthru
    _

// kernel: freq_block_pallas.2
$region0: #{freq_block_pallas.2}
  #allocation0 [shape = 'u32[]', space=smem, size = 0x4, offset = 0x4, fixed_abs, tag = 'smem constant byte address 0x4 - core index']
  #allocation1 [shape = 'u32[144,128]{1,0:T(1,128)}', space=vmem, size = 0x12000, scoped, tag = 'internal scratch']
  #allocation2 [shape = 'f32[1,1,1]{2,1,0:T(1,128)S(1)}', space=vmem, size = 0x200, scoped, tag = 'scoped memory for freq_block_pallas.2']
  #allocation3 [shape = 'f32[1,1,1]{2,1,0:T(1,128)S(1)}', space=vmem, size = 0x200, scoped, tag = 'scoped memory for freq_block_pallas.2']
  %s0 = inlined_call_operand.vmem [shape: f32[2,4,16,9], index: 0, kind: input, shape index: {}]
  %s1 = inlined_call_operand.vmem [shape: f32[2,4,16,9], index: 1, kind: input, shape index: {}]
  %s2 = inlined_call_operand.vmem [shape: f32[9,4,1,1], index: 2, kind: input, shape index: {}]
  %s3 = inlined_call_operand.vmem [shape: f32[4,1,1], index: 3, kind: input, shape index: {}]
  %s4 = inlined_call_operand.vmem [shape: f32[4,4,1,1], index: 4, kind: input, shape index: {}]
  %s5 = inlined_call_operand.vmem [shape: f32[4,1,1], index: 5, kind: input, shape index: {}]
  %s6 = inlined_call_operand.vmem [shape: f32[9,2,1,1], index: 6, kind: input, shape index: {}]
  %s7 = inlined_call_operand.vmem [shape: f32[2,1,1], index: 7, kind: input, shape index: {}]
  %s8 = inlined_call_operand.vmem [shape: f32[2,1,1,1], index: 8, kind: input, shape index: {}]
  %s9 = inlined_call_operand.<no memory space> [shape: f32[1,1,1], index: 9, kind: input, shape index: {}]
  %s10 = inlined_call_operand.vmem [shape: f32[9,8,1,1], index: 10, kind: input, shape index: {}]
  %s11 = inlined_call_operand.vmem [shape: f32[8,1,1], index: 11, kind: input, shape index: {}]
  %s12 = inlined_call_operand.vmem [shape: f32[8,4,1,1], index: 12, kind: input, shape index: {}]
  %s13 = inlined_call_operand.vmem [shape: f32[4,1,1], index: 13, kind: input, shape index: {}]
  %s14 = inlined_call_operand.vmem [shape: f32[9,2,1,1], index: 14, kind: input, shape index: {}]
  %s15 = inlined_call_operand.vmem [shape: f32[2,1,1], index: 15, kind: input, shape index: {}]
  %s16 = inlined_call_operand.vmem [shape: f32[2,1,1,1], index: 16, kind: input, shape index: {}]
  %s17 = inlined_call_operand.<no memory space> [shape: f32[1,1,1], index: 17, kind: input, shape index: {}]
  %s18 = inlined_call_operand.vmem [shape: f32[2,4,16,9], index: 18, kind: output, shape index: {0}]
  %s19 = inlined_call_operand.vmem [shape: f32[2,4,16,9], index: 19, kind: output, shape index: {1}]
  %20 = xla_tuple %s18, %s19
  %s21 = sld [smem:[#allocation0]]
  $region113: #{freq_block_pallas.2} parent=0
    _
  %s23 = ssub.s32 1, %s21
  %s24 = scalar_select 0, %s23, %s21
  %v25 = vstv %s9
  %26 = vst [vmem:[#allocation2] sm:$0x1] %v25
  %v27 = vstv %s17
  %28 = vst [vmem:[#allocation3] sm:$0x1] %v27
  loop: start=0, step=1, limit=4
  $region2: #{freq_block_pallas.2} parent=0 // loop_pre_header
    _
  $region3: #{freq_block_pallas.2} parent=0 // loop_header
    %s30 = sphi 0, %s34
    %p31 = scmp.ge.s32.totalorder %s30, 4
    %s40 = sphi 0, %s42
    %s43 = sphi 0, %s40
    %s44 = sphi 0, %s43
    %s60 = sphi 0, %s44
    %s66 = sphi 0, %s68
    %s69 = sphi 0, %s66
    %s70 = sphi 0, %s69
    %s86 = sphi 0, %s70
    %s90 = sphi 0, %s90
    %s92 = sphi 0, %s90
    %s93 = sphi 0, %s92
    %s107 = sphi 0, %s93
    %s111 = sphi 0, %s111
    %s113 = sphi 0, %s111
    %s114 = sphi 0, %s113
    %s128 = sphi 0, %s114
    %s132 = sphi 0, %s132
    %s134 = sphi 0, %s132
    %s135 = sphi 0, %s134
    %s149 = sphi 0, %s135
    %s153 = sphi 0, %s153
    %s155 = sphi 0, %s153
    %s156 = sphi 0, %s155
    %s170 = sphi 0, %s156
    %s174 = sphi 0, %s174
    %s176 = sphi 0, %s174
    %s177 = sphi 0, %s176
    %s191 = sphi 0, %s177
    %s195 = sphi 0, %s195
    %s197 = sphi 0, %s195
    %s198 = sphi 0, %s197
    %s212 = sphi 0, %s198
    %s216 = sphi 0, %s216
    %s218 = sphi 0, %s216
    %s219 = sphi 0, %s218
    %s233 = sphi 0, %s219
    %s237 = sphi 0, %s237
    %s239 = sphi 0, %s237
    %s240 = sphi 0, %s239
    %s254 = sphi 0, %s240
    %s258 = sphi 0, %s258
    %s260 = sphi 0, %s258
    %s261 = sphi 0, %s260
    %s275 = sphi 0, %s261
    %s279 = sphi 0, %s279
    %s281 = sphi 0, %s279
    %s282 = sphi 0, %s281
    %s296 = sphi 0, %s282
    %s300 = sphi 0, %s300
    %s302 = sphi 0, %s300
    %s303 = sphi 0, %s302
    %s317 = sphi 0, %s303
    %s321 = sphi 0, %s321
    %s323 = sphi 0, %s321
    %s324 = sphi 0, %s323
    %s338 = sphi 0, %s324
    %s342 = sphi 0, %s342
    %s344 = sphi 0, %s342
    %s345 = sphi 0, %s344
    %s359 = sphi 0, %s345
    %s363 = sphi 0, %s363
    %s365 = sphi 0, %s363
    %s366 = sphi 0, %s365
    %s380 = sphi 0, %s366
    %s384 = sphi 0, %s384
    %s386 = sphi 0, %s384
    %s387 = sphi 0, %s386
    %s401 = sphi 0, %s387
    %s405 = sphi 0, %s405
    %s407 = sphi 0, %s405
    %s408 = sphi 0, %s407
    %s422 = sphi 0, %s408
    %s428 = sphi 0, %s430
    %s431 = sphi 0, %s428
    %s432 = sphi 0, %s431
    %s448 = sphi 0, %s432
    %s454 = sphi 0, %s456
    %s457 = sphi 0, %s454
    %s458 = sphi 0, %s457
    %s474 = sphi 0, %s458
  $region4: #{freq_block_pallas.2} parent=0 // loop_header_branch
    %33 = sbr.rel (%p31) target = $region8
  $region5: #{freq_block_pallas.2} parent=0 // loop_body
    %s35 = ssub.s32 %s30, 1
    %s36 = ssub.s32 %s30, 2
    %s37 = sadd.s32 %s30, 1
    %s38 = ssub.s32 %s30, %s37
    %p39 = scmp.eq.s32.totalorder %s38, 0
    %s41 = sadd.s32 %s40, 1
    %s42 = scalar_select %p39, %s40, %s41
    %p45 = pneg %p39
    %p46 = scmp.eq.s32.totalorder %s30, 1
    %p47 = por %p45, %p46
    %p48 = scmp.ne.s32.totalorder %s40, %s43
    %p49 = scmp.eq.s32.totalorder %s30, 0
    %p50 = por %p48, %p49
    %p51 = scmp.ne.s32.totalorder %s40, %s43
    %p52 = scmp.eq.s32.totalorder %s35, 1
    %p53 = por %p51, %p52
    %p54 = scmp.ne.s32.totalorder %s43, %s44
    %p55 = scmp.eq.s32.totalorder %s35, 0
    %p56 = por %p54, %p55
    %p57 = scmp.ne.s32.totalorder %s43, %s44
    %p58 = scmp.eq.s32.totalorder %s36, 1
    %p59 = por %p57, %p58
    %p61 = scmp.ne.s32.totalorder %s44, %s60
    %p62 = scmp.eq.s32.totalorder %s36, 0
    %p63 = por %p61, %p62
    %s64 = ssub.s32 %s30, %s37
    %p65 = scmp.eq.s32.totalorder %s64, 0
    %s67 = sadd.s32 %s66, 1
    %s68 = scalar_select %p65, %s66, %s67
    %p71 = pneg %p65
    %p72 = scmp.eq.s32.totalorder %s30, 1
    %p73 = por %p71, %p72
    %p74 = scmp.ne.s32.totalorder %s66, %s69
    %p75 = scmp.eq.s32.totalorder %s30, 0
    %p76 = por %p74, %p75
    %p77 = scmp.ne.s32.totalorder %s66, %s69
    %p78 = scmp.eq.s32.totalorder %s35, 1
    %p79 = por %p77, %p78
    %p80 = scmp.ne.s32.totalorder %s69, %s70
    %p81 = scmp.eq.s32.totalorder %s35, 0
    %p82 = por %p80, %p81
    %p83 = scmp.ne.s32.totalorder %s69, %s70
    %p84 = scmp.eq.s32.totalorder %s36, 1
    %p85 = por %p83, %p84
    %p87 = scmp.ne.s32.totalorder %s70, %s86
    %p88 = scmp.eq.s32.totalorder %s36, 0
    %p89 = por %p87, %p88
    %s91 = sadd.s32 %s90, 1
    %p94 = scmp.eq.s32.totalorder %s30, 1
    %p95 = scmp.ne.s32.totalorder %s90, %s92
    %p96 = scmp.eq.s32.totalorder %s30, 0
    %p97 = por %p95, %p96
    %p98 = scmp.ne.s32.totalorder %s90, %s92
    %p99 = scmp.eq.s32.totalorder %s35, 1
    %p100 = por %p98, %p99
    %p101 = scmp.ne.s32.totalorder %s92, %s93
    %p102 = scmp.eq.s32.totalorder %s35, 0
    %p103 = por %p101, %p102
    %p104 = scmp.ne.s32.totalorder %s92, %s93
    %p105 = scmp.eq.s32.totalorder %s36, 1
    %p106 = por %p104, %p105
    %p108 = scmp.ne.s32.totalorder %s93, %s107
    %p109 = scmp.eq.s32.totalorder %s36, 0
    %p110 = por %p108, %p109
    %s112 = sadd.s32 %s111, 1
    %p115 = scmp.eq.s32.totalorder %s30, 1
    %p116 = scmp.ne.s32.totalorder %s111, %s113
    %p117 = scmp.eq.s32.totalorder %s30, 0
    %p118 = por %p116, %p117
    %p119 = scmp.ne.s32.totalorder %s111, %s113
    %p120 = scmp.eq.s32.totalorder %s35, 1
    %p121 = por %p119, %p120
    %p122 = scmp.ne.s32.totalorder %s113, %s114
    %p123 = scmp.eq.s32.totalorder %s35, 0
    %p124 = por %p122, %p123
    %p125 = scmp.ne.s32.totalorder %s113, %s114
    %p126 = scmp.eq.s32.totalorder %s36, 1
    %p127 = por %p125, %p126
    %p129 = scmp.ne.s32.totalorder %s114, %s128
    %p130 = scmp.eq.s32.totalorder %s36, 0
    %p131 = por %p129, %p130
    %s133 = sadd.s32 %s132, 1
    %p136 = scmp.eq.s32.totalorder %s30, 1
    %p137 = scmp.ne.s32.totalorder %s132, %s134
    %p138 = scmp.eq.s32.totalorder %s30, 0
    %p139 = por %p137, %p138
    %p140 = scmp.ne.s32.totalorder %s132, %s134
    %p141 = scmp.eq.s32.totalorder %s35, 1
    %p142 = por %p140, %p141
    %p143 = scmp.ne.s32.totalorder %s134, %s135
    %p144 = scmp.eq.s32.totalorder %s35, 0
    %p145 = por %p143, %p144
    %p146 = scmp.ne.s32.totalorder %s134, %s135
    %p147 = scmp.eq.s32.totalorder %s36, 1
    %p148 = por %p146, %p147
    %p150 = scmp.ne.s32.totalorder %s135, %s149
    %p151 = scmp.eq.s32.totalorder %s36, 0
    %p152 = por %p150, %p151
    %s154 = sadd.s32 %s153, 1
    %p157 = scmp.eq.s32.totalorder %s30, 1
    %p158 = scmp.ne.s32.totalorder %s153, %s155
    %p159 = scmp.eq.s32.totalorder %s30, 0
    %p160 = por %p158, %p159
    %p161 = scmp.ne.s32.totalorder %s153, %s155
    %p162 = scmp.eq.s32.totalorder %s35, 1
    %p163 = por %p161, %p162
    %p164 = scmp.ne.s32.totalorder %s155, %s156
    %p165 = scmp.eq.s32.totalorder %s35, 0
    %p166 = por %p164, %p165
    %p167 = scmp.ne.s32.totalorder %s155, %s156
    %p168 = scmp.eq.s32.totalorder %s36, 1
    %p169 = por %p167, %p168
    %p171 = scmp.ne.s32.totalorder %s156, %s170
    %p172 = scmp.eq.s32.totalorder %s36, 0
    %p173 = por %p171, %p172
    %s175 = sadd.s32 %s174, 1
    %p178 = scmp.eq.s32.totalorder %s30, 1
    %p179 = scmp.ne.s32.totalorder %s174, %s176
    %p180 = scmp.eq.s32.totalorder %s30, 0
    %p181 = por %p179, %p180
    %p182 = scmp.ne.s32.totalorder %s174, %s176
    %p183 = scmp.eq.s32.totalorder %s35, 1
    %p184 = por %p182, %p183
    %p185 = scmp.ne.s32.totalorder %s176, %s177
    %p186 = scmp.eq.s32.totalorder %s35, 0
    %p187 = por %p185, %p186
    %p188 = scmp.ne.s32.totalorder %s176, %s177
    %p189 = scmp.eq.s32.totalorder %s36, 1
    %p190 = por %p188, %p189
    %p192 = scmp.ne.s32.totalorder %s177, %s191
    %p193 = scmp.eq.s32.totalorder %s36, 0
    %p194 = por %p192, %p193
    %s196 = sadd.s32 %s195, 1
    %p199 = scmp.eq.s32.totalorder %s30, 1
    %p200 = scmp.ne.s32.totalorder %s195, %s197
    %p201 = scmp.eq.s32.totalorder %s30, 0
    %p202 = por %p200, %p201
    %p203 = scmp.ne.s32.totalorder %s195, %s197
    %p204 = scmp.eq.s32.totalorder %s35, 1
    %p205 = por %p203, %p204
    %p206 = scmp.ne.s32.totalorder %s197, %s198
    %p207 = scmp.eq.s32.totalorder %s35, 0
    %p208 = por %p206, %p207
    %p209 = scmp.ne.s32.totalorder %s197, %s198
    %p210 = scmp.eq.s32.totalorder %s36, 1
    %p211 = por %p209, %p210
    %p213 = scmp.ne.s32.totalorder %s198, %s212
    %p214 = scmp.eq.s32.totalorder %s36, 0
    %p215 = por %p213, %p214
    %s217 = sadd.s32 %s216, 1
    %p220 = scmp.eq.s32.totalorder %s30, 1
    %p221 = scmp.ne.s32.totalorder %s216, %s218
    %p222 = scmp.eq.s32.totalorder %s30, 0
    %p223 = por %p221, %p222
    %p224 = scmp.ne.s32.totalorder %s216, %s218
    %p225 = scmp.eq.s32.totalorder %s35, 1
    %p226 = por %p224, %p225
    %p227 = scmp.ne.s32.totalorder %s218, %s219
    %p228 = scmp.eq.s32.totalorder %s35, 0
    %p229 = por %p227, %p228
    %p230 = scmp.ne.s32.totalorder %s218, %s219
    %p231 = scmp.eq.s32.totalorder %s36, 1
    %p232 = por %p230, %p231
    %p234 = scmp.ne.s32.totalorder %s219, %s233
    %p235 = scmp.eq.s32.totalorder %s36, 0
    %p236 = por %p234, %p235
    %s238 = sadd.s32 %s237, 1
    %p241 = scmp.eq.s32.totalorder %s30, 1
    %p242 = scmp.ne.s32.totalorder %s237, %s239
    %p243 = scmp.eq.s32.totalorder %s30, 0
    %p244 = por %p242, %p243
    %p245 = scmp.ne.s32.totalorder %s237, %s239
    %p246 = scmp.eq.s32.totalorder %s35, 1
    %p247 = por %p245, %p246
    %p248 = scmp.ne.s32.totalorder %s239, %s240
    %p249 = scmp.eq.s32.totalorder %s35, 0
    %p250 = por %p248, %p249
    %p251 = scmp.ne.s32.totalorder %s239, %s240
    %p252 = scmp.eq.s32.totalorder %s36, 1
    %p253 = por %p251, %p252
    %p255 = scmp.ne.s32.totalorder %s240, %s254
    %p256 = scmp.eq.s32.totalorder %s36, 0
    %p257 = por %p255, %p256
    %s259 = sadd.s32 %s258, 1
    %p262 = scmp.eq.s32.totalorder %s30, 1
    %p263 = scmp.ne.s32.totalorder %s258, %s260
    %p264 = scmp.eq.s32.totalorder %s30, 0
    %p265 = por %p263, %p264
    %p266 = scmp.ne.s32.totalorder %s258, %s260
    %p267 = scmp.eq.s32.totalorder %s35, 1
    %p268 = por %p266, %p267
    %p269 = scmp.ne.s32.totalorder %s260, %s261
    %p270 = scmp.eq.s32.totalorder %s35, 0
    %p271 = por %p269, %p270
    %p272 = scmp.ne.s32.totalorder %s260, %s261
    %p273 = scmp.eq.s32.totalorder %s36, 1
    %p274 = por %p272, %p273
    %p276 = scmp.ne.s32.totalorder %s261, %s275
    %p277 = scmp.eq.s32.totalorder %s36, 0
    %p278 = por %p276, %p277
    %s280 = sadd.s32 %s279, 1
    %p283 = scmp.eq.s32.totalorder %s30, 1
    %p284 = scmp.ne.s32.totalorder %s279, %s281
    %p285 = scmp.eq.s32.totalorder %s30, 0
    %p286 = por %p284, %p285
    %p287 = scmp.ne.s32.totalorder %s279, %s281
    %p288 = scmp.eq.s32.totalorder %s35, 1
    %p289 = por %p287, %p288
    %p290 = scmp.ne.s32.totalorder %s281, %s282
    %p291 = scmp.eq.s32.totalorder %s35, 0
    %p292 = por %p290, %p291
    %p293 = scmp.ne.s32.totalorder %s281, %s282
    %p294 = scmp.eq.s32.totalorder %s36, 1
    %p295 = por %p293, %p294
    %p297 = scmp.ne.s32.totalorder %s282, %s296
    %p298 = scmp.eq.s32.totalorder %s36, 0
    %p299 = por %p297, %p298
    %s301 = sadd.s32 %s300, 1
    %p304 = scmp.eq.s32.totalorder %s30, 1
    %p305 = scmp.ne.s32.totalorder %s300, %s302
    %p306 = scmp.eq.s32.totalorder %s30, 0
    %p307 = por %p305, %p306
    %p308 = scmp.ne.s32.totalorder %s300, %s302
    %p309 = scmp.eq.s32.totalorder %s35, 1
    %p310 = por %p308, %p309
    %p311 = scmp.ne.s32.totalorder %s302, %s303
    %p312 = scmp.eq.s32.totalorder %s35, 0
    %p313 = por %p311, %p312
    %p314 = scmp.ne.s32.totalorder %s302, %s303
    %p315 = scmp.eq.s32.totalorder %s36, 1
    %p316 = por %p314, %p315
    %p318 = scmp.ne.s32.totalorder %s303, %s317
    %p319 = scmp.eq.s32.totalorder %s36, 0
    %p320 = por %p318, %p319
    %s322 = sadd.s32 %s321, 1
    %p325 = scmp.eq.s32.totalorder %s30, 1
    %p326 = scmp.ne.s32.totalorder %s321, %s323
    %p327 = scmp.eq.s32.totalorder %s30, 0
    %p328 = por %p326, %p327
    %p329 = scmp.ne.s32.totalorder %s321, %s323
    %p330 = scmp.eq.s32.totalorder %s35, 1
    %p331 = por %p329, %p330
    %p332 = scmp.ne.s32.totalorder %s323, %s324
    %p333 = scmp.eq.s32.totalorder %s35, 0
    %p334 = por %p332, %p333
    %p335 = scmp.ne.s32.totalorder %s323, %s324
    %p336 = scmp.eq.s32.totalorder %s36, 1
    %p337 = por %p335, %p336
    %p339 = scmp.ne.s32.totalorder %s324, %s338
    %p340 = scmp.eq.s32.totalorder %s36, 0
    %p341 = por %p339, %p340
    %s343 = sadd.s32 %s342, 1
    %p346 = scmp.eq.s32.totalorder %s30, 1
    %p347 = scmp.ne.s32.totalorder %s342, %s344
    %p348 = scmp.eq.s32.totalorder %s30, 0
    %p349 = por %p347, %p348
    %p350 = scmp.ne.s32.totalorder %s342, %s344
    %p351 = scmp.eq.s32.totalorder %s35, 1
    %p352 = por %p350, %p351
    %p353 = scmp.ne.s32.totalorder %s344, %s345
    %p354 = scmp.eq.s32.totalorder %s35, 0
    %p355 = por %p353, %p354
    %p356 = scmp.ne.s32.totalorder %s344, %s345
    %p357 = scmp.eq.s32.totalorder %s36, 1
    %p358 = por %p356, %p357
    %p360 = scmp.ne.s32.totalorder %s345, %s359
    %p361 = scmp.eq.s32.totalorder %s36, 0
    %p362 = por %p360, %p361
    %s364 = sadd.s32 %s363, 1
    %p367 = scmp.eq.s32.totalorder %s30, 1
    %p368 = scmp.ne.s32.totalorder %s363, %s365
    %p369 = scmp.eq.s32.totalorder %s30, 0
    %p370 = por %p368, %p369
    %p371 = scmp.ne.s32.totalorder %s363, %s365
    %p372 = scmp.eq.s32.totalorder %s35, 1
    %p373 = por %p371, %p372
    %p374 = scmp.ne.s32.totalorder %s365, %s366
    %p375 = scmp.eq.s32.totalorder %s35, 0
    %p376 = por %p374, %p375
    %p377 = scmp.ne.s32.totalorder %s365, %s366
    %p378 = scmp.eq.s32.totalorder %s36, 1
    %p379 = por %p377, %p378
    %p381 = scmp.ne.s32.totalorder %s366, %s380
    %p382 = scmp.eq.s32.totalorder %s36, 0
    %p383 = por %p381, %p382
    %s385 = sadd.s32 %s384, 1
    %p388 = scmp.eq.s32.totalorder %s30, 1
    %p389 = scmp.ne.s32.totalorder %s384, %s386
    %p390 = scmp.eq.s32.totalorder %s30, 0
    %p391 = por %p389, %p390
    %p392 = scmp.ne.s32.totalorder %s384, %s386
    %p393 = scmp.eq.s32.totalorder %s35, 1
    %p394 = por %p392, %p393
    %p395 = scmp.ne.s32.totalorder %s386, %s387
    %p396 = scmp.eq.s32.totalorder %s35, 0
    %p397 = por %p395, %p396
    %p398 = scmp.ne.s32.totalorder %s386, %s387
    %p399 = scmp.eq.s32.totalorder %s36, 1
    %p400 = por %p398, %p399
    %p402 = scmp.ne.s32.totalorder %s387, %s401
    %p403 = scmp.eq.s32.totalorder %s36, 0
    %p404 = por %p402, %p403
    %s406 = sadd.s32 %s405, 1
    %p409 = scmp.eq.s32.totalorder %s30, 1
    %p410 = scmp.ne.s32.totalorder %s405, %s407
    %p411 = scmp.eq.s32.totalorder %s30, 0
    %p412 = por %p410, %p411
    %p413 = scmp.ne.s32.totalorder %s405, %s407
    %p414 = scmp.eq.s32.totalorder %s35, 1
    %p415 = por %p413, %p414
    %p416 = scmp.ne.s32.totalorder %s407, %s408
    %p417 = scmp.eq.s32.totalorder %s35, 0
    %p418 = por %p416, %p417
    %p419 = scmp.ne.s32.totalorder %s407, %s408
    %p420 = scmp.eq.s32.totalorder %s36, 1
    %p421 = por %p419, %p420
    %p423 = scmp.ne.s32.totalorder %s408, %s422
    %p424 = scmp.eq.s32.totalorder %s36, 0
    %p425 = por %p423, %p424
    %s426 = ssub.s32 %s30, %s37
    %p427 = scmp.eq.s32.totalorder %s426, 0
    %s429 = sadd.s32 %s428, 1
    %s430 = scalar_select %p427, %s428, %s429
    %p433 = pneg %p427
    %p434 = scmp.eq.s32.totalorder %s30, 1
    %p435 = por %p433, %p434
    %p436 = scmp.ne.s32.totalorder %s428, %s431
    %p437 = scmp.eq.s32.totalorder %s30, 0
    %p438 = por %p436, %p437
    %p439 = scmp.ne.s32.totalorder %s428, %s431
    %p440 = scmp.eq.s32.totalorder %s35, 1
    %p441 = por %p439, %p440
    %p442 = scmp.ne.s32.totalorder %s431, %s432
    %p443 = scmp.eq.s32.totalorder %s35, 0
    %p444 = por %p442, %p443
    %p445 = scmp.ne.s32.totalorder %s431, %s432
    %p446 = scmp.eq.s32.totalorder %s36, 1
    %p447 = por %p445, %p446
    %p449 = scmp.ne.s32.totalorder %s432, %s448
    %p450 = scmp.eq.s32.totalorder %s36, 0
    %p451 = por %p449, %p450
    %s452 = ssub.s32 %s30, %s37
    %p453 = scmp.eq.s32.totalorder %s452, 0
    %s455 = sadd.s32 %s454, 1
    %s456 = scalar_select %p453, %s454, %s455
    %p459 = pneg %p453
    %p460 = scmp.eq.s32.totalorder %s30, 1
    %p461 = por %p459, %p460
    %p462 = scmp.ne.s32.totalorder %s454, %s457
    %p463 = scmp.eq.s32.totalorder %s30, 0
    %p464 = por %p462, %p463
    %p465 = scmp.ne.s32.totalorder %s454, %s457
    %p466 = scmp.eq.s32.totalorder %s35, 1
    %p467 = por %p465, %p466
    %p468 = scmp.ne.s32.totalorder %s457, %s458
    %p469 = scmp.eq.s32.totalorder %s35, 0
    %p470 = por %p468, %p469
    %p471 = scmp.ne.s32.totalorder %s457, %s458
    %p472 = scmp.eq.s32.totalorder %s36, 1
    %p473 = por %p471, %p472
    %p475 = scmp.ne.s32.totalorder %s458, %s474
    %p476 = scmp.eq.s32.totalorder %s36, 0
    %p477 = por %p475, %p476
    %p478 = scmp.le.s32.totalorder 1, %s30
    %p479 = scmp.lt.s32.totalorder %s30, 3
    %p480 = pnand %p478, %p479
    %p481 = pneg %p480
    // Predicated region
    $region9: #{freq_block_pallas.2} parent=5 // pred_check
      _
    $region10: #{freq_block_pallas.2} parent=5 // pred_check_branch
      %483 = sbr.rel (%p480) target = $region12
    $region11: #{freq_block_pallas.2} parent=5 // pred_region
      %s484 = ssub.s32 %s30, 1
      // Predicated region
      $region13: #{freq_block_pallas.2} parent=11 // pred_check
        %p485 = pneg %p103
      $region14: #{freq_block_pallas.2} parent=11 // pred_check_branch
        %487 = sbr.rel (%p485) target = $region16
      $region15: #{freq_block_pallas.2} parent=11 // pred_region
        _
      $region16: #{freq_block_pallas.2} parent=11 // pred_fallthru
        _
      // Predicated region
      $region17: #{freq_block_pallas.2} parent=11 // pred_check
        %p488 = pneg %p124
      $region18: #{freq_block_pallas.2} parent=11 // pred_check_branch
        %490 = sbr.rel (%p488) target = $region20
      $region19: #{freq_block_pallas.2} parent=11 // pred_region
        _
      $region20: #{freq_block_pallas.2} parent=11 // pred_fallthru
        _
      // Predicated region
      $region21: #{freq_block_pallas.2} parent=11 // pred_check
        %p491 = pneg %p145
      $region22: #{freq_block_pallas.2} parent=11 // pred_check_branch
        %493 = sbr.rel (%p491) target = $region24
      $region23: #{freq_block_pallas.2} parent=11 // pred_region
        _
      $region24: #{freq_block_pallas.2} parent=11 // pred_fallthru
        _
      // Predicated region
      $region25: #{freq_block_pallas.2} parent=11 // pred_check
        %p494 = pneg %p166
      $region26: #{freq_block_pallas.2} parent=11 // pred_check_branch
        %496 = sbr.rel (%p494) target = $region28
      $region27: #{freq_block_pallas.2} parent=11 // pred_region
        _
      $region28: #{freq_block_pallas.2} parent=11 // pred_fallthru
        _
      // Predicated region
      $region29: #{freq_block_pallas.2} parent=11 // pred_check
        %p497 = pneg %p187
      $region30: #{freq_block_pallas.2} parent=11 // pred_check_branch
        %499 = sbr.rel (%p497) target = $region32
      $region31: #{freq_block_pallas.2} parent=11 // pred_region
        _
      $region32: #{freq_block_pallas.2} parent=11 // pred_fallthru
        _
      // Predicated region
      $region33: #{freq_block_pallas.2} parent=11 // pred_check
        %p500 = pneg %p208
      $region34: #{freq_block_pallas.2} parent=11 // pred_check_branch
        %502 = sbr.rel (%p500) target = $region36
      $region35: #{freq_block_pallas.2} parent=11 // pred_region
        _
      $region36: #{freq_block_pallas.2} parent=11 // pred_fallthru
        _
      // Predicated region
      $region37: #{freq_block_pallas.2} parent=11 // pred_check
        %p503 = pneg %p229
      $region38: #{freq_block_pallas.2} parent=11 // pred_check_branch
        %505 = sbr.rel (%p503) target = $region40
      $region39: #{freq_block_pallas.2} parent=11 // pred_region
        _
      $region40: #{freq_block_pallas.2} parent=11 // pred_fallthru
        _
      // Predicated region
      $region41: #{freq_block_pallas.2} parent=11 // pred_check
        %p506 = pneg %p250
      $region42: #{freq_block_pallas.2} parent=11 // pred_check_branch
        %508 = sbr.rel (%p506) target = $region44
      $region43: #{freq_block_pallas.2} parent=11 // pred_region
        _
      $region44: #{freq_block_pallas.2} parent=11 // pred_fallthru
        _
      // Predicated region
      $region45: #{freq_block_pallas.2} parent=11 // pred_check
        %p509 = pneg %p271
      $region46: #{freq_block_pallas.2} parent=11 // pred_check_branch
        %511 = sbr.rel (%p509) target = $region48
      $region47: #{freq_block_pallas.2} parent=11 // pred_region
        _
      $region48: #{freq_block_pallas.2} parent=11 // pred_fallthru
        _
      // Predicated region
      $region49: #{freq_block_pallas.2} parent=11 // pred_check
        %p512 = pneg %p292
      $region50: #{freq_block_pallas.2} parent=11 // pred_check_branch
        %514 = sbr.rel (%p512) target = $region52
      $region51: #{freq_block_pallas.2} parent=11 // pred_region
        _
      $region52: #{freq_block_pallas.2} parent=11 // pred_fallthru
        _
      // Predicated region
      $region53: #{freq_block_pallas.2} parent=11 // pred_check
        %p515 = pneg %p313
      $region54: #{freq_block_pallas.2} parent=11 // pred_check_branch
        %517 = sbr.rel (%p515) target = $region56
      $region55: #{freq_block_pallas.2} parent=11 // pred_region
        _
      $region56: #{freq_block_pallas.2} parent=11 // pred_fallthru
        _
      // Predicated region
      $region57: #{freq_block_pallas.2} parent=11 // pred_check
        %p518 = pneg %p334
      $region58: #{freq_block_pallas.2} parent=11 // pred_check_branch
        %520 = sbr.rel (%p518) target = $region60
      $region59: #{freq_block_pallas.2} parent=11 // pred_region
        _
      $region60: #{freq_block_pallas.2} parent=11 // pred_fallthru
        _
      // Predicated region
      $region61: #{freq_block_pallas.2} parent=11 // pred_check
        %p521 = pneg %p355
      $region62: #{freq_block_pallas.2} parent=11 // pred_check_branch
        %523 = sbr.rel (%p521) target = $region64
      $region63: #{freq_block_pallas.2} parent=11 // pred_region
        _
      $region64: #{freq_block_pallas.2} parent=11 // pred_fallthru
        _
      // Predicated region
      $region65: #{freq_block_pallas.2} parent=11 // pred_check
        %p524 = pneg %p376
      $region66: #{freq_block_pallas.2} parent=11 // pred_check_branch
        %526 = sbr.rel (%p524) target = $region68
      $region67: #{freq_block_pallas.2} parent=11 // pred_region
        _
      $region68: #{freq_block_pallas.2} parent=11 // pred_fallthru
        _
      // Predicated region
      $region69: #{freq_block_pallas.2} parent=11 // pred_check
        %p527 = pneg %p397
      $region70: #{freq_block_pallas.2} parent=11 // pred_check_branch
        %529 = sbr.rel (%p527) target = $region72
      $region71: #{freq_block_pallas.2} parent=11 // pred_region
        _
      $region72: #{freq_block_pallas.2} parent=11 // pred_fallthru
        _
      // Predicated region
      $region73: #{freq_block_pallas.2} parent=11 // pred_check
        %p530 = pneg %p418
      $region74: #{freq_block_pallas.2} parent=11 // pred_check_branch
        %532 = sbr.rel (%p530) target = $region76
      $region75: #{freq_block_pallas.2} parent=11 // pred_region
        _
      $region76: #{freq_block_pallas.2} parent=11 // pred_fallthru
        _
    $region12: #{freq_block_pallas.2} parent=5 // pred_fallthru
      _
    %p533 = scmp.lt.s32.totalorder %s30, 2
    // Predicated region
    $region77: #{freq_block_pallas.2} parent=5 // pred_check
      %p534 = pneg %p533
    $region78: #{freq_block_pallas.2} parent=5 // pred_check_branch
      %536 = sbr.rel (%p534) target = $region80
    $region79: #{freq_block_pallas.2} parent=5 // pred_region
      // Predicated region
      $region81: #{freq_block_pallas.2} parent=79 // pred_check
        %p537 = pneg %p50
      $region82: #{freq_block_pallas.2} parent=79 // pred_check_branch
        %539 = sbr.rel (%p537) target = $region84
      $region83: #{freq_block_pallas.2} parent=79 // pred_region
        %p540 = scmp.lt.s32.totalorder %s30, 1
        %s541 = scalar_select %p540, %s30, 1
        %s542 = smul.addr %s541, 8
        %s543 = smul.addr %s542, 8
        %s544 = scalar_lea.vmem %s0, %s543
      $region84: #{freq_block_pallas.2} parent=79 // pred_fallthru
        _
      // Predicated region
      $region85: #{freq_block_pallas.2} parent=79 // pred_check
        %p545 = pneg %p76
      $region86: #{freq_block_pallas.2} parent=79 // pred_check_branch
        %547 = sbr.rel (%p545) target = $region88
      $region87: #{freq_block_pallas.2} parent=79 // pred_region
        %p548 = scmp.lt.s32.totalorder %s30, 1
        %s549 = scalar_select %p548, %s30, 1
        %s550 = smul.addr %s549, 8
        %s551 = smul.addr %s550, 8
        %s552 = scalar_lea.vmem %s1, %s551
      $region88: #{freq_block_pallas.2} parent=79 // pred_fallthru
        _
    $region80: #{freq_block_pallas.2} parent=5 // pred_fallthru
      _
    %p553 = scmp.le.s32.totalorder 1, %s30
    %p554 = scmp.lt.s32.totalorder %s30, 3
    %p555 = pnand %p553, %p554
    %p556 = pneg %p555
    // Predicated region
    $region89: #{freq_block_pallas.2} parent=5 // pred_check
      _
    $region90: #{freq_block_pallas.2} parent=5 // pred_check_branch
      %558 = sbr.rel (%p555) target = $region92
    $region91: #{freq_block_pallas.2} parent=5 // pred_region
      %s559 = ssub.s32 %s30, 1
      %p560 = scmp.lt.s32.totalorder %s35, 1
      %s561 = scalar_select %p560, %s35, 1
      %s562 = smul.addr %s561, 8
      %s563 = smul.addr %s562, 8
      %s564 = scalar_lea.vmem %s0, %s563
      %p565 = pneg %p56
      %p566 = pneg %p53
      %p567 = scmp.lt.s32.totalorder %s35, 1
      %s568 = scalar_select %p567, %s35, 1
      %s569 = smul.addr %s568, 8
      %s570 = smul.addr %s569, 8
      %s571 = scalar_lea.vmem %s1, %s570
      %p572 = pneg %p82
      %p573 = pneg %p79
      %p574 = pneg %p103
      %p575 = pneg %p100
      %p576 = pneg %p124
      %p577 = pneg %p121
      %p578 = pneg %p145
      %p579 = pneg %p142
      %p580 = pneg %p166
      %p581 = pneg %p163
      %p582 = pneg %p187
      %p583 = pneg %p184
      %p584 = pneg %p208
      %p585 = pneg %p205
      %p586 = pneg %p229
      %p587 = pneg %p226
      %p588 = pneg %p250
      %p589 = pneg %p247
      %p590 = pneg %p271
      %p591 = pneg %p268
      %p592 = pneg %p292
      %p593 = pneg %p289
      %p594 = pneg %p313
      %p595 = pneg %p310
      %p596 = pneg %p334
      %p597 = pneg %p331
      %p598 = pneg %p355
      %p599 = pneg %p352
      %p600 = pneg %p376
      %p601 = pneg %p373
      %p602 = pneg %p397
      %p603 = pneg %p394
      %p604 = pneg %p418
      %p605 = pneg %p415
      %p606 = pneg %p444
      %p607 = pneg %p441
      %p608 = scmp.lt.s32.totalorder %s35, 1
      %s609 = scalar_select %p608, %s35, 1
      %s610 = smul.addr %s609, 8
      %s611 = smul.addr %s610, 8
      %s612 = scalar_lea.vmem %s18, %s611
      %p613 = pneg %p470
      %p614 = pneg %p467
      %p615 = scmp.lt.s32.totalorder %s35, 1
      %s616 = scalar_select %p615, %s35, 1
      %s617 = smul.addr %s616, 8
      %s618 = smul.addr %s617, 8
      %s619 = scalar_lea.vmem %s19, %s618
      %p620 = scmp.lt.s32.totalorder %s35, 1
      %s621 = scalar_select %p620, %s35, 1
      %s622 = smul.addr %s621, 8
      %s623 = smul.addr %s622, 8
      %s624 = scalar_lea.vmem %s0, %s623
      %p625 = scmp.lt.s32.totalorder %s35, 1
      %s626 = scalar_select %p625, %s35, 1
      %s627 = smul.addr %s626, 8
      %s628 = smul.addr %s627, 8
      %s629 = scalar_lea.vmem %s1, %s628
      %p630 = scmp.lt.s32.totalorder %s35, 1
      %s631 = scalar_select %p630, %s35, 1
      %s632 = smul.addr %s631, 8
      %s633 = smul.addr %s632, 8
      %s634 = scalar_lea.vmem %s18, %s633
      %p635 = scmp.lt.s32.totalorder %s35, 1
      %s636 = scalar_select %p635, %s35, 1
      %s637 = smul.addr %s636, 8
      %s638 = smul.addr %s637, 8
      %s639 = scalar_lea.vmem %s19, %s638
      %v640 = vld [vmem:[%s624] sm:$0xff]
      %v641 = vld [vmem:[%s624 + $0x8] sm:$0xff]
      %v642 = vld [vmem:[%s624 + $0x10] sm:$0xff]
      %v643 = vld [vmem:[%s624 + $0x18] sm:$0xff]
      %v644 = vld [vmem:[%s624 + $0x20] sm:$0xff]
      %v645 = vld [vmem:[%s624 + $0x28] sm:$0xff]
      %v646 = vld [vmem:[%s624 + $0x30] sm:$0xff]
      %v647 = vld [vmem:[%s624 + $0x38] sm:$0xff]
      %v648 = vld [vmem:[%s629] sm:$0xff]
      %v649 = vld [vmem:[%s629 + $0x8] sm:$0xff]
      %v650 = vld [vmem:[%s629 + $0x10] sm:$0xff]
      %v651 = vld [vmem:[%s629 + $0x18] sm:$0xff]
      %v652 = vld [vmem:[%s629 + $0x20] sm:$0xff]
      %v653 = vld [vmem:[%s629 + $0x28] sm:$0xff]
      %v654 = vld [vmem:[%s629 + $0x30] sm:$0xff]
      %v655 = vld [vmem:[%s629 + $0x38] sm:$0xff]
      %vm664 = vcmask 1040384
      %v665 = vrot.slane %v640, 7
      %v666 = vrot.slane %v641, 7
      %v667 = vsel %vm664, %v665, %v666
      %v668 = vrot.slane %v642, 7
      %v669 = vrot.slane %v643, 7
      %v670 = vsel %vm664, %v668, %v669
      %v671 = vrot.slane %v644, 7
      %v672 = vrot.slane %v645, 7
      %v673 = vsel %vm664, %v671, %v672
      %v674 = vrot.slane %v646, 7
      %v675 = vrot.slane %v647, 7
      %v676 = vsel %vm664, %v674, %v675
      %v685 = vsel %vm664, 0.0, %v665
      %v686 = vsel %vm664, 0.0, %v668
      %v687 = vsel %vm664, 0.0, %v671
      %v688 = vsel %vm664, 0.0, %v674
      %v689 = vsel %vm664, %v666, 0.0
      %v690 = vsel %vm664, %v669, 0.0
      %v691 = vsel %vm664, %v672, 0.0
      %v692 = vsel %vm664, %v675, 0.0
      %701 = vrot.lane.b32.xlu0 %v685, 1
      %v702 = vpop.permute.xlu0 %701
      %703 = vrot.lane.b32.xlu0 %v667, 1
      %v704 = vpop.permute.xlu0 %703
      %705 = vrot.lane.b32.xlu0 %v689, 1
      %v706 = vpop.permute.xlu0 %705
      %707 = vrot.lane.b32.xlu0 %v686, 1
      %v708 = vpop.permute.xlu0 %707
      %709 = vrot.lane.b32.xlu0 %v670, 1
      %v710 = vpop.permute.xlu0 %709
      %711 = vrot.lane.b32.xlu0 %v690, 1
      %v712 = vpop.permute.xlu0 %711
      %713 = vrot.lane.b32.xlu0 %v687, 1
      %v714 = vpop.permute.xlu0 %713
      %715 = vrot.lane.b32.xlu0 %v673, 1
      %v716 = vpop.permute.xlu0 %715
      %717 = vrot.lane.b32.xlu0 %v691, 1
      %v718 = vpop.permute.xlu0 %717
      %719 = vrot.lane.b32.xlu0 %v688, 1
      %v720 = vpop.permute.xlu0 %719
      %721 = vrot.lane.b32.xlu0 %v676, 1
      %v722 = vpop.permute.xlu0 %721
      %723 = vrot.lane.b32.xlu0 %v692, 1
      %v724 = vpop.permute.xlu0 %723
      %vm737 = vcmask 7168
      %v738 = vsel %vm737, 0.0, %v702
      %v739 = vsel %vm737, 0.0, %v704
      %v740 = vsel %vm737, 0.0, %v706
      %v741 = vsel %vm737, 0.0, %v708
      %v742 = vsel %vm737, 0.0, %v710
      %v743 = vsel %vm737, 0.0, %v712
      %v744 = vsel %vm737, 0.0, %v714
      %v745 = vsel %vm737, 0.0, %v716
      %v746 = vsel %vm737, 0.0, %v718
      %v747 = vsel %vm737, 0.0, %v720
      %v748 = vsel %vm737, 0.0, %v722
      %v749 = vsel %vm737, 0.0, %v724
      %vm750 = vcmask 80896
      %v751 = vsel %vm750, %v738, 0.0
      %v752 = vsel %vm750, %v739, 0.0
      %v753 = vsel %vm750, %v740, 0.0
      %v754 = vsel %vm750, %v741, 0.0
      %v755 = vsel %vm750, %v742, 0.0
      %v756 = vsel %vm750, %v743, 0.0
      %v757 = vsel %vm750, %v744, 0.0
      %v758 = vsel %vm750, %v745, 0.0
      %v759 = vsel %vm750, %v746, 0.0
      %v760 = vsel %vm750, %v747, 0.0
      %v761 = vsel %vm750, %v748, 0.0
      %v762 = vsel %vm750, %v749, 0.0
      %v763 = vld [vmem:[%s2] sm:$0x1]
      %v764 = vld [vmem:[%s2 + $0x1] sm:$0x1]
      %v765 = vld [vmem:[%s2 + $0x2] sm:$0x1]
      %v766 = vld [vmem:[%s2 + $0x3] sm:$0x1]
      %v767 = vld [vmem:[%s2 + $0x4] sm:$0x1]
      %v768 = vld [vmem:[%s2 + $0x5] sm:$0x1]
      %v769 = vld [vmem:[%s2 + $0x6] sm:$0x1]
      %v770 = vld [vmem:[%s2 + $0x7] sm:$0x1]
      %v771 = vld [vmem:[%s2 + $0x8] sm:$0x1]
      %v772 = vld [vmem:[%s2 + $0x9] sm:$0x1]
      %v773 = vld [vmem:[%s2 + $0xa] sm:$0x1]
      %v774 = vld [vmem:[%s2 + $0xb] sm:$0x1]
      %v775 = vld [vmem:[%s2 + $0xc] sm:$0x1]
      %v776 = vld [vmem:[%s2 + $0xd] sm:$0x1]
      %v777 = vld [vmem:[%s2 + $0xe] sm:$0x1]
      %v778 = vld [vmem:[%s2 + $0xf] sm:$0x1]
      %v779 = vld [vmem:[%s2 + $0x10] sm:$0x1]
      %v780 = vld [vmem:[%s2 + $0x11] sm:$0x1]
      %v781 = vld [vmem:[%s2 + $0x12] sm:$0x1]
      %v782 = vld [vmem:[%s2 + $0x13] sm:$0x1]
      %v783 = vld [vmem:[%s2 + $0x14] sm:$0x1]
      %v784 = vld [vmem:[%s2 + $0x15] sm:$0x1]
      %v785 = vld [vmem:[%s2 + $0x16] sm:$0x1]
      %v786 = vld [vmem:[%s2 + $0x17] sm:$0x1]
      %v787 = vld [vmem:[%s2 + $0x18] sm:$0x1]
      %v788 = vld [vmem:[%s2 + $0x19] sm:$0x1]
      %v789 = vld [vmem:[%s2 + $0x1a] sm:$0x1]
      %v790 = vld [vmem:[%s2 + $0x1b] sm:$0x1]
      %v791 = vld [vmem:[%s2 + $0x1c] sm:$0x1]
      %v792 = vld [vmem:[%s2 + $0x1d] sm:$0x1]
      %v793 = vld [vmem:[%s2 + $0x1e] sm:$0x1]
      %v794 = vld [vmem:[%s2 + $0x1f] sm:$0x1]
      %v795 = vld [vmem:[%s2 + $0x20] sm:$0x1]
      %v796 = vld [vmem:[%s2 + $0x21] sm:$0x1]
      %v797 = vld [vmem:[%s2 + $0x22] sm:$0x1]
      %v798 = vld [vmem:[%s2 + $0x23] sm:$0x1]
      %v799 = vld [vmem:[%s3] sm:$0x1]
      %v800 = vld [vmem:[%s3 + $0x1] sm:$0x1]
      %v801 = vld [vmem:[%s3 + $0x2] sm:$0x1]
      %v802 = vld [vmem:[%s3 + $0x3] sm:$0x1]
      %v807 = vlaneseq
      %v808 = vshrl.u32 %v807, 7
      %v809 = vsub.s32 0, %v808
      %v810 = vrot.slane %v799, %v809
      %v811 = vlaneseq
      %v812 = vshrl.u32 %v811, 7
      %v813 = vsub.s32 0, %v812
      %v814 = vrot.slane %v800, %v813
      %v815 = vlaneseq
      %v816 = vshrl.u32 %v815, 7
      %v817 = vsub.s32 0, %v816
      %v818 = vrot.slane %v801, %v817
      %v819 = vlaneseq
      %v820 = vshrl.u32 %v819, 7
      %v821 = vsub.s32 0, %v820
      %v822 = vrot.slane %v802, %v821
      %823 = vset.pattern.permute.xlu0 0
      %824 = vperm.xlu0 %823, %v810
      %v825 = vpop.permute.xlu0 %824
      %827 = vset.pattern.permute.xlu0 0
      %828 = vperm.xlu0 %827, %v814
      %v829 = vpop.permute.xlu0 %828
      %831 = vset.pattern.permute.xlu0 0
      %832 = vperm.xlu0 %831, %v818
      %v833 = vpop.permute.xlu0 %832
      %835 = vset.pattern.permute.xlu0 0
      %836 = vperm.xlu0 %835, %v822
      %v837 = vpop.permute.xlu0 %836
      %v843 = vlaneseq
      %v844 = vshrl.u32 %v843, 7
      %v845 = vsub.s32 0, %v844
      %v846 = vrot.slane %v763, %v845
      %v847 = vlaneseq
      %v848 = vshrl.u32 %v847, 7
      %v849 = vsub.s32 0, %v848
      %v850 = vrot.slane %v764, %v849
      %v851 = vlaneseq
      %v852 = vshrl.u32 %v851, 7
      %v853 = vsub.s32 0, %v852
      %v854 = vrot.slane %v765, %v853
      %v855 = vlaneseq
      %v856 = vshrl.u32 %v855, 7
      %v857 = vsub.s32 0, %v856
      %v858 = vrot.slane %v766, %v857
      %859 = vset.pattern.permute.xlu0 0
      %860 = vperm.xlu0 %859, %v846
      %v861 = vpop.permute.xlu0 %860
      %863 = vset.pattern.permute.xlu0 0
      %864 = vperm.xlu0 %863, %v850
      %v865 = vpop.permute.xlu0 %864
      %867 = vset.pattern.permute.xlu0 0
      %868 = vperm.xlu0 %867, %v854
      %v869 = vpop.permute.xlu0 %868
      %871 = vset.pattern.permute.xlu0 0
      %872 = vperm.xlu0 %871, %v858
      %v873 = vpop.permute.xlu0 %872
      %v875 = vmul.f32 %v861, %v751
      %v876 = vmul.f32 %v861, %v752
      %v877 = vmul.f32 %v865, %v754
      %v878 = vmul.f32 %v865, %v755
      %v879 = vmul.f32 %v869, %v757
      %v880 = vmul.f32 %v869, %v758
      %v881 = vmul.f32 %v873, %v760
      %v882 = vmul.f32 %v873, %v761
      %v883 = vadd.f32 %v825, %v875
      %v884 = vadd.f32 %v825, %v876
      %v885 = vadd.f32 %v829, %v877
      %v886 = vadd.f32 %v829, %v878
      %v887 = vadd.f32 %v833, %v879
      %v888 = vadd.f32 %v833, %v880
      %v889 = vadd.f32 %v837, %v881
      %v890 = vadd.f32 %v837, %v882
      %v895 = vlaneseq
      %v896 = vshrl.u32 %v895, 7
      %v897 = vsub.s32 0, %v896
      %v898 = vrot.slane %v767, %v897
      %v899 = vlaneseq
      %v900 = vshrl.u32 %v899, 7
      %v901 = vsub.s32 0, %v900
      %v902 = vrot.slane %v768, %v901
      %v903 = vlaneseq
      %v904 = vshrl.u32 %v903, 7
      %v905 = vsub.s32 0, %v904
      %v906 = vrot.slane %v769, %v905
      %v907 = vlaneseq
      %v908 = vshrl.u32 %v907, 7
      %v909 = vsub.s32 0, %v908
      %v910 = vrot.slane %v770, %v909
      %911 = vset.pattern.permute.xlu0 0
      %912 = vperm.xlu0 %911, %v898
      %v913 = vpop.permute.xlu0 %912
      %915 = vset.pattern.permute.xlu0 0
      %916 = vperm.xlu0 %915, %v902
      %v917 = vpop.permute.xlu0 %916
      %919 = vset.pattern.permute.xlu0 0
      %920 = vperm.xlu0 %919, %v906
      %v921 = vpop.permute.xlu0 %920
      %923 = vset.pattern.permute.xlu0 0
      %924 = vperm.xlu0 %923, %v910
      %v925 = vpop.permute.xlu0 %924
      %v927 = vmul.f32 %v913, %v751
      %v928 = vmul.f32 %v913, %v752
      %v929 = vmul.f32 %v917, %v754
      %v930 = vmul.f32 %v917, %v755
      %v931 = vmul.f32 %v921, %v757
      %v932 = vmul.f32 %v921, %v758
      %v933 = vmul.f32 %v925, %v760
      %v934 = vmul.f32 %v925, %v761
      %943 = vrot.lane.b32.xlu0 %v927, 127
      %v944 = vpop.permute.xlu0 %943
      %945 = vrot.lane.b32.xlu0 %v928, 127
      %v946 = vpop.permute.xlu0 %945
      %947 = vrot.lane.b32.xlu0 %v929, 127
      %v948 = vpop.permute.xlu0 %947
      %949 = vrot.lane.b32.xlu0 %v930, 127
      %v950 = vpop.permute.xlu0 %949
      %951 = vrot.lane.b32.xlu0 %v931, 127
      %v952 = vpop.permute.xlu0 %951
      %953 = vrot.lane.b32.xlu0 %v932, 127
      %v954 = vpop.permute.xlu0 %953
      %955 = vrot.lane.b32.xlu0 %v933, 127
      %v956 = vpop.permute.xlu0 %955
      %957 = vrot.lane.b32.xlu0 %v934, 127
      %v958 = vpop.permute.xlu0 %957
      %v967 = vadd.f32 %v883, %v944
      %v968 = vadd.f32 %v884, %v946
      %v969 = vadd.f32 %v885, %v948
      %v970 = vadd.f32 %v886, %v950
      %v971 = vadd.f32 %v887, %v952
      %v972 = vadd.f32 %v888, %v954
      %v973 = vadd.f32 %v889, %v956
      %v974 = vadd.f32 %v890, %v958
      %v979 = vlaneseq
      %v980 = vshrl.u32 %v979, 7
      %v981 = vsub.s32 0, %v980
      %v982 = vrot.slane %v771, %v981
      %v983 = vlaneseq
      %v984 = vshrl.u32 %v983, 7
      %v985 = vsub.s32 0, %v984
      %v986 = vrot.slane %v772, %v985
      %v987 = vlaneseq
      %v988 = vshrl.u32 %v987, 7
      %v989 = vsub.s32 0, %v988
      %v990 = vrot.slane %v773, %v989
      %v991 = vlaneseq
      %v992 = vshrl.u32 %v991, 7
      %v993 = vsub.s32 0, %v992
      %v994 = vrot.slane %v774, %v993
      %995 = vset.pattern.permute.xlu0 0
      %996 = vperm.xlu0 %995, %v982
      %v997 = vpop.permute.xlu0 %996
      %999 = vset.pattern.permute.xlu0 0
      %1000 = vperm.xlu0 %999, %v986
      %v1001 = vpop.permute.xlu0 %1000
      %1003 = vset.pattern.permute.xlu0 0
      %1004 = vperm.xlu0 %1003, %v990
      %v1005 = vpop.permute.xlu0 %1004
      %1007 = vset.pattern.permute.xlu0 0
      %1008 = vperm.xlu0 %1007, %v994
      %v1009 = vpop.permute.xlu0 %1008
      %v1011 = vmul.f32 %v997, %v751
      %v1012 = vmul.f32 %v997, %v752
      %v1013 = vmul.f32 %v1001, %v754
      %v1014 = vmul.f32 %v1001, %v755
      %v1015 = vmul.f32 %v1005, %v757
      %v1016 = vmul.f32 %v1005, %v758
      %v1017 = vmul.f32 %v1009, %v760
      %v1018 = vmul.f32 %v1009, %v761
      %1027 = vrot.lane.b32.xlu0 %v1011, 126
      %v1028 = vpop.permute.xlu0 %1027
      %1029 = vrot.lane.b32.xlu0 %v1012, 126
      %v1030 = vpop.permute.xlu0 %1029
      %1031 = vrot.lane.b32.xlu0 %v1013, 126
      %v1032 = vpop.permute.xlu0 %1031
      %1033 = vrot.lane.b32.xlu0 %v1014, 126
      %v1034 = vpop.permute.xlu0 %1033
      %1035 = vrot.lane.b32.xlu0 %v1015, 126
      %v1036 = vpop.permute.xlu0 %1035
      %1037 = vrot.lane.b32.xlu0 %v1016, 126
      %v1038 = vpop.permute.xlu0 %1037
      %1039 = vrot.lane.b32.xlu0 %v1017, 126
      %v1040 = vpop.permute.xlu0 %1039
      %1041 = vrot.lane.b32.xlu0 %v1018, 126
      %v1042 = vpop.permute.xlu0 %1041
      %v1051 = vadd.f32 %v967, %v1028
      %v1052 = vadd.f32 %v968, %v1030
      %v1053 = vadd.f32 %v969, %v1032
      %v1054 = vadd.f32 %v970, %v1034
      %v1055 = vadd.f32 %v971, %v1036
      %v1056 = vadd.f32 %v972, %v1038
      %v1057 = vadd.f32 %v973, %v1040
      %v1058 = vadd.f32 %v974, %v1042
      %v1063 = vlaneseq
      %v1064 = vshrl.u32 %v1063, 7
      %v1065 = vsub.s32 0, %v1064
      %v1066 = vrot.slane %v775, %v1065
      %v1067 = vlaneseq
      %v1068 = vshrl.u32 %v1067, 7
      %v1069 = vsub.s32 0, %v1068
      %v1070 = vrot.slane %v776, %v1069
      %v1071 = vlaneseq
      %v1072 = vshrl.u32 %v1071, 7
      %v1073 = vsub.s32 0, %v1072
      %v1074 = vrot.slane %v777, %v1073
      %v1075 = vlaneseq
      %v1076 = vshrl.u32 %v1075, 7
      %v1077 = vsub.s32 0, %v1076
      %v1078 = vrot.slane %v778, %v1077
      %1079 = vset.pattern.permute.xlu0 0
      %1080 = vperm.xlu0 %1079, %v1066
      %v1081 = vpop.permute.xlu0 %1080
      %1083 = vset.pattern.permute.xlu0 0
      %1084 = vperm.xlu0 %1083, %v1070
      %v1085 = vpop.permute.xlu0 %1084
      %1087 = vset.pattern.permute.xlu0 0
      %1088 = vperm.xlu0 %1087, %v1074
      %v1089 = vpop.permute.xlu0 %1088
      %1091 = vset.pattern.permute.xlu0 0
      %1092 = vperm.xlu0 %1091, %v1078
      %v1093 = vpop.permute.xlu0 %1092
      %v1095 = vmul.f32 %v1081, %v751
      %v1096 = vmul.f32 %v1081, %v752
      %v1097 = vmul.f32 %v1081, %v753
      %v1098 = vmul.f32 %v1085, %v754
      %v1099 = vmul.f32 %v1085, %v755
      %v1100 = vmul.f32 %v1085, %v756
      %v1101 = vmul.f32 %v1089, %v757
      %v1102 = vmul.f32 %v1089, %v758
      %v1103 = vmul.f32 %v1089, %v759
      %v1104 = vmul.f32 %v1093, %v760
      %v1105 = vmul.f32 %v1093, %v761
      %v1106 = vmul.f32 %v1093, %v762
      %vm1119 = vcmask 1046528
      %v1120 = vrot.slane %v1095, 1
      %v1121 = vrot.slane %v1096, 1
      %v1122 = vsel %vm1119, %v1120, %v1121
      %v1123 = vrot.slane %v1097, 1
      %v1124 = vsel %vm1119, %v1121, %v1123
      %v1125 = vrot.slane %v1098, 1
      %v1126 = vrot.slane %v1099, 1
      %v1127 = vsel %vm1119, %v1125, %v1126
      %v1128 = vrot.slane %v1100, 1
      %v1129 = vsel %vm1119, %v1126, %v1128
      %v1130 = vrot.slane %v1101, 1
      %v1131 = vrot.slane %v1102, 1
      %v1132 = vsel %vm1119, %v1130, %v1131
      %v1133 = vrot.slane %v1103, 1
      %v1134 = vsel %vm1119, %v1131, %v1133
      %v1135 = vrot.slane %v1104, 1
      %v1136 = vrot.slane %v1105, 1
      %v1137 = vsel %vm1119, %v1135, %v1136
      %v1138 = vrot.slane %v1106, 1
      %v1139 = vsel %vm1119, %v1136, %v1138
      %v1148 = vadd.f32 %v1051, %v1122
      %v1149 = vadd.f32 %v1052, %v1124
      %v1150 = vadd.f32 %v1053, %v1127
      %v1151 = vadd.f32 %v1054, %v1129
      %v1152 = vadd.f32 %v1055, %v1132
      %v1153 = vadd.f32 %v1056, %v1134
      %v1154 = vadd.f32 %v1057, %v1137
      %v1155 = vadd.f32 %v1058, %v1139
      %v1160 = vlaneseq
      %v1161 = vshrl.u32 %v1160, 7
      %v1162 = vsub.s32 0, %v1161
      %v1163 = vrot.slane %v779, %v1162
      %v1164 = vlaneseq
      %v1165 = vshrl.u32 %v1164, 7
      %v1166 = vsub.s32 0, %v1165
      %v1167 = vrot.slane %v780, %v1166
      %v1168 = vlaneseq
      %v1169 = vshrl.u32 %v1168, 7
      %v1170 = vsub.s32 0, %v1169
      %v1171 = vrot.slane %v781, %v1170
      %v1172 = vlaneseq
      %v1173 = vshrl.u32 %v1172, 7
      %v1174 = vsub.s32 0, %v1173
      %v1175 = vrot.slane %v782, %v1174
      %1176 = vset.pattern.permute.xlu0 0
      %1177 = vperm.xlu0 %1176, %v1163
      %v1178 = vpop.permute.xlu0 %1177
      %1180 = vset.pattern.permute.xlu0 0
      %1181 = vperm.xlu0 %1180, %v1167
      %v1182 = vpop.permute.xlu0 %1181
      %1184 = vset.pattern.permute.xlu0 0
      %1185 = vperm.xlu0 %1184, %v1171
      %v1186 = vpop.permute.xlu0 %1185
      %1188 = vset.pattern.permute.xlu0 0
      %1189 = vperm.xlu0 %1188, %v1175
      %v1190 = vpop.permute.xlu0 %1189
      %v1192 = vmul.f32 %v1178, %v751
      %v1193 = vmul.f32 %v1178, %v752
      %v1194 = vmul.f32 %v1178, %v753
      %v1195 = vmul.f32 %v1182, %v754
      %v1196 = vmul.f32 %v1182, %v755
      %v1197 = vmul.f32 %v1182, %v756
      %v1198 = vmul.f32 %v1186, %v757
      %v1199 = vmul.f32 %v1186, %v758
      %v1200 = vmul.f32 %v1186, %v759
      %v1201 = vmul.f32 %v1190, %v760
      %v1202 = vmul.f32 %v1190, %v761
      %v1203 = vmul.f32 %v1190, %v762
      %v1216 = vrot.slane %v1192, 1
      %v1217 = vrot.slane %v1193, 1
      %v1218 = vsel %vm1119, %v1216, %v1217
      %v1219 = vrot.slane %v1194, 1
      %v1220 = vsel %vm1119, %v1217, %v1219
      %v1221 = vrot.slane %v1195, 1
      %v1222 = vrot.slane %v1196, 1
      %v1223 = vsel %vm1119, %v1221, %v1222
      %v1224 = vrot.slane %v1197, 1
      %v1225 = vsel %vm1119, %v1222, %v1224
      %v1226 = vrot.slane %v1198, 1
      %v1227 = vrot.slane %v1199, 1
      %v1228 = vsel %vm1119, %v1226, %v1227
      %v1229 = vrot.slane %v1200, 1
      %v1230 = vsel %vm1119, %v1227, %v1229
      %v1231 = vrot.slane %v1201, 1
      %v1232 = vrot.slane %v1202, 1
      %v1233 = vsel %vm1119, %v1231, %v1232
      %v1234 = vrot.slane %v1203, 1
      %v1235 = vsel %vm1119, %v1232, %v1234
      %1236 = vrot.lane.b32.xlu0 %v1218, 127
      %v1237 = vpop.permute.xlu0 %1236
      %1238 = vrot.lane.b32.xlu0 %v1220, 127
      %v1239 = vpop.permute.xlu0 %1238
      %1240 = vrot.lane.b32.xlu0 %v1223, 127
      %v1241 = vpop.permute.xlu0 %1240
      %1242 = vrot.lane.b32.xlu0 %v1225, 127
      %v1243 = vpop.permute.xlu0 %1242
      %1244 = vrot.lane.b32.xlu0 %v1228, 127
      %v1245 = vpop.permute.xlu0 %1244
      %1246 = vrot.lane.b32.xlu0 %v1230, 127
      %v1247 = vpop.permute.xlu0 %1246
      %1248 = vrot.lane.b32.xlu0 %v1233, 127
      %v1249 = vpop.permute.xlu0 %1248
      %1250 = vrot.lane.b32.xlu0 %v1235, 127
      %v1251 = vpop.permute.xlu0 %1250
      %v1260 = vadd.f32 %v1148, %v1237
      %v1261 = vadd.f32 %v1149, %v1239
      %v1262 = vadd.f32 %v1150, %v1241
      %v1263 = vadd.f32 %v1151, %v1243
      %v1264 = vadd.f32 %v1152, %v1245
      %v1265 = vadd.f32 %v1153, %v1247
      %v1266 = vadd.f32 %v1154, %v1249
      %v1267 = vadd.f32 %v1155, %v1251
      %v1272 = vlaneseq
      %v1273 = vshrl.u32 %v1272, 7
      %v1274 = vsub.s32 0, %v1273
      %v1275 = vrot.slane %v783, %v1274
      %v1276 = vlaneseq
      %v1277 = vshrl.u32 %v1276, 7
      %v1278 = vsub.s32 0, %v1277
      %v1279 = vrot.slane %v784, %v1278
      %v1280 = vlaneseq
      %v1281 = vshrl.u32 %v1280, 7
      %v1282 = vsub.s32 0, %v1281
      %v1283 = vrot.slane %v785, %v1282
      %v1284 = vlaneseq
      %v1285 = vshrl.u32 %v1284, 7
      %v1286 = vsub.s32 0, %v1285
      %v1287 = vrot.slane %v786, %v1286
      %1288 = vset.pattern.permute.xlu0 0
      %1289 = vperm.xlu0 %1288, %v1275
      %v1290 = vpop.permute.xlu0 %1289
      %1292 = vset.pattern.permute.xlu0 0
      %1293 = vperm.xlu0 %1292, %v1279
      %v1294 = vpop.permute.xlu0 %1293
      %1296 = vset.pattern.permute.xlu0 0
      %1297 = vperm.xlu0 %1296, %v1283
      %v1298 = vpop.permute.xlu0 %1297
      %1300 = vset.pattern.permute.xlu0 0
      %1301 = vperm.xlu0 %1300, %v1287
      %v1302 = vpop.permute.xlu0 %1301
      %v1304 = vmul.f32 %v1290, %v751
      %v1305 = vmul.f32 %v1290, %v752
      %v1306 = vmul.f32 %v1290, %v753
      %v1307 = vmul.f32 %v1294, %v754
      %v1308 = vmul.f32 %v1294, %v755
      %v1309 = vmul.f32 %v1294, %v756
      %v1310 = vmul.f32 %v1298, %v757
      %v1311 = vmul.f32 %v1298, %v758
      %v1312 = vmul.f32 %v1298, %v759
      %v1313 = vmul.f32 %v1302, %v760
      %v1314 = vmul.f32 %v1302, %v761
      %v1315 = vmul.f32 %v1302, %v762
      %v1328 = vrot.slane %v1304, 1
      %v1329 = vrot.slane %v1305, 1
      %v1330 = vsel %vm1119, %v1328, %v1329
      %v1331 = vrot.slane %v1306, 1
      %v1332 = vsel %vm1119, %v1329, %v1331
      %v1333 = vrot.slane %v1307, 1
      %v1334 = vrot.slane %v1308, 1
      %v1335 = vsel %vm1119, %v1333, %v1334
      %v1336 = vrot.slane %v1309, 1
      %v1337 = vsel %vm1119, %v1334, %v1336
      %v1338 = vrot.slane %v1310, 1
      %v1339 = vrot.slane %v1311, 1
      %v1340 = vsel %vm1119, %v1338, %v1339
      %v1341 = vrot.slane %v1312, 1
      %v1342 = vsel %vm1119, %v1339, %v1341
      %v1343 = vrot.slane %v1313, 1
      %v1344 = vrot.slane %v1314, 1
      %v1345 = vsel %vm1119, %v1343, %v1344
      %v1346 = vrot.slane %v1315, 1
      %v1347 = vsel %vm1119, %v1344, %v1346
      %1348 = vrot.lane.b32.xlu0 %v1330, 126
      %v1349 = vpop.permute.xlu0 %1348
      %1350 = vrot.lane.b32.xlu0 %v1332, 126
      %v1351 = vpop.permute.xlu0 %1350
      %1352 = vrot.lane.b32.xlu0 %v1335, 126
      %v1353 = vpop.permute.xlu0 %1352
      %1354 = vrot.lane.b32.xlu0 %v1337, 126
      %v1355 = vpop.permute.xlu0 %1354
      %1356 = vrot.lane.b32.xlu0 %v1340, 126
      %v1357 = vpop.permute.xlu0 %1356
      %1358 = vrot.lane.b32.xlu0 %v1342, 126
      %v1359 = vpop.permute.xlu0 %1358
      %1360 = vrot.lane.b32.xlu0 %v1345, 126
      %v1361 = vpop.permute.xlu0 %1360
      %1362 = vrot.lane.b32.xlu0 %v1347, 126
      %v1363 = vpop.permute.xlu0 %1362
      %v1372 = vadd.f32 %v1260, %v1349
      %v1373 = vadd.f32 %v1261, %v1351
      %v1374 = vadd.f32 %v1262, %v1353
      %v1375 = vadd.f32 %v1263, %v1355
      %v1376 = vadd.f32 %v1264, %v1357
      %v1377 = vadd.f32 %v1265, %v1359
      %v1378 = vadd.f32 %v1266, %v1361
      %v1379 = vadd.f32 %v1267, %v1363
      %v1384 = vlaneseq
      %v1385 = vshrl.u32 %v1384, 7
      %v1386 = vsub.s32 0, %v1385
      %v1387 = vrot.slane %v787, %v1386
      %v1388 = vlaneseq
      %v1389 = vshrl.u32 %v1388, 7
      %v1390 = vsub.s32 0, %v1389
      %v1391 = vrot.slane %v788, %v1390
      %v1392 = vlaneseq
      %v1393 = vshrl.u32 %v1392, 7
      %v1394 = vsub.s32 0, %v1393
      %v1395 = vrot.slane %v789, %v1394
      %v1396 = vlaneseq
      %v1397 = vshrl.u32 %v1396, 7
      %v1398 = vsub.s32 0, %v1397
      %v1399 = vrot.slane %v790, %v1398
      %1400 = vset.pattern.permute.xlu0 0
      %1401 = vperm.xlu0 %1400, %v1387
      %v1402 = vpop.permute.xlu0 %1401
      %1404 = vset.pattern.permute.xlu0 0
      %1405 = vperm.xlu0 %1404, %v1391
      %v1406 = vpop.permute.xlu0 %1405
      %1408 = vset.pattern.permute.xlu0 0
      %1409 = vperm.xlu0 %1408, %v1395
      %v1410 = vpop.permute.xlu0 %1409
      %1412 = vset.pattern.permute.xlu0 0
      %1413 = vperm.xlu0 %1412, %v1399
      %v1414 = vpop.permute.xlu0 %1413
      %v1416 = vmul.f32 %v1402, %v751
      %v1417 = vmul.f32 %v1402, %v752
      %v1418 = vmul.f32 %v1402, %v753
      %v1419 = vmul.f32 %v1406, %v754
      %v1420 = vmul.f32 %v1406, %v755
      %v1421 = vmul.f32 %v1406, %v756
      %v1422 = vmul.f32 %v1410, %v757
      %v1423 = vmul.f32 %v1410, %v758
      %v1424 = vmul.f32 %v1410, %v759
      %v1425 = vmul.f32 %v1414, %v760
      %v1426 = vmul.f32 %v1414, %v761
      %v1427 = vmul.f32 %v1414, %v762
      %vm1440 = vcmask 1045504
      %v1441 = vrot.slane %v1416, 2
      %v1442 = vrot.slane %v1417, 2
      %v1443 = vsel %vm1440, %v1441, %v1442
      %v1444 = vrot.slane %v1418, 2
      %v1445 = vsel %vm1440, %v1442, %v1444
      %v1446 = vrot.slane %v1419, 2
      %v1447 = vrot.slane %v1420, 2
      %v1448 = vsel %vm1440, %v1446, %v1447
      %v1449 = vrot.slane %v1421, 2
      %v1450 = vsel %vm1440, %v1447, %v1449
      %v1451 = vrot.slane %v1422, 2
      %v1452 = vrot.slane %v1423, 2
      %v1453 = vsel %vm1440, %v1451, %v1452
      %v1454 = vrot.slane %v1424, 2
      %v1455 = vsel %vm1440, %v1452, %v1454
      %v1456 = vrot.slane %v1425, 2
      %v1457 = vrot.slane %v1426, 2
      %v1458 = vsel %vm1440, %v1456, %v1457
      %v1459 = vrot.slane %v1427, 2
      %v1460 = vsel %vm1440, %v1457, %v1459
      %v1469 = vadd.f32 %v1372, %v1443
      %v1470 = vadd.f32 %v1373, %v1445
      %v1471 = vadd.f32 %v1374, %v1448
      %v1472 = vadd.f32 %v1375, %v1450
      %v1473 = vadd.f32 %v1376, %v1453
      %v1474 = vadd.f32 %v1377, %v1455
      %v1475 = vadd.f32 %v1378, %v1458
      %v1476 = vadd.f32 %v1379, %v1460
      %v1481 = vlaneseq
      %v1482 = vshrl.u32 %v1481, 7
      %v1483 = vsub.s32 0, %v1482
      %v1484 = vrot.slane %v791, %v1483
      %v1485 = vlaneseq
      %v1486 = vshrl.u32 %v1485, 7
      %v1487 = vsub.s32 0, %v1486
      %v1488 = vrot.slane %v792, %v1487
      %v1489 = vlaneseq
      %v1490 = vshrl.u32 %v1489, 7
      %v1491 = vsub.s32 0, %v1490
      %v1492 = vrot.slane %v793, %v1491
      %v1493 = vlaneseq
      %v1494 = vshrl.u32 %v1493, 7
      %v1495 = vsub.s32 0, %v1494
      %v1496 = vrot.slane %v794, %v1495
      %1497 = vset.pattern.permute.xlu0 0
      %1498 = vperm.xlu0 %1497, %v1484
      %v1499 = vpop.permute.xlu0 %1498
      %1501 = vset.pattern.permute.xlu0 0
      %1502 = vperm.xlu0 %1501, %v1488
      %v1503 = vpop.permute.xlu0 %1502
      %1505 = vset.pattern.permute.xlu0 0
      %1506 = vperm.xlu0 %1505, %v1492
      %v1507 = vpop.permute.xlu0 %1506
      %1509 = vset.pattern.permute.xlu0 0
      %1510 = vperm.xlu0 %1509, %v1496
      %v1511 = vpop.permute.xlu0 %1510
      %v1513 = vmul.f32 %v1499, %v751
      %v1514 = vmul.f32 %v1499, %v752
      %v1515 = vmul.f32 %v1499, %v753
      %v1516 = vmul.f32 %v1503, %v754
      %v1517 = vmul.f32 %v1503, %v755
      %v1518 = vmul.f32 %v1503, %v756
      %v1519 = vmul.f32 %v1507, %v757
      %v1520 = vmul.f32 %v1507, %v758
      %v1521 = vmul.f32 %v1507, %v759
      %v1522 = vmul.f32 %v1511, %v760
      %v1523 = vmul.f32 %v1511, %v761
      %v1524 = vmul.f32 %v1511, %v762
      %v1537 = vrot.slane %v1513, 2
      %v1538 = vrot.slane %v1514, 2
      %v1539 = vsel %vm1440, %v1537, %v1538
      %v1540 = vrot.slane %v1515, 2
      %v1541 = vsel %vm1440, %v1538, %v1540
      %v1542 = vrot.slane %v1516, 2
      %v1543 = vrot.slane %v1517, 2
      %v1544 = vsel %vm1440, %v1542, %v1543
      %v1545 = vrot.slane %v1518, 2
      %v1546 = vsel %vm1440, %v1543, %v1545
      %v1547 = vrot.slane %v1519, 2
      %v1548 = vrot.slane %v1520, 2
      %v1549 = vsel %vm1440, %v1547, %v1548
      %v1550 = vrot.slane %v1521, 2
      %v1551 = vsel %vm1440, %v1548, %v1550
      %v1552 = vrot.slane %v1522, 2
      %v1553 = vrot.slane %v1523, 2
      %v1554 = vsel %vm1440, %v1552, %v1553
      %v1555 = vrot.slane %v1524, 2
      %v1556 = vsel %vm1440, %v1553, %v1555
      %1557 = vrot.lane.b32.xlu0 %v1539, 127
      %v1558 = vpop.permute.xlu0 %1557
      %1559 = vrot.lane.b32.xlu0 %v1541, 127
      %v1560 = vpop.permute.xlu0 %1559
      %1561 = vrot.lane.b32.xlu0 %v1544, 127
      %v1562 = vpop.permute.xlu0 %1561
      %1563 = vrot.lane.b32.xlu0 %v1546, 127
      %v1564 = vpop.permute.xlu0 %1563
      %1565 = vrot.lane.b32.xlu0 %v1549, 127
      %v1566 = vpop.permute.xlu0 %1565
      %1567 = vrot.lane.b32.xlu0 %v1551, 127
      %v1568 = vpop.permute.xlu0 %1567
      %1569 = vrot.lane.b32.xlu0 %v1554, 127
      %v1570 = vpop.permute.xlu0 %1569
      %1571 = vrot.lane.b32.xlu0 %v1556, 127
      %v1572 = vpop.permute.xlu0 %1571
      %v1581 = vadd.f32 %v1469, %v1558
      %v1582 = vadd.f32 %v1470, %v1560
      %v1583 = vadd.f32 %v1471, %v1562
      %v1584 = vadd.f32 %v1472, %v1564
      %v1585 = vadd.f32 %v1473, %v1566
      %v1586 = vadd.f32 %v1474, %v1568
      %v1587 = vadd.f32 %v1475, %v1570
      %v1588 = vadd.f32 %v1476, %v1572
      %v1593 = vlaneseq
      %v1594 = vshrl.u32 %v1593, 7
      %v1595 = vsub.s32 0, %v1594
      %v1596 = vrot.slane %v795, %v1595
      %v1597 = vlaneseq
      %v1598 = vshrl.u32 %v1597, 7
      %v1599 = vsub.s32 0, %v1598
      %v1600 = vrot.slane %v796, %v1599
      %v1601 = vlaneseq
      %v1602 = vshrl.u32 %v1601, 7
      %v1603 = vsub.s32 0, %v1602
      %v1604 = vrot.slane %v797, %v1603
      %v1605 = vlaneseq
      %v1606 = vshrl.u32 %v1605, 7
      %v1607 = vsub.s32 0, %v1606
      %v1608 = vrot.slane %v798, %v1607
      %1609 = vset.pattern.permute.xlu0 0
      %1610 = vperm.xlu0 %1609, %v1596
      %v1611 = vpop.permute.xlu0 %1610
      %1613 = vset.pattern.permute.xlu0 0
      %1614 = vperm.xlu0 %1613, %v1600
      %v1615 = vpop.permute.xlu0 %1614
      %1617 = vset.pattern.permute.xlu0 0
      %1618 = vperm.xlu0 %1617, %v1604
      %v1619 = vpop.permute.xlu0 %1618
      %1621 = vset.pattern.permute.xlu0 0
      %1622 = vperm.xlu0 %1621, %v1608
      %v1623 = vpop.permute.xlu0 %1622
      %v1625 = vmul.f32 %v1611, %v751
      %v1626 = vmul.f32 %v1611, %v752
      %v1627 = vmul.f32 %v1611, %v753
      %v1628 = vmul.f32 %v1615, %v754
      %v1629 = vmul.f32 %v1615, %v755
      %v1630 = vmul.f32 %v1615, %v756
      %v1631 = vmul.f32 %v1619, %v757
      %v1632 = vmul.f32 %v1619, %v758
      %v1633 = vmul.f32 %v1619, %v759
      %v1634 = vmul.f32 %v1623, %v760
      %v1635 = vmul.f32 %v1623, %v761
      %v1636 = vmul.f32 %v1623, %v762
      %v1649 = vrot.slane %v1625, 2
      %v1650 = vrot.slane %v1626, 2
      %v1651 = vsel %vm1440, %v1649, %v1650
      %v1652 = vrot.slane %v1627, 2
      %v1653 = vsel %vm1440, %v1650, %v1652
      %v1654 = vrot.slane %v1628, 2
      %v1655 = vrot.slane %v1629, 2
      %v1656 = vsel %vm1440, %v1654, %v1655
      %v1657 = vrot.slane %v1630, 2
      %v1658 = vsel %vm1440, %v1655, %v1657
      %v1659 = vrot.slane %v1631, 2
      %v1660 = vrot.slane %v1632, 2
      %v1661 = vsel %vm1440, %v1659, %v1660
      %v1662 = vrot.slane %v1633, 2
      %v1663 = vsel %vm1440, %v1660, %v1662
      %v1664 = vrot.slane %v1634, 2
      %v1665 = vrot.slane %v1635, 2
      %v1666 = vsel %vm1440, %v1664, %v1665
      %v1667 = vrot.slane %v1636, 2
      %v1668 = vsel %vm1440, %v1665, %v1667
      %1669 = vrot.lane.b32.xlu0 %v1651, 126
      %v1670 = vpop.permute.xlu0 %1669
      %1671 = vrot.lane.b32.xlu0 %v1653, 126
      %v1672 = vpop.permute.xlu0 %1671
      %1673 = vrot.lane.b32.xlu0 %v1656, 126
      %v1674 = vpop.permute.xlu0 %1673
      %1675 = vrot.lane.b32.xlu0 %v1658, 126
      %v1676 = vpop.permute.xlu0 %1675
      %1677 = vrot.lane.b32.xlu0 %v1661, 126
      %v1678 = vpop.permute.xlu0 %1677
      %1679 = vrot.lane.b32.xlu0 %v1663, 126
      %v1680 = vpop.permute.xlu0 %1679
      %1681 = vrot.lane.b32.xlu0 %v1666, 126
      %v1682 = vpop.permute.xlu0 %1681
      %1683 = vrot.lane.b32.xlu0 %v1668, 126
      %v1684 = vpop.permute.xlu0 %1683
      %v1693 = vadd.f32 %v1581, %v1670
      %v1694 = vadd.f32 %v1582, %v1672
      %v1695 = vadd.f32 %v1583, %v1674
      %v1696 = vadd.f32 %v1584, %v1676
      %v1697 = vadd.f32 %v1585, %v1678
      %v1698 = vadd.f32 %v1586, %v1680
      %v1699 = vadd.f32 %v1587, %v1682
      %v1700 = vadd.f32 %v1588, %v1684
      %v1701 = vmax.f32 %v1693, 0.0
      %v1702 = vmax.f32 %v1694, 0.0
      %v1703 = vmax.f32 %v1695, 0.0
      %v1704 = vmax.f32 %v1696, 0.0
      %v1705 = vmax.f32 %v1697, 0.0
      %v1706 = vmax.f32 %v1698, 0.0
      %v1707 = vmax.f32 %v1699, 0.0
      %v1708 = vmax.f32 %v1700, 0.0
      %v1709 = vld [vmem:[%s4] sm:$0x1]
      %v1710 = vld [vmem:[%s4 + $0x1] sm:$0x1]
      %v1711 = vld [vmem:[%s4 + $0x2] sm:$0x1]
      %v1712 = vld [vmem:[%s4 + $0x3] sm:$0x1]
      %v1713 = vld [vmem:[%s4 + $0x4] sm:$0x1]
      %v1714 = vld [vmem:[%s4 + $0x5] sm:$0x1]
      %v1715 = vld [vmem:[%s4 + $0x6] sm:$0x1]
      %v1716 = vld [vmem:[%s4 + $0x7] sm:$0x1]
      %v1717 = vld [vmem:[%s4 + $0x8] sm:$0x1]
      %v1718 = vld [vmem:[%s4 + $0x9] sm:$0x1]
      %v1719 = vld [vmem:[%s4 + $0xa] sm:$0x1]
      %v1720 = vld [vmem:[%s4 + $0xb] sm:$0x1]
      %v1721 = vld [vmem:[%s4 + $0xc] sm:$0x1]
      %v1722 = vld [vmem:[%s4 + $0xd] sm:$0x1]
      %v1723 = vld [vmem:[%s4 + $0xe] sm:$0x1]
      %v1724 = vld [vmem:[%s4 + $0xf] sm:$0x1]
      %v1725 = vld [vmem:[%s5] sm:$0x1]
      %v1726 = vld [vmem:[%s5 + $0x1] sm:$0x1]
      %v1727 = vld [vmem:[%s5 + $0x2] sm:$0x1]
      %v1728 = vld [vmem:[%s5 + $0x3] sm:$0x1]
      %v1733 = vlaneseq
      %v1734 = vshrl.u32 %v1733, 7
      %v1735 = vsub.s32 0, %v1734
      %v1736 = vrot.slane %v1725, %v1735
      %v1737 = vlaneseq
      %v1738 = vshrl.u32 %v1737, 7
      %v1739 = vsub.s32 0, %v1738
      %v1740 = vrot.slane %v1726, %v1739
      %v1741 = vlaneseq
      %v1742 = vshrl.u32 %v1741, 7
      %v1743 = vsub.s32 0, %v1742
      %v1744 = vrot.slane %v1727, %v1743
      %v1745 = vlaneseq
      %v1746 = vshrl.u32 %v1745, 7
      %v1747 = vsub.s32 0, %v1746
      %v1748 = vrot.slane %v1728, %v1747
      %1749 = vset.pattern.permute.xlu0 0
      %1750 = vperm.xlu0 %1749, %v1736
      %v1751 = vpop.permute.xlu0 %1750
      %1753 = vset.pattern.permute.xlu0 0
      %1754 = vperm.xlu0 %1753, %v1740
      %v1755 = vpop.permute.xlu0 %1754
      %1757 = vset.pattern.permute.xlu0 0
      %1758 = vperm.xlu0 %1757, %v1744
      %v1759 = vpop.permute.xlu0 %1758
      %1761 = vset.pattern.permute.xlu0 0
      %1762 = vperm.xlu0 %1761, %v1748
      %v1763 = vpop.permute.xlu0 %1762
      %v1769 = vlaneseq
      %v1770 = vshrl.u32 %v1769, 7
      %v1771 = vsub.s32 0, %v1770
      %v1772 = vrot.slane %v1709, %v1771
      %v1773 = vlaneseq
      %v1774 = vshrl.u32 %v1773, 7
      %v1775 = vsub.s32 0, %v1774
      %v1776 = vrot.slane %v1710, %v1775
      %v1777 = vlaneseq
      %v1778 = vshrl.u32 %v1777, 7
      %v1779 = vsub.s32 0, %v1778
      %v1780 = vrot.slane %v1711, %v1779
      %v1781 = vlaneseq
      %v1782 = vshrl.u32 %v1781, 7
      %v1783 = vsub.s32 0, %v1782
      %v1784 = vrot.slane %v1712, %v1783
      %1785 = vset.pattern.permute.xlu0 0
      %1786 = vperm.xlu0 %1785, %v1772
      %v1787 = vpop.permute.xlu0 %1786
      %1789 = vset.pattern.permute.xlu0 0
      %1790 = vperm.xlu0 %1789, %v1776
      %v1791 = vpop.permute.xlu0 %1790
      %1793 = vset.pattern.permute.xlu0 0
      %1794 = vperm.xlu0 %1793, %v1780
      %v1795 = vpop.permute.xlu0 %1794
      %1797 = vset.pattern.permute.xlu0 0
      %1798 = vperm.xlu0 %1797, %v1784
      %v1799 = vpop.permute.xlu0 %1798
      %v1801 = vmul.f32 %v1787, %v1701
      %v1802 = vmul.f32 %v1787, %v1702
      %v1803 = vmul.f32 %v1791, %v1701
      %v1804 = vmul.f32 %v1791, %v1702
      %v1805 = vmul.f32 %v1795, %v1701
      %v1806 = vmul.f32 %v1795, %v1702
      %v1807 = vmul.f32 %v1799, %v1701
      %v1808 = vmul.f32 %v1799, %v1702
      %v1809 = vadd.f32 %v1751, %v1801
      %v1810 = vadd.f32 %v1751, %v1802
      %v1811 = vadd.f32 %v1755, %v1803
      %v1812 = vadd.f32 %v1755, %v1804
      %v1813 = vadd.f32 %v1759, %v1805
      %v1814 = vadd.f32 %v1759, %v1806
      %v1815 = vadd.f32 %v1763, %v1807
      %v1816 = vadd.f32 %v1763, %v1808
      %v1821 = vlaneseq
      %v1822 = vshrl.u32 %v1821, 7
      %v1823 = vsub.s32 0, %v1822
      %v1824 = vrot.slane %v1713, %v1823
      %v1825 = vlaneseq
      %v1826 = vshrl.u32 %v1825, 7
      %v1827 = vsub.s32 0, %v1826
      %v1828 = vrot.slane %v1714, %v1827
      %v1829 = vlaneseq
      %v1830 = vshrl.u32 %v1829, 7
      %v1831 = vsub.s32 0, %v1830
      %v1832 = vrot.slane %v1715, %v1831
      %v1833 = vlaneseq
      %v1834 = vshrl.u32 %v1833, 7
      %v1835 = vsub.s32 0, %v1834
      %v1836 = vrot.slane %v1716, %v1835
      %1837 = vset.pattern.permute.xlu0 0
      %1838 = vperm.xlu0 %1837, %v1824
      %v1839 = vpop.permute.xlu0 %1838
      %1841 = vset.pattern.permute.xlu0 0
      %1842 = vperm.xlu0 %1841, %v1828
      %v1843 = vpop.permute.xlu0 %1842
      %1845 = vset.pattern.permute.xlu0 0
      %1846 = vperm.xlu0 %1845, %v1832
      %v1847 = vpop.permute.xlu0 %1846
      %1849 = vset.pattern.permute.xlu0 0
      %1850 = vperm.xlu0 %1849, %v1836
      %v1851 = vpop.permute.xlu0 %1850
      %v1853 = vmul.f32 %v1839, %v1703
      %v1854 = vmul.f32 %v1839, %v1704
      %v1855 = vmul.f32 %v1843, %v1703
      %v1856 = vmul.f32 %v1843, %v1704
      %v1857 = vmul.f32 %v1847, %v1703
      %v1858 = vmul.f32 %v1847, %v1704
      %v1859 = vmul.f32 %v1851, %v1703
      %v1860 = vmul.f32 %v1851, %v1704
      %v1861 = vadd.f32 %v1809, %v1853
      %v1862 = vadd.f32 %v1810, %v1854
      %v1863 = vadd.f32 %v1811, %v1855
      %v1864 = vadd.f32 %v1812, %v1856
      %v1865 = vadd.f32 %v1813, %v1857
      %v1866 = vadd.f32 %v1814, %v1858
      %v1867 = vadd.f32 %v1815, %v1859
      %v1868 = vadd.f32 %v1816, %v1860
      %v1873 = vlaneseq
      %v1874 = vshrl.u32 %v1873, 7
      %v1875 = vsub.s32 0, %v1874
      %v1876 = vrot.slane %v1717, %v1875
      %v1877 = vlaneseq
      %v1878 = vshrl.u32 %v1877, 7
      %v1879 = vsub.s32 0, %v1878
      %v1880 = vrot.slane %v1718, %v1879
      %v1881 = vlaneseq
      %v1882 = vshrl.u32 %v1881, 7
      %v1883 = vsub.s32 0, %v1882
      %v1884 = vrot.slane %v1719, %v1883
      %v1885 = vlaneseq
      %v1886 = vshrl.u32 %v1885, 7
      %v1887 = vsub.s32 0, %v1886
      %v1888 = vrot.slane %v1720, %v1887
      %1889 = vset.pattern.permute.xlu0 0
      %1890 = vperm.xlu0 %1889, %v1876
      %v1891 = vpop.permute.xlu0 %1890
      %1893 = vset.pattern.permute.xlu0 0
      %1894 = vperm.xlu0 %1893, %v1880
      %v1895 = vpop.permute.xlu0 %1894
      %1897 = vset.pattern.permute.xlu0 0
      %1898 = vperm.xlu0 %1897, %v1884
      %v1899 = vpop.permute.xlu0 %1898
      %1901 = vset.pattern.permute.xlu0 0
      %1902 = vperm.xlu0 %1901, %v1888
      %v1903 = vpop.permute.xlu0 %1902
      %v1905 = vmul.f32 %v1891, %v1705
      %v1906 = vmul.f32 %v1891, %v1706
      %v1907 = vmul.f32 %v1895, %v1705
      %v1908 = vmul.f32 %v1895, %v1706
      %v1909 = vmul.f32 %v1899, %v1705
      %v1910 = vmul.f32 %v1899, %v1706
      %v1911 = vmul.f32 %v1903, %v1705
      %v1912 = vmul.f32 %v1903, %v1706
      %v1913 = vadd.f32 %v1861, %v1905
      %v1914 = vadd.f32 %v1862, %v1906
      %v1915 = vadd.f32 %v1863, %v1907
      %v1916 = vadd.f32 %v1864, %v1908
      %v1917 = vadd.f32 %v1865, %v1909
      %v1918 = vadd.f32 %v1866, %v1910
      %v1919 = vadd.f32 %v1867, %v1911
      %v1920 = vadd.f32 %v1868, %v1912
      %v1925 = vlaneseq
      %v1926 = vshrl.u32 %v1925, 7
      %v1927 = vsub.s32 0, %v1926
      %v1928 = vrot.slane %v1721, %v1927
      %v1929 = vlaneseq
      %v1930 = vshrl.u32 %v1929, 7
      %v1931 = vsub.s32 0, %v1930
      %v1932 = vrot.slane %v1722, %v1931
      %v1933 = vlaneseq
      %v1934 = vshrl.u32 %v1933, 7
      %v1935 = vsub.s32 0, %v1934
      %v1936 = vrot.slane %v1723, %v1935
      %v1937 = vlaneseq
      %v1938 = vshrl.u32 %v1937, 7
      %v1939 = vsub.s32 0, %v1938
      %v1940 = vrot.slane %v1724, %v1939
      %1941 = vset.pattern.permute.xlu0 0
      %1942 = vperm.xlu0 %1941, %v1928
      %v1943 = vpop.permute.xlu0 %1942
      %1945 = vset.pattern.permute.xlu0 0
      %1946 = vperm.xlu0 %1945, %v1932
      %v1947 = vpop.permute.xlu0 %1946
      %1949 = vset.pattern.permute.xlu0 0
      %1950 = vperm.xlu0 %1949, %v1936
      %v1951 = vpop.permute.xlu0 %1950
      %1953 = vset.pattern.permute.xlu0 0
      %1954 = vperm.xlu0 %1953, %v1940
      %v1955 = vpop.permute.xlu0 %1954
      %v1957 = vmul.f32 %v1943, %v1707
      %v1958 = vmul.f32 %v1943, %v1708
      %v1959 = vmul.f32 %v1947, %v1707
      %v1960 = vmul.f32 %v1947, %v1708
      %v1961 = vmul.f32 %v1951, %v1707
      %v1962 = vmul.f32 %v1951, %v1708
      %v1963 = vmul.f32 %v1955, %v1707
      %v1964 = vmul.f32 %v1955, %v1708
      %v1965 = vadd.f32 %v1913, %v1957
      %v1966 = vadd.f32 %v1914, %v1958
      %v1967 = vadd.f32 %v1915, %v1959
      %v1968 = vadd.f32 %v1916, %v1960
      %v1969 = vadd.f32 %v1917, %v1961
      %v1970 = vadd.f32 %v1918, %v1962
      %v1971 = vadd.f32 %v1919, %v1963
      %v1972 = vadd.f32 %v1920, %v1964
      %v1973 = vmax.f32 %v1965, 0.0
      %v1974 = vmax.f32 %v1966, 0.0
      %v1975 = vmax.f32 %v1967, 0.0
      %v1976 = vmax.f32 %v1968, 0.0
      %v1977 = vmax.f32 %v1969, 0.0
      %v1978 = vmax.f32 %v1970, 0.0
      %v1979 = vmax.f32 %v1971, 0.0
      %v1980 = vmax.f32 %v1972, 0.0
      %vm1981 = vcmask 72704
      %v1982 = vsel %vm1981, %v1973, 0.0
      %v1983 = vsel %vm1981, %v1975, 0.0
      %v1984 = vadd.f32 %v1982, %v1983
      %v1985 = vsel %vm1981, %v1977, 0.0
      %v1986 = vadd.f32 %v1984, %v1985
      %v1987 = vsel %vm1981, %v1979, 0.0
      %v1988 = vadd.f32 %v1986, %v1987
      %v1989 = vsel %vm1981, %v1974, 0.0
      %v1990 = vsel %vm1981, %v1976, 0.0
      %v1991 = vadd.f32 %v1989, %v1990
      %v1992 = vsel %vm1981, %v1978, 0.0
      %v1993 = vadd.f32 %v1991, %v1992
      %v1994 = vsel %vm1981, %v1980, 0.0
      %v1995 = vadd.f32 %v1993, %v1994
      %v1996 = vrcp.pop 4.0
      %v1997 = vmul.f32 %v1988, %v1996
      %v1998 = vmul.f32 %v1995, %v1996
      %v1999 = vsel %vm1981, %v1973, -inf
      %v2000 = vsel %vm1981, %v1975, -inf
      %v2001 = vsel %vm1981, %v1977, -inf
      %v2002 = vmax.f32 %v1999, %v2001
      %v2003 = vsel %vm1981, %v1979, -inf
      %v2004 = vmax.f32 %v2000, %v2003
      %v2005 = vmax.f32 %v2002, %v2004
      %v2006 = vsel %vm1981, %v1974, -inf
      %v2007 = vsel %vm1981, %v1976, -inf
      %v2008 = vsel %vm1981, %v1978, -inf
      %v2009 = vmax.f32 %v2006, %v2008
      %v2010 = vsel %vm1981, %v1980, -inf
      %v2011 = vmax.f32 %v2007, %v2010
      %v2012 = vmax.f32 %v2009, %v2011
      %v2017 = vrot.slane %v1997, 7
      %v2018 = vrot.slane %v1998, 7
      %v2019 = vsel %vm664, %v2017, %v2018
      %v2020 = vrot.slane %v2005, 7
      %v2021 = vrot.slane %v2012, 7
      %v2022 = vsel %vm664, %v2020, %v2021
      %v2027 = vsel %vm664, 0.0, %v2017
      %v2028 = vsel %vm664, 0.0, %v2020
      %v2029 = vsel %vm664, %v2018, 0.0
      %v2030 = vsel %vm664, %v2021, 0.0
      %2035 = vrot.lane.b32.xlu0 %v2027, 1
      %v2036 = vpop.permute.xlu0 %2035
      %2037 = vrot.lane.b32.xlu0 %v2019, 1
      %v2038 = vpop.permute.xlu0 %2037
      %2039 = vrot.lane.b32.xlu0 %v2029, 1
      %v2040 = vpop.permute.xlu0 %2039
      %2041 = vrot.lane.b32.xlu0 %v2028, 1
      %v2042 = vpop.permute.xlu0 %2041
      %2043 = vrot.lane.b32.xlu0 %v2022, 1
      %v2044 = vpop.permute.xlu0 %2043
      %2045 = vrot.lane.b32.xlu0 %v2030, 1
      %v2046 = vpop.permute.xlu0 %2045
      %v2053 = vsel %vm737, 0.0, %v2036
      %v2054 = vsel %vm737, 0.0, %v2038
      %v2055 = vsel %vm737, 0.0, %v2040
      %v2056 = vsel %vm737, 0.0, %v2042
      %v2057 = vsel %vm737, 0.0, %v2044
      %v2058 = vsel %vm737, 0.0, %v2046
      %v2059 = vsel %vm750, %v2053, 0.0
      %v2060 = vsel %vm750, %v2054, 0.0
      %v2061 = vsel %vm750, %v2055, 0.0
      %v2062 = vsel %vm750, %v2056, 0.0
      %v2063 = vsel %vm750, %v2057, 0.0
      %v2064 = vsel %vm750, %v2058, 0.0
      %v2065 = vld [vmem:[%s6] sm:$0x1]
      %v2066 = vld [vmem:[%s6 + $0x1] sm:$0x1]
      %v2067 = vld [vmem:[%s6 + $0x2] sm:$0x1]
      %v2068 = vld [vmem:[%s6 + $0x3] sm:$0x1]
      %v2069 = vld [vmem:[%s6 + $0x4] sm:$0x1]
      %v2070 = vld [vmem:[%s6 + $0x5] sm:$0x1]
      %v2071 = vld [vmem:[%s6 + $0x6] sm:$0x1]
      %v2072 = vld [vmem:[%s6 + $0x7] sm:$0x1]
      %v2073 = vld [vmem:[%s6 + $0x8] sm:$0x1]
      %v2074 = vld [vmem:[%s6 + $0x9] sm:$0x1]
      %v2075 = vld [vmem:[%s6 + $0xa] sm:$0x1]
      %v2076 = vld [vmem:[%s6 + $0xb] sm:$0x1]
      %v2077 = vld [vmem:[%s6 + $0xc] sm:$0x1]
      %v2078 = vld [vmem:[%s6 + $0xd] sm:$0x1]
      %v2079 = vld [vmem:[%s6 + $0xe] sm:$0x1]
      %v2080 = vld [vmem:[%s6 + $0xf] sm:$0x1]
      %v2081 = vld [vmem:[%s6 + $0x10] sm:$0x1]
      %v2082 = vld [vmem:[%s6 + $0x11] sm:$0x1]
      %v2083 = vld [vmem:[%s7] sm:$0x1]
      %v2084 = vld [vmem:[%s7 + $0x1] sm:$0x1]
      %v2087 = vlaneseq
      %v2088 = vshrl.u32 %v2087, 7
      %v2089 = vsub.s32 0, %v2088
      %v2090 = vrot.slane %v2083, %v2089
      %v2091 = vlaneseq
      %v2092 = vshrl.u32 %v2091, 7
      %v2093 = vsub.s32 0, %v2092
      %v2094 = vrot.slane %v2084, %v2093
      %2095 = vset.pattern.permute.xlu0 0
      %2096 = vperm.xlu0 %2095, %v2090
      %v2097 = vpop.permute.xlu0 %2096
      %2099 = vset.pattern.permute.xlu0 0
      %2100 = vperm.xlu0 %2099, %v2094
      %v2101 = vpop.permute.xlu0 %2100
      %v2105 = vlaneseq
      %v2106 = vshrl.u32 %v2105, 7
      %v2107 = vsub.s32 0, %v2106
      %v2108 = vrot.slane %v2065, %v2107
      %v2109 = vlaneseq
      %v2110 = vshrl.u32 %v2109, 7
      %v2111 = vsub.s32 0, %v2110
      %v2112 = vrot.slane %v2066, %v2111
      %2113 = vset.pattern.permute.xlu0 0
      %2114 = vperm.xlu0 %2113, %v2108
      %v2115 = vpop.permute.xlu0 %2114
      %2117 = vset.pattern.permute.xlu0 0
      %2118 = vperm.xlu0 %2117, %v2112
      %v2119 = vpop.permute.xlu0 %2118
      %v2121 = vmul.f32 %v2115, %v2059
      %v2122 = vmul.f32 %v2115, %v2060
      %v2123 = vmul.f32 %v2119, %v2062
      %v2124 = vmul.f32 %v2119, %v2063
      %v2125 = vadd.f32 %v2097, %v2121
      %v2126 = vadd.f32 %v2097, %v2122
      %v2127 = vadd.f32 %v2101, %v2123
      %v2128 = vadd.f32 %v2101, %v2124
      %v2131 = vlaneseq
      %v2132 = vshrl.u32 %v2131, 7
      %v2133 = vsub.s32 0, %v2132
      %v2134 = vrot.slane %v2067, %v2133
      %v2135 = vlaneseq
      %v2136 = vshrl.u32 %v2135, 7
      %v2137 = vsub.s32 0, %v2136
      %v2138 = vrot.slane %v2068, %v2137
      %2139 = vset.pattern.permute.xlu0 0
      %2140 = vperm.xlu0 %2139, %v2134
      %v2141 = vpop.permute.xlu0 %2140
      %2143 = vset.pattern.permute.xlu0 0
      %2144 = vperm.xlu0 %2143, %v2138
      %v2145 = vpop.permute.xlu0 %2144
      %v2147 = vmul.f32 %v2141, %v2059
      %v2148 = vmul.f32 %v2141, %v2060
      %v2149 = vmul.f32 %v2145, %v2062
      %v2150 = vmul.f32 %v2145, %v2063
      %2155 = vrot.lane.b32.xlu0 %v2147, 127
      %v2156 = vpop.permute.xlu0 %2155
      %2157 = vrot.lane.b32.xlu0 %v2148, 127
      %v2158 = vpop.permute.xlu0 %2157
      %2159 = vrot.lane.b32.xlu0 %v2149, 127
      %v2160 = vpop.permute.xlu0 %2159
      %2161 = vrot.lane.b32.xlu0 %v2150, 127
      %v2162 = vpop.permute.xlu0 %2161
      %v2167 = vadd.f32 %v2125, %v2156
      %v2168 = vadd.f32 %v2126, %v2158
      %v2169 = vadd.f32 %v2127, %v2160
      %v2170 = vadd.f32 %v2128, %v2162
      %v2173 = vlaneseq
      %v2174 = vshrl.u32 %v2173, 7
      %v2175 = vsub.s32 0, %v2174
      %v2176 = vrot.slane %v2069, %v2175
      %v2177 = vlaneseq
      %v2178 = vshrl.u32 %v2177, 7
      %v2179 = vsub.s32 0, %v2178
      %v2180 = vrot.slane %v2070, %v2179
      %2181 = vset.pattern.permute.xlu0 0
      %2182 = vperm.xlu0 %2181, %v2176
      %v2183 = vpop.permute.xlu0 %2182
      %2185 = vset.pattern.permute.xlu0 0
      %2186 = vperm.xlu0 %2185, %v2180
      %v2187 = vpop.permute.xlu0 %2186
      %v2189 = vmul.f32 %v2183, %v2059
      %v2190 = vmul.f32 %v2183, %v2060
      %v2191 = vmul.f32 %v2187, %v2062
      %v2192 = vmul.f32 %v2187, %v2063
      %2197 = vrot.lane.b32.xlu0 %v2189, 126
      %v2198 = vpop.permute.xlu0 %2197
      %2199 = vrot.lane.b32.xlu0 %v2190, 126
      %v2200 = vpop.permute.xlu0 %2199
      %2201 = vrot.lane.b32.xlu0 %v2191, 126
      %v2202 = vpop.permute.xlu0 %2201
      %2203 = vrot.lane.b32.xlu0 %v2192, 126
      %v2204 = vpop.permute.xlu0 %2203
      %v2209 = vadd.f32 %v2167, %v2198
      %v2210 = vadd.f32 %v2168, %v2200
      %v2211 = vadd.f32 %v2169, %v2202
      %v2212 = vadd.f32 %v2170, %v2204
      %v2215 = vlaneseq
      %v2216 = vshrl.u32 %v2215, 7
      %v2217 = vsub.s32 0, %v2216
      %v2218 = vrot.slane %v2071, %v2217
      %v2219 = vlaneseq
      %v2220 = vshrl.u32 %v2219, 7
      %v2221 = vsub.s32 0, %v2220
      %v2222 = vrot.slane %v2072, %v2221
      %2223 = vset.pattern.permute.xlu0 0
      %2224 = vperm.xlu0 %2223, %v2218
      %v2225 = vpop.permute.xlu0 %2224
      %2227 = vset.pattern.permute.xlu0 0
      %2228 = vperm.xlu0 %2227, %v2222
      %v2229 = vpop.permute.xlu0 %2228
      %v2231 = vmul.f32 %v2225, %v2059
      %v2232 = vmul.f32 %v2225, %v2060
      %v2233 = vmul.f32 %v2225, %v2061
      %v2234 = vmul.f32 %v2229, %v2062
      %v2235 = vmul.f32 %v2229, %v2063
      %v2236 = vmul.f32 %v2229, %v2064
      %v2243 = vrot.slane %v2231, 1
      %v2244 = vrot.slane %v2232, 1
      %v2245 = vsel %vm1119, %v2243, %v2244
      %v2246 = vrot.slane %v2233, 1
      %v2247 = vsel %vm1119, %v2244, %v2246
      %v2248 = vrot.slane %v2234, 1
      %v2249 = vrot.slane %v2235, 1
      %v2250 = vsel %vm1119, %v2248, %v2249
      %v2251 = vrot.slane %v2236, 1
      %v2252 = vsel %vm1119, %v2249, %v2251
      %v2257 = vadd.f32 %v2209, %v2245
      %v2258 = vadd.f32 %v2210, %v2247
      %v2259 = vadd.f32 %v2211, %v2250
      %v2260 = vadd.f32 %v2212, %v2252
      %v2263 = vlaneseq
      %v2264 = vshrl.u32 %v2263, 7
      %v2265 = vsub.s32 0, %v2264
      %v2266 = vrot.slane %v2073, %v2265
      %v2267 = vlaneseq
      %v2268 = vshrl.u32 %v2267, 7
      %v2269 = vsub.s32 0, %v2268
      %v2270 = vrot.slane %v2074, %v2269
      %2271 = vset.pattern.permute.xlu0 0
      %2272 = vperm.xlu0 %2271, %v2266
      %v2273 = vpop.permute.xlu0 %2272
      %2275 = vset.pattern.permute.xlu0 0
      %2276 = vperm.xlu0 %2275, %v2270
      %v2277 = vpop.permute.xlu0 %2276
      %v2279 = vmul.f32 %v2273, %v2059
      %v2280 = vmul.f32 %v2273, %v2060
      %v2281 = vmul.f32 %v2273, %v2061
      %v2282 = vmul.f32 %v2277, %v2062
      %v2283 = vmul.f32 %v2277, %v2063
      %v2284 = vmul.f32 %v2277, %v2064
      %v2291 = vrot.slane %v2279, 1
      %v2292 = vrot.slane %v2280, 1
      %v2293 = vsel %vm1119, %v2291, %v2292
      %v2294 = vrot.slane %v2281, 1
      %v2295 = vsel %vm1119, %v2292, %v2294
      %v2296 = vrot.slane %v2282, 1
      %v2297 = vrot.slane %v2283, 1
      %v2298 = vsel %vm1119, %v2296, %v2297
      %v2299 = vrot.slane %v2284, 1
      %v2300 = vsel %vm1119, %v2297, %v2299
      %2301 = vrot.lane.b32.xlu0 %v2293, 127
      %v2302 = vpop.permute.xlu0 %2301
      %2303 = vrot.lane.b32.xlu0 %v2295, 127
      %v2304 = vpop.permute.xlu0 %2303
      %2305 = vrot.lane.b32.xlu0 %v2298, 127
      %v2306 = vpop.permute.xlu0 %2305
      %2307 = vrot.lane.b32.xlu0 %v2300, 127
      %v2308 = vpop.permute.xlu0 %2307
      %v2313 = vadd.f32 %v2257, %v2302
      %v2314 = vadd.f32 %v2258, %v2304
      %v2315 = vadd.f32 %v2259, %v2306
      %v2316 = vadd.f32 %v2260, %v2308
      %v2319 = vlaneseq
      %v2320 = vshrl.u32 %v2319, 7
      %v2321 = vsub.s32 0, %v2320
      %v2322 = vrot.slane %v2075, %v2321
      %v2323 = vlaneseq
      %v2324 = vshrl.u32 %v2323, 7
      %v2325 = vsub.s32 0, %v2324
      %v2326 = vrot.slane %v2076, %v2325
      %2327 = vset.pattern.permute.xlu0 0
      %2328 = vperm.xlu0 %2327, %v2322
      %v2329 = vpop.permute.xlu0 %2328
      %2331 = vset.pattern.permute.xlu0 0
      %2332 = vperm.xlu0 %2331, %v2326
      %v2333 = vpop.permute.xlu0 %2332
      %v2335 = vmul.f32 %v2329, %v2059
      %v2336 = vmul.f32 %v2329, %v2060
      %v2337 = vmul.f32 %v2329, %v2061
      %v2338 = vmul.f32 %v2333, %v2062
      %v2339 = vmul.f32 %v2333, %v2063
      %v2340 = vmul.f32 %v2333, %v2064
      %v2347 = vrot.slane %v2335, 1
      %v2348 = vrot.slane %v2336, 1
      %v2349 = vsel %vm1119, %v2347, %v2348
      %v2350 = vrot.slane %v2337, 1
      %v2351 = vsel %vm1119, %v2348, %v2350
      %v2352 = vrot.slane %v2338, 1
      %v2353 = vrot.slane %v2339, 1
      %v2354 = vsel %vm1119, %v2352, %v2353
      %v2355 = vrot.slane %v2340, 1
      %v2356 = vsel %vm1119, %v2353, %v2355
      %2357 = vrot.lane.b32.xlu0 %v2349, 126
      %v2358 = vpop.permute.xlu0 %2357
      %2359 = vrot.lane.b32.xlu0 %v2351, 126
      %v2360 = vpop.permute.xlu0 %2359
      %2361 = vrot.lane.b32.xlu0 %v2354, 126
      %v2362 = vpop.permute.xlu0 %2361
      %2363 = vrot.lane.b32.xlu0 %v2356, 126
      %v2364 = vpop.permute.xlu0 %2363
      %v2369 = vadd.f32 %v2313, %v2358
      %v2370 = vadd.f32 %v2314, %v2360
      %v2371 = vadd.f32 %v2315, %v2362
      %v2372 = vadd.f32 %v2316, %v2364
      %v2375 = vlaneseq
      %v2376 = vshrl.u32 %v2375, 7
      %v2377 = vsub.s32 0, %v2376
      %v2378 = vrot.slane %v2077, %v2377
      %v2379 = vlaneseq
      %v2380 = vshrl.u32 %v2379, 7
      %v2381 = vsub.s32 0, %v2380
      %v2382 = vrot.slane %v2078, %v2381
      %2383 = vset.pattern.permute.xlu0 0
      %2384 = vperm.xlu0 %2383, %v2378
      %v2385 = vpop.permute.xlu0 %2384
      %2387 = vset.pattern.permute.xlu0 0
      %2388 = vperm.xlu0 %2387, %v2382
      %v2389 = vpop.permute.xlu0 %2388
      %v2391 = vmul.f32 %v2385, %v2059
      %v2392 = vmul.f32 %v2385, %v2060
      %v2393 = vmul.f32 %v2385, %v2061
      %v2394 = vmul.f32 %v2389, %v2062
      %v2395 = vmul.f32 %v2389, %v2063
      %v2396 = vmul.f32 %v2389, %v2064
      %v2403 = vrot.slane %v2391, 2
      %v2404 = vrot.slane %v2392, 2
      %v2405 = vsel %vm1440, %v2403, %v2404
      %v2406 = vrot.slane %v2393, 2
      %v2407 = vsel %vm1440, %v2404, %v2406
      %v2408 = vrot.slane %v2394, 2
      %v2409 = vrot.slane %v2395, 2
      %v2410 = vsel %vm1440, %v2408, %v2409
      %v2411 = vrot.slane %v2396, 2
      %v2412 = vsel %vm1440, %v2409, %v2411
      %v2417 = vadd.f32 %v2369, %v2405
      %v2418 = vadd.f32 %v2370, %v2407
      %v2419 = vadd.f32 %v2371, %v2410
      %v2420 = vadd.f32 %v2372, %v2412
      %v2423 = vlaneseq
      %v2424 = vshrl.u32 %v2423, 7
      %v2425 = vsub.s32 0, %v2424
      %v2426 = vrot.slane %v2079, %v2425
      %v2427 = vlaneseq
      %v2428 = vshrl.u32 %v2427, 7
      %v2429 = vsub.s32 0, %v2428
      %v2430 = vrot.slane %v2080, %v2429
      %2431 = vset.pattern.permute.xlu0 0
      %2432 = vperm.xlu0 %2431, %v2426
      %v2433 = vpop.permute.xlu0 %2432
      %2435 = vset.pattern.permute.xlu0 0
      %2436 = vperm.xlu0 %2435, %v2430
      %v2437 = vpop.permute.xlu0 %2436
      %v2439 = vmul.f32 %v2433, %v2059
      %v2440 = vmul.f32 %v2433, %v2060
      %v2441 = vmul.f32 %v2433, %v2061
      %v2442 = vmul.f32 %v2437, %v2062
      %v2443 = vmul.f32 %v2437, %v2063
      %v2444 = vmul.f32 %v2437, %v2064
      %v2451 = vrot.slane %v2439, 2
      %v2452 = vrot.slane %v2440, 2
      %v2453 = vsel %vm1440, %v2451, %v2452
      %v2454 = vrot.slane %v2441, 2
      %v2455 = vsel %vm1440, %v2452, %v2454
      %v2456 = vrot.slane %v2442, 2
      %v2457 = vrot.slane %v2443, 2
      %v2458 = vsel %vm1440, %v2456, %v2457
      %v2459 = vrot.slane %v2444, 2
      %v2460 = vsel %vm1440, %v2457, %v2459
      %2461 = vrot.lane.b32.xlu0 %v2453, 127
      %v2462 = vpop.permute.xlu0 %2461
      %2463 = vrot.lane.b32.xlu0 %v2455, 127
      %v2464 = vpop.permute.xlu0 %2463
      %2465 = vrot.lane.b32.xlu0 %v2458, 127
      %v2466 = vpop.permute.xlu0 %2465
      %2467 = vrot.lane.b32.xlu0 %v2460, 127
      %v2468 = vpop.permute.xlu0 %2467
      %v2473 = vadd.f32 %v2417, %v2462
      %v2474 = vadd.f32 %v2418, %v2464
      %v2475 = vadd.f32 %v2419, %v2466
      %v2476 = vadd.f32 %v2420, %v2468
      %v2479 = vlaneseq
      %v2480 = vshrl.u32 %v2479, 7
      %v2481 = vsub.s32 0, %v2480
      %v2482 = vrot.slane %v2081, %v2481
      %v2483 = vlaneseq
      %v2484 = vshrl.u32 %v2483, 7
      %v2485 = vsub.s32 0, %v2484
      %v2486 = vrot.slane %v2082, %v2485
      %2487 = vset.pattern.permute.xlu0 0
      %2488 = vperm.xlu0 %2487, %v2482
      %v2489 = vpop.permute.xlu0 %2488
      %2491 = vset.pattern.permute.xlu0 0
      %2492 = vperm.xlu0 %2491, %v2486
      %v2493 = vpop.permute.xlu0 %2492
      %v2495 = vmul.f32 %v2489, %v2059
      %v2496 = vmul.f32 %v2489, %v2060
      %v2497 = vmul.f32 %v2489, %v2061
      %v2498 = vmul.f32 %v2493, %v2062
      %v2499 = vmul.f32 %v2493, %v2063
      %v2500 = vmul.f32 %v2493, %v2064
      %v2507 = vrot.slane %v2495, 2
      %v2508 = vrot.slane %v2496, 2
      %v2509 = vsel %vm1440, %v2507, %v2508
      %v2510 = vrot.slane %v2497, 2
      %v2511 = vsel %vm1440, %v2508, %v2510
      %v2512 = vrot.slane %v2498, 2
      %v2513 = vrot.slane %v2499, 2
      %v2514 = vsel %vm1440, %v2512, %v2513
      %v2515 = vrot.slane %v2500, 2
      %v2516 = vsel %vm1440, %v2513, %v2515
      %2517 = vrot.lane.b32.xlu0 %v2509, 126
      %v2518 = vpop.permute.xlu0 %2517
      %2519 = vrot.lane.b32.xlu0 %v2511, 126
      %v2520 = vpop.permute.xlu0 %2519
      %2521 = vrot.lane.b32.xlu0 %v2514, 126
      %v2522 = vpop.permute.xlu0 %2521
      %2523 = vrot.lane.b32.xlu0 %v2516, 126
      %v2524 = vpop.permute.xlu0 %2523
      %v2529 = vadd.f32 %v2473, %v2518
      %v2530 = vadd.f32 %v2474, %v2520
      %v2531 = vadd.f32 %v2475, %v2522
      %v2532 = vadd.f32 %v2476, %v2524
      %v2533 = vmax.f32 %v2529, 0.0
      %v2534 = vmax.f32 %v2530, 0.0
      %v2535 = vmax.f32 %v2531, 0.0
      %v2536 = vmax.f32 %v2532, 0.0
      %v2537 = vld [vmem:[%s8] sm:$0x1]
      %v2538 = vld [vmem:[%s8 + $0x1] sm:$0x1]
      %v2539 = vld [vmem:[#allocation2] sm:$0x1]
      %v2541 = vlaneseq
      %v2542 = vshrl.u32 %v2541, 7
      %v2543 = vsub.s32 0, %v2542
      %v2544 = vrot.slane %v2539, %v2543
      %2545 = vset.pattern.permute.xlu0 0
      %2546 = vperm.xlu0 %2545, %v2544
      %v2547 = vpop.permute.xlu0 %2546
      %v2550 = vlaneseq
      %v2551 = vshrl.u32 %v2550, 7
      %v2552 = vsub.s32 0, %v2551
      %v2553 = vrot.slane %v2537, %v2552
      %2554 = vset.pattern.permute.xlu0 0
      %2555 = vperm.xlu0 %2554, %v2553
      %v2556 = vpop.permute.xlu0 %2555
      %v2558 = vmul.f32 %v2556, %v2533
      %v2559 = vmul.f32 %v2556, %v2534
      %v2560 = vadd.f32 %v2547, %v2558
      %v2561 = vadd.f32 %v2547, %v2559
      %v2563 = vlaneseq
      %v2564 = vshrl.u32 %v2563, 7
      %v2565 = vsub.s32 0, %v2564
      %v2566 = vrot.slane %v2538, %v2565
      %2567 = vset.pattern.permute.xlu0 0
      %2568 = vperm.xlu0 %2567, %v2566
      %v2569 = vpop.permute.xlu0 %2568
      %v2571 = vmul.f32 %v2569, %v2535
      %v2572 = vmul.f32 %v2569, %v2536
      %v2573 = vadd.f32 %v2560, %v2571
      %v2574 = vadd.f32 %v2561, %v2572
      %v2575 = vmul.f32 %v2573, 0.5
      %v2576 = vmul.f32 %v2574, 0.5
      %v2577 = vtanh.pop %v2575
      %v2578 = vtanh.pop %v2576
      %v2579 = vadd.f32 %v2577, 1.0
      %v2580 = vadd.f32 %v2578, 1.0
      %v2581 = vmul.f32 %v2579, 0.5
      %v2582 = vmul.f32 %v2580, 0.5
      %v2583 = vmul.f32 %v1973, %v2581
      %v2584 = vmul.f32 %v1974, %v2582
      %v2585 = vmul.f32 %v1975, %v2581
      %v2586 = vmul.f32 %v1976, %v2582
      %v2587 = vmul.f32 %v1977, %v2581
      %v2588 = vmul.f32 %v1978, %v2582
      %v2589 = vmul.f32 %v1979, %v2581
      %v2590 = vmul.f32 %v1980, %v2582
      %v2591 = vsub.f32 %v2583, %v640
      %v2592 = vsub.f32 %v2584, %v641
      %v2593 = vsub.f32 %v2585, %v642
      %v2594 = vsub.f32 %v2586, %v643
      %v2595 = vsub.f32 %v2587, %v644
      %v2596 = vsub.f32 %v2588, %v645
      %v2597 = vsub.f32 %v2589, %v646
      %v2598 = vsub.f32 %v2590, %v647
      %v2615 = vrot.slane %v648, 7
      %v2616 = vrot.slane %v649, 7
      %v2617 = vsel %vm664, %v2615, %v2616
      %v2618 = vrot.slane %v650, 7
      %v2619 = vrot.slane %v651, 7
      %v2620 = vsel %vm664, %v2618, %v2619
      %v2621 = vrot.slane %v652, 7
      %v2622 = vrot.slane %v653, 7
      %v2623 = vsel %vm664, %v2621, %v2622
      %v2624 = vrot.slane %v654, 7
      %v2625 = vrot.slane %v655, 7
      %v2626 = vsel %vm664, %v2624, %v2625
      %v2627 = vrot.slane %v2591, 7
      %v2628 = vrot.slane %v2592, 7
      %v2629 = vsel %vm664, %v2627, %v2628
      %v2630 = vrot.slane %v2593, 7
      %v2631 = vrot.slane %v2594, 7
      %v2632 = vsel %vm664, %v2630, %v2631
      %v2633 = vrot.slane %v2595, 7
      %v2634 = vrot.slane %v2596, 7
      %v2635 = vsel %vm664, %v2633, %v2634
      %v2636 = vrot.slane %v2597, 7
      %v2637 = vrot.slane %v2598, 7
      %v2638 = vsel %vm664, %v2636, %v2637
      %v2655 = vsel %vm664, 0.0, %v2615
      %v2656 = vsel %vm664, 0.0, %v2618
      %v2657 = vsel %vm664, 0.0, %v2621
      %v2658 = vsel %vm664, 0.0, %v2624
      %v2659 = vsel %vm664, 0.0, %v2627
      %v2660 = vsel %vm664, 0.0, %v2630
      %v2661 = vsel %vm664, 0.0, %v2633
      %v2662 = vsel %vm664, 0.0, %v2636
      %v2663 = vsel %vm664, %v2616, 0.0
      %v2664 = vsel %vm664, %v2619, 0.0
      %v2665 = vsel %vm664, %v2622, 0.0
      %v2666 = vsel %vm664, %v2625, 0.0
      %v2667 = vsel %vm664, %v2628, 0.0
      %v2668 = vsel %vm664, %v2631, 0.0
      %v2669 = vsel %vm664, %v2634, 0.0
      %v2670 = vsel %vm664, %v2637, 0.0
      %2687 = vrot.lane.b32.xlu0 %v2655, 1
      %v2688 = vpop.permute.xlu0 %2687
      %2689 = vrot.lane.b32.xlu0 %v2617, 1
      %v2690 = vpop.permute.xlu0 %2689
      %2691 = vrot.lane.b32.xlu0 %v2663, 1
      %v2692 = vpop.permute.xlu0 %2691
      %2693 = vrot.lane.b32.xlu0 %v2656, 1
      %v2694 = vpop.permute.xlu0 %2693
      %2695 = vrot.lane.b32.xlu0 %v2620, 1
      %v2696 = vpop.permute.xlu0 %2695
      %2697 = vrot.lane.b32.xlu0 %v2664, 1
      %v2698 = vpop.permute.xlu0 %2697
      %2699 = vrot.lane.b32.xlu0 %v2657, 1
      %v2700 = vpop.permute.xlu0 %2699
      %2701 = vrot.lane.b32.xlu0 %v2623, 1
      %v2702 = vpop.permute.xlu0 %2701
      %2703 = vrot.lane.b32.xlu0 %v2665, 1
      %v2704 = vpop.permute.xlu0 %2703
      %2705 = vrot.lane.b32.xlu0 %v2658, 1
      %v2706 = vpop.permute.xlu0 %2705
      %2707 = vrot.lane.b32.xlu0 %v2626, 1
      %v2708 = vpop.permute.xlu0 %2707
      %2709 = vrot.lane.b32.xlu0 %v2666, 1
      %v2710 = vpop.permute.xlu0 %2709
      %2711 = vrot.lane.b32.xlu0 %v2659, 1
      %v2712 = vpop.permute.xlu0 %2711
      %2713 = vrot.lane.b32.xlu0 %v2629, 1
      %v2714 = vpop.permute.xlu0 %2713
      %2715 = vrot.lane.b32.xlu0 %v2667, 1
      %v2716 = vpop.permute.xlu0 %2715
      %2717 = vrot.lane.b32.xlu0 %v2660, 1
      %v2718 = vpop.permute.xlu0 %2717
      %2719 = vrot.lane.b32.xlu0 %v2632, 1
      %v2720 = vpop.permute.xlu0 %2719
      %2721 = vrot.lane.b32.xlu0 %v2668, 1
      %v2722 = vpop.permute.xlu0 %2721
      %2723 = vrot.lane.b32.xlu0 %v2661, 1
      %v2724 = vpop.permute.xlu0 %2723
      %2725 = vrot.lane.b32.xlu0 %v2635, 1
      %v2726 = vpop.permute.xlu0 %2725
      %2727 = vrot.lane.b32.xlu0 %v2669, 1
      %v2728 = vpop.permute.xlu0 %2727
      %2729 = vrot.lane.b32.xlu0 %v2662, 1
      %v2730 = vpop.permute.xlu0 %2729
      %2731 = vrot.lane.b32.xlu0 %v2638, 1
      %v2732 = vpop.permute.xlu0 %2731
      %2733 = vrot.lane.b32.xlu0 %v2670, 1
      %v2734 = vpop.permute.xlu0 %2733
      %v2759 = vsel %vm737, 0.0, %v2688
      %v2760 = vsel %vm737, 0.0, %v2690
      %v2761 = vsel %vm737, 0.0, %v2692
      %v2762 = vsel %vm737, 0.0, %v2694
      %v2763 = vsel %vm737, 0.0, %v2696
      %v2764 = vsel %vm737, 0.0, %v2698
      %v2765 = vsel %vm737, 0.0, %v2700
      %v2766 = vsel %vm737, 0.0, %v2702
      %v2767 = vsel %vm737, 0.0, %v2704
      %v2768 = vsel %vm737, 0.0, %v2706
      %v2769 = vsel %vm737, 0.0, %v2708
      %v2770 = vsel %vm737, 0.0, %v2710
      %v2771 = vsel %vm737, 0.0, %v2712
      %v2772 = vsel %vm737, 0.0, %v2714
      %v2773 = vsel %vm737, 0.0, %v2716
      %v2774 = vsel %vm737, 0.0, %v2718
      %v2775 = vsel %vm737, 0.0, %v2720
      %v2776 = vsel %vm737, 0.0, %v2722
      %v2777 = vsel %vm737, 0.0, %v2724
      %v2778 = vsel %vm737, 0.0, %v2726
      %v2779 = vsel %vm737, 0.0, %v2728
      %v2780 = vsel %vm737, 0.0, %v2730
      %v2781 = vsel %vm737, 0.0, %v2732
      %v2782 = vsel %vm737, 0.0, %v2734
      %v2783 = vsel %vm750, %v2759, 0.0
      %v2784 = vsel %vm750, %v2760, 0.0
      %v2785 = vsel %vm750, %v2761, 0.0
      %v2786 = vsel %vm750, %v2762, 0.0
      %v2787 = vsel %vm750, %v2763, 0.0
      %v2788 = vsel %vm750, %v2764, 0.0
      %v2789 = vsel %vm750, %v2765, 0.0
      %v2790 = vsel %vm750, %v2766, 0.0
      %v2791 = vsel %vm750, %v2767, 0.0
      %v2792 = vsel %vm750, %v2768, 0.0
      %v2793 = vsel %vm750, %v2769, 0.0
      %v2794 = vsel %vm750, %v2770, 0.0
      %v2795 = vsel %vm750, %v2771, 0.0
      %v2796 = vsel %vm750, %v2772, 0.0
      %v2797 = vsel %vm750, %v2773, 0.0
      %v2798 = vsel %vm750, %v2774, 0.0
      %v2799 = vsel %vm750, %v2775, 0.0
      %v2800 = vsel %vm750, %v2776, 0.0
      %v2801 = vsel %vm750, %v2777, 0.0
      %v2802 = vsel %vm750, %v2778, 0.0
      %v2803 = vsel %vm750, %v2779, 0.0
      %v2804 = vsel %vm750, %v2780, 0.0
      %v2805 = vsel %vm750, %v2781, 0.0
      %v2806 = vsel %vm750, %v2782, 0.0
      %v2807 = vld [vmem:[%s10] sm:$0x1]
      %v2808 = vld [vmem:[%s10 + $0x1] sm:$0x1]
      %v2809 = vld [vmem:[%s10 + $0x2] sm:$0x1]
      %v2810 = vld [vmem:[%s10 + $0x3] sm:$0x1]
      %v2811 = vld [vmem:[%s10 + $0x4] sm:$0x1]
      %v2812 = vld [vmem:[%s10 + $0x5] sm:$0x1]
      %v2813 = vld [vmem:[%s10 + $0x6] sm:$0x1]
      %v2814 = vld [vmem:[%s10 + $0x7] sm:$0x1]
      %v2815 = vld [vmem:[%s10 + $0x8] sm:$0x1]
      %v2816 = vld [vmem:[%s10 + $0x9] sm:$0x1]
      %v2817 = vld [vmem:[%s10 + $0xa] sm:$0x1]
      %v2818 = vld [vmem:[%s10 + $0xb] sm:$0x1]
      %v2819 = vld [vmem:[%s10 + $0xc] sm:$0x1]
      %v2820 = vld [vmem:[%s10 + $0xd] sm:$0x1]
      %v2821 = vld [vmem:[%s10 + $0xe] sm:$0x1]
      %v2822 = vld [vmem:[%s10 + $0xf] sm:$0x1]
      %v2823 = vld [vmem:[%s10 + $0x10] sm:$0x1]
      %v2824 = vld [vmem:[%s10 + $0x11] sm:$0x1]
      %v2825 = vld [vmem:[%s10 + $0x12] sm:$0x1]
      %v2826 = vld [vmem:[%s10 + $0x13] sm:$0x1]
      %v2827 = vld [vmem:[%s10 + $0x14] sm:$0x1]
      %v2828 = vld [vmem:[%s10 + $0x15] sm:$0x1]
      %v2829 = vld [vmem:[%s10 + $0x16] sm:$0x1]
      %v2830 = vld [vmem:[%s10 + $0x17] sm:$0x1]
      %v2831 = vld [vmem:[%s10 + $0x18] sm:$0x1]
      %v2832 = vld [vmem:[%s10 + $0x19] sm:$0x1]
      %v2833 = vld [vmem:[%s10 + $0x1a] sm:$0x1]
      %v2834 = vld [vmem:[%s10 + $0x1b] sm:$0x1]
      %v2835 = vld [vmem:[%s10 + $0x1c] sm:$0x1]
      %v2836 = vld [vmem:[%s10 + $0x1d] sm:$0x1]
      %v2837 = vld [vmem:[%s10 + $0x1e] sm:$0x1]
      %v2838 = vld [vmem:[%s10 + $0x1f] sm:$0x1]
      %v2839 = vld [vmem:[%s10 + $0x20] sm:$0x1]
      %v2840 = vld [vmem:[%s10 + $0x21] sm:$0x1]
      %v2841 = vld [vmem:[%s10 + $0x22] sm:$0x1]
      %v2842 = vld [vmem:[%s10 + $0x23] sm:$0x1]
      %v2843 = vld [vmem:[%s10 + $0x24] sm:$0x1]
      %v2844 = vld [vmem:[%s10 + $0x25] sm:$0x1]
      %v2845 = vld [vmem:[%s10 + $0x26] sm:$0x1]
      %v2846 = vld [vmem:[%s10 + $0x27] sm:$0x1]
      %v2847 = vld [vmem:[%s10 + $0x28] sm:$0x1]
      %v2848 = vld [vmem:[%s10 + $0x29] sm:$0x1]
      %v2849 = vld [vmem:[%s10 + $0x2a] sm:$0x1]
      %v2850 = vld [vmem:[%s10 + $0x2b] sm:$0x1]
      %v2851 = vld [vmem:[%s10 + $0x2c] sm:$0x1]
      %v2852 = vld [vmem:[%s10 + $0x2d] sm:$0x1]
      %v2853 = vld [vmem:[%s10 + $0x2e] sm:$0x1]
      %v2854 = vld [vmem:[%s10 + $0x2f] sm:$0x1]
      %v2855 = vld [vmem:[%s10 + $0x30] sm:$0x1]
      %v2856 = vld [vmem:[%s10 + $0x31] sm:$0x1]
      %v2857 = vld [vmem:[%s10 + $0x32] sm:$0x1]
      %v2858 = vld [vmem:[%s10 + $0x33] sm:$0x1]
      %v2859 = vld [vmem:[%s10 + $0x34] sm:$0x1]
      %v2860 = vld [vmem:[%s10 + $0x35] sm:$0x1]
      %v2861 = vld [vmem:[%s10 + $0x36] sm:$0x1]
      %v2862 = vld [vmem:[%s10 + $0x37] sm:$0x1]
      %v2863 = vld [vmem:[%s10 + $0x38] sm:$0x1]
      %v2864 = vld [vmem:[%s10 + $0x39] sm:$0x1]
      %v2865 = vld [vmem:[%s10 + $0x3a] sm:$0x1]
      %v2866 = vld [vmem:[%s10 + $0x3b] sm:$0x1]
      %v2867 = vld [vmem:[%s10 + $0x3c] sm:$0x1]
      %v2868 = vld [vmem:[%s10 + $0x3d] sm:$0x1]
      %v2869 = vld [vmem:[%s10 + $0x3e] sm:$0x1]
      %v2870 = vld [vmem:[%s10 + $0x3f] sm:$0x1]
      %v2871 = vld [vmem:[%s10 + $0x40] sm:$0x1]
      %v2872 = vld [vmem:[%s10 + $0x41] sm:$0x1]
      %v2873 = vld [vmem:[%s10 + $0x42] sm:$0x1]
      %v2874 = vld [vmem:[%s10 + $0x43] sm:$0x1]
      %v2875 = vld [vmem:[%s10 + $0x44] sm:$0x1]
      %v2876 = vld [vmem:[%s10 + $0x45] sm:$0x1]
      %v2877 = vld [vmem:[%s10 + $0x46] sm:$0x1]
      %v2878 = vld [vmem:[%s10 + $0x47] sm:$0x1]
      %v2879 = vld [vmem:[%s11] sm:$0x1]
      %v2880 = vld [vmem:[%s11 + $0x1] sm:$0x1]
      %v2881 = vld [vmem:[%s11 + $0x2] sm:$0x1]
      %v2882 = vld [vmem:[%s11 + $0x3] sm:$0x1]
      %v2883 = vld [vmem:[%s11 + $0x4] sm:$0x1]
      %v2884 = vld [vmem:[%s11 + $0x5] sm:$0x1]
      %v2885 = vld [vmem:[%s11 + $0x6] sm:$0x1]
      %v2886 = vld [vmem:[%s11 + $0x7] sm:$0x1]
      %v2895 = vlaneseq
      %v2896 = vshrl.u32 %v2895, 7
      %v2897 = vsub.s32 0, %v2896
      %v2898 = vrot.slane %v2879, %v2897
      %v2899 = vlaneseq
      %v2900 = vshrl.u32 %v2899, 7
      %v2901 = vsub.s32 0, %v2900
      %v2902 = vrot.slane %v2880, %v2901
      %v2903 = vlaneseq
      %v2904 = vshrl.u32 %v2903, 7
      %v2905 = vsub.s32 0, %v2904
      %v2906 = vrot.slane %v2881, %v2905
      %v2907 = vlaneseq
      %v2908 = vshrl.u32 %v2907, 7
      %v2909 = vsub.s32 0, %v2908
      %v2910 = vrot.slane %v2882, %v2909
      %v2911 = vlaneseq
      %v2912 = vshrl.u32 %v2911, 7
      %v2913 = vsub.s32 0, %v2912
      %v2914 = vrot.slane %v2883, %v2913
      %v2915 = vlaneseq
      %v2916 = vshrl.u32 %v2915, 7
      %v2917 = vsub.s32 0, %v2916
      %v2918 = vrot.slane %v2884, %v2917
      %v2919 = vlaneseq
      %v2920 = vshrl.u32 %v2919, 7
      %v2921 = vsub.s32 0, %v2920
      %v2922 = vrot.slane %v2885, %v2921
      %v2923 = vlaneseq
      %v2924 = vshrl.u32 %v2923, 7
      %v2925 = vsub.s32 0, %v2924
      %v2926 = vrot.slane %v2886, %v2925
      %2927 = vset.pattern.permute.xlu0 0
      %2928 = vperm.xlu0 %2927, %v2898
      %v2929 = vpop.permute.xlu0 %2928
      %2931 = vset.pattern.permute.xlu0 0
      %2932 = vperm.xlu0 %2931, %v2902
      %v2933 = vpop.permute.xlu0 %2932
      %2935 = vset.pattern.permute.xlu0 0
      %2936 = vperm.xlu0 %2935, %v2906
      %v2937 = vpop.permute.xlu0 %2936
      %2939 = vset.pattern.permute.xlu0 0
      %2940 = vperm.xlu0 %2939, %v2910
      %v2941 = vpop.permute.xlu0 %2940
      %2943 = vset.pattern.permute.xlu0 0
      %2944 = vperm.xlu0 %2943, %v2914
      %v2945 = vpop.permute.xlu0 %2944
      %2947 = vset.pattern.permute.xlu0 0
      %2948 = vperm.xlu0 %2947, %v2918
      %v2949 = vpop.permute.xlu0 %2948
      %2951 = vset.pattern.permute.xlu0 0
      %2952 = vperm.xlu0 %2951, %v2922
      %v2953 = vpop.permute.xlu0 %2952
      %2955 = vset.pattern.permute.xlu0 0
      %2956 = vperm.xlu0 %2955, %v2926
      %v2957 = vpop.permute.xlu0 %2956
      %v2967 = vlaneseq
      %v2968 = vshrl.u32 %v2967, 7
      %v2969 = vsub.s32 0, %v2968
      %v2970 = vrot.slane %v2807, %v2969
      %v2971 = vlaneseq
      %v2972 = vshrl.u32 %v2971, 7
      %v2973 = vsub.s32 0, %v2972
      %v2974 = vrot.slane %v2808, %v2973
      %v2975 = vlaneseq
      %v2976 = vshrl.u32 %v2975, 7
      %v2977 = vsub.s32 0, %v2976
      %v2978 = vrot.slane %v2809, %v2977
      %v2979 = vlaneseq
      %v2980 = vshrl.u32 %v2979, 7
      %v2981 = vsub.s32 0, %v2980
      %v2982 = vrot.slane %v2810, %v2981
      %v2983 = vlaneseq
      %v2984 = vshrl.u32 %v2983, 7
      %v2985 = vsub.s32 0, %v2984
      %v2986 = vrot.slane %v2811, %v2985
      %v2987 = vlaneseq
      %v2988 = vshrl.u32 %v2987, 7
      %v2989 = vsub.s32 0, %v2988
      %v2990 = vrot.slane %v2812, %v2989
      %v2991 = vlaneseq
      %v2992 = vshrl.u32 %v2991, 7
      %v2993 = vsub.s32 0, %v2992
      %v2994 = vrot.slane %v2813, %v2993
      %v2995 = vlaneseq
      %v2996 = vshrl.u32 %v2995, 7
      %v2997 = vsub.s32 0, %v2996
      %v2998 = vrot.slane %v2814, %v2997
      %2999 = vset.pattern.permute.xlu0 0
      %3000 = vperm.xlu0 %2999, %v2970
      %v3001 = vpop.permute.xlu0 %3000
      %3003 = vset.pattern.permute.xlu0 0
      %3004 = vperm.xlu0 %3003, %v2974
      %v3005 = vpop.permute.xlu0 %3004
      %3007 = vset.pattern.permute.xlu0 0
      %3008 = vperm.xlu0 %3007, %v2978
      %v3009 = vpop.permute.xlu0 %3008
      %3011 = vset.pattern.permute.xlu0 0
      %3012 = vperm.xlu0 %3011, %v2982
      %v3013 = vpop.permute.xlu0 %3012
      %3015 = vset.pattern.permute.xlu0 0
      %3016 = vperm.xlu0 %3015, %v2986
      %v3017 = vpop.permute.xlu0 %3016
      %3019 = vset.pattern.permute.xlu0 0
      %3020 = vperm.xlu0 %3019, %v2990
      %v3021 = vpop.permute.xlu0 %3020
      %3023 = vset.pattern.permute.xlu0 0
      %3024 = vperm.xlu0 %3023, %v2994
      %v3025 = vpop.permute.xlu0 %3024
      %3027 = vset.pattern.permute.xlu0 0
      %3028 = vperm.xlu0 %3027, %v2998
      %v3029 = vpop.permute.xlu0 %3028
      %v3031 = vmul.f32 %v3001, %v2783
      %v3032 = vmul.f32 %v3001, %v2784
      %v3033 = vmul.f32 %v3005, %v2786
      %v3034 = vmul.f32 %v3005, %v2787
      %v3035 = vmul.f32 %v3009, %v2789
      %v3036 = vmul.f32 %v3009, %v2790
      %v3037 = vmul.f32 %v3013, %v2792
      %v3038 = vmul.f32 %v3013, %v2793
      %v3039 = vmul.f32 %v3017, %v2795
      %v3040 = vmul.f32 %v3017, %v2796
      %v3041 = vmul.f32 %v3021, %v2798
      %v3042 = vmul.f32 %v3021, %v2799
      %v3043 = vmul.f32 %v3025, %v2801
      %v3044 = vmul.f32 %v3025, %v2802
      %v3045 = vmul.f32 %v3029, %v2804
      %v3046 = vmul.f32 %v3029, %v2805
      %v3047 = vadd.f32 %v2929, %v3031
      %v3048 = vadd.f32 %v2929, %v3032
      %v3049 = vadd.f32 %v2933, %v3033
      %v3050 = vadd.f32 %v2933, %v3034
      %v3051 = vadd.f32 %v2937, %v3035
      %v3052 = vadd.f32 %v2937, %v3036
      %v3053 = vadd.f32 %v2941, %v3037
      %v3054 = vadd.f32 %v2941, %v3038
      %v3055 = vadd.f32 %v2945, %v3039
      %v3056 = vadd.f32 %v2945, %v3040
      %v3057 = vadd.f32 %v2949, %v3041
      %v3058 = vadd.f32 %v2949, %v3042
      %v3059 = vadd.f32 %v2953, %v3043
      %v3060 = vadd.f32 %v2953, %v3044
      %v3061 = vadd.f32 %v2957, %v3045
      %v3062 = vadd.f32 %v2957, %v3046
      %v3071 = vlaneseq
      %v3072 = vshrl.u32 %v3071, 7
      %v3073 = vsub.s32 0, %v3072
      %v3074 = vrot.slane %v2815, %v3073
      %v3075 = vlaneseq
      %v3076 = vshrl.u32 %v3075, 7
      %v3077 = vsub.s32 0, %v3076
      %v3078 = vrot.slane %v2816, %v3077
      %v3079 = vlaneseq
      %v3080 = vshrl.u32 %v3079, 7
      %v3081 = vsub.s32 0, %v3080
      %v3082 = vrot.slane %v2817, %v3081
      %v3083 = vlaneseq
      %v3084 = vshrl.u32 %v3083, 7
      %v3085 = vsub.s32 0, %v3084
      %v3086 = vrot.slane %v2818, %v3085
      %v3087 = vlaneseq
      %v3088 = vshrl.u32 %v3087, 7
      %v3089 = vsub.s32 0, %v3088
      %v3090 = vrot.slane %v2819, %v3089
      %v3091 = vlaneseq
      %v3092 = vshrl.u32 %v3091, 7
      %v3093 = vsub.s32 0, %v3092
      %v3094 = vrot.slane %v2820, %v3093
      %v3095 = vlaneseq
      %v3096 = vshrl.u32 %v3095, 7
      %v3097 = vsub.s32 0, %v3096
      %v3098 = vrot.slane %v2821, %v3097
      %v3099 = vlaneseq
      %v3100 = vshrl.u32 %v3099, 7
      %v3101 = vsub.s32 0, %v3100
      %v3102 = vrot.slane %v2822, %v3101
      %3103 = vset.pattern.permute.xlu0 0
      %3104 = vperm.xlu0 %3103, %v3074
      %v3105 = vpop.permute.xlu0 %3104
      %3107 = vset.pattern.permute.xlu0 0
      %3108 = vperm.xlu0 %3107, %v3078
      %v3109 = vpop.permute.xlu0 %3108
      %3111 = vset.pattern.permute.xlu0 0
      %3112 = vperm.xlu0 %3111, %v3082
      %v3113 = vpop.permute.xlu0 %3112
      %3115 = vset.pattern.permute.xlu0 0
      %3116 = vperm.xlu0 %3115, %v3086
      %v3117 = vpop.permute.xlu0 %3116
      %3119 = vset.pattern.permute.xlu0 0
      %3120 = vperm.xlu0 %3119, %v3090
      %v3121 = vpop.permute.xlu0 %3120
      %3123 = vset.pattern.permute.xlu0 0
      %3124 = vperm.xlu0 %3123, %v3094
      %v3125 = vpop.permute.xlu0 %3124
      %3127 = vset.pattern.permute.xlu0 0
      %3128 = vperm.xlu0 %3127, %v3098
      %v3129 = vpop.permute.xlu0 %3128
      %3131 = vset.pattern.permute.xlu0 0
      %3132 = vperm.xlu0 %3131, %v3102
      %v3133 = vpop.permute.xlu0 %3132
      %v3135 = vmul.f32 %v3105, %v2783
      %v3136 = vmul.f32 %v3105, %v2784
      %v3137 = vmul.f32 %v3109, %v2786
      %v3138 = vmul.f32 %v3109, %v2787
      %v3139 = vmul.f32 %v3113, %v2789
      %v3140 = vmul.f32 %v3113, %v2790
      %v3141 = vmul.f32 %v3117, %v2792
      %v3142 = vmul.f32 %v3117, %v2793
      %v3143 = vmul.f32 %v3121, %v2795
      %v3144 = vmul.f32 %v3121, %v2796
      %v3145 = vmul.f32 %v3125, %v2798
      %v3146 = vmul.f32 %v3125, %v2799
      %v3147 = vmul.f32 %v3129, %v2801
      %v3148 = vmul.f32 %v3129, %v2802
      %v3149 = vmul.f32 %v3133, %v2804
      %v3150 = vmul.f32 %v3133, %v2805
      %3167 = vrot.lane.b32.xlu0 %v3135, 127
      %v3168 = vpop.permute.xlu0 %3167
      %3169 = vrot.lane.b32.xlu0 %v3136, 127
      %v3170 = vpop.permute.xlu0 %3169
      %3171 = vrot.lane.b32.xlu0 %v3137, 127
      %v3172 = vpop.permute.xlu0 %3171
      %3173 = vrot.lane.b32.xlu0 %v3138, 127
      %v3174 = vpop.permute.xlu0 %3173
      %3175 = vrot.lane.b32.xlu0 %v3139, 127
      %v3176 = vpop.permute.xlu0 %3175
      %3177 = vrot.lane.b32.xlu0 %v3140, 127
      %v3178 = vpop.permute.xlu0 %3177
      %3179 = vrot.lane.b32.xlu0 %v3141, 127
      %v3180 = vpop.permute.xlu0 %3179
      %3181 = vrot.lane.b32.xlu0 %v3142, 127
      %v3182 = vpop.permute.xlu0 %3181
      %3183 = vrot.lane.b32.xlu0 %v3143, 127
      %v3184 = vpop.permute.xlu0 %3183
      %3185 = vrot.lane.b32.xlu0 %v3144, 127
      %v3186 = vpop.permute.xlu0 %3185
      %3187 = vrot.lane.b32.xlu0 %v3145, 127
      %v3188 = vpop.permute.xlu0 %3187
      %3189 = vrot.lane.b32.xlu0 %v3146, 127
      %v3190 = vpop.permute.xlu0 %3189
      %3191 = vrot.lane.b32.xlu0 %v3147, 127
      %v3192 = vpop.permute.xlu0 %3191
      %3193 = vrot.lane.b32.xlu0 %v3148, 127
      %v3194 = vpop.permute.xlu0 %3193
      %3195 = vrot.lane.b32.xlu0 %v3149, 127
      %v3196 = vpop.permute.xlu0 %3195
      %3197 = vrot.lane.b32.xlu0 %v3150, 127
      %v3198 = vpop.permute.xlu0 %3197
      %v3215 = vadd.f32 %v3047, %v3168
      %v3216 = vadd.f32 %v3048, %v3170
      %v3217 = vadd.f32 %v3049, %v3172
      %v3218 = vadd.f32 %v3050, %v3174
      %v3219 = vadd.f32 %v3051, %v3176
      %v3220 = vadd.f32 %v3052, %v3178
      %v3221 = vadd.f32 %v3053, %v3180
      %v3222 = vadd.f32 %v3054, %v3182
      %v3223 = vadd.f32 %v3055, %v3184
      %v3224 = vadd.f32 %v3056, %v3186
      %v3225 = vadd.f32 %v3057, %v3188
      %v3226 = vadd.f32 %v3058, %v3190
      %v3227 = vadd.f32 %v3059, %v3192
      %v3228 = vadd.f32 %v3060, %v3194
      %v3229 = vadd.f32 %v3061, %v3196
      %v3230 = vadd.f32 %v3062, %v3198
      %v3239 = vlaneseq
      %v3240 = vshrl.u32 %v3239, 7
      %v3241 = vsub.s32 0, %v3240
      %v3242 = vrot.slane %v2823, %v3241
      %v3243 = vlaneseq
      %v3244 = vshrl.u32 %v3243, 7
      %v3245 = vsub.s32 0, %v3244
      %v3246 = vrot.slane %v2824, %v3245
      %v3247 = vlaneseq
      %v3248 = vshrl.u32 %v3247, 7
      %v3249 = vsub.s32 0, %v3248
      %v3250 = vrot.slane %v2825, %v3249
      %v3251 = vlaneseq
      %v3252 = vshrl.u32 %v3251, 7
      %v3253 = vsub.s32 0, %v3252
      %v3254 = vrot.slane %v2826, %v3253
      %v3255 = vlaneseq
      %v3256 = vshrl.u32 %v3255, 7
      %v3257 = vsub.s32 0, %v3256
      %v3258 = vrot.slane %v2827, %v3257
      %v3259 = vlaneseq
      %v3260 = vshrl.u32 %v3259, 7
      %v3261 = vsub.s32 0, %v3260
      %v3262 = vrot.slane %v2828, %v3261
      %v3263 = vlaneseq
      %v3264 = vshrl.u32 %v3263, 7
      %v3265 = vsub.s32 0, %v3264
      %v3266 = vrot.slane %v2829, %v3265
      %v3267 = vlaneseq
      %v3268 = vshrl.u32 %v3267, 7
      %v3269 = vsub.s32 0, %v3268
      %v3270 = vrot.slane %v2830, %v3269
      %3271 = vset.pattern.permute.xlu0 0
      %3272 = vperm.xlu0 %3271, %v3242
      %v3273 = vpop.permute.xlu0 %3272
      %3275 = vset.pattern.permute.xlu0 0
      %3276 = vperm.xlu0 %3275, %v3246
      %v3277 = vpop.permute.xlu0 %3276
      %3279 = vset.pattern.permute.xlu0 0
      %3280 = vperm.xlu0 %3279, %v3250
      %v3281 = vpop.permute.xlu0 %3280
      %3283 = vset.pattern.permute.xlu0 0
      %3284 = vperm.xlu0 %3283, %v3254
      %v3285 = vpop.permute.xlu0 %3284
      %3287 = vset.pattern.permute.xlu0 0
      %3288 = vperm.xlu0 %3287, %v3258
      %v3289 = vpop.permute.xlu0 %3288
      %3291 = vset.pattern.permute.xlu0 0
      %3292 = vperm.xlu0 %3291, %v3262
      %v3293 = vpop.permute.xlu0 %3292
      %3295 = vset.pattern.permute.xlu0 0
      %3296 = vperm.xlu0 %3295, %v3266
      %v3297 = vpop.permute.xlu0 %3296
      %3299 = vset.pattern.permute.xlu0 0
      %3300 = vperm.xlu0 %3299, %v3270
      %v3301 = vpop.permute.xlu0 %3300
      %v3303 = vmul.f32 %v3273, %v2783
      %v3304 = vmul.f32 %v3273, %v2784
      %v3305 = vmul.f32 %v3277, %v2786
      %v3306 = vmul.f32 %v3277, %v2787
      %v3307 = vmul.f32 %v3281, %v2789
      %v3308 = vmul.f32 %v3281, %v2790
      %v3309 = vmul.f32 %v3285, %v2792
      %v3310 = vmul.f32 %v3285, %v2793
      %v3311 = vmul.f32 %v3289, %v2795
      %v3312 = vmul.f32 %v3289, %v2796
      %v3313 = vmul.f32 %v3293, %v2798
      %v3314 = vmul.f32 %v3293, %v2799
      %v3315 = vmul.f32 %v3297, %v2801
      %v3316 = vmul.f32 %v3297, %v2802
      %v3317 = vmul.f32 %v3301, %v2804
      %v3318 = vmul.f32 %v3301, %v2805
      %3335 = vrot.lane.b32.xlu0 %v3303, 126
      %v3336 = vpop.permute.xlu0 %3335
      %3337 = vrot.lane.b32.xlu0 %v3304, 126
      %v3338 = vpop.permute.xlu0 %3337
      %3339 = vrot.lane.b32.xlu0 %v3305, 126
      %v3340 = vpop.permute.xlu0 %3339
      %3341 = vrot.lane.b32.xlu0 %v3306, 126
      %v3342 = vpop.permute.xlu0 %3341
      %3343 = vrot.lane.b32.xlu0 %v3307, 126
      %v3344 = vpop.permute.xlu0 %3343
      %3345 = vrot.lane.b32.xlu0 %v3308, 126
      %v3346 = vpop.permute.xlu0 %3345
      %3347 = vrot.lane.b32.xlu0 %v3309, 126
      %v3348 = vpop.permute.xlu0 %3347
      %3349 = vrot.lane.b32.xlu0 %v3310, 126
      %v3350 = vpop.permute.xlu0 %3349
      %3351 = vrot.lane.b32.xlu0 %v3311, 126
      %v3352 = vpop.permute.xlu0 %3351
      %3353 = vrot.lane.b32.xlu0 %v3312, 126
      %v3354 = vpop.permute.xlu0 %3353
      %3355 = vrot.lane.b32.xlu0 %v3313, 126
      %v3356 = vpop.permute.xlu0 %3355
      %3357 = vrot.lane.b32.xlu0 %v3314, 126
      %v3358 = vpop.permute.xlu0 %3357
      %3359 = vrot.lane.b32.xlu0 %v3315, 126
      %v3360 = vpop.permute.xlu0 %3359
      %3361 = vrot.lane.b32.xlu0 %v3316, 126
      %v3362 = vpop.permute.xlu0 %3361
      %3363 = vrot.lane.b32.xlu0 %v3317, 126
      %v3364 = vpop.permute.xlu0 %3363
      %3365 = vrot.lane.b32.xlu0 %v3318, 126
      %v3366 = vpop.permute.xlu0 %3365
      %v3383 = vadd.f32 %v3215, %v3336
      %v3384 = vadd.f32 %v3216, %v3338
      %v3385 = vadd.f32 %v3217, %v3340
      %v3386 = vadd.f32 %v3218, %v3342
      %v3387 = vadd.f32 %v3219, %v3344
      %v3388 = vadd.f32 %v3220, %v3346
      %v3389 = vadd.f32 %v3221, %v3348
      %v3390 = vadd.f32 %v3222, %v3350
      %v3391 = vadd.f32 %v3223, %v3352
      %v3392 = vadd.f32 %v3224, %v3354
      %v3393 = vadd.f32 %v3225, %v3356
      %v3394 = vadd.f32 %v3226, %v3358
      %v3395 = vadd.f32 %v3227, %v3360
      %v3396 = vadd.f32 %v3228, %v3362
      %v3397 = vadd.f32 %v3229, %v3364
      %v3398 = vadd.f32 %v3230, %v3366
      %v3407 = vlaneseq
      %v3408 = vshrl.u32 %v3407, 7
      %v3409 = vsub.s32 0, %v3408
      %v3410 = vrot.slane %v2831, %v3409
      %v3411 = vlaneseq
      %v3412 = vshrl.u32 %v3411, 7
      %v3413 = vsub.s32 0, %v3412
      %v3414 = vrot.slane %v2832, %v3413
      %v3415 = vlaneseq
      %v3416 = vshrl.u32 %v3415, 7
      %v3417 = vsub.s32 0, %v3416
      %v3418 = vrot.slane %v2833, %v3417
      %v3419 = vlaneseq
      %v3420 = vshrl.u32 %v3419, 7
      %v3421 = vsub.s32 0, %v3420
      %v3422 = vrot.slane %v2834, %v3421
      %v3423 = vlaneseq
      %v3424 = vshrl.u32 %v3423, 7
      %v3425 = vsub.s32 0, %v3424
      %v3426 = vrot.slane %v2835, %v3425
      %v3427 = vlaneseq
      %v3428 = vshrl.u32 %v3427, 7
      %v3429 = vsub.s32 0, %v3428
      %v3430 = vrot.slane %v2836, %v3429
      %v3431 = vlaneseq
      %v3432 = vshrl.u32 %v3431, 7
      %v3433 = vsub.s32 0, %v3432
      %v3434 = vrot.slane %v2837, %v3433
      %v3435 = vlaneseq
      %v3436 = vshrl.u32 %v3435, 7
      %v3437 = vsub.s32 0, %v3436
      %v3438 = vrot.slane %v2838, %v3437
      %3439 = vset.pattern.permute.xlu0 0
      %3440 = vperm.xlu0 %3439, %v3410
      %v3441 = vpop.permute.xlu0 %3440
      %3443 = vset.pattern.permute.xlu0 0
      %3444 = vperm.xlu0 %3443, %v3414
      %v3445 = vpop.permute.xlu0 %3444
      %3447 = vset.pattern.permute.xlu0 0
      %3448 = vperm.xlu0 %3447, %v3418
      %v3449 = vpop.permute.xlu0 %3448
      %3451 = vset.pattern.permute.xlu0 0
      %3452 = vperm.xlu0 %3451, %v3422
      %v3453 = vpop.permute.xlu0 %3452
      %3455 = vset.pattern.permute.xlu0 0
      %3456 = vperm.xlu0 %3455, %v3426
      %v3457 = vpop.permute.xlu0 %3456
      %3459 = vset.pattern.permute.xlu0 0
      %3460 = vperm.xlu0 %3459, %v3430
      %v3461 = vpop.permute.xlu0 %3460
      %3463 = vset.pattern.permute.xlu0 0
      %3464 = vperm.xlu0 %3463, %v3434
      %v3465 = vpop.permute.xlu0 %3464
      %3467 = vset.pattern.permute.xlu0 0
      %3468 = vperm.xlu0 %3467, %v3438
      %v3469 = vpop.permute.xlu0 %3468
      %v3471 = vmul.f32 %v3441, %v2783
      %v3472 = vmul.f32 %v3441, %v2784
      %v3473 = vmul.f32 %v3441, %v2785
      %v3474 = vmul.f32 %v3445, %v2786
      %v3475 = vmul.f32 %v3445, %v2787
      %v3476 = vmul.f32 %v3445, %v2788
      %v3477 = vmul.f32 %v3449, %v2789
      %v3478 = vmul.f32 %v3449, %v2790
      %v3479 = vmul.f32 %v3449, %v2791
      %v3480 = vmul.f32 %v3453, %v2792
      %v3481 = vmul.f32 %v3453, %v2793
      %v3482 = vmul.f32 %v3453, %v2794
      %v3483 = vmul.f32 %v3457, %v2795
      %v3484 = vmul.f32 %v3457, %v2796
      %v3485 = vmul.f32 %v3457, %v2797
      %v3486 = vmul.f32 %v3461, %v2798
      %v3487 = vmul.f32 %v3461, %v2799
      %v3488 = vmul.f32 %v3461, %v2800
      %v3489 = vmul.f32 %v3465, %v2801
      %v3490 = vmul.f32 %v3465, %v2802
      %v3491 = vmul.f32 %v3465, %v2803
      %v3492 = vmul.f32 %v3469, %v2804
      %v3493 = vmul.f32 %v3469, %v2805
      %v3494 = vmul.f32 %v3469, %v2806
      %v3519 = vrot.slane %v3471, 1
      %v3520 = vrot.slane %v3472, 1
      %v3521 = vsel %vm1119, %v3519, %v3520
      %v3522 = vrot.slane %v3473, 1
      %v3523 = vsel %vm1119, %v3520, %v3522
      %v3524 = vrot.slane %v3474, 1
      %v3525 = vrot.slane %v3475, 1
      %v3526 = vsel %vm1119, %v3524, %v3525
      %v3527 = vrot.slane %v3476, 1
      %v3528 = vsel %vm1119, %v3525, %v3527
      %v3529 = vrot.slane %v3477, 1
      %v3530 = vrot.slane %v3478, 1
      %v3531 = vsel %vm1119, %v3529, %v3530
      %v3532 = vrot.slane %v3479, 1
      %v3533 = vsel %vm1119, %v3530, %v3532
      %v3534 = vrot.slane %v3480, 1
      %v3535 = vrot.slane %v3481, 1
      %v3536 = vsel %vm1119, %v3534, %v3535
      %v3537 = vrot.slane %v3482, 1
      %v3538 = vsel %vm1119, %v3535, %v3537
      %v3539 = vrot.slane %v3483, 1
      %v3540 = vrot.slane %v3484, 1
      %v3541 = vsel %vm1119, %v3539, %v3540
      %v3542 = vrot.slane %v3485, 1
      %v3543 = vsel %vm1119, %v3540, %v3542
      %v3544 = vrot.slane %v3486, 1
      %v3545 = vrot.slane %v3487, 1
      %v3546 = vsel %vm1119, %v3544, %v3545
      %v3547 = vrot.slane %v3488, 1
      %v3548 = vsel %vm1119, %v3545, %v3547
      %v3549 = vrot.slane %v3489, 1
      %v3550 = vrot.slane %v3490, 1
      %v3551 = vsel %vm1119, %v3549, %v3550
      %v3552 = vrot.slane %v3491, 1
      %v3553 = vsel %vm1119, %v3550, %v3552
      %v3554 = vrot.slane %v3492, 1
      %v3555 = vrot.slane %v3493, 1
      %v3556 = vsel %vm1119, %v3554, %v3555
      %v3557 = vrot.slane %v3494, 1
      %v3558 = vsel %vm1119, %v3555, %v3557
      %v3575 = vadd.f32 %v3383, %v3521
      %v3576 = vadd.f32 %v3384, %v3523
      %v3577 = vadd.f32 %v3385, %v3526
      %v3578 = vadd.f32 %v3386, %v3528
      %v3579 = vadd.f32 %v3387, %v3531
      %v3580 = vadd.f32 %v3388, %v3533
      %v3581 = vadd.f32 %v3389, %v3536
      %v3582 = vadd.f32 %v3390, %v3538
      %v3583 = vadd.f32 %v3391, %v3541
      %v3584 = vadd.f32 %v3392, %v3543
      %v3585 = vadd.f32 %v3393, %v3546
      %v3586 = vadd.f32 %v3394, %v3548
      %v3587 = vadd.f32 %v3395, %v3551
      %v3588 = vadd.f32 %v3396, %v3553
      %v3589 = vadd.f32 %v3397, %v3556
      %v3590 = vadd.f32 %v3398, %v3558
      %v3599 = vlaneseq
      %v3600 = vshrl.u32 %v3599, 7
      %v3601 = vsub.s32 0, %v3600
      %v3602 = vrot.slane %v2839, %v3601
      %v3603 = vlaneseq
      %v3604 = vshrl.u32 %v3603, 7
      %v3605 = vsub.s32 0, %v3604
      %v3606 = vrot.slane %v2840, %v3605
      %v3607 = vlaneseq
      %v3608 = vshrl.u32 %v3607, 7
      %v3609 = vsub.s32 0, %v3608
      %v3610 = vrot.slane %v2841, %v3609
      %v3611 = vlaneseq
      %v3612 = vshrl.u32 %v3611, 7
      %v3613 = vsub.s32 0, %v3612
      %v3614 = vrot.slane %v2842, %v3613
      %v3615 = vlaneseq
      %v3616 = vshrl.u32 %v3615, 7
      %v3617 = vsub.s32 0, %v3616
      %v3618 = vrot.slane %v2843, %v3617
      %v3619 = vlaneseq
      %v3620 = vshrl.u32 %v3619, 7
      %v3621 = vsub.s32 0, %v3620
      %v3622 = vrot.slane %v2844, %v3621
      %v3623 = vlaneseq
      %v3624 = vshrl.u32 %v3623, 7
      %v3625 = vsub.s32 0, %v3624
      %v3626 = vrot.slane %v2845, %v3625
      %v3627 = vlaneseq
      %v3628 = vshrl.u32 %v3627, 7
      %v3629 = vsub.s32 0, %v3628
      %v3630 = vrot.slane %v2846, %v3629
      %3631 = vset.pattern.permute.xlu0 0
      %3632 = vperm.xlu0 %3631, %v3602
      %v3633 = vpop.permute.xlu0 %3632
      %3635 = vset.pattern.permute.xlu0 0
      %3636 = vperm.xlu0 %3635, %v3606
      %v3637 = vpop.permute.xlu0 %3636
      %3639 = vset.pattern.permute.xlu0 0
      %3640 = vperm.xlu0 %3639, %v3610
      %v3641 = vpop.permute.xlu0 %3640
      %3643 = vset.pattern.permute.xlu0 0
      %3644 = vperm.xlu0 %3643, %v3614
      %v3645 = vpop.permute.xlu0 %3644
      %3647 = vset.pattern.permute.xlu0 0
      %3648 = vperm.xlu0 %3647, %v3618
      %v3649 = vpop.permute.xlu0 %3648
      %3651 = vset.pattern.permute.xlu0 0
      %3652 = vperm.xlu0 %3651, %v3622
      %v3653 = vpop.permute.xlu0 %3652
      %3655 = vset.pattern.permute.xlu0 0
      %3656 = vperm.xlu0 %3655, %v3626
      %v3657 = vpop.permute.xlu0 %3656
      %3659 = vset.pattern.permute.xlu0 0
      %3660 = vperm.xlu0 %3659, %v3630
      %v3661 = vpop.permute.xlu0 %3660
      %v3663 = vmul.f32 %v3633, %v2783
      %v3664 = vmul.f32 %v3633, %v2784
      %v3665 = vmul.f32 %v3633, %v2785
      %v3666 = vmul.f32 %v3637, %v2786
      %v3667 = vmul.f32 %v3637, %v2787
      %v3668 = vmul.f32 %v3637, %v2788
      %v3669 = vmul.f32 %v3641, %v2789
      %v3670 = vmul.f32 %v3641, %v2790
      %v3671 = vmul.f32 %v3641, %v2791
      %v3672 = vmul.f32 %v3645, %v2792
      %v3673 = vmul.f32 %v3645, %v2793
      %v3674 = vmul.f32 %v3645, %v2794
      %v3675 = vmul.f32 %v3649, %v2795
      %v3676 = vmul.f32 %v3649, %v2796
      %v3677 = vmul.f32 %v3649, %v2797
      %v3678 = vmul.f32 %v3653, %v2798
      %v3679 = vmul.f32 %v3653, %v2799
      %v3680 = vmul.f32 %v3653, %v2800
      %v3681 = vmul.f32 %v3657, %v2801
      %v3682 = vmul.f32 %v3657, %v2802
      %v3683 = vmul.f32 %v3657, %v2803
      %v3684 = vmul.f32 %v3661, %v2804
      %v3685 = vmul.f32 %v3661, %v2805
      %v3686 = vmul.f32 %v3661, %v2806
      %v3711 = vrot.slane %v3663, 1
      %v3712 = vrot.slane %v3664, 1
      %v3713 = vsel %vm1119, %v3711, %v3712
      %v3714 = vrot.slane %v3665, 1
      %v3715 = vsel %vm1119, %v3712, %v3714
      %v3716 = vrot.slane %v3666, 1
      %v3717 = vrot.slane %v3667, 1
      %v3718 = vsel %vm1119, %v3716, %v3717
      %v3719 = vrot.slane %v3668, 1
      %v3720 = vsel %vm1119, %v3717, %v3719
      %v3721 = vrot.slane %v3669, 1
      %v3722 = vrot.slane %v3670, 1
      %v3723 = vsel %vm1119, %v3721, %v3722
      %v3724 = vrot.slane %v3671, 1
      %v3725 = vsel %vm1119, %v3722, %v3724
      %v3726 = vrot.slane %v3672, 1
      %v3727 = vrot.slane %v3673, 1
      %v3728 = vsel %vm1119, %v3726, %v3727
      %v3729 = vrot.slane %v3674, 1
      %v3730 = vsel %vm1119, %v3727, %v3729
      %v3731 = vrot.slane %v3675, 1
      %v3732 = vrot.slane %v3676, 1
      %v3733 = vsel %vm1119, %v3731, %v3732
      %v3734 = vrot.slane %v3677, 1
      %v3735 = vsel %vm1119, %v3732, %v3734
      %v3736 = vrot.slane %v3678, 1
      %v3737 = vrot.slane %v3679, 1
      %v3738 = vsel %vm1119, %v3736, %v3737
      %v3739 = vrot.slane %v3680, 1
      %v3740 = vsel %vm1119, %v3737, %v3739
      %v3741 = vrot.slane %v3681, 1
      %v3742 = vrot.slane %v3682, 1
      %v3743 = vsel %vm1119, %v3741, %v3742
      %v3744 = vrot.slane %v3683, 1
      %v3745 = vsel %vm1119, %v3742, %v3744
      %v3746 = vrot.slane %v3684, 1
      %v3747 = vrot.slane %v3685, 1
      %v3748 = vsel %vm1119, %v3746, %v3747
      %v3749 = vrot.slane %v3686, 1
      %v3750 = vsel %vm1119, %v3747, %v3749
      %3751 = vrot.lane.b32.xlu0 %v3713, 127
      %v3752 = vpop.permute.xlu0 %3751
      %3753 = vrot.lane.b32.xlu0 %v3715, 127
      %v3754 = vpop.permute.xlu0 %3753
      %3755 = vrot.lane.b32.xlu0 %v3718, 127
      %v3756 = vpop.permute.xlu0 %3755
      %3757 = vrot.lane.b32.xlu0 %v3720, 127
      %v3758 = vpop.permute.xlu0 %3757
      %3759 = vrot.lane.b32.xlu0 %v3723, 127
      %v3760 = vpop.permute.xlu0 %3759
      %3761 = vrot.lane.b32.xlu0 %v3725, 127
      %v3762 = vpop.permute.xlu0 %3761
      %3763 = vrot.lane.b32.xlu0 %v3728, 127
      %v3764 = vpop.permute.xlu0 %3763
      %3765 = vrot.lane.b32.xlu0 %v3730, 127
      %v3766 = vpop.permute.xlu0 %3765
      %3767 = vrot.lane.b32.xlu0 %v3733, 127
      %v3768 = vpop.permute.xlu0 %3767
      %3769 = vrot.lane.b32.xlu0 %v3735, 127
      %v3770 = vpop.permute.xlu0 %3769
      %3771 = vrot.lane.b32.xlu0 %v3738, 127
      %v3772 = vpop.permute.xlu0 %3771
      %3773 = vrot.lane.b32.xlu0 %v3740, 127
      %v3774 = vpop.permute.xlu0 %3773
      %3775 = vrot.lane.b32.xlu0 %v3743, 127
      %v3776 = vpop.permute.xlu0 %3775
      %3777 = vrot.lane.b32.xlu0 %v3745, 127
      %v3778 = vpop.permute.xlu0 %3777
      %3779 = vrot.lane.b32.xlu0 %v3748, 127
      %v3780 = vpop.permute.xlu0 %3779
      %3781 = vrot.lane.b32.xlu0 %v3750, 127
      %v3782 = vpop.permute.xlu0 %3781
      %v3799 = vadd.f32 %v3575, %v3752
      %v3800 = vadd.f32 %v3576, %v3754
      %v3801 = vadd.f32 %v3577, %v3756
      %v3802 = vadd.f32 %v3578, %v3758
      %v3803 = vadd.f32 %v3579, %v3760
      %v3804 = vadd.f32 %v3580, %v3762
      %v3805 = vadd.f32 %v3581, %v3764
      %v3806 = vadd.f32 %v3582, %v3766
      %v3807 = vadd.f32 %v3583, %v3768
      %v3808 = vadd.f32 %v3584, %v3770
      %v3809 = vadd.f32 %v3585, %v3772
      %v3810 = vadd.f32 %v3586, %v3774
      %v3811 = vadd.f32 %v3587, %v3776
      %v3812 = vadd.f32 %v3588, %v3778
      %v3813 = vadd.f32 %v3589, %v3780
      %v3814 = vadd.f32 %v3590, %v3782
      %v3823 = vlaneseq
      %v3824 = vshrl.u32 %v3823, 7
      %v3825 = vsub.s32 0, %v3824
      %v3826 = vrot.slane %v2847, %v3825
      %v3827 = vlaneseq
      %v3828 = vshrl.u32 %v3827, 7
      %v3829 = vsub.s32 0, %v3828
      %v3830 = vrot.slane %v2848, %v3829
      %v3831 = vlaneseq
      %v3832 = vshrl.u32 %v3831, 7
      %v3833 = vsub.s32 0, %v3832
      %v3834 = vrot.slane %v2849, %v3833
      %v3835 = vlaneseq
      %v3836 = vshrl.u32 %v3835, 7
      %v3837 = vsub.s32 0, %v3836
      %v3838 = vrot.slane %v2850, %v3837
      %v3839 = vlaneseq
      %v3840 = vshrl.u32 %v3839, 7
      %v3841 = vsub.s32 0, %v3840
      %v3842 = vrot.slane %v2851, %v3841
      %v3843 = vlaneseq
      %v3844 = vshrl.u32 %v3843, 7
      %v3845 = vsub.s32 0, %v3844
      %v3846 = vrot.slane %v2852, %v3845
      %v3847 = vlaneseq
      %v3848 = vshrl.u32 %v3847, 7
      %v3849 = vsub.s32 0, %v3848
      %v3850 = vrot.slane %v2853, %v3849
      %v3851 = vlaneseq
      %v3852 = vshrl.u32 %v3851, 7
      %v3853 = vsub.s32 0, %v3852
      %v3854 = vrot.slane %v2854, %v3853
      %3855 = vset.pattern.permute.xlu0 0
      %3856 = vperm.xlu0 %3855, %v3826
      %v3857 = vpop.permute.xlu0 %3856
      %3859 = vset.pattern.permute.xlu0 0
      %3860 = vperm.xlu0 %3859, %v3830
      %v3861 = vpop.permute.xlu0 %3860
      %3863 = vset.pattern.permute.xlu0 0
      %3864 = vperm.xlu0 %3863, %v3834
      %v3865 = vpop.permute.xlu0 %3864
      %3867 = vset.pattern.permute.xlu0 0
      %3868 = vperm.xlu0 %3867, %v3838
      %v3869 = vpop.permute.xlu0 %3868
      %3871 = vset.pattern.permute.xlu0 0
      %3872 = vperm.xlu0 %3871, %v3842
      %v3873 = vpop.permute.xlu0 %3872
      %3875 = vset.pattern.permute.xlu0 0
      %3876 = vperm.xlu0 %3875, %v3846
      %v3877 = vpop.permute.xlu0 %3876
      %3879 = vset.pattern.permute.xlu0 0
      %3880 = vperm.xlu0 %3879, %v3850
      %v3881 = vpop.permute.xlu0 %3880
      %3883 = vset.pattern.permute.xlu0 0
      %3884 = vperm.xlu0 %3883, %v3854
      %v3885 = vpop.permute.xlu0 %3884
      %v3887 = vmul.f32 %v3857, %v2783
      %v3888 = vmul.f32 %v3857, %v2784
      %v3889 = vmul.f32 %v3857, %v2785
      %v3890 = vmul.f32 %v3861, %v2786
      %v3891 = vmul.f32 %v3861, %v2787
      %v3892 = vmul.f32 %v3861, %v2788
      %v3893 = vmul.f32 %v3865, %v2789
      %v3894 = vmul.f32 %v3865, %v2790
      %v3895 = vmul.f32 %v3865, %v2791
      %v3896 = vmul.f32 %v3869, %v2792
      %v3897 = vmul.f32 %v3869, %v2793
      %v3898 = vmul.f32 %v3869, %v2794
      %v3899 = vmul.f32 %v3873, %v2795
      %v3900 = vmul.f32 %v3873, %v2796
      %v3901 = vmul.f32 %v3873, %v2797
      %v3902 = vmul.f32 %v3877, %v2798
      %v3903 = vmul.f32 %v3877, %v2799
      %v3904 = vmul.f32 %v3877, %v2800
      %v3905 = vmul.f32 %v3881, %v2801
      %v3906 = vmul.f32 %v3881, %v2802
      %v3907 = vmul.f32 %v3881, %v2803
      %v3908 = vmul.f32 %v3885, %v2804
      %v3909 = vmul.f32 %v3885, %v2805
      %v3910 = vmul.f32 %v3885, %v2806
      %v3935 = vrot.slane %v3887, 1
      %v3936 = vrot.slane %v3888, 1
      %v3937 = vsel %vm1119, %v3935, %v3936
      %v3938 = vrot.slane %v3889, 1
      %v3939 = vsel %vm1119, %v3936, %v3938
      %v3940 = vrot.slane %v3890, 1
      %v3941 = vrot.slane %v3891, 1
      %v3942 = vsel %vm1119, %v3940, %v3941
      %v3943 = vrot.slane %v3892, 1
      %v3944 = vsel %vm1119, %v3941, %v3943
      %v3945 = vrot.slane %v3893, 1
      %v3946 = vrot.slane %v3894, 1
      %v3947 = vsel %vm1119, %v3945, %v3946
      %v3948 = vrot.slane %v3895, 1
      %v3949 = vsel %vm1119, %v3946, %v3948
      %v3950 = vrot.slane %v3896, 1
      %v3951 = vrot.slane %v3897, 1
      %v3952 = vsel %vm1119, %v3950, %v3951
      %v3953 = vrot.slane %v3898, 1
      %v3954 = vsel %vm1119, %v3951, %v3953
      %v3955 = vrot.slane %v3899, 1
      %v3956 = vrot.slane %v3900, 1
      %v3957 = vsel %vm1119, %v3955, %v3956
      %v3958 = vrot.slane %v3901, 1
      %v3959 = vsel %vm1119, %v3956, %v3958
      %v3960 = vrot.slane %v3902, 1
      %v3961 = vrot.slane %v3903, 1
      %v3962 = vsel %vm1119, %v3960, %v3961
      %v3963 = vrot.slane %v3904, 1
      %v3964 = vsel %vm1119, %v3961, %v3963
      %v3965 = vrot.slane %v3905, 1
      %v3966 = vrot.slane %v3906, 1
      %v3967 = vsel %vm1119, %v3965, %v3966
      %v3968 = vrot.slane %v3907, 1
      %v3969 = vsel %vm1119, %v3966, %v3968
      %v3970 = vrot.slane %v3908, 1
      %v3971 = vrot.slane %v3909, 1
      %v3972 = vsel %vm1119, %v3970, %v3971
      %v3973 = vrot.slane %v3910, 1
      %v3974 = vsel %vm1119, %v3971, %v3973
      %3975 = vrot.lane.b32.xlu0 %v3937, 126
      %v3976 = vpop.permute.xlu0 %3975
      %3977 = vrot.lane.b32.xlu0 %v3939, 126
      %v3978 = vpop.permute.xlu0 %3977
      %3979 = vrot.lane.b32.xlu0 %v3942, 126
      %v3980 = vpop.permute.xlu0 %3979
      %3981 = vrot.lane.b32.xlu0 %v3944, 126
      %v3982 = vpop.permute.xlu0 %3981
      %3983 = vrot.lane.b32.xlu0 %v3947, 126
      %v3984 = vpop.permute.xlu0 %3983
      %3985 = vrot.lane.b32.xlu0 %v3949, 126
      %v3986 = vpop.permute.xlu0 %3985
      %3987 = vrot.lane.b32.xlu0 %v3952, 126
      %v3988 = vpop.permute.xlu0 %3987
      %3989 = vrot.lane.b32.xlu0 %v3954, 126
      %v3990 = vpop.permute.xlu0 %3989
      %3991 = vrot.lane.b32.xlu0 %v3957, 126
      %v3992 = vpop.permute.xlu0 %3991
      %3993 = vrot.lane.b32.xlu0 %v3959, 126
      %v3994 = vpop.permute.xlu0 %3993
      %3995 = vrot.lane.b32.xlu0 %v3962, 126
      %v3996 = vpop.permute.xlu0 %3995
      %3997 = vrot.lane.b32.xlu0 %v3964, 126
      %v3998 = vpop.permute.xlu0 %3997
      %3999 = vrot.lane.b32.xlu0 %v3967, 126
      %v4000 = vpop.permute.xlu0 %3999
      %4001 = vrot.lane.b32.xlu0 %v3969, 126
      %v4002 = vpop.permute.xlu0 %4001
      %4003 = vrot.lane.b32.xlu0 %v3972, 126
      %v4004 = vpop.permute.xlu0 %4003
      %4005 = vrot.lane.b32.xlu0 %v3974, 126
      %v4006 = vpop.permute.xlu0 %4005
      %v4023 = vadd.f32 %v3799, %v3976
      %v4024 = vadd.f32 %v3800, %v3978
      %v4025 = vadd.f32 %v3801, %v3980
      %v4026 = vadd.f32 %v3802, %v3982
      %v4027 = vadd.f32 %v3803, %v3984
      %v4028 = vadd.f32 %v3804, %v3986
      %v4029 = vadd.f32 %v3805, %v3988
      %v4030 = vadd.f32 %v3806, %v3990
      %v4031 = vadd.f32 %v3807, %v3992
      %v4032 = vadd.f32 %v3808, %v3994
      %v4033 = vadd.f32 %v3809, %v3996
      %v4034 = vadd.f32 %v3810, %v3998
      %v4035 = vadd.f32 %v3811, %v4000
      %v4036 = vadd.f32 %v3812, %v4002
      %v4037 = vadd.f32 %v3813, %v4004
      %v4038 = vadd.f32 %v3814, %v4006
      %v4047 = vlaneseq
      %v4048 = vshrl.u32 %v4047, 7
      %v4049 = vsub.s32 0, %v4048
      %v4050 = vrot.slane %v2855, %v4049
      %v4051 = vlaneseq
      %v4052 = vshrl.u32 %v4051, 7
      %v4053 = vsub.s32 0, %v4052
      %v4054 = vrot.slane %v2856, %v4053
      %v4055 = vlaneseq
      %v4056 = vshrl.u32 %v4055, 7
      %v4057 = vsub.s32 0, %v4056
      %v4058 = vrot.slane %v2857, %v4057
      %v4059 = vlaneseq
      %v4060 = vshrl.u32 %v4059, 7
      %v4061 = vsub.s32 0, %v4060
      %v4062 = vrot.slane %v2858, %v4061
      %v4063 = vlaneseq
      %v4064 = vshrl.u32 %v4063, 7
      %v4065 = vsub.s32 0, %v4064
      %v4066 = vrot.slane %v2859, %v4065
      %v4067 = vlaneseq
      %v4068 = vshrl.u32 %v4067, 7
      %v4069 = vsub.s32 0, %v4068
      %v4070 = vrot.slane %v2860, %v4069
      %v4071 = vlaneseq
      %v4072 = vshrl.u32 %v4071, 7
      %v4073 = vsub.s32 0, %v4072
      %v4074 = vrot.slane %v2861, %v4073
      %v4075 = vlaneseq
      %v4076 = vshrl.u32 %v4075, 7
      %v4077 = vsub.s32 0, %v4076
      %v4078 = vrot.slane %v2862, %v4077
      %4079 = vset.pattern.permute.xlu0 0
      %4080 = vperm.xlu0 %4079, %v4050
      %v4081 = vpop.permute.xlu0 %4080
      %4083 = vset.pattern.permute.xlu0 0
      %4084 = vperm.xlu0 %4083, %v4054
      %v4085 = vpop.permute.xlu0 %4084
      %4087 = vset.pattern.permute.xlu0 0
      %4088 = vperm.xlu0 %4087, %v4058
      %v4089 = vpop.permute.xlu0 %4088
      %4091 = vset.pattern.permute.xlu0 0
      %4092 = vperm.xlu0 %4091, %v4062
      %v4093 = vpop.permute.xlu0 %4092
      %4095 = vset.pattern.permute.xlu0 0
      %4096 = vperm.xlu0 %4095, %v4066
      %v4097 = vpop.permute.xlu0 %4096
      %4099 = vset.pattern.permute.xlu0 0
      %4100 = vperm.xlu0 %4099, %v4070
      %v4101 = vpop.permute.xlu0 %4100
      %4103 = vset.pattern.permute.xlu0 0
      %4104 = vperm.xlu0 %4103, %v4074
      %v4105 = vpop.permute.xlu0 %4104
      %4107 = vset.pattern.permute.xlu0 0
      %4108 = vperm.xlu0 %4107, %v4078
      %v4109 = vpop.permute.xlu0 %4108
      %v4111 = vmul.f32 %v4081, %v2783
      %v4112 = vmul.f32 %v4081, %v2784
      %v4113 = vmul.f32 %v4081, %v2785
      %v4114 = vmul.f32 %v4085, %v2786
      %v4115 = vmul.f32 %v4085, %v2787
      %v4116 = vmul.f32 %v4085, %v2788
      %v4117 = vmul.f32 %v4089, %v2789
      %v4118 = vmul.f32 %v4089, %v2790
      %v4119 = vmul.f32 %v4089, %v2791
      %v4120 = vmul.f32 %v4093, %v2792
      %v4121 = vmul.f32 %v4093, %v2793
      %v4122 = vmul.f32 %v4093, %v2794
      %v4123 = vmul.f32 %v4097, %v2795
      %v4124 = vmul.f32 %v4097, %v2796
      %v4125 = vmul.f32 %v4097, %v2797
      %v4126 = vmul.f32 %v4101, %v2798
      %v4127 = vmul.f32 %v4101, %v2799
      %v4128 = vmul.f32 %v4101, %v2800
      %v4129 = vmul.f32 %v4105, %v2801
      %v4130 = vmul.f32 %v4105, %v2802
      %v4131 = vmul.f32 %v4105, %v2803
      %v4132 = vmul.f32 %v4109, %v2804
      %v4133 = vmul.f32 %v4109, %v2805
      %v4134 = vmul.f32 %v4109, %v2806
      %v4159 = vrot.slane %v4111, 2
      %v4160 = vrot.slane %v4112, 2
      %v4161 = vsel %vm1440, %v4159, %v4160
      %v4162 = vrot.slane %v4113, 2
      %v4163 = vsel %vm1440, %v4160, %v4162
      %v4164 = vrot.slane %v4114, 2
      %v4165 = vrot.slane %v4115, 2
      %v4166 = vsel %vm1440, %v4164, %v4165
      %v4167 = vrot.slane %v4116, 2
      %v4168 = vsel %vm1440, %v4165, %v4167
      %v4169 = vrot.slane %v4117, 2
      %v4170 = vrot.slane %v4118, 2
      %v4171 = vsel %vm1440, %v4169, %v4170
      %v4172 = vrot.slane %v4119, 2
      %v4173 = vsel %vm1440, %v4170, %v4172
      %v4174 = vrot.slane %v4120, 2
      %v4175 = vrot.slane %v4121, 2
      %v4176 = vsel %vm1440, %v4174, %v4175
      %v4177 = vrot.slane %v4122, 2
      %v4178 = vsel %vm1440, %v4175, %v4177
      %v4179 = vrot.slane %v4123, 2
      %v4180 = vrot.slane %v4124, 2
      %v4181 = vsel %vm1440, %v4179, %v4180
      %v4182 = vrot.slane %v4125, 2
      %v4183 = vsel %vm1440, %v4180, %v4182
      %v4184 = vrot.slane %v4126, 2
      %v4185 = vrot.slane %v4127, 2
      %v4186 = vsel %vm1440, %v4184, %v4185
      %v4187 = vrot.slane %v4128, 2
      %v4188 = vsel %vm1440, %v4185, %v4187
      %v4189 = vrot.slane %v4129, 2
      %v4190 = vrot.slane %v4130, 2
      %v4191 = vsel %vm1440, %v4189, %v4190
      %v4192 = vrot.slane %v4131, 2
      %v4193 = vsel %vm1440, %v4190, %v4192
      %v4194 = vrot.slane %v4132, 2
      %v4195 = vrot.slane %v4133, 2
      %v4196 = vsel %vm1440, %v4194, %v4195
      %v4197 = vrot.slane %v4134, 2
      %v4198 = vsel %vm1440, %v4195, %v4197
      %v4215 = vadd.f32 %v4023, %v4161
      %v4216 = vadd.f32 %v4024, %v4163
      %v4217 = vadd.f32 %v4025, %v4166
      %v4218 = vadd.f32 %v4026, %v4168
      %v4219 = vadd.f32 %v4027, %v4171
      %v4220 = vadd.f32 %v4028, %v4173
      %v4221 = vadd.f32 %v4029, %v4176
      %v4222 = vadd.f32 %v4030, %v4178
      %v4223 = vadd.f32 %v4031, %v4181
      %v4224 = vadd.f32 %v4032, %v4183
      %v4225 = vadd.f32 %v4033, %v4186
      %v4226 = vadd.f32 %v4034, %v4188
      %v4227 = vadd.f32 %v4035, %v4191
      %v4228 = vadd.f32 %v4036, %v4193
      %v4229 = vadd.f32 %v4037, %v4196
      %v4230 = vadd.f32 %v4038, %v4198
      %v4239 = vlaneseq
      %v4240 = vshrl.u32 %v4239, 7
      %v4241 = vsub.s32 0, %v4240
      %v4242 = vrot.slane %v2863, %v4241
      %v4243 = vlaneseq
      %v4244 = vshrl.u32 %v4243, 7
      %v4245 = vsub.s32 0, %v4244
      %v4246 = vrot.slane %v2864, %v4245
      %v4247 = vlaneseq
      %v4248 = vshrl.u32 %v4247, 7
      %v4249 = vsub.s32 0, %v4248
      %v4250 = vrot.slane %v2865, %v4249
      %v4251 = vlaneseq
      %v4252 = vshrl.u32 %v4251, 7
      %v4253 = vsub.s32 0, %v4252
      %v4254 = vrot.slane %v2866, %v4253
      %v4255 = vlaneseq
      %v4256 = vshrl.u32 %v4255, 7
      %v4257 = vsub.s32 0, %v4256
      %v4258 = vrot.slane %v2867, %v4257
      %v4259 = vlaneseq
      %v4260 = vshrl.u32 %v4259, 7
      %v4261 = vsub.s32 0, %v4260
      %v4262 = vrot.slane %v2868, %v4261
      %v4263 = vlaneseq
      %v4264 = vshrl.u32 %v4263, 7
      %v4265 = vsub.s32 0, %v4264
      %v4266 = vrot.slane %v2869, %v4265
      %v4267 = vlaneseq
      %v4268 = vshrl.u32 %v4267, 7
      %v4269 = vsub.s32 0, %v4268
      %v4270 = vrot.slane %v2870, %v4269
      %4271 = vset.pattern.permute.xlu0 0
      %4272 = vperm.xlu0 %4271, %v4242
      %v4273 = vpop.permute.xlu0 %4272
      %4275 = vset.pattern.permute.xlu0 0
      %4276 = vperm.xlu0 %4275, %v4246
      %v4277 = vpop.permute.xlu0 %4276
      %4279 = vset.pattern.permute.xlu0 0
      %4280 = vperm.xlu0 %4279, %v4250
      %v4281 = vpop.permute.xlu0 %4280
      %4283 = vset.pattern.permute.xlu0 0
      %4284 = vperm.xlu0 %4283, %v4254
      %v4285 = vpop.permute.xlu0 %4284
      %4287 = vset.pattern.permute.xlu0 0
      %4288 = vperm.xlu0 %4287, %v4258
      %v4289 = vpop.permute.xlu0 %4288
      %4291 = vset.pattern.permute.xlu0 0
      %4292 = vperm.xlu0 %4291, %v4262
      %v4293 = vpop.permute.xlu0 %4292
      %4295 = vset.pattern.permute.xlu0 0
      %4296 = vperm.xlu0 %4295, %v4266
      %v4297 = vpop.permute.xlu0 %4296
      %4299 = vset.pattern.permute.xlu0 0
      %4300 = vperm.xlu0 %4299, %v4270
      %v4301 = vpop.permute.xlu0 %4300
      %v4303 = vmul.f32 %v4273, %v2783
      %v4304 = vmul.f32 %v4273, %v2784
      %v4305 = vmul.f32 %v4273, %v2785
      %v4306 = vmul.f32 %v4277, %v2786
      %v4307 = vmul.f32 %v4277, %v2787
      %v4308 = vmul.f32 %v4277, %v2788
      %v4309 = vmul.f32 %v4281, %v2789
      %v4310 = vmul.f32 %v4281, %v2790
      %v4311 = vmul.f32 %v4281, %v2791
      %v4312 = vmul.f32 %v4285, %v2792
      %v4313 = vmul.f32 %v4285, %v2793
      %v4314 = vmul.f32 %v4285, %v2794
      %v4315 = vmul.f32 %v4289, %v2795
      %v4316 = vmul.f32 %v4289, %v2796
      %v4317 = vmul.f32 %v4289, %v2797
      %v4318 = vmul.f32 %v4293, %v2798
      %v4319 = vmul.f32 %v4293, %v2799
      %v4320 = vmul.f32 %v4293, %v2800
      %v4321 = vmul.f32 %v4297, %v2801
      %v4322 = vmul.f32 %v4297, %v2802
      %v4323 = vmul.f32 %v4297, %v2803
      %v4324 = vmul.f32 %v4301, %v2804
      %v4325 = vmul.f32 %v4301, %v2805
      %v4326 = vmul.f32 %v4301, %v2806
      %v4351 = vrot.slane %v4303, 2
      %v4352 = vrot.slane %v4304, 2
      %v4353 = vsel %vm1440, %v4351, %v4352
      %v4354 = vrot.slane %v4305, 2
      %v4355 = vsel %vm1440, %v4352, %v4354
      %v4356 = vrot.slane %v4306, 2
      %v4357 = vrot.slane %v4307, 2
      %v4358 = vsel %vm1440, %v4356, %v4357
      %v4359 = vrot.slane %v4308, 2
      %v4360 = vsel %vm1440, %v4357, %v4359
      %v4361 = vrot.slane %v4309, 2
      %v4362 = vrot.slane %v4310, 2
      %v4363 = vsel %vm1440, %v4361, %v4362
      %v4364 = vrot.slane %v4311, 2
      %v4365 = vsel %vm1440, %v4362, %v4364
      %v4366 = vrot.slane %v4312, 2
      %v4367 = vrot.slane %v4313, 2
      %v4368 = vsel %vm1440, %v4366, %v4367
      %v4369 = vrot.slane %v4314, 2
      %v4370 = vsel %vm1440, %v4367, %v4369
      %v4371 = vrot.slane %v4315, 2
      %v4372 = vrot.slane %v4316, 2
      %v4373 = vsel %vm1440, %v4371, %v4372
      %v4374 = vrot.slane %v4317, 2
      %v4375 = vsel %vm1440, %v4372, %v4374
      %v4376 = vrot.slane %v4318, 2
      %v4377 = vrot.slane %v4319, 2
      %v4378 = vsel %vm1440, %v4376, %v4377
      %v4379 = vrot.slane %v4320, 2
      %v4380 = vsel %vm1440, %v4377, %v4379
      %v4381 = vrot.slane %v4321, 2
      %v4382 = vrot.slane %v4322, 2
      %v4383 = vsel %vm1440, %v4381, %v4382
      %v4384 = vrot.slane %v4323, 2
      %v4385 = vsel %vm1440, %v4382, %v4384
      %v4386 = vrot.slane %v4324, 2
      %v4387 = vrot.slane %v4325, 2
      %v4388 = vsel %vm1440, %v4386, %v4387
      %v4389 = vrot.slane %v4326, 2
      %v4390 = vsel %vm1440, %v4387, %v4389
      %4391 = vrot.lane.b32.xlu0 %v4353, 127
      %v4392 = vpop.permute.xlu0 %4391
      %4393 = vrot.lane.b32.xlu0 %v4355, 127
      %v4394 = vpop.permute.xlu0 %4393
      %4395 = vrot.lane.b32.xlu0 %v4358, 127
      %v4396 = vpop.permute.xlu0 %4395
      %4397 = vrot.lane.b32.xlu0 %v4360, 127
      %v4398 = vpop.permute.xlu0 %4397
      %4399 = vrot.lane.b32.xlu0 %v4363, 127
      %v4400 = vpop.permute.xlu0 %4399
      %4401 = vrot.lane.b32.xlu0 %v4365, 127
      %v4402 = vpop.permute.xlu0 %4401
      %4403 = vrot.lane.b32.xlu0 %v4368, 127
      %v4404 = vpop.permute.xlu0 %4403
      %4405 = vrot.lane.b32.xlu0 %v4370, 127
      %v4406 = vpop.permute.xlu0 %4405
      %4407 = vrot.lane.b32.xlu0 %v4373, 127
      %v4408 = vpop.permute.xlu0 %4407
      %4409 = vrot.lane.b32.xlu0 %v4375, 127
      %v4410 = vpop.permute.xlu0 %4409
      %4411 = vrot.lane.b32.xlu0 %v4378, 127
      %v4412 = vpop.permute.xlu0 %4411
      %4413 = vrot.lane.b32.xlu0 %v4380, 127
      %v4414 = vpop.permute.xlu0 %4413
      %4415 = vrot.lane.b32.xlu0 %v4383, 127
      %v4416 = vpop.permute.xlu0 %4415
      %4417 = vrot.lane.b32.xlu0 %v4385, 127
      %v4418 = vpop.permute.xlu0 %4417
      %4419 = vrot.lane.b32.xlu0 %v4388, 127
      %v4420 = vpop.permute.xlu0 %4419
      %4421 = vrot.lane.b32.xlu0 %v4390, 127
      %v4422 = vpop.permute.xlu0 %4421
      %v4439 = vadd.f32 %v4215, %v4392
      %v4440 = vadd.f32 %v4216, %v4394
      %v4441 = vadd.f32 %v4217, %v4396
      %v4442 = vadd.f32 %v4218, %v4398
      %v4443 = vadd.f32 %v4219, %v4400
      %v4444 = vadd.f32 %v4220, %v4402
      %v4445 = vadd.f32 %v4221, %v4404
      %v4446 = vadd.f32 %v4222, %v4406
      %v4447 = vadd.f32 %v4223, %v4408
      %v4448 = vadd.f32 %v4224, %v4410
      %v4449 = vadd.f32 %v4225, %v4412
      %v4450 = vadd.f32 %v4226, %v4414
      %v4451 = vadd.f32 %v4227, %v4416
      %v4452 = vadd.f32 %v4228, %v4418
      %v4453 = vadd.f32 %v4229, %v4420
      %v4454 = vadd.f32 %v4230, %v4422
      %v4463 = vlaneseq
      %v4464 = vshrl.u32 %v4463, 7
      %v4465 = vsub.s32 0, %v4464
      %v4466 = vrot.slane %v2871, %v4465
      %v4467 = vlaneseq
      %v4468 = vshrl.u32 %v4467, 7
      %v4469 = vsub.s32 0, %v4468
      %v4470 = vrot.slane %v2872, %v4469
      %v4471 = vlaneseq
      %v4472 = vshrl.u32 %v4471, 7
      %v4473 = vsub.s32 0, %v4472
      %v4474 = vrot.slane %v2873, %v4473
      %v4475 = vlaneseq
      %v4476 = vshrl.u32 %v4475, 7
      %v4477 = vsub.s32 0, %v4476
      %v4478 = vrot.slane %v2874, %v4477
      %v4479 = vlaneseq
      %v4480 = vshrl.u32 %v4479, 7
      %v4481 = vsub.s32 0, %v4480
      %v4482 = vrot.slane %v2875, %v4481
      %v4483 = vlaneseq
      %v4484 = vshrl.u32 %v4483, 7
      %v4485 = vsub.s32 0, %v4484
      %v4486 = vrot.slane %v2876, %v4485
      %v4487 = vlaneseq
      %v4488 = vshrl.u32 %v4487, 7
      %v4489 = vsub.s32 0, %v4488
      %v4490 = vrot.slane %v2877, %v4489
      %v4491 = vlaneseq
      %v4492 = vshrl.u32 %v4491, 7
      %v4493 = vsub.s32 0, %v4492
      %v4494 = vrot.slane %v2878, %v4493
      %4495 = vset.pattern.permute.xlu0 0
      %4496 = vperm.xlu0 %4495, %v4466
      %v4497 = vpop.permute.xlu0 %4496
      %4499 = vset.pattern.permute.xlu0 0
      %4500 = vperm.xlu0 %4499, %v4470
      %v4501 = vpop.permute.xlu0 %4500
      %4503 = vset.pattern.permute.xlu0 0
      %4504 = vperm.xlu0 %4503, %v4474
      %v4505 = vpop.permute.xlu0 %4504
      %4507 = vset.pattern.permute.xlu0 0
      %4508 = vperm.xlu0 %4507, %v4478
      %v4509 = vpop.permute.xlu0 %4508
      %4511 = vset.pattern.permute.xlu0 0
      %4512 = vperm.xlu0 %4511, %v4482
      %v4513 = vpop.permute.xlu0 %4512
      %4515 = vset.pattern.permute.xlu0 0
      %4516 = vperm.xlu0 %4515, %v4486
      %v4517 = vpop.permute.xlu0 %4516
      %4519 = vset.pattern.permute.xlu0 0
      %4520 = vperm.xlu0 %4519, %v4490
      %v4521 = vpop.permute.xlu0 %4520
      %4523 = vset.pattern.permute.xlu0 0
      %4524 = vperm.xlu0 %4523, %v4494
      %v4525 = vpop.permute.xlu0 %4524
      %v4527 = vmul.f32 %v4497, %v2783
      %v4528 = vmul.f32 %v4497, %v2784
      %v4529 = vmul.f32 %v4497, %v2785
      %v4530 = vmul.f32 %v4501, %v2786
      %v4531 = vmul.f32 %v4501, %v2787
      %v4532 = vmul.f32 %v4501, %v2788
      %v4533 = vmul.f32 %v4505, %v2789
      %v4534 = vmul.f32 %v4505, %v2790
      %v4535 = vmul.f32 %v4505, %v2791
      %v4536 = vmul.f32 %v4509, %v2792
      %v4537 = vmul.f32 %v4509, %v2793
      %v4538 = vmul.f32 %v4509, %v2794
      %v4539 = vmul.f32 %v4513, %v2795
      %v4540 = vmul.f32 %v4513, %v2796
      %v4541 = vmul.f32 %v4513, %v2797
      %v4542 = vmul.f32 %v4517, %v2798
      %v4543 = vmul.f32 %v4517, %v2799
      %v4544 = vmul.f32 %v4517, %v2800
      %v4545 = vmul.f32 %v4521, %v2801
      %v4546 = vmul.f32 %v4521, %v2802
      %v4547 = vmul.f32 %v4521, %v2803
      %v4548 = vmul.f32 %v4525, %v2804
      %v4549 = vmul.f32 %v4525, %v2805
      %v4550 = vmul.f32 %v4525, %v2806
      %v4575 = vrot.slane %v4527, 2
      %v4576 = vrot.slane %v4528, 2
      %v4577 = vsel %vm1440, %v4575, %v4576
      %v4578 = vrot.slane %v4529, 2
      %v4579 = vsel %vm1440, %v4576, %v4578
      %v4580 = vrot.slane %v4530, 2
      %v4581 = vrot.slane %v4531, 2
      %v4582 = vsel %vm1440, %v4580, %v4581
      %v4583 = vrot.slane %v4532, 2
      %v4584 = vsel %vm1440, %v4581, %v4583
      %v4585 = vrot.slane %v4533, 2
      %v4586 = vrot.slane %v4534, 2
      %v4587 = vsel %vm1440, %v4585, %v4586
      %v4588 = vrot.slane %v4535, 2
      %v4589 = vsel %vm1440, %v4586, %v4588
      %v4590 = vrot.slane %v4536, 2
      %v4591 = vrot.slane %v4537, 2
      %v4592 = vsel %vm1440, %v4590, %v4591
      %v4593 = vrot.slane %v4538, 2
      %v4594 = vsel %vm1440, %v4591, %v4593
      %v4595 = vrot.slane %v4539, 2
      %v4596 = vrot.slane %v4540, 2
      %v4597 = vsel %vm1440, %v4595, %v4596
      %v4598 = vrot.slane %v4541, 2
      %v4599 = vsel %vm1440, %v4596, %v4598
      %v4600 = vrot.slane %v4542, 2
      %v4601 = vrot.slane %v4543, 2
      %v4602 = vsel %vm1440, %v4600, %v4601
      %v4603 = vrot.slane %v4544, 2
      %v4604 = vsel %vm1440, %v4601, %v4603
      %v4605 = vrot.slane %v4545, 2
      %v4606 = vrot.slane %v4546, 2
      %v4607 = vsel %vm1440, %v4605, %v4606
      %v4608 = vrot.slane %v4547, 2
      %v4609 = vsel %vm1440, %v4606, %v4608
      %v4610 = vrot.slane %v4548, 2
      %v4611 = vrot.slane %v4549, 2
      %v4612 = vsel %vm1440, %v4610, %v4611
      %v4613 = vrot.slane %v4550, 2
      %v4614 = vsel %vm1440, %v4611, %v4613
      %4615 = vrot.lane.b32.xlu0 %v4577, 126
      %v4616 = vpop.permute.xlu0 %4615
      %4617 = vrot.lane.b32.xlu0 %v4579, 126
      %v4618 = vpop.permute.xlu0 %4617
      %4619 = vrot.lane.b32.xlu0 %v4582, 126
      %v4620 = vpop.permute.xlu0 %4619
      %4621 = vrot.lane.b32.xlu0 %v4584, 126
      %v4622 = vpop.permute.xlu0 %4621
      %4623 = vrot.lane.b32.xlu0 %v4587, 126
      %v4624 = vpop.permute.xlu0 %4623
      %4625 = vrot.lane.b32.xlu0 %v4589, 126
      %v4626 = vpop.permute.xlu0 %4625
      %4627 = vrot.lane.b32.xlu0 %v4592, 126
      %v4628 = vpop.permute.xlu0 %4627
      %4629 = vrot.lane.b32.xlu0 %v4594, 126
      %v4630 = vpop.permute.xlu0 %4629
      %4631 = vrot.lane.b32.xlu0 %v4597, 126
      %v4632 = vpop.permute.xlu0 %4631
      %4633 = vrot.lane.b32.xlu0 %v4599, 126
      %v4634 = vpop.permute.xlu0 %4633
      %4635 = vrot.lane.b32.xlu0 %v4602, 126
      %v4636 = vpop.permute.xlu0 %4635
      %4637 = vrot.lane.b32.xlu0 %v4604, 126
      %v4638 = vpop.permute.xlu0 %4637
      %4639 = vrot.lane.b32.xlu0 %v4607, 126
      %v4640 = vpop.permute.xlu0 %4639
      %4641 = vrot.lane.b32.xlu0 %v4609, 126
      %v4642 = vpop.permute.xlu0 %4641
      %4643 = vrot.lane.b32.xlu0 %v4612, 126
      %v4644 = vpop.permute.xlu0 %4643
      %4645 = vrot.lane.b32.xlu0 %v4614, 126
      %v4646 = vpop.permute.xlu0 %4645
      %v4663 = vadd.f32 %v4439, %v4616
      %v4664 = vadd.f32 %v4440, %v4618
      %v4665 = vadd.f32 %v4441, %v4620
      %v4666 = vadd.f32 %v4442, %v4622
      %v4667 = vadd.f32 %v4443, %v4624
      %v4668 = vadd.f32 %v4444, %v4626
      %v4669 = vadd.f32 %v4445, %v4628
      %v4670 = vadd.f32 %v4446, %v4630
      %v4671 = vadd.f32 %v4447, %v4632
      %v4672 = vadd.f32 %v4448, %v4634
      %v4673 = vadd.f32 %v4449, %v4636
      %v4674 = vadd.f32 %v4450, %v4638
      %v4675 = vadd.f32 %v4451, %v4640
      %v4676 = vadd.f32 %v4452, %v4642
      %v4677 = vadd.f32 %v4453, %v4644
      %v4678 = vadd.f32 %v4454, %v4646
      %v4679 = vmax.f32 %v4663, 0.0
      %v4680 = vmax.f32 %v4664, 0.0
      %v4681 = vmax.f32 %v4665, 0.0
      %v4682 = vmax.f32 %v4666, 0.0
      %v4683 = vmax.f32 %v4667, 0.0
      %v4684 = vmax.f32 %v4668, 0.0
      %v4685 = vmax.f32 %v4669, 0.0
      %v4686 = vmax.f32 %v4670, 0.0
      %v4687 = vmax.f32 %v4671, 0.0
      %v4688 = vmax.f32 %v4672, 0.0
      %v4689 = vmax.f32 %v4673, 0.0
      %v4690 = vmax.f32 %v4674, 0.0
      %v4691 = vmax.f32 %v4675, 0.0
      %v4692 = vmax.f32 %v4676, 0.0
      %v4693 = vmax.f32 %v4677, 0.0
      %v4694 = vmax.f32 %v4678, 0.0
      %v4695 = vld [vmem:[%s12] sm:$0x1]
      %v4696 = vld [vmem:[%s12 + $0x1] sm:$0x1]
      %v4697 = vld [vmem:[%s12 + $0x2] sm:$0x1]
      %v4698 = vld [vmem:[%s12 + $0x3] sm:$0x1]
      %v4699 = vld [vmem:[%s12 + $0x4] sm:$0x1]
      %v4700 = vld [vmem:[%s12 + $0x5] sm:$0x1]
      %v4701 = vld [vmem:[%s12 + $0x6] sm:$0x1]
      %v4702 = vld [vmem:[%s12 + $0x7] sm:$0x1]
      %v4703 = vld [vmem:[%s12 + $0x8] sm:$0x1]
      %v4704 = vld [vmem:[%s12 + $0x9] sm:$0x1]
      %v4705 = vld [vmem:[%s12 + $0xa] sm:$0x1]
      %v4706 = vld [vmem:[%s12 + $0xb] sm:$0x1]
      %v4707 = vld [vmem:[%s12 + $0xc] sm:$0x1]
      %v4708 = vld [vmem:[%s12 + $0xd] sm:$0x1]
      %v4709 = vld [vmem:[%s12 + $0xe] sm:$0x1]
      %v4710 = vld [vmem:[%s12 + $0xf] sm:$0x1]
      %v4711 = vld [vmem:[%s12 + $0x10] sm:$0x1]
      %v4712 = vld [vmem:[%s12 + $0x11] sm:$0x1]
      %v4713 = vld [vmem:[%s12 + $0x12] sm:$0x1]
      %v4714 = vld [vmem:[%s12 + $0x13] sm:$0x1]
      %v4715 = vld [vmem:[%s12 + $0x14] sm:$0x1]
      %v4716 = vld [vmem:[%s12 + $0x15] sm:$0x1]
      %v4717 = vld [vmem:[%s12 + $0x16] sm:$0x1]
      %v4718 = vld [vmem:[%s12 + $0x17] sm:$0x1]
      %v4719 = vld [vmem:[%s12 + $0x18] sm:$0x1]
      %v4720 = vld [vmem:[%s12 + $0x19] sm:$0x1]
      %v4721 = vld [vmem:[%s12 + $0x1a] sm:$0x1]
      %v4722 = vld [vmem:[%s12 + $0x1b] sm:$0x1]
      %v4723 = vld [vmem:[%s12 + $0x1c] sm:$0x1]
      %v4724 = vld [vmem:[%s12 + $0x1d] sm:$0x1]
      %v4725 = vld [vmem:[%s12 + $0x1e] sm:$0x1]
      %v4726 = vld [vmem:[%s12 + $0x1f] sm:$0x1]
      %v4727 = vld [vmem:[%s13] sm:$0x1]
      %v4728 = vld [vmem:[%s13 + $0x1] sm:$0x1]
      %v4729 = vld [vmem:[%s13 + $0x2] sm:$0x1]
      %v4730 = vld [vmem:[%s13 + $0x3] sm:$0x1]
      %v4735 = vlaneseq
      %v4736 = vshrl.u32 %v4735, 7
      %v4737 = vsub.s32 0, %v4736
      %v4738 = vrot.slane %v4727, %v4737
      %v4739 = vlaneseq
      %v4740 = vshrl.u32 %v4739, 7
      %v4741 = vsub.s32 0, %v4740
      %v4742 = vrot.slane %v4728, %v4741
      %v4743 = vlaneseq
      %v4744 = vshrl.u32 %v4743, 7
      %v4745 = vsub.s32 0, %v4744
      %v4746 = vrot.slane %v4729, %v4745
      %v4747 = vlaneseq
      %v4748 = vshrl.u32 %v4747, 7
      %v4749 = vsub.s32 0, %v4748
      %v4750 = vrot.slane %v4730, %v4749
      %4751 = vset.pattern.permute.xlu0 0
      %4752 = vperm.xlu0 %4751, %v4738
      %v4753 = vpop.permute.xlu0 %4752
      %4755 = vset.pattern.permute.xlu0 0
      %4756 = vperm.xlu0 %4755, %v4742
      %v4757 = vpop.permute.xlu0 %4756
      %4759 = vset.pattern.permute.xlu0 0
      %4760 = vperm.xlu0 %4759, %v4746
      %v4761 = vpop.permute.xlu0 %4760
      %4763 = vset.pattern.permute.xlu0 0
      %4764 = vperm.xlu0 %4763, %v4750
      %v4765 = vpop.permute.xlu0 %4764
      %v4771 = vlaneseq
      %v4772 = vshrl.u32 %v4771, 7
      %v4773 = vsub.s32 0, %v4772
      %v4774 = vrot.slane %v4695, %v4773
      %v4775 = vlaneseq
      %v4776 = vshrl.u32 %v4775, 7
      %v4777 = vsub.s32 0, %v4776
      %v4778 = vrot.slane %v4696, %v4777
      %v4779 = vlaneseq
      %v4780 = vshrl.u32 %v4779, 7
      %v4781 = vsub.s32 0, %v4780
      %v4782 = vrot.slane %v4697, %v4781
      %v4783 = vlaneseq
      %v4784 = vshrl.u32 %v4783, 7
      %v4785 = vsub.s32 0, %v4784
      %v4786 = vrot.slane %v4698, %v4785
      %4787 = vset.pattern.permute.xlu0 0
      %4788 = vperm.xlu0 %4787, %v4774
      %v4789 = vpop.permute.xlu0 %4788
      %4791 = vset.pattern.permute.xlu0 0
      %4792 = vperm.xlu0 %4791, %v4778
      %v4793 = vpop.permute.xlu0 %4792
      %4795 = vset.pattern.permute.xlu0 0
      %4796 = vperm.xlu0 %4795, %v4782
      %v4797 = vpop.permute.xlu0 %4796
      %4799 = vset.pattern.permute.xlu0 0
      %4800 = vperm.xlu0 %4799, %v4786
      %v4801 = vpop.permute.xlu0 %4800
      %v4803 = vmul.f32 %v4789, %v4679
      %v4804 = vmul.f32 %v4789, %v4680
      %v4805 = vmul.f32 %v4793, %v4679
      %v4806 = vmul.f32 %v4793, %v4680
      %v4807 = vmul.f32 %v4797, %v4679
      %v4808 = vmul.f32 %v4797, %v4680
      %v4809 = vmul.f32 %v4801, %v4679
      %v4810 = vmul.f32 %v4801, %v4680
      %v4811 = vadd.f32 %v4753, %v4803
      %v4812 = vadd.f32 %v4753, %v4804
      %v4813 = vadd.f32 %v4757, %v4805
      %v4814 = vadd.f32 %v4757, %v4806
      %v4815 = vadd.f32 %v4761, %v4807
      %v4816 = vadd.f32 %v4761, %v4808
      %v4817 = vadd.f32 %v4765, %v4809
      %v4818 = vadd.f32 %v4765, %v4810
      %v4823 = vlaneseq
      %v4824 = vshrl.u32 %v4823, 7
      %v4825 = vsub.s32 0, %v4824
      %v4826 = vrot.slane %v4699, %v4825
      %v4827 = vlaneseq
      %v4828 = vshrl.u32 %v4827, 7
      %v4829 = vsub.s32 0, %v4828
      %v4830 = vrot.slane %v4700, %v4829
      %v4831 = vlaneseq
      %v4832 = vshrl.u32 %v4831, 7
      %v4833 = vsub.s32 0, %v4832
      %v4834 = vrot.slane %v4701, %v4833
      %v4835 = vlaneseq
      %v4836 = vshrl.u32 %v4835, 7
      %v4837 = vsub.s32 0, %v4836
      %v4838 = vrot.slane %v4702, %v4837
      %4839 = vset.pattern.permute.xlu0 0
      %4840 = vperm.xlu0 %4839, %v4826
      %v4841 = vpop.permute.xlu0 %4840
      %4843 = vset.pattern.permute.xlu0 0
      %4844 = vperm.xlu0 %4843, %v4830
      %v4845 = vpop.permute.xlu0 %4844
      %4847 = vset.pattern.permute.xlu0 0
      %4848 = vperm.xlu0 %4847, %v4834
      %v4849 = vpop.permute.xlu0 %4848
      %4851 = vset.pattern.permute.xlu0 0
      %4852 = vperm.xlu0 %4851, %v4838
      %v4853 = vpop.permute.xlu0 %4852
      %v4855 = vmul.f32 %v4841, %v4681
      %v4856 = vmul.f32 %v4841, %v4682
      %v4857 = vmul.f32 %v4845, %v4681
      %v4858 = vmul.f32 %v4845, %v4682
      %v4859 = vmul.f32 %v4849, %v4681
      %v4860 = vmul.f32 %v4849, %v4682
      %v4861 = vmul.f32 %v4853, %v4681
      %v4862 = vmul.f32 %v4853, %v4682
      %v4863 = vadd.f32 %v4811, %v4855
      %v4864 = vadd.f32 %v4812, %v4856
      %v4865 = vadd.f32 %v4813, %v4857
      %v4866 = vadd.f32 %v4814, %v4858
      %v4867 = vadd.f32 %v4815, %v4859
      %v4868 = vadd.f32 %v4816, %v4860
      %v4869 = vadd.f32 %v4817, %v4861
      %v4870 = vadd.f32 %v4818, %v4862
      %v4875 = vlaneseq
      %v4876 = vshrl.u32 %v4875, 7
      %v4877 = vsub.s32 0, %v4876
      %v4878 = vrot.slane %v4703, %v4877
      %v4879 = vlaneseq
      %v4880 = vshrl.u32 %v4879, 7
      %v4881 = vsub.s32 0, %v4880
      %v4882 = vrot.slane %v4704, %v4881
      %v4883 = vlaneseq
      %v4884 = vshrl.u32 %v4883, 7
      %v4885 = vsub.s32 0, %v4884
      %v4886 = vrot.slane %v4705, %v4885
      %v4887 = vlaneseq
      %v4888 = vshrl.u32 %v4887, 7
      %v4889 = vsub.s32 0, %v4888
      %v4890 = vrot.slane %v4706, %v4889
      %4891 = vset.pattern.permute.xlu0 0
      %4892 = vperm.xlu0 %4891, %v4878
      %v4893 = vpop.permute.xlu0 %4892
      %4895 = vset.pattern.permute.xlu0 0
      %4896 = vperm.xlu0 %4895, %v4882
      %v4897 = vpop.permute.xlu0 %4896
      %4899 = vset.pattern.permute.xlu0 0
      %4900 = vperm.xlu0 %4899, %v4886
      %v4901 = vpop.permute.xlu0 %4900
      %4903 = vset.pattern.permute.xlu0 0
      %4904 = vperm.xlu0 %4903, %v4890
      %v4905 = vpop.permute.xlu0 %4904
      %v4907 = vmul.f32 %v4893, %v4683
      %v4908 = vmul.f32 %v4893, %v4684
      %v4909 = vmul.f32 %v4897, %v4683
      %v4910 = vmul.f32 %v4897, %v4684
      %v4911 = vmul.f32 %v4901, %v4683
      %v4912 = vmul.f32 %v4901, %v4684
      %v4913 = vmul.f32 %v4905, %v4683
      %v4914 = vmul.f32 %v4905, %v4684
      %v4915 = vadd.f32 %v4863, %v4907
      %v4916 = vadd.f32 %v4864, %v4908
      %v4917 = vadd.f32 %v4865, %v4909
      %v4918 = vadd.f32 %v4866, %v4910
      %v4919 = vadd.f32 %v4867, %v4911
      %v4920 = vadd.f32 %v4868, %v4912
      %v4921 = vadd.f32 %v4869, %v4913
      %v4922 = vadd.f32 %v4870, %v4914
      %v4927 = vlaneseq
      %v4928 = vshrl.u32 %v4927, 7
      %v4929 = vsub.s32 0, %v4928
      %v4930 = vrot.slane %v4707, %v4929
      %v4931 = vlaneseq
      %v4932 = vshrl.u32 %v4931, 7
      %v4933 = vsub.s32 0, %v4932
      %v4934 = vrot.slane %v4708, %v4933
      %v4935 = vlaneseq
      %v4936 = vshrl.u32 %v4935, 7
      %v4937 = vsub.s32 0, %v4936
      %v4938 = vrot.slane %v4709, %v4937
      %v4939 = vlaneseq
      %v4940 = vshrl.u32 %v4939, 7
      %v4941 = vsub.s32 0, %v4940
      %v4942 = vrot.slane %v4710, %v4941
      %4943 = vset.pattern.permute.xlu0 0
      %4944 = vperm.xlu0 %4943, %v4930
      %v4945 = vpop.permute.xlu0 %4944
      %4947 = vset.pattern.permute.xlu0 0
      %4948 = vperm.xlu0 %4947, %v4934
      %v4949 = vpop.permute.xlu0 %4948
      %4951 = vset.pattern.permute.xlu0 0
      %4952 = vperm.xlu0 %4951, %v4938
      %v4953 = vpop.permute.xlu0 %4952
      %4955 = vset.pattern.permute.xlu0 0
      %4956 = vperm.xlu0 %4955, %v4942
      %v4957 = vpop.permute.xlu0 %4956
      %v4959 = vmul.f32 %v4945, %v4685
      %v4960 = vmul.f32 %v4945, %v4686
      %v4961 = vmul.f32 %v4949, %v4685
      %v4962 = vmul.f32 %v4949, %v4686
      %v4963 = vmul.f32 %v4953, %v4685
      %v4964 = vmul.f32 %v4953, %v4686
      %v4965 = vmul.f32 %v4957, %v4685
      %v4966 = vmul.f32 %v4957, %v4686
      %v4967 = vadd.f32 %v4915, %v4959
      %v4968 = vadd.f32 %v4916, %v4960
      %v4969 = vadd.f32 %v4917, %v4961
      %v4970 = vadd.f32 %v4918, %v4962
      %v4971 = vadd.f32 %v4919, %v4963
      %v4972 = vadd.f32 %v4920, %v4964
      %v4973 = vadd.f32 %v4921, %v4965
      %v4974 = vadd.f32 %v4922, %v4966
      %v4979 = vlaneseq
      %v4980 = vshrl.u32 %v4979, 7
      %v4981 = vsub.s32 0, %v4980
      %v4982 = vrot.slane %v4711, %v4981
      %v4983 = vlaneseq
      %v4984 = vshrl.u32 %v4983, 7
      %v4985 = vsub.s32 0, %v4984
      %v4986 = vrot.slane %v4712, %v4985
      %v4987 = vlaneseq
      %v4988 = vshrl.u32 %v4987, 7
      %v4989 = vsub.s32 0, %v4988
      %v4990 = vrot.slane %v4713, %v4989
      %v4991 = vlaneseq
      %v4992 = vshrl.u32 %v4991, 7
      %v4993 = vsub.s32 0, %v4992
      %v4994 = vrot.slane %v4714, %v4993
      %4995 = vset.pattern.permute.xlu0 0
      %4996 = vperm.xlu0 %4995, %v4982
      %v4997 = vpop.permute.xlu0 %4996
      %4999 = vset.pattern.permute.xlu0 0
      %5000 = vperm.xlu0 %4999, %v4986
      %v5001 = vpop.permute.xlu0 %5000
      %5003 = vset.pattern.permute.xlu0 0
      %5004 = vperm.xlu0 %5003, %v4990
      %v5005 = vpop.permute.xlu0 %5004
      %5007 = vset.pattern.permute.xlu0 0
      %5008 = vperm.xlu0 %5007, %v4994
      %v5009 = vpop.permute.xlu0 %5008
      %v5011 = vmul.f32 %v4997, %v4687
      %v5012 = vmul.f32 %v4997, %v4688
      %v5013 = vmul.f32 %v5001, %v4687
      %v5014 = vmul.f32 %v5001, %v4688
      %v5015 = vmul.f32 %v5005, %v4687
      %v5016 = vmul.f32 %v5005, %v4688
      %v5017 = vmul.f32 %v5009, %v4687
      %v5018 = vmul.f32 %v5009, %v4688
      %v5019 = vadd.f32 %v4967, %v5011
      %v5020 = vadd.f32 %v4968, %v5012
      %v5021 = vadd.f32 %v4969, %v5013
      %v5022 = vadd.f32 %v4970, %v5014
      %v5023 = vadd.f32 %v4971, %v5015
      %v5024 = vadd.f32 %v4972, %v5016
      %v5025 = vadd.f32 %v4973, %v5017
      %v5026 = vadd.f32 %v4974, %v5018
      %v5031 = vlaneseq
      %v5032 = vshrl.u32 %v5031, 7
      %v5033 = vsub.s32 0, %v5032
      %v5034 = vrot.slane %v4715, %v5033
      %v5035 = vlaneseq
      %v5036 = vshrl.u32 %v5035, 7
      %v5037 = vsub.s32 0, %v5036
      %v5038 = vrot.slane %v4716, %v5037
      %v5039 = vlaneseq
      %v5040 = vshrl.u32 %v5039, 7
      %v5041 = vsub.s32 0, %v5040
      %v5042 = vrot.slane %v4717, %v5041
      %v5043 = vlaneseq
      %v5044 = vshrl.u32 %v5043, 7
      %v5045 = vsub.s32 0, %v5044
      %v5046 = vrot.slane %v4718, %v5045
      %5047 = vset.pattern.permute.xlu0 0
      %5048 = vperm.xlu0 %5047, %v5034
      %v5049 = vpop.permute.xlu0 %5048
      %5051 = vset.pattern.permute.xlu0 0
      %5052 = vperm.xlu0 %5051, %v5038
      %v5053 = vpop.permute.xlu0 %5052
      %5055 = vset.pattern.permute.xlu0 0
      %5056 = vperm.xlu0 %5055, %v5042
      %v5057 = vpop.permute.xlu0 %5056
      %5059 = vset.pattern.permute.xlu0 0
      %5060 = vperm.xlu0 %5059, %v5046
      %v5061 = vpop.permute.xlu0 %5060
      %v5063 = vmul.f32 %v5049, %v4689
      %v5064 = vmul.f32 %v5049, %v4690
      %v5065 = vmul.f32 %v5053, %v4689
      %v5066 = vmul.f32 %v5053, %v4690
      %v5067 = vmul.f32 %v5057, %v4689
      %v5068 = vmul.f32 %v5057, %v4690
      %v5069 = vmul.f32 %v5061, %v4689
      %v5070 = vmul.f32 %v5061, %v4690
      %v5071 = vadd.f32 %v5019, %v5063
      %v5072 = vadd.f32 %v5020, %v5064
      %v5073 = vadd.f32 %v5021, %v5065
      %v5074 = vadd.f32 %v5022, %v5066
      %v5075 = vadd.f32 %v5023, %v5067
      %v5076 = vadd.f32 %v5024, %v5068
      %v5077 = vadd.f32 %v5025, %v5069
      %v5078 = vadd.f32 %v5026, %v5070
      %v5083 = vlaneseq
      %v5084 = vshrl.u32 %v5083, 7
      %v5085 = vsub.s32 0, %v5084
      %v5086 = vrot.slane %v4719, %v5085
      %v5087 = vlaneseq
      %v5088 = vshrl.u32 %v5087, 7
      %v5089 = vsub.s32 0, %v5088
      %v5090 = vrot.slane %v4720, %v5089
      %v5091 = vlaneseq
      %v5092 = vshrl.u32 %v5091, 7
      %v5093 = vsub.s32 0, %v5092
      %v5094 = vrot.slane %v4721, %v5093
      %v5095 = vlaneseq
      %v5096 = vshrl.u32 %v5095, 7
      %v5097 = vsub.s32 0, %v5096
      %v5098 = vrot.slane %v4722, %v5097
      %5099 = vset.pattern.permute.xlu0 0
      %5100 = vperm.xlu0 %5099, %v5086
      %v5101 = vpop.permute.xlu0 %5100
      %5103 = vset.pattern.permute.xlu0 0
      %5104 = vperm.xlu0 %5103, %v5090
      %v5105 = vpop.permute.xlu0 %5104
      %5107 = vset.pattern.permute.xlu0 0
      %5108 = vperm.xlu0 %5107, %v5094
      %v5109 = vpop.permute.xlu0 %5108
      %5111 = vset.pattern.permute.xlu0 0
      %5112 = vperm.xlu0 %5111, %v5098
      %v5113 = vpop.permute.xlu0 %5112
      %v5115 = vmul.f32 %v5101, %v4691
      %v5116 = vmul.f32 %v5101, %v4692
      %v5117 = vmul.f32 %v5105, %v4691
      %v5118 = vmul.f32 %v5105, %v4692
      %v5119 = vmul.f32 %v5109, %v4691
      %v5120 = vmul.f32 %v5109, %v4692
      %v5121 = vmul.f32 %v5113, %v4691
      %v5122 = vmul.f32 %v5113, %v4692
      %v5123 = vadd.f32 %v5071, %v5115
      %v5124 = vadd.f32 %v5072, %v5116
      %v5125 = vadd.f32 %v5073, %v5117
      %v5126 = vadd.f32 %v5074, %v5118
      %v5127 = vadd.f32 %v5075, %v5119
      %v5128 = vadd.f32 %v5076, %v5120
      %v5129 = vadd.f32 %v5077, %v5121
      %v5130 = vadd.f32 %v5078, %v5122
      %v5135 = vlaneseq
      %v5136 = vshrl.u32 %v5135, 7
      %v5137 = vsub.s32 0, %v5136
      %v5138 = vrot.slane %v4723, %v5137
      %v5139 = vlaneseq
      %v5140 = vshrl.u32 %v5139, 7
      %v5141 = vsub.s32 0, %v5140
      %v5142 = vrot.slane %v4724, %v5141
      %v5143 = vlaneseq
      %v5144 = vshrl.u32 %v5143, 7
      %v5145 = vsub.s32 0, %v5144
      %v5146 = vrot.slane %v4725, %v5145
      %v5147 = vlaneseq
      %v5148 = vshrl.u32 %v5147, 7
      %v5149 = vsub.s32 0, %v5148
      %v5150 = vrot.slane %v4726, %v5149
      %5151 = vset.pattern.permute.xlu0 0
      %5152 = vperm.xlu0 %5151, %v5138
      %v5153 = vpop.permute.xlu0 %5152
      %5155 = vset.pattern.permute.xlu0 0
      %5156 = vperm.xlu0 %5155, %v5142
      %v5157 = vpop.permute.xlu0 %5156
      %5159 = vset.pattern.permute.xlu0 0
      %5160 = vperm.xlu0 %5159, %v5146
      %v5161 = vpop.permute.xlu0 %5160
      %5163 = vset.pattern.permute.xlu0 0
      %5164 = vperm.xlu0 %5163, %v5150
      %v5165 = vpop.permute.xlu0 %5164
      %v5167 = vmul.f32 %v5153, %v4693
      %v5168 = vmul.f32 %v5153, %v4694
      %v5169 = vmul.f32 %v5157, %v4693
      %v5170 = vmul.f32 %v5157, %v4694
      %v5171 = vmul.f32 %v5161, %v4693
      %v5172 = vmul.f32 %v5161, %v4694
      %v5173 = vmul.f32 %v5165, %v4693
      %v5174 = vmul.f32 %v5165, %v4694
      %v5175 = vadd.f32 %v5123, %v5167
      %v5176 = vadd.f32 %v5124, %v5168
      %v5177 = vadd.f32 %v5125, %v5169
      %v5178 = vadd.f32 %v5126, %v5170
      %v5179 = vadd.f32 %v5127, %v5171
      %v5180 = vadd.f32 %v5128, %v5172
      %v5181 = vadd.f32 %v5129, %v5173
      %v5182 = vadd.f32 %v5130, %v5174
      %v5183 = vmul.f32 %v5175, 0.5
      %v5184 = vmul.f32 %v5176, 0.5
      %v5185 = vmul.f32 %v5177, 0.5
      %v5186 = vmul.f32 %v5178, 0.5
      %v5187 = vmul.f32 %v5179, 0.5
      %v5188 = vmul.f32 %v5180, 0.5
      %v5189 = vmul.f32 %v5181, 0.5
      %v5190 = vmul.f32 %v5182, 0.5
      %v5191 = vtanh.pop %v5183
      %v5192 = vtanh.pop %v5184
      %v5193 = vtanh.pop %v5185
      %v5194 = vtanh.pop %v5186
      %v5195 = vtanh.pop %v5187
      %v5196 = vtanh.pop %v5188
      %v5197 = vtanh.pop %v5189
      %v5198 = vtanh.pop %v5190
      %v5199 = vadd.f32 %v5191, 1.0
      %v5200 = vadd.f32 %v5192, 1.0
      %v5201 = vadd.f32 %v5193, 1.0
      %v5202 = vadd.f32 %v5194, 1.0
      %v5203 = vadd.f32 %v5195, 1.0
      %v5204 = vadd.f32 %v5196, 1.0
      %v5205 = vadd.f32 %v5197, 1.0
      %v5206 = vadd.f32 %v5198, 1.0
      %v5207 = vmul.f32 %v5199, 0.5
      %v5208 = vmul.f32 %v5200, 0.5
      %v5209 = vmul.f32 %v5201, 0.5
      %v5210 = vmul.f32 %v5202, 0.5
      %v5211 = vmul.f32 %v5203, 0.5
      %v5212 = vmul.f32 %v5204, 0.5
      %v5213 = vmul.f32 %v5205, 0.5
      %v5214 = vmul.f32 %v5206, 0.5
      %v5215 = vsel %vm1981, %v5207, 0.0
      %v5216 = vsel %vm1981, %v5209, 0.0
      %v5217 = vadd.f32 %v5215, %v5216
      %v5218 = vsel %vm1981, %v5211, 0.0
      %v5219 = vadd.f32 %v5217, %v5218
      %v5220 = vsel %vm1981, %v5213, 0.0
      %v5221 = vadd.f32 %v5219, %v5220
      %v5222 = vsel %vm1981, %v5208, 0.0
      %v5223 = vsel %vm1981, %v5210, 0.0
      %v5224 = vadd.f32 %v5222, %v5223
      %v5225 = vsel %vm1981, %v5212, 0.0
      %v5226 = vadd.f32 %v5224, %v5225
      %v5227 = vsel %vm1981, %v5214, 0.0
      %v5228 = vadd.f32 %v5226, %v5227
      %v5229 = vmul.f32 %v5221, %v1996
      %v5230 = vmul.f32 %v5228, %v1996
      %v5231 = vsel %vm1981, %v5207, -inf
      %v5232 = vsel %vm1981, %v5209, -inf
      %v5233 = vsel %vm1981, %v5211, -inf
      %v5234 = vmax.f32 %v5231, %v5233
      %v5235 = vsel %vm1981, %v5213, -inf
      %v5236 = vmax.f32 %v5232, %v5235
      %v5237 = vmax.f32 %v5234, %v5236
      %v5238 = vsel %vm1981, %v5208, -inf
      %v5239 = vsel %vm1981, %v5210, -inf
      %v5240 = vsel %vm1981, %v5212, -inf
      %v5241 = vmax.f32 %v5238, %v5240
      %v5242 = vsel %vm1981, %v5214, -inf
      %v5243 = vmax.f32 %v5239, %v5242
      %v5244 = vmax.f32 %v5241, %v5243
      %v5249 = vrot.slane %v5229, 7
      %v5250 = vrot.slane %v5230, 7
      %v5251 = vsel %vm664, %v5249, %v5250
      %v5252 = vrot.slane %v5237, 7
      %v5253 = vrot.slane %v5244, 7
      %v5254 = vsel %vm664, %v5252, %v5253
      %v5259 = vsel %vm664, 0.0, %v5249
      %v5260 = vsel %vm664, 0.0, %v5252
      %v5261 = vsel %vm664, %v5250, 0.0
      %v5262 = vsel %vm664, %v5253, 0.0
      %5267 = vrot.lane.b32.xlu0 %v5259, 1
      %v5268 = vpop.permute.xlu0 %5267
      %5269 = vrot.lane.b32.xlu0 %v5251, 1
      %v5270 = vpop.permute.xlu0 %5269
      %5271 = vrot.lane.b32.xlu0 %v5261, 1
      %v5272 = vpop.permute.xlu0 %5271
      %5273 = vrot.lane.b32.xlu0 %v5260, 1
      %v5274 = vpop.permute.xlu0 %5273
      %5275 = vrot.lane.b32.xlu0 %v5254, 1
      %v5276 = vpop.permute.xlu0 %5275
      %5277 = vrot.lane.b32.xlu0 %v5262, 1
      %v5278 = vpop.permute.xlu0 %5277
      %v5285 = vsel %vm737, 0.0, %v5268
      %v5286 = vsel %vm737, 0.0, %v5270
      %v5287 = vsel %vm737, 0.0, %v5272
      %v5288 = vsel %vm737, 0.0, %v5274
      %v5289 = vsel %vm737, 0.0, %v5276
      %v5290 = vsel %vm737, 0.0, %v5278
      %v5291 = vsel %vm750, %v5285, 0.0
      %v5292 = vsel %vm750, %v5286, 0.0
      %v5293 = vsel %vm750, %v5287, 0.0
      %v5294 = vsel %vm750, %v5288, 0.0
      %v5295 = vsel %vm750, %v5289, 0.0
      %v5296 = vsel %vm750, %v5290, 0.0
      %v5297 = vld [vmem:[%s14] sm:$0x1]
      %v5298 = vld [vmem:[%s14 + $0x1] sm:$0x1]
      %v5299 = vld [vmem:[%s14 + $0x2] sm:$0x1]
      %v5300 = vld [vmem:[%s14 + $0x3] sm:$0x1]
      %v5301 = vld [vmem:[%s14 + $0x4] sm:$0x1]
      %v5302 = vld [vmem:[%s14 + $0x5] sm:$0x1]
      %v5303 = vld [vmem:[%s14 + $0x6] sm:$0x1]
      %v5304 = vld [vmem:[%s14 + $0x7] sm:$0x1]
      %v5305 = vld [vmem:[%s14 + $0x8] sm:$0x1]
      %v5306 = vld [vmem:[%s14 + $0x9] sm:$0x1]
      %v5307 = vld [vmem:[%s14 + $0xa] sm:$0x1]
      %v5308 = vld [vmem:[%s14 + $0xb] sm:$0x1]
      %v5309 = vld [vmem:[%s14 + $0xc] sm:$0x1]
      %v5310 = vld [vmem:[%s14 + $0xd] sm:$0x1]
      %v5311 = vld [vmem:[%s14 + $0xe] sm:$0x1]
      %v5312 = vld [vmem:[%s14 + $0xf] sm:$0x1]
      %v5313 = vld [vmem:[%s14 + $0x10] sm:$0x1]
      %v5314 = vld [vmem:[%s14 + $0x11] sm:$0x1]
      %v5315 = vld [vmem:[%s15] sm:$0x1]
      %v5316 = vld [vmem:[%s15 + $0x1] sm:$0x1]
      %v5319 = vlaneseq
      %v5320 = vshrl.u32 %v5319, 7
      %v5321 = vsub.s32 0, %v5320
      %v5322 = vrot.slane %v5315, %v5321
      %v5323 = vlaneseq
      %v5324 = vshrl.u32 %v5323, 7
      %v5325 = vsub.s32 0, %v5324
      %v5326 = vrot.slane %v5316, %v5325
      %5327 = vset.pattern.permute.xlu0 0
      %5328 = vperm.xlu0 %5327, %v5322
      %v5329 = vpop.permute.xlu0 %5328
      %5331 = vset.pattern.permute.xlu0 0
      %5332 = vperm.xlu0 %5331, %v5326
      %v5333 = vpop.permute.xlu0 %5332
      %v5337 = vlaneseq
      %v5338 = vshrl.u32 %v5337, 7
      %v5339 = vsub.s32 0, %v5338
      %v5340 = vrot.slane %v5297, %v5339
      %v5341 = vlaneseq
      %v5342 = vshrl.u32 %v5341, 7
      %v5343 = vsub.s32 0, %v5342
      %v5344 = vrot.slane %v5298, %v5343
      %5345 = vset.pattern.permute.xlu0 0
      %5346 = vperm.xlu0 %5345, %v5340
      %v5347 = vpop.permute.xlu0 %5346
      %5349 = vset.pattern.permute.xlu0 0
      %5350 = vperm.xlu0 %5349, %v5344
      %v5351 = vpop.permute.xlu0 %5350
      %v5353 = vmul.f32 %v5347, %v5291
      %v5354 = vmul.f32 %v5347, %v5292
      %v5355 = vmul.f32 %v5351, %v5294
      %v5356 = vmul.f32 %v5351, %v5295
      %v5357 = vadd.f32 %v5329, %v5353
      %v5358 = vadd.f32 %v5329, %v5354
      %v5359 = vadd.f32 %v5333, %v5355
      %v5360 = vadd.f32 %v5333, %v5356
      %v5363 = vlaneseq
      %v5364 = vshrl.u32 %v5363, 7
      %v5365 = vsub.s32 0, %v5364
      %v5366 = vrot.slane %v5299, %v5365
      %v5367 = vlaneseq
      %v5368 = vshrl.u32 %v5367, 7
      %v5369 = vsub.s32 0, %v5368
      %v5370 = vrot.slane %v5300, %v5369
      %5371 = vset.pattern.permute.xlu0 0
      %5372 = vperm.xlu0 %5371, %v5366
      %v5373 = vpop.permute.xlu0 %5372
      %5375 = vset.pattern.permute.xlu0 0
      %5376 = vperm.xlu0 %5375, %v5370
      %v5377 = vpop.permute.xlu0 %5376
      %v5379 = vmul.f32 %v5373, %v5291
      %v5380 = vmul.f32 %v5373, %v5292
      %v5381 = vmul.f32 %v5377, %v5294
      %v5382 = vmul.f32 %v5377, %v5295
      %5387 = vrot.lane.b32.xlu0 %v5379, 127
      %v5388 = vpop.permute.xlu0 %5387
      %5389 = vrot.lane.b32.xlu0 %v5380, 127
      %v5390 = vpop.permute.xlu0 %5389
      %5391 = vrot.lane.b32.xlu0 %v5381, 127
      %v5392 = vpop.permute.xlu0 %5391
      %5393 = vrot.lane.b32.xlu0 %v5382, 127
      %v5394 = vpop.permute.xlu0 %5393
      %v5399 = vadd.f32 %v5357, %v5388
      %v5400 = vadd.f32 %v5358, %v5390
      %v5401 = vadd.f32 %v5359, %v5392
      %v5402 = vadd.f32 %v5360, %v5394
      %v5405 = vlaneseq
      %v5406 = vshrl.u32 %v5405, 7
      %v5407 = vsub.s32 0, %v5406
      %v5408 = vrot.slane %v5301, %v5407
      %v5409 = vlaneseq
      %v5410 = vshrl.u32 %v5409, 7
      %v5411 = vsub.s32 0, %v5410
      %v5412 = vrot.slane %v5302, %v5411
      %5413 = vset.pattern.permute.xlu0 0
      %5414 = vperm.xlu0 %5413, %v5408
      %v5415 = vpop.permute.xlu0 %5414
      %5417 = vset.pattern.permute.xlu0 0
      %5418 = vperm.xlu0 %5417, %v5412
      %v5419 = vpop.permute.xlu0 %5418
      %v5421 = vmul.f32 %v5415, %v5291
      %v5422 = vmul.f32 %v5415, %v5292
      %v5423 = vmul.f32 %v5419, %v5294
      %v5424 = vmul.f32 %v5419, %v5295
      %5429 = vrot.lane.b32.xlu0 %v5421, 126
      %v5430 = vpop.permute.xlu0 %5429
      %5431 = vrot.lane.b32.xlu0 %v5422, 126
      %v5432 = vpop.permute.xlu0 %5431
      %5433 = vrot.lane.b32.xlu0 %v5423, 126
      %v5434 = vpop.permute.xlu0 %5433
      %5435 = vrot.lane.b32.xlu0 %v5424, 126
      %v5436 = vpop.permute.xlu0 %5435
      %v5441 = vadd.f32 %v5399, %v5430
      %v5442 = vadd.f32 %v5400, %v5432
      %v5443 = vadd.f32 %v5401, %v5434
      %v5444 = vadd.f32 %v5402, %v5436
      %v5447 = vlaneseq
      %v5448 = vshrl.u32 %v5447, 7
      %v5449 = vsub.s32 0, %v5448
      %v5450 = vrot.slane %v5303, %v5449
      %v5451 = vlaneseq
      %v5452 = vshrl.u32 %v5451, 7
      %v5453 = vsub.s32 0, %v5452
      %v5454 = vrot.slane %v5304, %v5453
      %5455 = vset.pattern.permute.xlu0 0
      %5456 = vperm.xlu0 %5455, %v5450
      %v5457 = vpop.permute.xlu0 %5456
      %5459 = vset.pattern.permute.xlu0 0
      %5460 = vperm.xlu0 %5459, %v5454
      %v5461 = vpop.permute.xlu0 %5460
      %v5463 = vmul.f32 %v5457, %v5291
      %v5464 = vmul.f32 %v5457, %v5292
      %v5465 = vmul.f32 %v5457, %v5293
      %v5466 = vmul.f32 %v5461, %v5294
      %v5467 = vmul.f32 %v5461, %v5295
      %v5468 = vmul.f32 %v5461, %v5296
      %v5475 = vrot.slane %v5463, 1
      %v5476 = vrot.slane %v5464, 1
      %v5477 = vsel %vm1119, %v5475, %v5476
      %v5478 = vrot.slane %v5465, 1
      %v5479 = vsel %vm1119, %v5476, %v5478
      %v5480 = vrot.slane %v5466, 1
      %v5481 = vrot.slane %v5467, 1
      %v5482 = vsel %vm1119, %v5480, %v5481
      %v5483 = vrot.slane %v5468, 1
      %v5484 = vsel %vm1119, %v5481, %v5483
      %v5489 = vadd.f32 %v5441, %v5477
      %v5490 = vadd.f32 %v5442, %v5479
      %v5491 = vadd.f32 %v5443, %v5482
      %v5492 = vadd.f32 %v5444, %v5484
      %v5495 = vlaneseq
      %v5496 = vshrl.u32 %v5495, 7
      %v5497 = vsub.s32 0, %v5496
      %v5498 = vrot.slane %v5305, %v5497
      %v5499 = vlaneseq
      %v5500 = vshrl.u32 %v5499, 7
      %v5501 = vsub.s32 0, %v5500
      %v5502 = vrot.slane %v5306, %v5501
      %5503 = vset.pattern.permute.xlu0 0
      %5504 = vperm.xlu0 %5503, %v5498
      %v5505 = vpop.permute.xlu0 %5504
      %5507 = vset.pattern.permute.xlu0 0
      %5508 = vperm.xlu0 %5507, %v5502
      %v5509 = vpop.permute.xlu0 %5508
      %v5511 = vmul.f32 %v5505, %v5291
      %v5512 = vmul.f32 %v5505, %v5292
      %v5513 = vmul.f32 %v5505, %v5293
      %v5514 = vmul.f32 %v5509, %v5294
      %v5515 = vmul.f32 %v5509, %v5295
      %v5516 = vmul.f32 %v5509, %v5296
      %v5523 = vrot.slane %v5511, 1
      %v5524 = vrot.slane %v5512, 1
      %v5525 = vsel %vm1119, %v5523, %v5524
      %v5526 = vrot.slane %v5513, 1
      %v5527 = vsel %vm1119, %v5524, %v5526
      %v5528 = vrot.slane %v5514, 1
      %v5529 = vrot.slane %v5515, 1
      %v5530 = vsel %vm1119, %v5528, %v5529
      %v5531 = vrot.slane %v5516, 1
      %v5532 = vsel %vm1119, %v5529, %v5531
      %5533 = vrot.lane.b32.xlu0 %v5525, 127
      %v5534 = vpop.permute.xlu0 %5533
      %5535 = vrot.lane.b32.xlu0 %v5527, 127
      %v5536 = vpop.permute.xlu0 %5535
      %5537 = vrot.lane.b32.xlu0 %v5530, 127
      %v5538 = vpop.permute.xlu0 %5537
      %5539 = vrot.lane.b32.xlu0 %v5532, 127
      %v5540 = vpop.permute.xlu0 %5539
      %v5545 = vadd.f32 %v5489, %v5534
      %v5546 = vadd.f32 %v5490, %v5536
      %v5547 = vadd.f32 %v5491, %v5538
      %v5548 = vadd.f32 %v5492, %v5540
      %v5551 = vlaneseq
      %v5552 = vshrl.u32 %v5551, 7
      %v5553 = vsub.s32 0, %v5552
      %v5554 = vrot.slane %v5307, %v5553
      %v5555 = vlaneseq
      %v5556 = vshrl.u32 %v5555, 7
      %v5557 = vsub.s32 0, %v5556
      %v5558 = vrot.slane %v5308, %v5557
      %5559 = vset.pattern.permute.xlu0 0
      %5560 = vperm.xlu0 %5559, %v5554
      %v5561 = vpop.permute.xlu0 %5560
      %5563 = vset.pattern.permute.xlu0 0
      %5564 = vperm.xlu0 %5563, %v5558
      %v5565 = vpop.permute.xlu0 %5564
      %v5567 = vmul.f32 %v5561, %v5291
      %v5568 = vmul.f32 %v5561, %v5292
      %v5569 = vmul.f32 %v5561, %v5293
      %v5570 = vmul.f32 %v5565, %v5294
      %v5571 = vmul.f32 %v5565, %v5295
      %v5572 = vmul.f32 %v5565, %v5296
      %v5579 = vrot.slane %v5567, 1
      %v5580 = vrot.slane %v5568, 1
      %v5581 = vsel %vm1119, %v5579, %v5580
      %v5582 = vrot.slane %v5569, 1
      %v5583 = vsel %vm1119, %v5580, %v5582
      %v5584 = vrot.slane %v5570, 1
      %v5585 = vrot.slane %v5571, 1
      %v5586 = vsel %vm1119, %v5584, %v5585
      %v5587 = vrot.slane %v5572, 1
      %v5588 = vsel %vm1119, %v5585, %v5587
      %5589 = vrot.lane.b32.xlu0 %v5581, 126
      %v5590 = vpop.permute.xlu0 %5589
      %5591 = vrot.lane.b32.xlu0 %v5583, 126
      %v5592 = vpop.permute.xlu0 %5591
      %5593 = vrot.lane.b32.xlu0 %v5586, 126
      %v5594 = vpop.permute.xlu0 %5593
      %5595 = vrot.lane.b32.xlu0 %v5588, 126
      %v5596 = vpop.permute.xlu0 %5595
      %v5601 = vadd.f32 %v5545, %v5590
      %v5602 = vadd.f32 %v5546, %v5592
      %v5603 = vadd.f32 %v5547, %v5594
      %v5604 = vadd.f32 %v5548, %v5596
      %v5607 = vlaneseq
      %v5608 = vshrl.u32 %v5607, 7
      %v5609 = vsub.s32 0, %v5608
      %v5610 = vrot.slane %v5309, %v5609
      %v5611 = vlaneseq
      %v5612 = vshrl.u32 %v5611, 7
      %v5613 = vsub.s32 0, %v5612
      %v5614 = vrot.slane %v5310, %v5613
      %5615 = vset.pattern.permute.xlu0 0
      %5616 = vperm.xlu0 %5615, %v5610
      %v5617 = vpop.permute.xlu0 %5616
      %5619 = vset.pattern.permute.xlu0 0
      %5620 = vperm.xlu0 %5619, %v5614
      %v5621 = vpop.permute.xlu0 %5620
      %v5623 = vmul.f32 %v5617, %v5291
      %v5624 = vmul.f32 %v5617, %v5292
      %v5625 = vmul.f32 %v5617, %v5293
      %v5626 = vmul.f32 %v5621, %v5294
      %v5627 = vmul.f32 %v5621, %v5295
      %v5628 = vmul.f32 %v5621, %v5296
      %v5635 = vrot.slane %v5623, 2
      %v5636 = vrot.slane %v5624, 2
      %v5637 = vsel %vm1440, %v5635, %v5636
      %v5638 = vrot.slane %v5625, 2
      %v5639 = vsel %vm1440, %v5636, %v5638
      %v5640 = vrot.slane %v5626, 2
      %v5641 = vrot.slane %v5627, 2
      %v5642 = vsel %vm1440, %v5640, %v5641
      %v5643 = vrot.slane %v5628, 2
      %v5644 = vsel %vm1440, %v5641, %v5643
      %v5649 = vadd.f32 %v5601, %v5637
      %v5650 = vadd.f32 %v5602, %v5639
      %v5651 = vadd.f32 %v5603, %v5642
      %v5652 = vadd.f32 %v5604, %v5644
      %v5655 = vlaneseq
      %v5656 = vshrl.u32 %v5655, 7
      %v5657 = vsub.s32 0, %v5656
      %v5658 = vrot.slane %v5311, %v5657
      %v5659 = vlaneseq
      %v5660 = vshrl.u32 %v5659, 7
      %v5661 = vsub.s32 0, %v5660
      %v5662 = vrot.slane %v5312, %v5661
      %5663 = vset.pattern.permute.xlu0 0
      %5664 = vperm.xlu0 %5663, %v5658
      %v5665 = vpop.permute.xlu0 %5664
      %5667 = vset.pattern.permute.xlu0 0
      %5668 = vperm.xlu0 %5667, %v5662
      %v5669 = vpop.permute.xlu0 %5668
      %v5671 = vmul.f32 %v5665, %v5291
      %v5672 = vmul.f32 %v5665, %v5292
      %v5673 = vmul.f32 %v5665, %v5293
      %v5674 = vmul.f32 %v5669, %v5294
      %v5675 = vmul.f32 %v5669, %v5295
      %v5676 = vmul.f32 %v5669, %v5296
      %v5683 = vrot.slane %v5671, 2
      %v5684 = vrot.slane %v5672, 2
      %v5685 = vsel %vm1440, %v5683, %v5684
      %v5686 = vrot.slane %v5673, 2
      %v5687 = vsel %vm1440, %v5684, %v5686
      %v5688 = vrot.slane %v5674, 2
      %v5689 = vrot.slane %v5675, 2
      %v5690 = vsel %vm1440, %v5688, %v5689
      %v5691 = vrot.slane %v5676, 2
      %v5692 = vsel %vm1440, %v5689, %v5691
      %5693 = vrot.lane.b32.xlu0 %v5685, 127
      %v5694 = vpop.permute.xlu0 %5693
      %5695 = vrot.lane.b32.xlu0 %v5687, 127
      %v5696 = vpop.permute.xlu0 %5695
      %5697 = vrot.lane.b32.xlu0 %v5690, 127
      %v5698 = vpop.permute.xlu0 %5697
      %5699 = vrot.lane.b32.xlu0 %v5692, 127
      %v5700 = vpop.permute.xlu0 %5699
      %v5705 = vadd.f32 %v5649, %v5694
      %v5706 = vadd.f32 %v5650, %v5696
      %v5707 = vadd.f32 %v5651, %v5698
      %v5708 = vadd.f32 %v5652, %v5700
      %v5711 = vlaneseq
      %v5712 = vshrl.u32 %v5711, 7
      %v5713 = vsub.s32 0, %v5712
      %v5714 = vrot.slane %v5313, %v5713
      %v5715 = vlaneseq
      %v5716 = vshrl.u32 %v5715, 7
      %v5717 = vsub.s32 0, %v5716
      %v5718 = vrot.slane %v5314, %v5717
      %5719 = vset.pattern.permute.xlu0 0
      %5720 = vperm.xlu0 %5719, %v5714
      %v5721 = vpop.permute.xlu0 %5720
      %5723 = vset.pattern.permute.xlu0 0
      %5724 = vperm.xlu0 %5723, %v5718
      %v5725 = vpop.permute.xlu0 %5724
      %v5727 = vmul.f32 %v5721, %v5291
      %v5728 = vmul.f32 %v5721, %v5292
      %v5729 = vmul.f32 %v5721, %v5293
      %v5730 = vmul.f32 %v5725, %v5294
      %v5731 = vmul.f32 %v5725, %v5295
      %v5732 = vmul.f32 %v5725, %v5296
      %v5739 = vrot.slane %v5727, 2
      %v5740 = vrot.slane %v5728, 2
      %v5741 = vsel %vm1440, %v5739, %v5740
      %v5742 = vrot.slane %v5729, 2
      %v5743 = vsel %vm1440, %v5740, %v5742
      %v5744 = vrot.slane %v5730, 2
      %v5745 = vrot.slane %v5731, 2
      %v5746 = vsel %vm1440, %v5744, %v5745
      %v5747 = vrot.slane %v5732, 2
      %v5748 = vsel %vm1440, %v5745, %v5747
      %5749 = vrot.lane.b32.xlu0 %v5741, 126
      %v5750 = vpop.permute.xlu0 %5749
      %5751 = vrot.lane.b32.xlu0 %v5743, 126
      %v5752 = vpop.permute.xlu0 %5751
      %5753 = vrot.lane.b32.xlu0 %v5746, 126
      %v5754 = vpop.permute.xlu0 %5753
      %5755 = vrot.lane.b32.xlu0 %v5748, 126
      %v5756 = vpop.permute.xlu0 %5755
      %v5761 = vadd.f32 %v5705, %v5750
      %v5762 = vadd.f32 %v5706, %v5752
      %v5763 = vadd.f32 %v5707, %v5754
      %v5764 = vadd.f32 %v5708, %v5756
      %v5765 = vmax.f32 %v5761, 0.0
      %v5766 = vmax.f32 %v5762, 0.0
      %v5767 = vmax.f32 %v5763, 0.0
      %v5768 = vmax.f32 %v5764, 0.0
      %v5769 = vld [vmem:[%s16] sm:$0x1]
      %v5770 = vld [vmem:[%s16 + $0x1] sm:$0x1]
      %v5771 = vld [vmem:[#allocation3] sm:$0x1]
      %v5773 = vlaneseq
      %v5774 = vshrl.u32 %v5773, 7
      %v5775 = vsub.s32 0, %v5774
      %v5776 = vrot.slane %v5771, %v5775
      %5777 = vset.pattern.permute.xlu0 0
      %5778 = vperm.xlu0 %5777, %v5776
      %v5779 = vpop.permute.xlu0 %5778
      %v5782 = vlaneseq
      %v5783 = vshrl.u32 %v5782, 7
      %v5784 = vsub.s32 0, %v5783
      %v5785 = vrot.slane %v5769, %v5784
      %5786 = vset.pattern.permute.xlu0 0
      %5787 = vperm.xlu0 %5786, %v5785
      %v5788 = vpop.permute.xlu0 %5787
      %v5790 = vmul.f32 %v5788, %v5765
      %v5791 = vmul.f32 %v5788, %v5766
      %v5792 = vadd.f32 %v5779, %v5790
      %v5793 = vadd.f32 %v5779, %v5791
      %v5795 = vlaneseq
      %v5796 = vshrl.u32 %v5795, 7
      %v5797 = vsub.s32 0, %v5796
      %v5798 = vrot.slane %v5770, %v5797
      %5799 = vset.pattern.permute.xlu0 0
      %5800 = vperm.xlu0 %5799, %v5798
      %v5801 = vpop.permute.xlu0 %5800
      %v5803 = vmul.f32 %v5801, %v5767
      %v5804 = vmul.f32 %v5801, %v5768
      %v5805 = vadd.f32 %v5792, %v5803
      %v5806 = vadd.f32 %v5793, %v5804
      %v5807 = vmul.f32 %v5805, 0.5
      %v5808 = vmul.f32 %v5806, 0.5
      %v5809 = vtanh.pop %v5807
      %v5810 = vtanh.pop %v5808
      %v5811 = vadd.f32 %v5809, 1.0
      %v5812 = vadd.f32 %v5810, 1.0
      %v5813 = vmul.f32 %v5811, 0.5
      %v5814 = vmul.f32 %v5812, 0.5
      %v5815 = vmul.f32 %v5207, %v5813
      %v5816 = vmul.f32 %v5208, %v5814
      %v5817 = vmul.f32 %v5209, %v5813
      %v5818 = vmul.f32 %v5210, %v5814
      %v5819 = vmul.f32 %v5211, %v5813
      %v5820 = vmul.f32 %v5212, %v5814
      %v5821 = vmul.f32 %v5213, %v5813
      %v5822 = vmul.f32 %v5214, %v5814
      %v5823 = vmul.f32 %v5815, 6.2831855
      %v5824 = vmul.f32 %v5816, 6.2831855
      %v5825 = vmul.f32 %v5817, 6.2831855
      %v5826 = vmul.f32 %v5818, 6.2831855
      %v5827 = vmul.f32 %v5819, 6.2831855
      %v5828 = vmul.f32 %v5820, 6.2831855
      %v5829 = vmul.f32 %v5821, 6.2831855
      %v5830 = vmul.f32 %v5822, 6.2831855
      %v5831 = vsub.f32 %v5823, 3.1415927
      %v5832 = vsub.f32 %v5824, 3.1415927
      %v5833 = vsub.f32 %v5825, 3.1415927
      %v5834 = vsub.f32 %v5826, 3.1415927
      %v5835 = vsub.f32 %v5827, 3.1415927
      %v5836 = vsub.f32 %v5828, 3.1415927
      %v5837 = vsub.f32 %v5829, 3.1415927
      %v5838 = vsub.f32 %v5830, 3.1415927
      %v5839 = vand.u32 2147483647, %v5831
      %vm5840 = vcmp.le.f32.partialorder %v5839, 0.7853982
      %vm5841 = vcmp.lt.s32.totalorder %v5831, 0
      %v5842 = vand.u32 %v5831, 2139095040
      %v5843 = vshrl.u32 %v5842, 23
      %v5844 = vsub.s32 %v5843, 127
      %v5845 = vand.u32 2147483647, %v5831
      %v5846 = vand.u32 %v5845, 8388607
      %v5847 = vor.u32 %v5846, 8388608
      %v5848 = vsub.s32 0, %v5847
      %v5849 = vadd.s32 %v5844, 1
      %vm5850 = vcmp.gt.s32.totalorder %v5849, 0
      %v5851 = vsel %vm5850, %v5849, 0
      %v5852 = vshrl.u32 %v5851, 5
      %v5853 = vand.u32 %v5851, 31
      %v5854 = vsub.s32 32, %v5853
      %v5855 = vshrl.u32 683565275, %v5854
      %v5856 = vshll.u32 683565275, %v5853
      %v5857 = vshrl.u32 2475754826, %v5854
      %v5858 = vor.u32 %v5856, %v5857
      %v5859 = vshll.u32 2475754826, %v5853
      %v5860 = vshrl.u32 2131351028, %v5854
      %v5861 = vor.u32 %v5859, %v5860
      %v5862 = vshll.u32 2131351028, %v5853
      %v5863 = vshrl.u32 2102212464, %v5854
      %v5864 = vor.u32 %v5862, %v5863
      %v5865 = vshll.u32 2102212464, %v5853
      %v5866 = vshrl.u32 920167782, %v5854
      %v5867 = vor.u32 %v5865, %v5866
      %v5868 = vshll.u32 920167782, %v5853
      %v5869 = vshrl.u32 1326507024, %v5854
      %v5870 = vor.u32 %v5868, %v5869
      %vm5871 = vcmp.lt.s32.totalorder %v5852, 1
      %vm5872 = vcmp.lt.s32.totalorder %v5852, 2
      %vm5873 = vcmp.lt.s32.totalorder %v5852, 3
      %vm5874 = vcmp.lt.s32.totalorder %v5852, 4
      %v5875 = vsel %vm5871, %v5855, %v5858
      %v5876 = vsel %vm5874, %v5864, 2102212464
      %v5877 = vsel %vm5873, %v5861, %v5876
      %v5878 = vsel %vm5872, %v5875, %v5877
      %v5879 = vsel %vm5871, %v5858, %v5861
      %v5880 = vsel %vm5874, %v5867, 920167782
      %v5881 = vsel %vm5873, %v5864, %v5880
      %v5882 = vsel %vm5872, %v5879, %v5881
      %v5883 = vsel %vm5871, %v5861, %v5864
      %v5884 = vsel %vm5874, %v5870, 1326507024
      %v5885 = vsel %vm5873, %v5867, %v5884
      %v5886 = vsel %vm5872, %v5883, %v5885
      %v5887 = vshll.u32 %v5847, 8
      %v5888 = vmul.u32.u64.compose %v5887, %v5886
      %v5889 = vextract.low.u32 %v5888
      %v5890 = vextract.high.u32 %v5888
      %v5891 = vmul.u32.u64.compose %v5887, %v5882
      %v5892 = vextract.low.u32 %v5891
      %v5893 = vextract.high.u32 %v5891
      %v5894 = vmul.u32 %v5887, %v5878
      %v5895 = vadd.s32 %v5890, %v5892
      %vm5896 = vc.u32 %v5890, %v5892
      %v5897 = vadd.s32 %v5893, 1
      %v5898 = vsel %vm5896, %v5897, %v5893
      %v5899 = vadd.s32 %v5894, %v5898
      %v5900 = vadd.s32 %v5899, 536870912
      %v5901 = vshrl.u32 %v5900, 30
      %v5902 = vshll.u32 %v5901, 30
      %v5903 = vsub.s32 %v5899, %v5902
      %vm5904 = vcmp.lt.s32.totalorder %v5903, 0
      %v5905 = vsub.s32 0, %v5903
      %v5906 = vsel %vm5904, %v5905, %v5903
      %v5907 = vclz %v5906
      %v5908 = vsub.s32 %v5907, 2
      %vm5909 = vcmp.gt.s32.totalorder 0, %v5908
      %v5910 = vsel %vm5909, 0, %v5908
      %v5911 = vsub.s32 32, %v5910
      %v5912 = vshll.u32 %v5903, %v5910
      %v5913 = vshrl.u32 %v5895, %v5911
      %v5914 = vor.u32 %v5912, %v5913
      %v5915 = vsub.s32 4294967266, %v5910
      %v5916 = vadd.s32 %v5915, 127
      %v5917 = vshll.u32 %v5916, 23
      %v5918 = vor.u32 4788187, %v5917
      %v5919 = vand.u32 2147483647, %v5918
      %v5921 = vcvt.s32.f32 %v5914
      %v5922 = vmul.f32 %v5921, %v5919
      %v5923 = vxor.u32 %v5922, 2147483648
      %v5924 = vsel %vm5841, %v5923, %v5922
      %v5925 = vsub.s32 4, %v5901
      %v5926 = vsel %vm5841, %v5925, %v5901
      %v5927 = vsel %vm5840, %v5831, %v5924
      %v5928 = vsel %vm5840, 0, %v5926
      %v5929 = vcosq.f32.pop %v5927
      %v5930 = vsinq.f32.pop %v5927
      %vm5931 = vweird.f32 %v5831
      %v5932 = vand.u32 %v5928, 3
      %vm5933 = vcmp.lt.s32.totalorder %v5932, 2
      %vm5934 = vcmp.eq.s32.totalorder %v5932, 0
      %v5935 = vxor.u32 %v5930, 2147483648
      %v5936 = vsel %vm5934, %v5929, %v5935
      %vm5937 = vcmp.eq.s32.totalorder %v5932, 2
      %v5938 = vxor.u32 %v5929, 2147483648
      %v5939 = vsel %vm5937, %v5938, %v5930
      %v5940 = vsel %vm5933, %v5936, %v5939
      %v5941 = vsel %vm5931, nan, %v5940
      %v5942 = vand.u32 2147483647, %v5832
      %vm5943 = vcmp.le.f32.partialorder %v5942, 0.7853982
      %vm5944 = vcmp.lt.s32.totalorder %v5832, 0
      %v5945 = vand.u32 %v5832, 2139095040
      %v5946 = vshrl.u32 %v5945, 23
      %v5947 = vsub.s32 %v5946, 127
      %v5948 = vand.u32 2147483647, %v5832
      %v5949 = vand.u32 %v5948, 8388607
      %v5950 = vor.u32 %v5949, 8388608
      %v5951 = vsub.s32 0, %v5950
      %v5952 = vadd.s32 %v5947, 1
      %vm5953 = vcmp.gt.s32.totalorder %v5952, 0
      %v5954 = vsel %vm5953, %v5952, 0
      %v5955 = vshrl.u32 %v5954, 5
      %v5956 = vand.u32 %v5954, 31
      %v5957 = vsub.s32 32, %v5956
      %v5958 = vshrl.u32 683565275, %v5957
      %v5959 = vshll.u32 683565275, %v5956
      %v5960 = vshrl.u32 2475754826, %v5957
      %v5961 = vor.u32 %v5959, %v5960
      %v5962 = vshll.u32 2475754826, %v5956
      %v5963 = vshrl.u32 2131351028, %v5957
      %v5964 = vor.u32 %v5962, %v5963
      %v5965 = vshll.u32 2131351028, %v5956
      %v5966 = vshrl.u32 2102212464, %v5957
      %v5967 = vor.u32 %v5965, %v5966
      %v5968 = vshll.u32 2102212464, %v5956
      %v5969 = vshrl.u32 920167782, %v5957
      %v5970 = vor.u32 %v5968, %v5969
      %v5971 = vshll.u32 920167782, %v5956
      %v5972 = vshrl.u32 1326507024, %v5957
      %v5973 = vor.u32 %v5971, %v5972
      %vm5974 = vcmp.lt.s32.totalorder %v5955, 1
      %vm5975 = vcmp.lt.s32.totalorder %v5955, 2
      %vm5976 = vcmp.lt.s32.totalorder %v5955, 3
      %vm5977 = vcmp.lt.s32.totalorder %v5955, 4
      %v5978 = vsel %vm5974, %v5958, %v5961
      %v5979 = vsel %vm5977, %v5967, 2102212464
      %v5980 = vsel %vm5976, %v5964, %v5979
      %v5981 = vsel %vm5975, %v5978, %v5980
      %v5982 = vsel %vm5974, %v5961, %v5964
      %v5983 = vsel %vm5977, %v5970, 920167782
      %v5984 = vsel %vm5976, %v5967, %v5983
      %v5985 = vsel %vm5975, %v5982, %v5984
      %v5986 = vsel %vm5974, %v5964, %v5967
      %v5987 = vsel %vm5977, %v5973, 1326507024
      %v5988 = vsel %vm5976, %v5970, %v5987
      %v5989 = vsel %vm5975, %v5986, %v5988
      %v5990 = vshll.u32 %v5950, 8
      %v5991 = vmul.u32.u64.compose %v5990, %v5989
      %v5992 = vextract.low.u32 %v5991
      %v5993 = vextract.high.u32 %v5991
      %v5994 = vmul.u32.u64.compose %v5990, %v5985
      %v5995 = vextract.low.u32 %v5994
      %v5996 = vextract.high.u32 %v5994
      %v5997 = vmul.u32 %v5990, %v5981
      %v5998 = vadd.s32 %v5993, %v5995
      %vm5999 = vc.u32 %v5993, %v5995
      %v6000 = vadd.s32 %v5996, 1
      %v6001 = vsel %vm5999, %v6000, %v5996
      %v6002 = vadd.s32 %v5997, %v6001
      %v6003 = vadd.s32 %v6002, 536870912
      %v6004 = vshrl.u32 %v6003, 30
      %v6005 = vshll.u32 %v6004, 30
      %v6006 = vsub.s32 %v6002, %v6005
      %vm6007 = vcmp.lt.s32.totalorder %v6006, 0
      %v6008 = vsub.s32 0, %v6006
      %v6009 = vsel %vm6007, %v6008, %v6006
      %v6010 = vclz %v6009
      %v6011 = vsub.s32 %v6010, 2
      %vm6012 = vcmp.gt.s32.totalorder 0, %v6011
      %v6013 = vsel %vm6012, 0, %v6011
      %v6014 = vsub.s32 32, %v6013
      %v6015 = vshll.u32 %v6006, %v6013
      %v6016 = vshrl.u32 %v5998, %v6014
      %v6017 = vor.u32 %v6015, %v6016
      %v6018 = vsub.s32 4294967266, %v6013
      %v6019 = vadd.s32 %v6018, 127
      %v6020 = vshll.u32 %v6019, 23
      %v6021 = vor.u32 4788187, %v6020
      %v6022 = vand.u32 2147483647, %v6021
      %v6024 = vcvt.s32.f32 %v6017
      %v6025 = vmul.f32 %v6024, %v6022
      %v6026 = vxor.u32 %v6025, 2147483648
      %v6027 = vsel %vm5944, %v6026, %v6025
      %v6028 = vsub.s32 4, %v6004
      %v6029 = vsel %vm5944, %v6028, %v6004
      %v6030 = vsel %vm5943, %v5832, %v6027
      %v6031 = vsel %vm5943, 0, %v6029
      %v6032 = vcosq.f32.pop %v6030
      %v6033 = vsinq.f32.pop %v6030
      %vm6034 = vweird.f32 %v5832
      %v6035 = vand.u32 %v6031, 3
      %vm6036 = vcmp.lt.s32.totalorder %v6035, 2
      %vm6037 = vcmp.eq.s32.totalorder %v6035, 0
      %v6038 = vxor.u32 %v6033, 2147483648
      %v6039 = vsel %vm6037, %v6032, %v6038
      %vm6040 = vcmp.eq.s32.totalorder %v6035, 2
      %v6041 = vxor.u32 %v6032, 2147483648
      %v6042 = vsel %vm6040, %v6041, %v6033
      %v6043 = vsel %vm6036, %v6039, %v6042
      %v6044 = vsel %vm6034, nan, %v6043
      %v6045 = vand.u32 2147483647, %v5833
      %vm6046 = vcmp.le.f32.partialorder %v6045, 0.7853982
      %vm6047 = vcmp.lt.s32.totalorder %v5833, 0
      %v6048 = vand.u32 %v5833, 2139095040
      %v6049 = vshrl.u32 %v6048, 23
      %v6050 = vsub.s32 %v6049, 127
      %v6051 = vand.u32 2147483647, %v5833
      %v6052 = vand.u32 %v6051, 8388607
      %v6053 = vor.u32 %v6052, 8388608
      %v6054 = vsub.s32 0, %v6053
      %v6055 = vadd.s32 %v6050, 1
      %vm6056 = vcmp.gt.s32.totalorder %v6055, 0
      %v6057 = vsel %vm6056, %v6055, 0
      %v6058 = vshrl.u32 %v6057, 5
      %v6059 = vand.u32 %v6057, 31
      %v6060 = vsub.s32 32, %v6059
      %v6061 = vshrl.u32 683565275, %v6060
      %v6062 = vshll.u32 683565275, %v6059
      %v6063 = vshrl.u32 2475754826, %v6060
      %v6064 = vor.u32 %v6062, %v6063
      %v6065 = vshll.u32 2475754826, %v6059
      %v6066 = vshrl.u32 2131351028, %v6060
      %v6067 = vor.u32 %v6065, %v6066
      %v6068 = vshll.u32 2131351028, %v6059
      %v6069 = vshrl.u32 2102212464, %v6060
      %v6070 = vor.u32 %v6068, %v6069
      %v6071 = vshll.u32 2102212464, %v6059
      %v6072 = vshrl.u32 920167782, %v6060
      %v6073 = vor.u32 %v6071, %v6072
      %v6074 = vshll.u32 920167782, %v6059
      %v6075 = vshrl.u32 1326507024, %v6060
      %v6076 = vor.u32 %v6074, %v6075
      %vm6077 = vcmp.lt.s32.totalorder %v6058, 1
      %vm6078 = vcmp.lt.s32.totalorder %v6058, 2
      %vm6079 = vcmp.lt.s32.totalorder %v6058, 3
      %vm6080 = vcmp.lt.s32.totalorder %v6058, 4
      %v6081 = vsel %vm6077, %v6061, %v6064
      %v6082 = vsel %vm6080, %v6070, 2102212464
      %v6083 = vsel %vm6079, %v6067, %v6082
      %v6084 = vsel %vm6078, %v6081, %v6083
      %v6085 = vsel %vm6077, %v6064, %v6067
      %v6086 = vsel %vm6080, %v6073, 920167782
      %v6087 = vsel %vm6079, %v6070, %v6086
      %v6088 = vsel %vm6078, %v6085, %v6087
      %v6089 = vsel %vm6077, %v6067, %v6070
      %v6090 = vsel %vm6080, %v6076, 1326507024
      %v6091 = vsel %vm6079, %v6073, %v6090
      %v6092 = vsel %vm6078, %v6089, %v6091
      %v6093 = vshll.u32 %v6053, 8
      %v6094 = vmul.u32.u64.compose %v6093, %v6092
      %v6095 = vextract.low.u32 %v6094
      %v6096 = vextract.high.u32 %v6094
      %v6097 = vmul.u32.u64.compose %v6093, %v6088
      %v6098 = vextract.low.u32 %v6097
      %v6099 = vextract.high.u32 %v6097
      %v6100 = vmul.u32 %v6093, %v6084
      %v6101 = vadd.s32 %v6096, %v6098
      %vm6102 = vc.u32 %v6096, %v6098
      %v6103 = vadd.s32 %v6099, 1
      %v6104 = vsel %vm6102, %v6103, %v6099
      %v6105 = vadd.s32 %v6100, %v6104
      %v6106 = vadd.s32 %v6105, 536870912
      %v6107 = vshrl.u32 %v6106, 30
      %v6108 = vshll.u32 %v6107, 30
      %v6109 = vsub.s32 %v6105, %v6108
      %vm6110 = vcmp.lt.s32.totalorder %v6109, 0
      %v6111 = vsub.s32 0, %v6109
      %v6112 = vsel %vm6110, %v6111, %v6109
      %v6113 = vclz %v6112
      %v6114 = vsub.s32 %v6113, 2
      %vm6115 = vcmp.gt.s32.totalorder 0, %v6114
      %v6116 = vsel %vm6115, 0, %v6114
      %v6117 = vsub.s32 32, %v6116
      %v6118 = vshll.u32 %v6109, %v6116
      %v6119 = vshrl.u32 %v6101, %v6117
      %v6120 = vor.u32 %v6118, %v6119
      %v6121 = vsub.s32 4294967266, %v6116
      %v6122 = vadd.s32 %v6121, 127
      %v6123 = vshll.u32 %v6122, 23
      %v6124 = vor.u32 4788187, %v6123
      %v6125 = vand.u32 2147483647, %v6124
      %v6127 = vcvt.s32.f32 %v6120
      %v6128 = vmul.f32 %v6127, %v6125
      %v6129 = vxor.u32 %v6128, 2147483648
      %v6130 = vsel %vm6047, %v6129, %v6128
      %v6131 = vsub.s32 4, %v6107
      %v6132 = vsel %vm6047, %v6131, %v6107
      %v6133 = vsel %vm6046, %v5833, %v6130
      %v6134 = vsel %vm6046, 0, %v6132
      %v6135 = vcosq.f32.pop %v6133
      %v6136 = vsinq.f32.pop %v6133
      %vm6137 = vweird.f32 %v5833
      %v6138 = vand.u32 %v6134, 3
      %vm6139 = vcmp.lt.s32.totalorder %v6138, 2
      %vm6140 = vcmp.eq.s32.totalorder %v6138, 0
      %v6141 = vxor.u32 %v6136, 2147483648
      %v6142 = vsel %vm6140, %v6135, %v6141
      %vm6143 = vcmp.eq.s32.totalorder %v6138, 2
      %v6144 = vxor.u32 %v6135, 2147483648
      %v6145 = vsel %vm6143, %v6144, %v6136
      %v6146 = vsel %vm6139, %v6142, %v6145
      %v6147 = vsel %vm6137, nan, %v6146
      %v6148 = vand.u32 2147483647, %v5834
      %vm6149 = vcmp.le.f32.partialorder %v6148, 0.7853982
      %vm6150 = vcmp.lt.s32.totalorder %v5834, 0
      %v6151 = vand.u32 %v5834, 2139095040
      %v6152 = vshrl.u32 %v6151, 23
      %v6153 = vsub.s32 %v6152, 127
      %v6154 = vand.u32 2147483647, %v5834
      %v6155 = vand.u32 %v6154, 8388607
      %v6156 = vor.u32 %v6155, 8388608
      %v6157 = vsub.s32 0, %v6156
      %v6158 = vadd.s32 %v6153, 1
      %vm6159 = vcmp.gt.s32.totalorder %v6158, 0
      %v6160 = vsel %vm6159, %v6158, 0
      %v6161 = vshrl.u32 %v6160, 5
      %v6162 = vand.u32 %v6160, 31
      %v6163 = vsub.s32 32, %v6162
      %v6164 = vshrl.u32 683565275, %v6163
      %v6165 = vshll.u32 683565275, %v6162
      %v6166 = vshrl.u32 2475754826, %v6163
      %v6167 = vor.u32 %v6165, %v6166
      %v6168 = vshll.u32 2475754826, %v6162
      %v6169 = vshrl.u32 2131351028, %v6163
      %v6170 = vor.u32 %v6168, %v6169
      %v6171 = vshll.u32 2131351028, %v6162
      %v6172 = vshrl.u32 2102212464, %v6163
      %v6173 = vor.u32 %v6171, %v6172
      %v6174 = vshll.u32 2102212464, %v6162
      %v6175 = vshrl.u32 920167782, %v6163
      %v6176 = vor.u32 %v6174, %v6175
      %v6177 = vshll.u32 920167782, %v6162
      %v6178 = vshrl.u32 1326507024, %v6163
      %v6179 = vor.u32 %v6177, %v6178
      %vm6180 = vcmp.lt.s32.totalorder %v6161, 1
      %vm6181 = vcmp.lt.s32.totalorder %v6161, 2
      %vm6182 = vcmp.lt.s32.totalorder %v6161, 3
      %vm6183 = vcmp.lt.s32.totalorder %v6161, 4
      %v6184 = vsel %vm6180, %v6164, %v6167
      %v6185 = vsel %vm6183, %v6173, 2102212464
      %v6186 = vsel %vm6182, %v6170, %v6185
      %v6187 = vsel %vm6181, %v6184, %v6186
      %v6188 = vsel %vm6180, %v6167, %v6170
      %v6189 = vsel %vm6183, %v6176, 920167782
      %v6190 = vsel %vm6182, %v6173, %v6189
      %v6191 = vsel %vm6181, %v6188, %v6190
      %v6192 = vsel %vm6180, %v6170, %v6173
      %v6193 = vsel %vm6183, %v6179, 1326507024
      %v6194 = vsel %vm6182, %v6176, %v6193
      %v6195 = vsel %vm6181, %v6192, %v6194
      %v6196 = vshll.u32 %v6156, 8
      %v6197 = vmul.u32.u64.compose %v6196, %v6195
      %v6198 = vextract.low.u32 %v6197
      %v6199 = vextract.high.u32 %v6197
      %v6200 = vmul.u32.u64.compose %v6196, %v6191
      %v6201 = vextract.low.u32 %v6200
      %v6202 = vextract.high.u32 %v6200
      %v6203 = vmul.u32 %v6196, %v6187
      %v6204 = vadd.s32 %v6199, %v6201
      %vm6205 = vc.u32 %v6199, %v6201
      %v6206 = vadd.s32 %v6202, 1
      %v6207 = vsel %vm6205, %v6206, %v6202
      %v6208 = vadd.s32 %v6203, %v6207
      %v6209 = vadd.s32 %v6208, 536870912
      %v6210 = vshrl.u32 %v6209, 30
      %v6211 = vshll.u32 %v6210, 30
      %v6212 = vsub.s32 %v6208, %v6211
      %vm6213 = vcmp.lt.s32.totalorder %v6212, 0
      %v6214 = vsub.s32 0, %v6212
      %v6215 = vsel %vm6213, %v6214, %v6212
      %v6216 = vclz %v6215
      %v6217 = vsub.s32 %v6216, 2
      %vm6218 = vcmp.gt.s32.totalorder 0, %v6217
      %v6219 = vsel %vm6218, 0, %v6217
      %v6220 = vsub.s32 32, %v6219
      %v6221 = vshll.u32 %v6212, %v6219
      %v6222 = vshrl.u32 %v6204, %v6220
      %v6223 = vor.u32 %v6221, %v6222
      %v6224 = vsub.s32 4294967266, %v6219
      %v6225 = vadd.s32 %v6224, 127
      %v6226 = vshll.u32 %v6225, 23
      %v6227 = vor.u32 4788187, %v6226
      %v6228 = vand.u32 2147483647, %v6227
      %v6230 = vcvt.s32.f32 %v6223
      %v6231 = vmul.f32 %v6230, %v6228
      %v6232 = vxor.u32 %v6231, 2147483648
      %v6233 = vsel %vm6150, %v6232, %v6231
      %v6234 = vsub.s32 4, %v6210
      %v6235 = vsel %vm6150, %v6234, %v6210
      %v6236 = vsel %vm6149, %v5834, %v6233
      %v6237 = vsel %vm6149, 0, %v6235
      %v6238 = vcosq.f32.pop %v6236
      %v6239 = vsinq.f32.pop %v6236
      %vm6240 = vweird.f32 %v5834
      %v6241 = vand.u32 %v6237, 3
      %vm6242 = vcmp.lt.s32.totalorder %v6241, 2
      %vm6243 = vcmp.eq.s32.totalorder %v6241, 0
      %v6244 = vxor.u32 %v6239, 2147483648
      %v6245 = vsel %vm6243, %v6238, %v6244
      %vm6246 = vcmp.eq.s32.totalorder %v6241, 2
      %v6247 = vxor.u32 %v6238, 2147483648
      %v6248 = vsel %vm6246, %v6247, %v6239
      %v6249 = vsel %vm6242, %v6245, %v6248
      %v6250 = vsel %vm6240, nan, %v6249
      %v6251 = vand.u32 2147483647, %v5835
      %vm6252 = vcmp.le.f32.partialorder %v6251, 0.7853982
      %vm6253 = vcmp.lt.s32.totalorder %v5835, 0
      %v6254 = vand.u32 %v5835, 2139095040
      %v6255 = vshrl.u32 %v6254, 23
      %v6256 = vsub.s32 %v6255, 127
      %v6257 = vand.u32 2147483647, %v5835
      %v6258 = vand.u32 %v6257, 8388607
      %v6259 = vor.u32 %v6258, 8388608
      %v6260 = vsub.s32 0, %v6259
      %v6261 = vadd.s32 %v6256, 1
      %vm6262 = vcmp.gt.s32.totalorder %v6261, 0
      %v6263 = vsel %vm6262, %v6261, 0
      %v6264 = vshrl.u32 %v6263, 5
      %v6265 = vand.u32 %v6263, 31
      %v6266 = vsub.s32 32, %v6265
      %v6267 = vshrl.u32 683565275, %v6266
      %v6268 = vshll.u32 683565275, %v6265
      %v6269 = vshrl.u32 2475754826, %v6266
      %v6270 = vor.u32 %v6268, %v6269
      %v6271 = vshll.u32 2475754826, %v6265
      %v6272 = vshrl.u32 2131351028, %v6266
      %v6273 = vor.u32 %v6271, %v6272
      %v6274 = vshll.u32 2131351028, %v6265
      %v6275 = vshrl.u32 2102212464, %v6266
      %v6276 = vor.u32 %v6274, %v6275
      %v6277 = vshll.u32 2102212464, %v6265
      %v6278 = vshrl.u32 920167782, %v6266
      %v6279 = vor.u32 %v6277, %v6278
      %v6280 = vshll.u32 920167782, %v6265
      %v6281 = vshrl.u32 1326507024, %v6266
      %v6282 = vor.u32 %v6280, %v6281
      %vm6283 = vcmp.lt.s32.totalorder %v6264, 1
      %vm6284 = vcmp.lt.s32.totalorder %v6264, 2
      %vm6285 = vcmp.lt.s32.totalorder %v6264, 3
      %vm6286 = vcmp.lt.s32.totalorder %v6264, 4
      %v6287 = vsel %vm6283, %v6267, %v6270
      %v6288 = vsel %vm6286, %v6276, 2102212464
      %v6289 = vsel %vm6285, %v6273, %v6288
      %v6290 = vsel %vm6284, %v6287, %v6289
      %v6291 = vsel %vm6283, %v6270, %v6273
      %v6292 = vsel %vm6286, %v6279, 920167782
      %v6293 = vsel %vm6285, %v6276, %v6292
      %v6294 = vsel %vm6284, %v6291, %v6293
      %v6295 = vsel %vm6283, %v6273, %v6276
      %v6296 = vsel %vm6286, %v6282, 1326507024
      %v6297 = vsel %vm6285, %v6279, %v6296
      %v6298 = vsel %vm6284, %v6295, %v6297
      %v6299 = vshll.u32 %v6259, 8
      %v6300 = vmul.u32.u64.compose %v6299, %v6298
      %v6301 = vextract.low.u32 %v6300
      %v6302 = vextract.high.u32 %v6300
      %v6303 = vmul.u32.u64.compose %v6299, %v6294
      %v6304 = vextract.low.u32 %v6303
      %v6305 = vextract.high.u32 %v6303
      %v6306 = vmul.u32 %v6299, %v6290
      %v6307 = vadd.s32 %v6302, %v6304
      %vm6308 = vc.u32 %v6302, %v6304
      %v6309 = vadd.s32 %v6305, 1
      %v6310 = vsel %vm6308, %v6309, %v6305
      %v6311 = vadd.s32 %v6306, %v6310
      %v6312 = vadd.s32 %v6311, 536870912
      %v6313 = vshrl.u32 %v6312, 30
      %v6314 = vshll.u32 %v6313, 30
      %v6315 = vsub.s32 %v6311, %v6314
      %vm6316 = vcmp.lt.s32.totalorder %v6315, 0
      %v6317 = vsub.s32 0, %v6315
      %v6318 = vsel %vm6316, %v6317, %v6315
      %v6319 = vclz %v6318
      %v6320 = vsub.s32 %v6319, 2
      %vm6321 = vcmp.gt.s32.totalorder 0, %v6320
      %v6322 = vsel %vm6321, 0, %v6320
      %v6323 = vsub.s32 32, %v6322
      %v6324 = vshll.u32 %v6315, %v6322
      %v6325 = vshrl.u32 %v6307, %v6323
      %v6326 = vor.u32 %v6324, %v6325
      %v6327 = vsub.s32 4294967266, %v6322
      %v6328 = vadd.s32 %v6327, 127
      %v6329 = vshll.u32 %v6328, 23
      %v6330 = vor.u32 4788187, %v6329
      %v6331 = vand.u32 2147483647, %v6330
      %v6333 = vcvt.s32.f32 %v6326
      %v6334 = vmul.f32 %v6333, %v6331
      %v6335 = vxor.u32 %v6334, 2147483648
      %v6336 = vsel %vm6253, %v6335, %v6334
      %v6337 = vsub.s32 4, %v6313
      %v6338 = vsel %vm6253, %v6337, %v6313
      %v6339 = vsel %vm6252, %v5835, %v6336
      %v6340 = vsel %vm6252, 0, %v6338
      %v6341 = vcosq.f32.pop %v6339
      %v6342 = vsinq.f32.pop %v6339
      %vm6343 = vweird.f32 %v5835
      %v6344 = vand.u32 %v6340, 3
      %vm6345 = vcmp.lt.s32.totalorder %v6344, 2
      %vm6346 = vcmp.eq.s32.totalorder %v6344, 0
      %v6347 = vxor.u32 %v6342, 2147483648
      %v6348 = vsel %vm6346, %v6341, %v6347
      %vm6349 = vcmp.eq.s32.totalorder %v6344, 2
      %v6350 = vxor.u32 %v6341, 2147483648
      %v6351 = vsel %vm6349, %v6350, %v6342
      %v6352 = vsel %vm6345, %v6348, %v6351
      %v6353 = vsel %vm6343, nan, %v6352
      %v6354 = vand.u32 2147483647, %v5836
      %vm6355 = vcmp.le.f32.partialorder %v6354, 0.7853982
      %vm6356 = vcmp.lt.s32.totalorder %v5836, 0
      %v6357 = vand.u32 %v5836, 2139095040
      %v6358 = vshrl.u32 %v6357, 23
      %v6359 = vsub.s32 %v6358, 127
      %v6360 = vand.u32 2147483647, %v5836
      %v6361 = vand.u32 %v6360, 8388607
      %v6362 = vor.u32 %v6361, 8388608
      %v6363 = vsub.s32 0, %v6362
      %v6364 = vadd.s32 %v6359, 1
      %vm6365 = vcmp.gt.s32.totalorder %v6364, 0
      %v6366 = vsel %vm6365, %v6364, 0
      %v6367 = vshrl.u32 %v6366, 5
      %v6368 = vand.u32 %v6366, 31
      %v6369 = vsub.s32 32, %v6368
      %v6370 = vshrl.u32 683565275, %v6369
      %v6371 = vshll.u32 683565275, %v6368
      %v6372 = vshrl.u32 2475754826, %v6369
      %v6373 = vor.u32 %v6371, %v6372
      %v6374 = vshll.u32 2475754826, %v6368
      %v6375 = vshrl.u32 2131351028, %v6369
      %v6376 = vor.u32 %v6374, %v6375
      %v6377 = vshll.u32 2131351028, %v6368
      %v6378 = vshrl.u32 2102212464, %v6369
      %v6379 = vor.u32 %v6377, %v6378
      %v6380 = vshll.u32 2102212464, %v6368
      %v6381 = vshrl.u32 920167782, %v6369
      %v6382 = vor.u32 %v6380, %v6381
      %v6383 = vshll.u32 920167782, %v6368
      %v6384 = vshrl.u32 1326507024, %v6369
      %v6385 = vor.u32 %v6383, %v6384
      %vm6386 = vcmp.lt.s32.totalorder %v6367, 1
      %vm6387 = vcmp.lt.s32.totalorder %v6367, 2
      %vm6388 = vcmp.lt.s32.totalorder %v6367, 3
      %vm6389 = vcmp.lt.s32.totalorder %v6367, 4
      %v6390 = vsel %vm6386, %v6370, %v6373
      %v6391 = vsel %vm6389, %v6379, 2102212464
      %v6392 = vsel %vm6388, %v6376, %v6391
      %v6393 = vsel %vm6387, %v6390, %v6392
      %v6394 = vsel %vm6386, %v6373, %v6376
      %v6395 = vsel %vm6389, %v6382, 920167782
      %v6396 = vsel %vm6388, %v6379, %v6395
      %v6397 = vsel %vm6387, %v6394, %v6396
      %v6398 = vsel %vm6386, %v6376, %v6379
      %v6399 = vsel %vm6389, %v6385, 1326507024
      %v6400 = vsel %vm6388, %v6382, %v6399
      %v6401 = vsel %vm6387, %v6398, %v6400
      %v6402 = vshll.u32 %v6362, 8
      %v6403 = vmul.u32.u64.compose %v6402, %v6401
      %v6404 = vextract.low.u32 %v6403
      %v6405 = vextract.high.u32 %v6403
      %v6406 = vmul.u32.u64.compose %v6402, %v6397
      %v6407 = vextract.low.u32 %v6406
      %v6408 = vextract.high.u32 %v6406
      %v6409 = vmul.u32 %v6402, %v6393
      %v6410 = vadd.s32 %v6405, %v6407
      %vm6411 = vc.u32 %v6405, %v6407
      %v6412 = vadd.s32 %v6408, 1
      %v6413 = vsel %vm6411, %v6412, %v6408
      %v6414 = vadd.s32 %v6409, %v6413
      %v6415 = vadd.s32 %v6414, 536870912
      %v6416 = vshrl.u32 %v6415, 30
      %v6417 = vshll.u32 %v6416, 30
      %v6418 = vsub.s32 %v6414, %v6417
      %vm6419 = vcmp.lt.s32.totalorder %v6418, 0
      %v6420 = vsub.s32 0, %v6418
      %v6421 = vsel %vm6419, %v6420, %v6418
      %v6422 = vclz %v6421
      %v6423 = vsub.s32 %v6422, 2
      %vm6424 = vcmp.gt.s32.totalorder 0, %v6423
      %v6425 = vsel %vm6424, 0, %v6423
      %v6426 = vsub.s32 32, %v6425
      %v6427 = vshll.u32 %v6418, %v6425
      %v6428 = vshrl.u32 %v6410, %v6426
      %v6429 = vor.u32 %v6427, %v6428
      %v6430 = vsub.s32 4294967266, %v6425
      %v6431 = vadd.s32 %v6430, 127
      %v6432 = vshll.u32 %v6431, 23
      %v6433 = vor.u32 4788187, %v6432
      %v6434 = vand.u32 2147483647, %v6433
      %v6436 = vcvt.s32.f32 %v6429
      %v6437 = vmul.f32 %v6436, %v6434
      %v6438 = vxor.u32 %v6437, 2147483648
      %v6439 = vsel %vm6356, %v6438, %v6437
      %v6440 = vsub.s32 4, %v6416
      %v6441 = vsel %vm6356, %v6440, %v6416
      %v6442 = vsel %vm6355, %v5836, %v6439
      %v6443 = vsel %vm6355, 0, %v6441
      %v6444 = vcosq.f32.pop %v6442
      %v6445 = vsinq.f32.pop %v6442
      %vm6446 = vweird.f32 %v5836
      %v6447 = vand.u32 %v6443, 3
      %vm6448 = vcmp.lt.s32.totalorder %v6447, 2
      %vm6449 = vcmp.eq.s32.totalorder %v6447, 0
      %v6450 = vxor.u32 %v6445, 2147483648
      %v6451 = vsel %vm6449, %v6444, %v6450
      %vm6452 = vcmp.eq.s32.totalorder %v6447, 2
      %v6453 = vxor.u32 %v6444, 2147483648
      %v6454 = vsel %vm6452, %v6453, %v6445
      %v6455 = vsel %vm6448, %v6451, %v6454
      %v6456 = vsel %vm6446, nan, %v6455
      %v6457 = vand.u32 2147483647, %v5837
      %vm6458 = vcmp.le.f32.partialorder %v6457, 0.7853982
      %vm6459 = vcmp.lt.s32.totalorder %v5837, 0
      %v6460 = vand.u32 %v5837, 2139095040
      %v6461 = vshrl.u32 %v6460, 23
      %v6462 = vsub.s32 %v6461, 127
      %v6463 = vand.u32 2147483647, %v5837
      %v6464 = vand.u32 %v6463, 8388607
      %v6465 = vor.u32 %v6464, 8388608
      %v6466 = vsub.s32 0, %v6465
      %v6467 = vadd.s32 %v6462, 1
      %vm6468 = vcmp.gt.s32.totalorder %v6467, 0
      %v6469 = vsel %vm6468, %v6467, 0
      %v6470 = vshrl.u32 %v6469, 5
      %v6471 = vand.u32 %v6469, 31
      %v6472 = vsub.s32 32, %v6471
      %v6473 = vshrl.u32 683565275, %v6472
      %v6474 = vshll.u32 683565275, %v6471
      %v6475 = vshrl.u32 2475754826, %v6472
      %v6476 = vor.u32 %v6474, %v6475
      %v6477 = vshll.u32 2475754826, %v6471
      %v6478 = vshrl.u32 2131351028, %v6472
      %v6479 = vor.u32 %v6477, %v6478
      %v6480 = vshll.u32 2131351028, %v6471
      %v6481 = vshrl.u32 2102212464, %v6472
      %v6482 = vor.u32 %v6480, %v6481
      %v6483 = vshll.u32 2102212464, %v6471
      %v6484 = vshrl.u32 920167782, %v6472
      %v6485 = vor.u32 %v6483, %v6484
      %v6486 = vshll.u32 920167782, %v6471
      %v6487 = vshrl.u32 1326507024, %v6472
      %v6488 = vor.u32 %v6486, %v6487
      %vm6489 = vcmp.lt.s32.totalorder %v6470, 1
      %vm6490 = vcmp.lt.s32.totalorder %v6470, 2
      %vm6491 = vcmp.lt.s32.totalorder %v6470, 3
      %vm6492 = vcmp.lt.s32.totalorder %v6470, 4
      %v6493 = vsel %vm6489, %v6473, %v6476
      %v6494 = vsel %vm6492, %v6482, 2102212464
      %v6495 = vsel %vm6491, %v6479, %v6494
      %v6496 = vsel %vm6490, %v6493, %v6495
      %v6497 = vsel %vm6489, %v6476, %v6479
      %v6498 = vsel %vm6492, %v6485, 920167782
      %v6499 = vsel %vm6491, %v6482, %v6498
      %v6500 = vsel %vm6490, %v6497, %v6499
      %v6501 = vsel %vm6489, %v6479, %v6482
      %v6502 = vsel %vm6492, %v6488, 1326507024
      %v6503 = vsel %vm6491, %v6485, %v6502
      %v6504 = vsel %vm6490, %v6501, %v6503
      %v6505 = vshll.u32 %v6465, 8
      %v6506 = vmul.u32.u64.compose %v6505, %v6504
      %v6507 = vextract.low.u32 %v6506
      %v6508 = vextract.high.u32 %v6506
      %v6509 = vmul.u32.u64.compose %v6505, %v6500
      %v6510 = vextract.low.u32 %v6509
      %v6511 = vextract.high.u32 %v6509
      %v6512 = vmul.u32 %v6505, %v6496
      %v6513 = vadd.s32 %v6508, %v6510
      %vm6514 = vc.u32 %v6508, %v6510
      %v6515 = vadd.s32 %v6511, 1
      %v6516 = vsel %vm6514, %v6515, %v6511
      %v6517 = vadd.s32 %v6512, %v6516
      %v6518 = vadd.s32 %v6517, 536870912
      %v6519 = vshrl.u32 %v6518, 30
      %v6520 = vshll.u32 %v6519, 30
      %v6521 = vsub.s32 %v6517, %v6520
      %vm6522 = vcmp.lt.s32.totalorder %v6521, 0
      %v6523 = vsub.s32 0, %v6521
      %v6524 = vsel %vm6522, %v6523, %v6521
      %v6525 = vclz %v6524
      %v6526 = vsub.s32 %v6525, 2
      %vm6527 = vcmp.gt.s32.totalorder 0, %v6526
      %v6528 = vsel %vm6527, 0, %v6526
      %v6529 = vsub.s32 32, %v6528
      %v6530 = vshll.u32 %v6521, %v6528
      %v6531 = vshrl.u32 %v6513, %v6529
      %v6532 = vor.u32 %v6530, %v6531
      %v6533 = vsub.s32 4294967266, %v6528
      %v6534 = vadd.s32 %v6533, 127
      %v6535 = vshll.u32 %v6534, 23
      %v6536 = vor.u32 4788187, %v6535
      %v6537 = vand.u32 2147483647, %v6536
      %v6539 = vcvt.s32.f32 %v6532
      %v6540 = vmul.f32 %v6539, %v6537
      %v6541 = vxor.u32 %v6540, 2147483648
      %v6542 = vsel %vm6459, %v6541, %v6540
      %v6543 = vsub.s32 4, %v6519
      %v6544 = vsel %vm6459, %v6543, %v6519
      %v6545 = vsel %vm6458, %v5837, %v6542
      %v6546 = vsel %vm6458, 0, %v6544
      %v6547 = vcosq.f32.pop %v6545
      %v6548 = vsinq.f32.pop %v6545
      %vm6549 = vweird.f32 %v5837
      %v6550 = vand.u32 %v6546, 3
      %vm6551 = vcmp.lt.s32.totalorder %v6550, 2
      %vm6552 = vcmp.eq.s32.totalorder %v6550, 0
      %v6553 = vxor.u32 %v6548, 2147483648
      %v6554 = vsel %vm6552, %v6547, %v6553
      %vm6555 = vcmp.eq.s32.totalorder %v6550, 2
      %v6556 = vxor.u32 %v6547, 2147483648
      %v6557 = vsel %vm6555, %v6556, %v6548
      %v6558 = vsel %vm6551, %v6554, %v6557
      %v6559 = vsel %vm6549, nan, %v6558
      %v6560 = vand.u32 2147483647, %v5838
      %vm6561 = vcmp.le.f32.partialorder %v6560, 0.7853982
      %vm6562 = vcmp.lt.s32.totalorder %v5838, 0
      %v6563 = vand.u32 %v5838, 2139095040
      %v6564 = vshrl.u32 %v6563, 23
      %v6565 = vsub.s32 %v6564, 127
      %v6566 = vand.u32 2147483647, %v5838
      %v6567 = vand.u32 %v6566, 8388607
      %v6568 = vor.u32 %v6567, 8388608
      %v6569 = vsub.s32 0, %v6568
      %v6570 = vadd.s32 %v6565, 1
      %vm6571 = vcmp.gt.s32.totalorder %v6570, 0
      %v6572 = vsel %vm6571, %v6570, 0
      %v6573 = vshrl.u32 %v6572, 5
      %v6574 = vand.u32 %v6572, 31
      %v6575 = vsub.s32 32, %v6574
      %v6576 = vshrl.u32 683565275, %v6575
      %v6577 = vshll.u32 683565275, %v6574
      %v6578 = vshrl.u32 2475754826, %v6575
      %v6579 = vor.u32 %v6577, %v6578
      %v6580 = vshll.u32 2475754826, %v6574
      %v6581 = vshrl.u32 2131351028, %v6575
      %v6582 = vor.u32 %v6580, %v6581
      %v6583 = vshll.u32 2131351028, %v6574
      %v6584 = vshrl.u32 2102212464, %v6575
      %v6585 = vor.u32 %v6583, %v6584
      %v6586 = vshll.u32 2102212464, %v6574
      %v6587 = vshrl.u32 920167782, %v6575
      %v6588 = vor.u32 %v6586, %v6587
      %v6589 = vshll.u32 920167782, %v6574
      %v6590 = vshrl.u32 1326507024, %v6575
      %v6591 = vor.u32 %v6589, %v6590
      %vm6592 = vcmp.lt.s32.totalorder %v6573, 1
      %vm6593 = vcmp.lt.s32.totalorder %v6573, 2
      %vm6594 = vcmp.lt.s32.totalorder %v6573, 3
      %vm6595 = vcmp.lt.s32.totalorder %v6573, 4
      %v6596 = vsel %vm6592, %v6576, %v6579
      %v6597 = vsel %vm6595, %v6585, 2102212464
      %v6598 = vsel %vm6594, %v6582, %v6597
      %v6599 = vsel %vm6593, %v6596, %v6598
      %v6600 = vsel %vm6592, %v6579, %v6582
      %v6601 = vsel %vm6595, %v6588, 920167782
      %v6602 = vsel %vm6594, %v6585, %v6601
      %v6603 = vsel %vm6593, %v6600, %v6602
      %v6604 = vsel %vm6592, %v6582, %v6585
      %v6605 = vsel %vm6595, %v6591, 1326507024
      %v6606 = vsel %vm6594, %v6588, %v6605
      %v6607 = vsel %vm6593, %v6604, %v6606
      %v6608 = vshll.u32 %v6568, 8
      %v6609 = vmul.u32.u64.compose %v6608, %v6607
      %v6610 = vextract.low.u32 %v6609
      %v6611 = vextract.high.u32 %v6609
      %v6612 = vmul.u32.u64.compose %v6608, %v6603
      %v6613 = vextract.low.u32 %v6612
      %v6614 = vextract.high.u32 %v6612
      %v6615 = vmul.u32 %v6608, %v6599
      %v6616 = vadd.s32 %v6611, %v6613
      %vm6617 = vc.u32 %v6611, %v6613
      %v6618 = vadd.s32 %v6614, 1
      %v6619 = vsel %vm6617, %v6618, %v6614
      %v6620 = vadd.s32 %v6615, %v6619
      %v6621 = vadd.s32 %v6620, 536870912
      %v6622 = vshrl.u32 %v6621, 30
      %v6623 = vshll.u32 %v6622, 30
      %v6624 = vsub.s32 %v6620, %v6623
      %vm6625 = vcmp.lt.s32.totalorder %v6624, 0
      %v6626 = vsub.s32 0, %v6624
      %v6627 = vsel %vm6625, %v6626, %v6624
      %v6628 = vclz %v6627
      %v6629 = vsub.s32 %v6628, 2
      %vm6630 = vcmp.gt.s32.totalorder 0, %v6629
      %v6631 = vsel %vm6630, 0, %v6629
      %v6632 = vsub.s32 32, %v6631
      %v6633 = vshll.u32 %v6624, %v6631
      %v6634 = vshrl.u32 %v6616, %v6632
      %v6635 = vor.u32 %v6633, %v6634
      %v6636 = vsub.s32 4294967266, %v6631
      %v6637 = vadd.s32 %v6636, 127
      %v6638 = vshll.u32 %v6637, 23
      %v6639 = vor.u32 4788187, %v6638
      %v6640 = vand.u32 2147483647, %v6639
      %v6642 = vcvt.s32.f32 %v6635
      %v6643 = vmul.f32 %v6642, %v6640
      %v6644 = vxor.u32 %v6643, 2147483648
      %v6645 = vsel %vm6562, %v6644, %v6643
      %v6646 = vsub.s32 4, %v6622
      %v6647 = vsel %vm6562, %v6646, %v6622
      %v6648 = vsel %vm6561, %v5838, %v6645
      %v6649 = vsel %vm6561, 0, %v6647
      %v6650 = vcosq.f32.pop %v6648
      %v6651 = vsinq.f32.pop %v6648
      %vm6652 = vweird.f32 %v5838
      %v6653 = vand.u32 %v6649, 3
      %vm6654 = vcmp.lt.s32.totalorder %v6653, 2
      %vm6655 = vcmp.eq.s32.totalorder %v6653, 0
      %v6656 = vxor.u32 %v6651, 2147483648
      %v6657 = vsel %vm6655, %v6650, %v6656
      %vm6658 = vcmp.eq.s32.totalorder %v6653, 2
      %v6659 = vxor.u32 %v6650, 2147483648
      %v6660 = vsel %vm6658, %v6659, %v6651
      %v6661 = vsel %vm6654, %v6657, %v6660
      %v6662 = vsel %vm6652, nan, %v6661
      %v6663 = vmul.f32 %v2583, %v5941
      %v6664 = vmul.f32 %v2584, %v6044
      %v6665 = vmul.f32 %v2585, %v6147
      %v6666 = vmul.f32 %v2586, %v6250
      %v6667 = vmul.f32 %v2587, %v6353
      %v6668 = vmul.f32 %v2588, %v6456
      %v6669 = vmul.f32 %v2589, %v6559
      %v6670 = vmul.f32 %v2590, %v6662
      %6671 = vst.msk [vmem:[%s634] sm:$0xff] %vm1981, %v6663
      %6672 = vst.msk [vmem:[%s634 + $0x8] sm:$0xff] %vm1981, %v6664
      %6673 = vst.msk [vmem:[%s634 + $0x10] sm:$0xff] %vm1981, %v6665
      %6674 = vst.msk [vmem:[%s634 + $0x18] sm:$0xff] %vm1981, %v6666
      %6675 = vst.msk [vmem:[%s634 + $0x20] sm:$0xff] %vm1981, %v6667
      %6676 = vst.msk [vmem:[%s634 + $0x28] sm:$0xff] %vm1981, %v6668
      %6677 = vst.msk [vmem:[%s634 + $0x30] sm:$0xff] %vm1981, %v6669
      %6678 = vst.msk [vmem:[%s634 + $0x38] sm:$0xff] %vm1981, %v6670
      %v6679 = vand.u32 2147483647, %v5831
      %vm6680 = vcmp.le.f32.partialorder %v6679, 0.7853982
      %vm6681 = vcmp.lt.s32.totalorder %v5831, 0
      %v6682 = vand.u32 %v5831, 2139095040
      %v6683 = vshrl.u32 %v6682, 23
      %v6684 = vsub.s32 %v6683, 127
      %v6685 = vand.u32 2147483647, %v5831
      %v6686 = vand.u32 %v6685, 8388607
      %v6687 = vor.u32 %v6686, 8388608
      %v6688 = vsub.s32 0, %v6687
      %v6689 = vadd.s32 %v6684, 1
      %vm6690 = vcmp.gt.s32.totalorder %v6689, 0
      %v6691 = vsel %vm6690, %v6689, 0
      %v6692 = vshrl.u32 %v6691, 5
      %v6693 = vand.u32 %v6691, 31
      %v6694 = vsub.s32 32, %v6693
      %v6695 = vshrl.u32 683565275, %v6694
      %v6696 = vshll.u32 683565275, %v6693
      %v6697 = vshrl.u32 2475754826, %v6694
      %v6698 = vor.u32 %v6696, %v6697
      %v6699 = vshll.u32 2475754826, %v6693
      %v6700 = vshrl.u32 2131351028, %v6694
      %v6701 = vor.u32 %v6699, %v6700
      %v6702 = vshll.u32 2131351028, %v6693
      %v6703 = vshrl.u32 2102212464, %v6694
      %v6704 = vor.u32 %v6702, %v6703
      %v6705 = vshll.u32 2102212464, %v6693
      %v6706 = vshrl.u32 920167782, %v6694
      %v6707 = vor.u32 %v6705, %v6706
      %v6708 = vshll.u32 920167782, %v6693
      %v6709 = vshrl.u32 1326507024, %v6694
      %v6710 = vor.u32 %v6708, %v6709
      %vm6711 = vcmp.lt.s32.totalorder %v6692, 1
      %vm6712 = vcmp.lt.s32.totalorder %v6692, 2
      %vm6713 = vcmp.lt.s32.totalorder %v6692, 3
      %vm6714 = vcmp.lt.s32.totalorder %v6692, 4
      %v6715 = vsel %vm6711, %v6695, %v6698
      %v6716 = vsel %vm6714, %v6704, 2102212464
      %v6717 = vsel %vm6713, %v6701, %v6716
      %v6718 = vsel %vm6712, %v6715, %v6717
      %v6719 = vsel %vm6711, %v6698, %v6701
      %v6720 = vsel %vm6714, %v6707, 920167782
      %v6721 = vsel %vm6713, %v6704, %v6720
      %v6722 = vsel %vm6712, %v6719, %v6721
      %v6723 = vsel %vm6711, %v6701, %v6704
      %v6724 = vsel %vm6714, %v6710, 1326507024
      %v6725 = vsel %vm6713, %v6707, %v6724
      %v6726 = vsel %vm6712, %v6723, %v6725
      %v6727 = vshll.u32 %v6687, 8
      %v6728 = vmul.u32.u64.compose %v6727, %v6726
      %v6729 = vextract.low.u32 %v6728
      %v6730 = vextract.high.u32 %v6728
      %v6731 = vmul.u32.u64.compose %v6727, %v6722
      %v6732 = vextract.low.u32 %v6731
      %v6733 = vextract.high.u32 %v6731
      %v6734 = vmul.u32 %v6727, %v6718
      %v6735 = vadd.s32 %v6730, %v6732
      %vm6736 = vc.u32 %v6730, %v6732
      %v6737 = vadd.s32 %v6733, 1
      %v6738 = vsel %vm6736, %v6737, %v6733
      %v6739 = vadd.s32 %v6734, %v6738
      %v6740 = vadd.s32 %v6739, 536870912
      %v6741 = vshrl.u32 %v6740, 30
      %v6742 = vshll.u32 %v6741, 30
      %v6743 = vsub.s32 %v6739, %v6742
      %vm6744 = vcmp.lt.s32.totalorder %v6743, 0
      %v6745 = vsub.s32 0, %v6743
      %v6746 = vsel %vm6744, %v6745, %v6743
      %v6747 = vclz %v6746
      %v6748 = vsub.s32 %v6747, 2
      %vm6749 = vcmp.gt.s32.totalorder 0, %v6748
      %v6750 = vsel %vm6749, 0, %v6748
      %v6751 = vsub.s32 32, %v6750
      %v6752 = vshll.u32 %v6743, %v6750
      %v6753 = vshrl.u32 %v6735, %v6751
      %v6754 = vor.u32 %v6752, %v6753
      %v6755 = vsub.s32 4294967266, %v6750
      %v6756 = vadd.s32 %v6755, 127
      %v6757 = vshll.u32 %v6756, 23
      %v6758 = vor.u32 4788187, %v6757
      %v6759 = vand.u32 2147483647, %v6758
      %v6761 = vcvt.s32.f32 %v6754
      %v6762 = vmul.f32 %v6761, %v6759
      %v6763 = vxor.u32 %v6762, 2147483648
      %v6764 = vsel %vm6681, %v6763, %v6762
      %v6765 = vsub.s32 4, %v6741
      %v6766 = vsel %vm6681, %v6765, %v6741
      %v6767 = vsel %vm6680, %v5831, %v6764
      %v6768 = vsel %vm6680, 0, %v6766
      %v6769 = vcosq.f32.pop %v6767
      %v6770 = vsinq.f32.pop %v6767
      %vm6771 = vweird.f32 %v5831
      %v6772 = vadd.s32 %v6768, 3
      %v6773 = vand.u32 %v6772, 3
      %vm6774 = vcmp.lt.s32.totalorder %v6773, 2
      %vm6775 = vcmp.eq.s32.totalorder %v6773, 0
      %v6776 = vxor.u32 %v6770, 2147483648
      %v6777 = vsel %vm6775, %v6769, %v6776
      %vm6778 = vcmp.eq.s32.totalorder %v6773, 2
      %v6779 = vxor.u32 %v6769, 2147483648
      %v6780 = vsel %vm6778, %v6779, %v6770
      %v6781 = vsel %vm6774, %v6777, %v6780
      %v6782 = vsel %vm6771, nan, %v6781
      %v6783 = vand.u32 2147483647, %v5832
      %vm6784 = vcmp.le.f32.partialorder %v6783, 0.7853982
      %vm6785 = vcmp.lt.s32.totalorder %v5832, 0
      %v6786 = vand.u32 %v5832, 2139095040
      %v6787 = vshrl.u32 %v6786, 23
      %v6788 = vsub.s32 %v6787, 127
      %v6789 = vand.u32 2147483647, %v5832
      %v6790 = vand.u32 %v6789, 8388607
      %v6791 = vor.u32 %v6790, 8388608
      %v6792 = vsub.s32 0, %v6791
      %v6793 = vadd.s32 %v6788, 1
      %vm6794 = vcmp.gt.s32.totalorder %v6793, 0
      %v6795 = vsel %vm6794, %v6793, 0
      %v6796 = vshrl.u32 %v6795, 5
      %v6797 = vand.u32 %v6795, 31
      %v6798 = vsub.s32 32, %v6797
      %v6799 = vshrl.u32 683565275, %v6798
      %v6800 = vshll.u32 683565275, %v6797
      %v6801 = vshrl.u32 2475754826, %v6798
      %v6802 = vor.u32 %v6800, %v6801
      %v6803 = vshll.u32 2475754826, %v6797
      %v6804 = vshrl.u32 2131351028, %v6798
      %v6805 = vor.u32 %v6803, %v6804
      %v6806 = vshll.u32 2131351028, %v6797
      %v6807 = vshrl.u32 2102212464, %v6798
      %v6808 = vor.u32 %v6806, %v6807
      %v6809 = vshll.u32 2102212464, %v6797
      %v6810 = vshrl.u32 920167782, %v6798
      %v6811 = vor.u32 %v6809, %v6810
      %v6812 = vshll.u32 920167782, %v6797
      %v6813 = vshrl.u32 1326507024, %v6798
      %v6814 = vor.u32 %v6812, %v6813
      %vm6815 = vcmp.lt.s32.totalorder %v6796, 1
      %vm6816 = vcmp.lt.s32.totalorder %v6796, 2
      %vm6817 = vcmp.lt.s32.totalorder %v6796, 3
      %vm6818 = vcmp.lt.s32.totalorder %v6796, 4
      %v6819 = vsel %vm6815, %v6799, %v6802
      %v6820 = vsel %vm6818, %v6808, 2102212464
      %v6821 = vsel %vm6817, %v6805, %v6820
      %v6822 = vsel %vm6816, %v6819, %v6821
      %v6823 = vsel %vm6815, %v6802, %v6805
      %v6824 = vsel %vm6818, %v6811, 920167782
      %v6825 = vsel %vm6817, %v6808, %v6824
      %v6826 = vsel %vm6816, %v6823, %v6825
      %v6827 = vsel %vm6815, %v6805, %v6808
      %v6828 = vsel %vm6818, %v6814, 1326507024
      %v6829 = vsel %vm6817, %v6811, %v6828
      %v6830 = vsel %vm6816, %v6827, %v6829
      %v6831 = vshll.u32 %v6791, 8
      %v6832 = vmul.u32.u64.compose %v6831, %v6830
      %v6833 = vextract.low.u32 %v6832
      %v6834 = vextract.high.u32 %v6832
      %v6835 = vmul.u32.u64.compose %v6831, %v6826
      %v6836 = vextract.low.u32 %v6835
      %v6837 = vextract.high.u32 %v6835
      %v6838 = vmul.u32 %v6831, %v6822
      %v6839 = vadd.s32 %v6834, %v6836
      %vm6840 = vc.u32 %v6834, %v6836
      %v6841 = vadd.s32 %v6837, 1
      %v6842 = vsel %vm6840, %v6841, %v6837
      %v6843 = vadd.s32 %v6838, %v6842
      %v6844 = vadd.s32 %v6843, 536870912
      %v6845 = vshrl.u32 %v6844, 30
      %v6846 = vshll.u32 %v6845, 30
      %v6847 = vsub.s32 %v6843, %v6846
      %vm6848 = vcmp.lt.s32.totalorder %v6847, 0
      %v6849 = vsub.s32 0, %v6847
      %v6850 = vsel %vm6848, %v6849, %v6847
      %v6851 = vclz %v6850
      %v6852 = vsub.s32 %v6851, 2
      %vm6853 = vcmp.gt.s32.totalorder 0, %v6852
      %v6854 = vsel %vm6853, 0, %v6852
      %v6855 = vsub.s32 32, %v6854
      %v6856 = vshll.u32 %v6847, %v6854
      %v6857 = vshrl.u32 %v6839, %v6855
      %v6858 = vor.u32 %v6856, %v6857
      %v6859 = vsub.s32 4294967266, %v6854
      %v6860 = vadd.s32 %v6859, 127
      %v6861 = vshll.u32 %v6860, 23
      %v6862 = vor.u32 4788187, %v6861
      %v6863 = vand.u32 2147483647, %v6862
      %v6865 = vcvt.s32.f32 %v6858
      %v6866 = vmul.f32 %v6865, %v6863
      %v6867 = vxor.u32 %v6866, 2147483648
      %v6868 = vsel %vm6785, %v6867, %v6866
      %v6869 = vsub.s32 4, %v6845
      %v6870 = vsel %vm6785, %v6869, %v6845
      %v6871 = vsel %vm6784, %v5832, %v6868
      %v6872 = vsel %vm6784, 0, %v6870
      %v6873 = vcosq.f32.pop %v6871
      %v6874 = vsinq.f32.pop %v6871
      %vm6875 = vweird.f32 %v5832
      %v6876 = vadd.s32 %v6872, 3
      %v6877 = vand.u32 %v6876, 3
      %vm6878 = vcmp.lt.s32.totalorder %v6877, 2
      %vm6879 = vcmp.eq.s32.totalorder %v6877, 0
      %v6880 = vxor.u32 %v6874, 2147483648
      %v6881 = vsel %vm6879, %v6873, %v6880
      %vm6882 = vcmp.eq.s32.totalorder %v6877, 2
      %v6883 = vxor.u32 %v6873, 2147483648
      %v6884 = vsel %vm6882, %v6883, %v6874
      %v6885 = vsel %vm6878, %v6881, %v6884
      %v6886 = vsel %vm6875, nan, %v6885
      %v6887 = vand.u32 2147483647, %v5833
      %vm6888 = vcmp.le.f32.partialorder %v6887, 0.7853982
      %vm6889 = vcmp.lt.s32.totalorder %v5833, 0
      %v6890 = vand.u32 %v5833, 2139095040
      %v6891 = vshrl.u32 %v6890, 23
      %v6892 = vsub.s32 %v6891, 127
      %v6893 = vand.u32 2147483647, %v5833
      %v6894 = vand.u32 %v6893, 8388607
      %v6895 = vor.u32 %v6894, 8388608
      %v6896 = vsub.s32 0, %v6895
      %v6897 = vadd.s32 %v6892, 1
      %vm6898 = vcmp.gt.s32.totalorder %v6897, 0
      %v6899 = vsel %vm6898, %v6897, 0
      %v6900 = vshrl.u32 %v6899, 5
      %v6901 = vand.u32 %v6899, 31
      %v6902 = vsub.s32 32, %v6901
      %v6903 = vshrl.u32 683565275, %v6902
      %v6904 = vshll.u32 683565275, %v6901
      %v6905 = vshrl.u32 2475754826, %v6902
      %v6906 = vor.u32 %v6904, %v6905
      %v6907 = vshll.u32 2475754826, %v6901
      %v6908 = vshrl.u32 2131351028, %v6902
      %v6909 = vor.u32 %v6907, %v6908
      %v6910 = vshll.u32 2131351028, %v6901
      %v6911 = vshrl.u32 2102212464, %v6902
      %v6912 = vor.u32 %v6910, %v6911
      %v6913 = vshll.u32 2102212464, %v6901
      %v6914 = vshrl.u32 920167782, %v6902
      %v6915 = vor.u32 %v6913, %v6914
      %v6916 = vshll.u32 920167782, %v6901
      %v6917 = vshrl.u32 1326507024, %v6902
      %v6918 = vor.u32 %v6916, %v6917
      %vm6919 = vcmp.lt.s32.totalorder %v6900, 1
      %vm6920 = vcmp.lt.s32.totalorder %v6900, 2
      %vm6921 = vcmp.lt.s32.totalorder %v6900, 3
      %vm6922 = vcmp.lt.s32.totalorder %v6900, 4
      %v6923 = vsel %vm6919, %v6903, %v6906
      %v6924 = vsel %vm6922, %v6912, 2102212464
      %v6925 = vsel %vm6921, %v6909, %v6924
      %v6926 = vsel %vm6920, %v6923, %v6925
      %v6927 = vsel %vm6919, %v6906, %v6909
      %v6928 = vsel %vm6922, %v6915, 920167782
      %v6929 = vsel %vm6921, %v6912, %v6928
      %v6930 = vsel %vm6920, %v6927, %v6929
      %v6931 = vsel %vm6919, %v6909, %v6912
      %v6932 = vsel %vm6922, %v6918, 1326507024
      %v6933 = vsel %vm6921, %v6915, %v6932
      %v6934 = vsel %vm6920, %v6931, %v6933
      %v6935 = vshll.u32 %v6895, 8
      %v6936 = vmul.u32.u64.compose %v6935, %v6934
      %v6937 = vextract.low.u32 %v6936
      %v6938 = vextract.high.u32 %v6936
      %v6939 = vmul.u32.u64.compose %v6935, %v6930
      %v6940 = vextract.low.u32 %v6939
      %v6941 = vextract.high.u32 %v6939
      %v6942 = vmul.u32 %v6935, %v6926
      %v6943 = vadd.s32 %v6938, %v6940
      %vm6944 = vc.u32 %v6938, %v6940
      %v6945 = vadd.s32 %v6941, 1
      %v6946 = vsel %vm6944, %v6945, %v6941
      %v6947 = vadd.s32 %v6942, %v6946
      %v6948 = vadd.s32 %v6947, 536870912
      %v6949 = vshrl.u32 %v6948, 30
      %v6950 = vshll.u32 %v6949, 30
      %v6951 = vsub.s32 %v6947, %v6950
      %vm6952 = vcmp.lt.s32.totalorder %v6951, 0
      %v6953 = vsub.s32 0, %v6951
      %v6954 = vsel %vm6952, %v6953, %v6951
      %v6955 = vclz %v6954
      %v6956 = vsub.s32 %v6955, 2
      %vm6957 = vcmp.gt.s32.totalorder 0, %v6956
      %v6958 = vsel %vm6957, 0, %v6956
      %v6959 = vsub.s32 32, %v6958
      %v6960 = vshll.u32 %v6951, %v6958
      %v6961 = vshrl.u32 %v6943, %v6959
      %v6962 = vor.u32 %v6960, %v6961
      %v6963 = vsub.s32 4294967266, %v6958
      %v6964 = vadd.s32 %v6963, 127
      %v6965 = vshll.u32 %v6964, 23
      %v6966 = vor.u32 4788187, %v6965
      %v6967 = vand.u32 2147483647, %v6966
      %v6969 = vcvt.s32.f32 %v6962
      %v6970 = vmul.f32 %v6969, %v6967
      %v6971 = vxor.u32 %v6970, 2147483648
      %v6972 = vsel %vm6889, %v6971, %v6970
      %v6973 = vsub.s32 4, %v6949
      %v6974 = vsel %vm6889, %v6973, %v6949
      %v6975 = vsel %vm6888, %v5833, %v6972
      %v6976 = vsel %vm6888, 0, %v6974
      %v6977 = vcosq.f32.pop %v6975
      %v6978 = vsinq.f32.pop %v6975
      %vm6979 = vweird.f32 %v5833
      %v6980 = vadd.s32 %v6976, 3
      %v6981 = vand.u32 %v6980, 3
      %vm6982 = vcmp.lt.s32.totalorder %v6981, 2
      %vm6983 = vcmp.eq.s32.totalorder %v6981, 0
      %v6984 = vxor.u32 %v6978, 2147483648
      %v6985 = vsel %vm6983, %v6977, %v6984
      %vm6986 = vcmp.eq.s32.totalorder %v6981, 2
      %v6987 = vxor.u32 %v6977, 2147483648
      %v6988 = vsel %vm6986, %v6987, %v6978
      %v6989 = vsel %vm6982, %v6985, %v6988
      %v6990 = vsel %vm6979, nan, %v6989
      %v6991 = vand.u32 2147483647, %v5834
      %vm6992 = vcmp.le.f32.partialorder %v6991, 0.7853982
      %vm6993 = vcmp.lt.s32.totalorder %v5834, 0
      %v6994 = vand.u32 %v5834, 2139095040
      %v6995 = vshrl.u32 %v6994, 23
      %v6996 = vsub.s32 %v6995, 127
      %v6997 = vand.u32 2147483647, %v5834
      %v6998 = vand.u32 %v6997, 8388607
      %v6999 = vor.u32 %v6998, 8388608
      %v7000 = vsub.s32 0, %v6999
      %v7001 = vadd.s32 %v6996, 1
      %vm7002 = vcmp.gt.s32.totalorder %v7001, 0
      %v7003 = vsel %vm7002, %v7001, 0
      %v7004 = vshrl.u32 %v7003, 5
      %v7005 = vand.u32 %v7003, 31
      %v7006 = vsub.s32 32, %v7005
      %v7007 = vshrl.u32 683565275, %v7006
      %v7008 = vshll.u32 683565275, %v7005
      %v7009 = vshrl.u32 2475754826, %v7006
      %v7010 = vor.u32 %v7008, %v7009
      %v7011 = vshll.u32 2475754826, %v7005
      %v7012 = vshrl.u32 2131351028, %v7006
      %v7013 = vor.u32 %v7011, %v7012
      %v7014 = vshll.u32 2131351028, %v7005
      %v7015 = vshrl.u32 2102212464, %v7006
      %v7016 = vor.u32 %v7014, %v7015
      %v7017 = vshll.u32 2102212464, %v7005
      %v7018 = vshrl.u32 920167782, %v7006
      %v7019 = vor.u32 %v7017, %v7018
      %v7020 = vshll.u32 920167782, %v7005
      %v7021 = vshrl.u32 1326507024, %v7006
      %v7022 = vor.u32 %v7020, %v7021
      %vm7023 = vcmp.lt.s32.totalorder %v7004, 1
      %vm7024 = vcmp.lt.s32.totalorder %v7004, 2
      %vm7025 = vcmp.lt.s32.totalorder %v7004, 3
      %vm7026 = vcmp.lt.s32.totalorder %v7004, 4
      %v7027 = vsel %vm7023, %v7007, %v7010
      %v7028 = vsel %vm7026, %v7016, 2102212464
      %v7029 = vsel %vm7025, %v7013, %v7028
      %v7030 = vsel %vm7024, %v7027, %v7029
      %v7031 = vsel %vm7023, %v7010, %v7013
      %v7032 = vsel %vm7026, %v7019, 920167782
      %v7033 = vsel %vm7025, %v7016, %v7032
      %v7034 = vsel %vm7024, %v7031, %v7033
      %v7035 = vsel %vm7023, %v7013, %v7016
      %v7036 = vsel %vm7026, %v7022, 1326507024
      %v7037 = vsel %vm7025, %v7019, %v7036
      %v7038 = vsel %vm7024, %v7035, %v7037
      %v7039 = vshll.u32 %v6999, 8
      %v7040 = vmul.u32.u64.compose %v7039, %v7038
      %v7041 = vextract.low.u32 %v7040
      %v7042 = vextract.high.u32 %v7040
      %v7043 = vmul.u32.u64.compose %v7039, %v7034
      %v7044 = vextract.low.u32 %v7043
      %v7045 = vextract.high.u32 %v7043
      %v7046 = vmul.u32 %v7039, %v7030
      %v7047 = vadd.s32 %v7042, %v7044
      %vm7048 = vc.u32 %v7042, %v7044
      %v7049 = vadd.s32 %v7045, 1
      %v7050 = vsel %vm7048, %v7049, %v7045
      %v7051 = vadd.s32 %v7046, %v7050
      %v7052 = vadd.s32 %v7051, 536870912
      %v7053 = vshrl.u32 %v7052, 30
      %v7054 = vshll.u32 %v7053, 30
      %v7055 = vsub.s32 %v7051, %v7054
      %vm7056 = vcmp.lt.s32.totalorder %v7055, 0
      %v7057 = vsub.s32 0, %v7055
      %v7058 = vsel %vm7056, %v7057, %v7055
      %v7059 = vclz %v7058
      %v7060 = vsub.s32 %v7059, 2
      %vm7061 = vcmp.gt.s32.totalorder 0, %v7060
      %v7062 = vsel %vm7061, 0, %v7060
      %v7063 = vsub.s32 32, %v7062
      %v7064 = vshll.u32 %v7055, %v7062
      %v7065 = vshrl.u32 %v7047, %v7063
      %v7066 = vor.u32 %v7064, %v7065
      %v7067 = vsub.s32 4294967266, %v7062
      %v7068 = vadd.s32 %v7067, 127
      %v7069 = vshll.u32 %v7068, 23
      %v7070 = vor.u32 4788187, %v7069
      %v7071 = vand.u32 2147483647, %v7070
      %v7073 = vcvt.s32.f32 %v7066
      %v7074 = vmul.f32 %v7073, %v7071
      %v7075 = vxor.u32 %v7074, 2147483648
      %v7076 = vsel %vm6993, %v7075, %v7074
      %v7077 = vsub.s32 4, %v7053
      %v7078 = vsel %vm6993, %v7077, %v7053
      %v7079 = vsel %vm6992, %v5834, %v7076
      %v7080 = vsel %vm6992, 0, %v7078
      %v7081 = vcosq.f32.pop %v7079
      %v7082 = vsinq.f32.pop %v7079
      %vm7083 = vweird.f32 %v5834
      %v7084 = vadd.s32 %v7080, 3
      %v7085 = vand.u32 %v7084, 3
      %vm7086 = vcmp.lt.s32.totalorder %v7085, 2
      %vm7087 = vcmp.eq.s32.totalorder %v7085, 0
      %v7088 = vxor.u32 %v7082, 2147483648
      %v7089 = vsel %vm7087, %v7081, %v7088
      %vm7090 = vcmp.eq.s32.totalorder %v7085, 2
      %v7091 = vxor.u32 %v7081, 2147483648
      %v7092 = vsel %vm7090, %v7091, %v7082
      %v7093 = vsel %vm7086, %v7089, %v7092
      %v7094 = vsel %vm7083, nan, %v7093
      %v7095 = vand.u32 2147483647, %v5835
      %vm7096 = vcmp.le.f32.partialorder %v7095, 0.7853982
      %vm7097 = vcmp.lt.s32.totalorder %v5835, 0
      %v7098 = vand.u32 %v5835, 2139095040
      %v7099 = vshrl.u32 %v7098, 23
      %v7100 = vsub.s32 %v7099, 127
      %v7101 = vand.u32 2147483647, %v5835
      %v7102 = vand.u32 %v7101, 8388607
      %v7103 = vor.u32 %v7102, 8388608
      %v7104 = vsub.s32 0, %v7103
      %v7105 = vadd.s32 %v7100, 1
      %vm7106 = vcmp.gt.s32.totalorder %v7105, 0
      %v7107 = vsel %vm7106, %v7105, 0
      %v7108 = vshrl.u32 %v7107, 5
      %v7109 = vand.u32 %v7107, 31
      %v7110 = vsub.s32 32, %v7109
      %v7111 = vshrl.u32 683565275, %v7110
      %v7112 = vshll.u32 683565275, %v7109
      %v7113 = vshrl.u32 2475754826, %v7110
      %v7114 = vor.u32 %v7112, %v7113
      %v7115 = vshll.u32 2475754826, %v7109
      %v7116 = vshrl.u32 2131351028, %v7110
      %v7117 = vor.u32 %v7115, %v7116
      %v7118 = vshll.u32 2131351028, %v7109
      %v7119 = vshrl.u32 2102212464, %v7110
      %v7120 = vor.u32 %v7118, %v7119
      %v7121 = vshll.u32 2102212464, %v7109
      %v7122 = vshrl.u32 920167782, %v7110
      %v7123 = vor.u32 %v7121, %v7122
      %v7124 = vshll.u32 920167782, %v7109
      %v7125 = vshrl.u32 1326507024, %v7110
      %v7126 = vor.u32 %v7124, %v7125
      %vm7127 = vcmp.lt.s32.totalorder %v7108, 1
      %vm7128 = vcmp.lt.s32.totalorder %v7108, 2
      %vm7129 = vcmp.lt.s32.totalorder %v7108, 3
      %vm7130 = vcmp.lt.s32.totalorder %v7108, 4
      %v7131 = vsel %vm7127, %v7111, %v7114
      %v7132 = vsel %vm7130, %v7120, 2102212464
      %v7133 = vsel %vm7129, %v7117, %v7132
      %v7134 = vsel %vm7128, %v7131, %v7133
      %v7135 = vsel %vm7127, %v7114, %v7117
      %v7136 = vsel %vm7130, %v7123, 920167782
      %v7137 = vsel %vm7129, %v7120, %v7136
      %v7138 = vsel %vm7128, %v7135, %v7137
      %v7139 = vsel %vm7127, %v7117, %v7120
      %v7140 = vsel %vm7130, %v7126, 1326507024
      %v7141 = vsel %vm7129, %v7123, %v7140
      %v7142 = vsel %vm7128, %v7139, %v7141
      %v7143 = vshll.u32 %v7103, 8
      %v7144 = vmul.u32.u64.compose %v7143, %v7142
      %v7145 = vextract.low.u32 %v7144
      %v7146 = vextract.high.u32 %v7144
      %v7147 = vmul.u32.u64.compose %v7143, %v7138
      %v7148 = vextract.low.u32 %v7147
      %v7149 = vextract.high.u32 %v7147
      %v7150 = vmul.u32 %v7143, %v7134
      %v7151 = vadd.s32 %v7146, %v7148
      %vm7152 = vc.u32 %v7146, %v7148
      %v7153 = vadd.s32 %v7149, 1
      %v7154 = vsel %vm7152, %v7153, %v7149
      %v7155 = vadd.s32 %v7150, %v7154
      %v7156 = vadd.s32 %v7155, 536870912
      %v7157 = vshrl.u32 %v7156, 30
      %v7158 = vshll.u32 %v7157, 30
      %v7159 = vsub.s32 %v7155, %v7158
      %vm7160 = vcmp.lt.s32.totalorder %v7159, 0
      %v7161 = vsub.s32 0, %v7159
      %v7162 = vsel %vm7160, %v7161, %v7159
      %v7163 = vclz %v7162
      %v7164 = vsub.s32 %v7163, 2
      %vm7165 = vcmp.gt.s32.totalorder 0, %v7164
      %v7166 = vsel %vm7165, 0, %v7164
      %v7167 = vsub.s32 32, %v7166
      %v7168 = vshll.u32 %v7159, %v7166
      %v7169 = vshrl.u32 %v7151, %v7167
      %v7170 = vor.u32 %v7168, %v7169
      %v7171 = vsub.s32 4294967266, %v7166
      %v7172 = vadd.s32 %v7171, 127
      %v7173 = vshll.u32 %v7172, 23
      %v7174 = vor.u32 4788187, %v7173
      %v7175 = vand.u32 2147483647, %v7174
      %v7177 = vcvt.s32.f32 %v7170
      %v7178 = vmul.f32 %v7177, %v7175
      %v7179 = vxor.u32 %v7178, 2147483648
      %v7180 = vsel %vm7097, %v7179, %v7178
      %v7181 = vsub.s32 4, %v7157
      %v7182 = vsel %vm7097, %v7181, %v7157
      %v7183 = vsel %vm7096, %v5835, %v7180
      %v7184 = vsel %vm7096, 0, %v7182
      %v7185 = vcosq.f32.pop %v7183
      %v7186 = vsinq.f32.pop %v7183
      %vm7187 = vweird.f32 %v5835
      %v7188 = vadd.s32 %v7184, 3
      %v7189 = vand.u32 %v7188, 3
      %vm7190 = vcmp.lt.s32.totalorder %v7189, 2
      %vm7191 = vcmp.eq.s32.totalorder %v7189, 0
      %v7192 = vxor.u32 %v7186, 2147483648
      %v7193 = vsel %vm7191, %v7185, %v7192
      %vm7194 = vcmp.eq.s32.totalorder %v7189, 2
      %v7195 = vxor.u32 %v7185, 2147483648
      %v7196 = vsel %vm7194, %v7195, %v7186
      %v7197 = vsel %vm7190, %v7193, %v7196
      %v7198 = vsel %vm7187, nan, %v7197
      %v7199 = vand.u32 2147483647, %v5836
      %vm7200 = vcmp.le.f32.partialorder %v7199, 0.7853982
      %vm7201 = vcmp.lt.s32.totalorder %v5836, 0
      %v7202 = vand.u32 %v5836, 2139095040
      %v7203 = vshrl.u32 %v7202, 23
      %v7204 = vsub.s32 %v7203, 127
      %v7205 = vand.u32 2147483647, %v5836
      %v7206 = vand.u32 %v7205, 8388607
      %v7207 = vor.u32 %v7206, 8388608
      %v7208 = vsub.s32 0, %v7207
      %v7209 = vadd.s32 %v7204, 1
      %vm7210 = vcmp.gt.s32.totalorder %v7209, 0
      %v7211 = vsel %vm7210, %v7209, 0
      %v7212 = vshrl.u32 %v7211, 5
      %v7213 = vand.u32 %v7211, 31
      %v7214 = vsub.s32 32, %v7213
      %v7215 = vshrl.u32 683565275, %v7214
      %v7216 = vshll.u32 683565275, %v7213
      %v7217 = vshrl.u32 2475754826, %v7214
      %v7218 = vor.u32 %v7216, %v7217
      %v7219 = vshll.u32 2475754826, %v7213
      %v7220 = vshrl.u32 2131351028, %v7214
      %v7221 = vor.u32 %v7219, %v7220
      %v7222 = vshll.u32 2131351028, %v7213
      %v7223 = vshrl.u32 2102212464, %v7214
      %v7224 = vor.u32 %v7222, %v7223
      %v7225 = vshll.u32 2102212464, %v7213
      %v7226 = vshrl.u32 920167782, %v7214
      %v7227 = vor.u32 %v7225, %v7226
      %v7228 = vshll.u32 920167782, %v7213
      %v7229 = vshrl.u32 1326507024, %v7214
      %v7230 = vor.u32 %v7228, %v7229
      %vm7231 = vcmp.lt.s32.totalorder %v7212, 1
      %vm7232 = vcmp.lt.s32.totalorder %v7212, 2
      %vm7233 = vcmp.lt.s32.totalorder %v7212, 3
      %vm7234 = vcmp.lt.s32.totalorder %v7212, 4
      %v7235 = vsel %vm7231, %v7215, %v7218
      %v7236 = vsel %vm7234, %v7224, 2102212464
      %v7237 = vsel %vm7233, %v7221, %v7236
      %v7238 = vsel %vm7232, %v7235, %v7237
      %v7239 = vsel %vm7231, %v7218, %v7221
      %v7240 = vsel %vm7234, %v7227, 920167782
      %v7241 = vsel %vm7233, %v7224, %v7240
      %v7242 = vsel %vm7232, %v7239, %v7241
      %v7243 = vsel %vm7231, %v7221, %v7224
      %v7244 = vsel %vm7234, %v7230, 1326507024
      %v7245 = vsel %vm7233, %v7227, %v7244
      %v7246 = vsel %vm7232, %v7243, %v7245
      %v7247 = vshll.u32 %v7207, 8
      %v7248 = vmul.u32.u64.compose %v7247, %v7246
      %v7249 = vextract.low.u32 %v7248
      %v7250 = vextract.high.u32 %v7248
      %v7251 = vmul.u32.u64.compose %v7247, %v7242
      %v7252 = vextract.low.u32 %v7251
      %v7253 = vextract.high.u32 %v7251
      %v7254 = vmul.u32 %v7247, %v7238
      %v7255 = vadd.s32 %v7250, %v7252
      %vm7256 = vc.u32 %v7250, %v7252
      %v7257 = vadd.s32 %v7253, 1
      %v7258 = vsel %vm7256, %v7257, %v7253
      %v7259 = vadd.s32 %v7254, %v7258
      %v7260 = vadd.s32 %v7259, 536870912
      %v7261 = vshrl.u32 %v7260, 30
      %v7262 = vshll.u32 %v7261, 30
      %v7263 = vsub.s32 %v7259, %v7262
      %vm7264 = vcmp.lt.s32.totalorder %v7263, 0
      %v7265 = vsub.s32 0, %v7263
      %v7266 = vsel %vm7264, %v7265, %v7263
      %v7267 = vclz %v7266
      %v7268 = vsub.s32 %v7267, 2
      %vm7269 = vcmp.gt.s32.totalorder 0, %v7268
      %v7270 = vsel %vm7269, 0, %v7268
      %v7271 = vsub.s32 32, %v7270
      %v7272 = vshll.u32 %v7263, %v7270
      %v7273 = vshrl.u32 %v7255, %v7271
      %v7274 = vor.u32 %v7272, %v7273
      %v7275 = vsub.s32 4294967266, %v7270
      %v7276 = vadd.s32 %v7275, 127
      %v7277 = vshll.u32 %v7276, 23
      %v7278 = vor.u32 4788187, %v7277
      %v7279 = vand.u32 2147483647, %v7278
      %v7281 = vcvt.s32.f32 %v7274
      %v7282 = vmul.f32 %v7281, %v7279
      %v7283 = vxor.u32 %v7282, 2147483648
      %v7284 = vsel %vm7201, %v7283, %v7282
      %v7285 = vsub.s32 4, %v7261
      %v7286 = vsel %vm7201, %v7285, %v7261
      %v7287 = vsel %vm7200, %v5836, %v7284
      %v7288 = vsel %vm7200, 0, %v7286
      %v7289 = vcosq.f32.pop %v7287
      %v7290 = vsinq.f32.pop %v7287
      %vm7291 = vweird.f32 %v5836
      %v7292 = vadd.s32 %v7288, 3
      %v7293 = vand.u32 %v7292, 3
      %vm7294 = vcmp.lt.s32.totalorder %v7293, 2
      %vm7295 = vcmp.eq.s32.totalorder %v7293, 0
      %v7296 = vxor.u32 %v7290, 2147483648
      %v7297 = vsel %vm7295, %v7289, %v7296
      %vm7298 = vcmp.eq.s32.totalorder %v7293, 2
      %v7299 = vxor.u32 %v7289, 2147483648
      %v7300 = vsel %vm7298, %v7299, %v7290
      %v7301 = vsel %vm7294, %v7297, %v7300
      %v7302 = vsel %vm7291, nan, %v7301
      %v7303 = vand.u32 2147483647, %v5837
      %vm7304 = vcmp.le.f32.partialorder %v7303, 0.7853982
      %vm7305 = vcmp.lt.s32.totalorder %v5837, 0
      %v7306 = vand.u32 %v5837, 2139095040
      %v7307 = vshrl.u32 %v7306, 23
      %v7308 = vsub.s32 %v7307, 127
      %v7309 = vand.u32 2147483647, %v5837
      %v7310 = vand.u32 %v7309, 8388607
      %v7311 = vor.u32 %v7310, 8388608
      %v7312 = vsub.s32 0, %v7311
      %v7313 = vadd.s32 %v7308, 1
      %vm7314 = vcmp.gt.s32.totalorder %v7313, 0
      %v7315 = vsel %vm7314, %v7313, 0
      %v7316 = vshrl.u32 %v7315, 5
      %v7317 = vand.u32 %v7315, 31
      %v7318 = vsub.s32 32, %v7317
      %v7319 = vshrl.u32 683565275, %v7318
      %v7320 = vshll.u32 683565275, %v7317
      %v7321 = vshrl.u32 2475754826, %v7318
      %v7322 = vor.u32 %v7320, %v7321
      %v7323 = vshll.u32 2475754826, %v7317
      %v7324 = vshrl.u32 2131351028, %v7318
      %v7325 = vor.u32 %v7323, %v7324
      %v7326 = vshll.u32 2131351028, %v7317
      %v7327 = vshrl.u32 2102212464, %v7318
      %v7328 = vor.u32 %v7326, %v7327
      %v7329 = vshll.u32 2102212464, %v7317
      %v7330 = vshrl.u32 920167782, %v7318
      %v7331 = vor.u32 %v7329, %v7330
      %v7332 = vshll.u32 920167782, %v7317
      %v7333 = vshrl.u32 1326507024, %v7318
      %v7334 = vor.u32 %v7332, %v7333
      %vm7335 = vcmp.lt.s32.totalorder %v7316, 1
      %vm7336 = vcmp.lt.s32.totalorder %v7316, 2
      %vm7337 = vcmp.lt.s32.totalorder %v7316, 3
      %vm7338 = vcmp.lt.s32.totalorder %v7316, 4
      %v7339 = vsel %vm7335, %v7319, %v7322
      %v7340 = vsel %vm7338, %v7328, 2102212464
      %v7341 = vsel %vm7337, %v7325, %v7340
      %v7342 = vsel %vm7336, %v7339, %v7341
      %v7343 = vsel %vm7335, %v7322, %v7325
      %v7344 = vsel %vm7338, %v7331, 920167782
      %v7345 = vsel %vm7337, %v7328, %v7344
      %v7346 = vsel %vm7336, %v7343, %v7345
      %v7347 = vsel %vm7335, %v7325, %v7328
      %v7348 = vsel %vm7338, %v7334, 1326507024
      %v7349 = vsel %vm7337, %v7331, %v7348
      %v7350 = vsel %vm7336, %v7347, %v7349
      %v7351 = vshll.u32 %v7311, 8
      %v7352 = vmul.u32.u64.compose %v7351, %v7350
      %v7353 = vextract.low.u32 %v7352
      %v7354 = vextract.high.u32 %v7352
      %v7355 = vmul.u32.u64.compose %v7351, %v7346
      %v7356 = vextract.low.u32 %v7355
      %v7357 = vextract.high.u32 %v7355
      %v7358 = vmul.u32 %v7351, %v7342
      %v7359 = vadd.s32 %v7354, %v7356
      %vm7360 = vc.u32 %v7354, %v7356
      %v7361 = vadd.s32 %v7357, 1
      %v7362 = vsel %vm7360, %v7361, %v7357
      %v7363 = vadd.s32 %v7358, %v7362
      %v7364 = vadd.s32 %v7363, 536870912
      %v7365 = vshrl.u32 %v7364, 30
      %v7366 = vshll.u32 %v7365, 30
      %v7367 = vsub.s32 %v7363, %v7366
      %vm7368 = vcmp.lt.s32.totalorder %v7367, 0
      %v7369 = vsub.s32 0, %v7367
      %v7370 = vsel %vm7368, %v7369, %v7367
      %v7371 = vclz %v7370
      %v7372 = vsub.s32 %v7371, 2
      %vm7373 = vcmp.gt.s32.totalorder 0, %v7372
      %v7374 = vsel %vm7373, 0, %v7372
      %v7375 = vsub.s32 32, %v7374
      %v7376 = vshll.u32 %v7367, %v7374
      %v7377 = vshrl.u32 %v7359, %v7375
      %v7378 = vor.u32 %v7376, %v7377
      %v7379 = vsub.s32 4294967266, %v7374
      %v7380 = vadd.s32 %v7379, 127
      %v7381 = vshll.u32 %v7380, 23
      %v7382 = vor.u32 4788187, %v7381
      %v7383 = vand.u32 2147483647, %v7382
      %v7385 = vcvt.s32.f32 %v7378
      %v7386 = vmul.f32 %v7385, %v7383
      %v7387 = vxor.u32 %v7386, 2147483648
      %v7388 = vsel %vm7305, %v7387, %v7386
      %v7389 = vsub.s32 4, %v7365
      %v7390 = vsel %vm7305, %v7389, %v7365
      %v7391 = vsel %vm7304, %v5837, %v7388
      %v7392 = vsel %vm7304, 0, %v7390
      %v7393 = vcosq.f32.pop %v7391
      %v7394 = vsinq.f32.pop %v7391
      %vm7395 = vweird.f32 %v5837
      %v7396 = vadd.s32 %v7392, 3
      %v7397 = vand.u32 %v7396, 3
      %vm7398 = vcmp.lt.s32.totalorder %v7397, 2
      %vm7399 = vcmp.eq.s32.totalorder %v7397, 0
      %v7400 = vxor.u32 %v7394, 2147483648
      %v7401 = vsel %vm7399, %v7393, %v7400
      %vm7402 = vcmp.eq.s32.totalorder %v7397, 2
      %v7403 = vxor.u32 %v7393, 2147483648
      %v7404 = vsel %vm7402, %v7403, %v7394
      %v7405 = vsel %vm7398, %v7401, %v7404
      %v7406 = vsel %vm7395, nan, %v7405
      %v7407 = vand.u32 2147483647, %v5838
      %vm7408 = vcmp.le.f32.partialorder %v7407, 0.7853982
      %vm7409 = vcmp.lt.s32.totalorder %v5838, 0
      %v7410 = vand.u32 %v5838, 2139095040
      %v7411 = vshrl.u32 %v7410, 23
      %v7412 = vsub.s32 %v7411, 127
      %v7413 = vand.u32 2147483647, %v5838
      %v7414 = vand.u32 %v7413, 8388607
      %v7415 = vor.u32 %v7414, 8388608
      %v7416 = vsub.s32 0, %v7415
      %v7417 = vadd.s32 %v7412, 1
      %vm7418 = vcmp.gt.s32.totalorder %v7417, 0
      %v7419 = vsel %vm7418, %v7417, 0
      %v7420 = vshrl.u32 %v7419, 5
      %v7421 = vand.u32 %v7419, 31
      %v7422 = vsub.s32 32, %v7421
      %v7423 = vshrl.u32 683565275, %v7422
      %v7424 = vshll.u32 683565275, %v7421
      %v7425 = vshrl.u32 2475754826, %v7422
      %v7426 = vor.u32 %v7424, %v7425
      %v7427 = vshll.u32 2475754826, %v7421
      %v7428 = vshrl.u32 2131351028, %v7422
      %v7429 = vor.u32 %v7427, %v7428
      %v7430 = vshll.u32 2131351028, %v7421
      %v7431 = vshrl.u32 2102212464, %v7422
      %v7432 = vor.u32 %v7430, %v7431
      %v7433 = vshll.u32 2102212464, %v7421
      %v7434 = vshrl.u32 920167782, %v7422
      %v7435 = vor.u32 %v7433, %v7434
      %v7436 = vshll.u32 920167782, %v7421
      %v7437 = vshrl.u32 1326507024, %v7422
      %v7438 = vor.u32 %v7436, %v7437
      %vm7439 = vcmp.lt.s32.totalorder %v7420, 1
      %vm7440 = vcmp.lt.s32.totalorder %v7420, 2
      %vm7441 = vcmp.lt.s32.totalorder %v7420, 3
      %vm7442 = vcmp.lt.s32.totalorder %v7420, 4
      %v7443 = vsel %vm7439, %v7423, %v7426
      %v7444 = vsel %vm7442, %v7432, 2102212464
      %v7445 = vsel %vm7441, %v7429, %v7444
      %v7446 = vsel %vm7440, %v7443, %v7445
      %v7447 = vsel %vm7439, %v7426, %v7429
      %v7448 = vsel %vm7442, %v7435, 920167782
      %v7449 = vsel %vm7441, %v7432, %v7448
      %v7450 = vsel %vm7440, %v7447, %v7449
      %v7451 = vsel %vm7439, %v7429, %v7432
      %v7452 = vsel %vm7442, %v7438, 1326507024
      %v7453 = vsel %vm7441, %v7435, %v7452
      %v7454 = vsel %vm7440, %v7451, %v7453
      %v7455 = vshll.u32 %v7415, 8
      %v7456 = vmul.u32.u64.compose %v7455, %v7454
      %v7457 = vextract.low.u32 %v7456
      %v7458 = vextract.high.u32 %v7456
      %v7459 = vmul.u32.u64.compose %v7455, %v7450
      %v7460 = vextract.low.u32 %v7459
      %v7461 = vextract.high.u32 %v7459
      %v7462 = vmul.u32 %v7455, %v7446
      %v7463 = vadd.s32 %v7458, %v7460
      %vm7464 = vc.u32 %v7458, %v7460
      %v7465 = vadd.s32 %v7461, 1
      %v7466 = vsel %vm7464, %v7465, %v7461
      %v7467 = vadd.s32 %v7462, %v7466
      %v7468 = vadd.s32 %v7467, 536870912
      %v7469 = vshrl.u32 %v7468, 30
      %v7470 = vshll.u32 %v7469, 30
      %v7471 = vsub.s32 %v7467, %v7470
      %vm7472 = vcmp.lt.s32.totalorder %v7471, 0
      %v7473 = vsub.s32 0, %v7471
      %v7474 = vsel %vm7472, %v7473, %v7471
      %v7475 = vclz %v7474
      %v7476 = vsub.s32 %v7475, 2
      %vm7477 = vcmp.gt.s32.totalorder 0, %v7476
      %v7478 = vsel %vm7477, 0, %v7476
      %v7479 = vsub.s32 32, %v7478
      %v7480 = vshll.u32 %v7471, %v7478
      %v7481 = vshrl.u32 %v7463, %v7479
      %v7482 = vor.u32 %v7480, %v7481
      %v7483 = vsub.s32 4294967266, %v7478
      %v7484 = vadd.s32 %v7483, 127
      %v7485 = vshll.u32 %v7484, 23
      %v7486 = vor.u32 4788187, %v7485
      %v7487 = vand.u32 2147483647, %v7486
      %v7489 = vcvt.s32.f32 %v7482
      %v7490 = vmul.f32 %v7489, %v7487
      %v7491 = vxor.u32 %v7490, 2147483648
      %v7492 = vsel %vm7409, %v7491, %v7490
      %v7493 = vsub.s32 4, %v7469
      %v7494 = vsel %vm7409, %v7493, %v7469
      %v7495 = vsel %vm7408, %v5838, %v7492
      %v7496 = vsel %vm7408, 0, %v7494
      %v7497 = vcosq.f32.pop %v7495
      %v7498 = vsinq.f32.pop %v7495
      %vm7499 = vweird.f32 %v5838
      %v7500 = vadd.s32 %v7496, 3
      %v7501 = vand.u32 %v7500, 3
      %vm7502 = vcmp.lt.s32.totalorder %v7501, 2
      %vm7503 = vcmp.eq.s32.totalorder %v7501, 0
      %v7504 = vxor.u32 %v7498, 2147483648
      %v7505 = vsel %vm7503, %v7497, %v7504
      %vm7506 = vcmp.eq.s32.totalorder %v7501, 2
      %v7507 = vxor.u32 %v7497, 2147483648
      %v7508 = vsel %vm7506, %v7507, %v7498
      %v7509 = vsel %vm7502, %v7505, %v7508
      %v7510 = vsel %vm7499, nan, %v7509
      %v7511 = vmul.f32 %v2583, %v6782
      %v7512 = vmul.f32 %v2584, %v6886
      %v7513 = vmul.f32 %v2585, %v6990
      %v7514 = vmul.f32 %v2586, %v7094
      %v7515 = vmul.f32 %v2587, %v7198
      %v7516 = vmul.f32 %v2588, %v7302
      %v7517 = vmul.f32 %v2589, %v7406
      %v7518 = vmul.f32 %v2590, %v7510
      %7519 = vst.msk [vmem:[%s639] sm:$0xff] %vm1981, %v7511
      %7520 = vst.msk [vmem:[%s639 + $0x8] sm:$0xff] %vm1981, %v7512
      %7521 = vst.msk [vmem:[%s639 + $0x10] sm:$0xff] %vm1981, %v7513
      %7522 = vst.msk [vmem:[%s639 + $0x18] sm:$0xff] %vm1981, %v7514
      %7523 = vst.msk [vmem:[%s639 + $0x20] sm:$0xff] %vm1981, %v7515
      %7524 = vst.msk [vmem:[%s639 + $0x28] sm:$0xff] %vm1981, %v7516
      %7525 = vst.msk [vmem:[%s639 + $0x30] sm:$0xff] %vm1981, %v7517
      %7526 = vst.msk [vmem:[%s639 + $0x38] sm:$0xff] %vm1981, %v7518
      %p7527 = scmp.lt.s32.totalorder %s35, 1
      %s7528 = scalar_select %p7527, %s35, 1
      %s7529 = smul.addr %s7528, 8
      %s7530 = smul.addr %s7529, 8
      %s7531 = scalar_lea.vmem %s18, %s7530
      %p7532 = scmp.lt.s32.totalorder %s35, 1
      %s7533 = scalar_select %p7532, %s35, 1
      %s7534 = smul.addr %s7533, 8
      %s7535 = smul.addr %s7534, 8
      %s7536 = scalar_lea.vmem %s19, %s7535
      // Predicated region
      $region93: #{freq_block_pallas.2} parent=91 // pred_check
        %p7537 = pneg %p441
      $region94: #{freq_block_pallas.2} parent=91 // pred_check_branch
        %7539 = sbr.rel (%p7537) target = $region96
      $region95: #{freq_block_pallas.2} parent=91 // pred_region
        _
      $region96: #{freq_block_pallas.2} parent=91 // pred_fallthru
        _
      // Predicated region
      $region97: #{freq_block_pallas.2} parent=91 // pred_check
        %p7540 = pneg %p467
      $region98: #{freq_block_pallas.2} parent=91 // pred_check_branch
        %7542 = sbr.rel (%p7540) target = $region100
      $region99: #{freq_block_pallas.2} parent=91 // pred_region
        _
      $region100: #{freq_block_pallas.2} parent=91 // pred_fallthru
        _
    $region92: #{freq_block_pallas.2} parent=5 // pred_fallthru
      _
    %p7543 = scmp.le.s32.totalorder 2, %s30
    // Predicated region
    $region101: #{freq_block_pallas.2} parent=5 // pred_check
      %p7544 = pneg %p7543
    $region102: #{freq_block_pallas.2} parent=5 // pred_check_branch
      %7546 = sbr.rel (%p7544) target = $region104
    $region103: #{freq_block_pallas.2} parent=5 // pred_region
      %s7547 = ssub.s32 %s30, 2
      // Predicated region
      $region105: #{freq_block_pallas.2} parent=103 // pred_check
        %p7548 = pneg %p447
      $region106: #{freq_block_pallas.2} parent=103 // pred_check_branch
        %7550 = sbr.rel (%p7548) target = $region108
      $region107: #{freq_block_pallas.2} parent=103 // pred_region
        %p7551 = scmp.lt.s32.totalorder %s36, 1
        %s7552 = scalar_select %p7551, %s36, 1
        %s7553 = smul.addr %s7552, 8
        %s7554 = smul.addr %s7553, 8
        %s7555 = scalar_lea.vmem %s18, %s7554
      $region108: #{freq_block_pallas.2} parent=103 // pred_fallthru
        _
      // Predicated region
      $region109: #{freq_block_pallas.2} parent=103 // pred_check
        %p7556 = pneg %p473
      $region110: #{freq_block_pallas.2} parent=103 // pred_check_branch
        %7558 = sbr.rel (%p7556) target = $region112
      $region111: #{freq_block_pallas.2} parent=103 // pred_region
        %p7559 = scmp.lt.s32.totalorder %s36, 1
        %s7560 = scalar_select %p7559, %s36, 1
        %s7561 = smul.addr %s7560, 8
        %s7562 = smul.addr %s7561, 8
        %s7563 = scalar_lea.vmem %s19, %s7562
      $region112: #{freq_block_pallas.2} parent=103 // pred_fallthru
        _
    $region104: #{freq_block_pallas.2} parent=5 // pred_fallthru
      _
  $region6: #{freq_block_pallas.2} parent=0 // loop_footer
    %s34 = sadd.s32 1, %s30
  $region7: #{freq_block_pallas.2} parent=0 // loop_footer_branch
    %29 = sbr.rel target = $region3
  $region8: #{freq_block_pallas.2} parent=0 // loop_exit
    _

</llo_original>
